<compile_context>
chip_gen: v7x
topology: tpu7x:2x2x1
jax: 0.10.0
libtpu: 0.0.40
codegen_flags: <defaults>
</compile_context>

<pallas_src>
import math
from functools import partial

import numpy as np
import jax
import jax.numpy as jnp
from jax.experimental import pallas as pl
from jax.experimental.pallas import tpu as pltpu


# ----------------------------------------------------------------------------
# Static plan: per-layer lengths, 0/1 selection operators (conv-as-matmul)
# and the Hann-windowed DFT matrix.  Built with numpy at trace time, so they
# are baked into the program as constants (no runtime cost).
# ----------------------------------------------------------------------------
def build_plan(cfg, L):
    enc = cfg["enc_channels"]
    K = cfg["kernel_size"]
    pad = cfg["padding"]
    frame_len = cfg["frame_len"]
    hop = cfg["frame_shift"]
    n_layers = len(enc) - 1
    assert L % (2 ** n_layers) == 0, "input length must be divisible by 2**n_layers"

    # encoder: Conv1d(k=K, stride=2, padding=pad)
    enc_lin, enc_lout, g_enc = [], [], []
    lc = L
    for _ in range(n_layers):
        lout = (lc + 2 * pad - K) // 2 + 1
        g = np.zeros((lc, K * lout), np.float32)
        for k in range(K):
            for l in range(lout):
                m = 2 * l + k - pad
                if 0 <= m < lc:
                    g[m, k * lout + l] = 1.0
        enc_lin.append(lc)
        enc_lout.append(lout)
        g_enc.append(jnp.asarray(g, jnp.bfloat16))
        lc = lout

    # decoder: zero-insertion upsample (data at positions pad + 2m of a
    # length 2*Lin + 2*pad buffer) followed by Conv1d(k=K, stride=1, pad=0).
    dec_lin, dec_lout, g_dec = [], [], []
    for _ in range(n_layers):
        lexp = 2 * lc + 2 * pad
        lout = lexp - K + 1
        g = np.zeros((lc, K * lout), np.float32)
        for k in range(K):
            for l in range(lout):
                t = l + k - pad
                if t >= 0 and t % 2 == 0 and (t // 2) < lc:
                    g[t // 2, k * lout + l] = 1.0
        dec_lin.append(lc)
        dec_lout.append(lout)
        g_dec.append(jnp.asarray(g, jnp.bfloat16))
        lc = lout

    assert lc == L, "U-net output length must match input length"

    # Hann-windowed [cos | sin] DFT matrix, (frame_len, 2F), window folded in.
    F = frame_len // 2 + 1
    T = (L - frame_len) // hop + 1
    n = np.arange(frame_len, dtype=np.float64)
    win = 0.5 * (1.0 - np.cos(2.0 * np.pi * n / frame_len))        # periodic Hann
    f = np.arange(F, dtype=np.float64)
    ang = 2.0 * np.pi * np.outer(n, f) / frame_len                 # (frame_len, F)
    dft = np.concatenate([np.cos(ang) * win[:, None],
                          np.sin(ang) * win[:, None]], axis=1)     # (frame_len, 2F)

    return dict(n_layers=n_layers, K=K,
                enc_lin=enc_lin, enc_lout=enc_lout, g_enc=g_enc,
                dec_lin=dec_lin, dec_lout=dec_lout, g_dec=g_dec,
                F=F, T=T, frame_len=frame_len, hop=hop,
                dft=jnp.asarray(dft, jnp.bfloat16))


# ----------------------------------------------------------------------------
# Parameters (deterministic, synthetic).  BN scale folded into the weights,
# conv bias + BN shift folded into a per-channel shift.  Decoder / last-layer
# weights are split by input-channel halves (dec_out half, skip half).
# ----------------------------------------------------------------------------
def init_params(key, cfg):
    enc = cfg["enc_channels"]
    dec = list(reversed(enc))
    K = cfg["kernel_size"]
    eps = 1e-5
    counter = [0]

    def nk():
        counter[0] += 1
        return jax.random.fold_in(key, counter[0])

    def conv_init(cout, cin, k):
        std = math.sqrt(2.0 / ((cin + cout) * k))                  # xavier_normal_
        w = jax.random.normal(nk(), (cout, cin, k), jnp.float32) * std
        bound = 1.0 / math.sqrt(cin * k)                           # default bias init
        b = jax.random.uniform(nk(), (cout,), jnp.float32, minval=-bound, maxval=bound)
        return w, b

    def bn_fold(c):
        gamma = jnp.ones((c,), jnp.float32)
        beta = jnp.zeros((c,), jnp.float32)
        mean = jnp.zeros((c,), jnp.float32)
        var = jnp.ones((c,), jnp.float32)
        scale = gamma / jnp.sqrt(var + eps)
        shift = beta - mean * scale
        return scale, shift

    def fold(w, b, cout):
        scale, sh = bn_fold(cout)
        wf = w * scale[:, None, None]
        shift = (b * scale + sh).reshape(cout, 1).astype(jnp.float32)
        return wf, shift

    def taps(wf):                                                  # (Co,Ci,K)->(K,Co,Ci)
        return jnp.transpose(wf, (2, 0, 1)).astype(jnp.bfloat16)

    params = {}
    # first layer: Conv1d(1 -> enc[0], k=1) + Tanh   (no BN)
    w, b = conv_init(enc[0], 1, 1)
    params["first_w"] = w.reshape(enc[0], 1).astype(jnp.float32)
    params["first_b"] = b.reshape(enc[0], 1).astype(jnp.float32)

    # encoder: [Dropout] Conv1d(K, stride=2, pad) + BN + ReLU
    params["enc"] = []
    for i in range(len(enc) - 1):
        w, b = conv_init(enc[i + 1], enc[i], K)
        wf, shift = fold(w, b, enc[i + 1])
        params["enc"].append((taps(wf), shift))

    # decoder: [Dropout] Conv1d(K, stride=1) + BN + ReLU; input = [dec_out ; skip]
    params["dec"] = []
    for i in range(len(dec) - 1):
        cin = dec[i] * (1 if i == 0 else 2)
        w, b = conv_init(dec[i + 1], cin, K)
        wf, shift = fold(w, b, dec[i + 1])
        if i == 0:
            params["dec"].append((taps(wf), None, shift))
        else:
            c = dec[i]                                             # equal channel halves
            params["dec"].append((taps(wf[:, :c, :]), taps(wf[:, c:, :]), shift))

    # last layer: Conv1d(dec[-1]*2 -> 1, k=1) + Tanh  (no BN)
    w, b = conv_init(1, dec[-1] * 2, 1)
    c = dec[-1]
    params["last_w1"] = w[:, :c, 0].astype(jnp.bfloat16)           # (1, c)
    params["last_w2"] = w[:, c:, 0].astype(jnp.bfloat16)           # (1, c)
    params["last_b"] = b.reshape(1, 1).astype(jnp.float32)
    return params


# ----------------------------------------------------------------------------
# Full forward pass: one fused pallas_call (grid over batch only).
# ----------------------------------------------------------------------------
def cnns_forward(params, inputs, cfg):
    B, _, L = inputs.shape
    plan = build_plan(cfg, L)
    n_layers, K = plan["n_layers"], plan["K"]
    enc_lout, dec_lout = plan["enc_lout"], plan["dec_lout"]
    F, T = plan["F"], plan["T"]
    frame_len, hop = plan["frame_len"], plan["hop"]
    enc_ch = cfg["enc_channels"]
    dec_ch = list(reversed(enc_ch))

    # ---- operand list + matching BlockSpecs -------------------------------
    operands, in_specs = [], []

    def _const_spec(shape):
        nd = len(shape)

        def idx(b):
            return (0,) * nd

        return pl.BlockSpec(tuple(shape), idx)

    def add(arr, spec=None):
        operands.append(arr)
        in_specs.append(spec if spec is not None else _const_spec(arr.shape))

    add(inputs, pl.BlockSpec((1, 1, L), lambda b: (b, 0, 0)))
    add(params["first_w"])
    add(params["first_b"])
    for i in range(n_layers):
        add(plan["g_enc"][i])
        add(params["enc"][i][0])
        add(params["enc"][i][1])
    for i in range(n_layers):
        w1, w2, sh = params["dec"][i]
        add(plan["g_dec"][i])
        add(w1)
        if i > 0:
            add(w2)
        add(sh)
    add(params["last_w1"])
    add(params["last_w2"])
    add(params["last_b"])
    add(plan["dft"])

    # ---- fused kernel ------------------------------------------------------
    def kernel(*refs):
        it = iter(refs)
        x_ref = next(it)
        fw_ref, fb_ref = next(it), next(it)
        enc_r = [(next(it), next(it), next(it)) for _ in range(n_layers)]
        dec_r = []
        for i in range(n_layers):
            g_ref, w1_ref = next(it), next(it)
            w2_ref = next(it) if i > 0 else None
            s_ref = next(it)
            dec_r.append((g_ref, w1_ref, w2_ref, s_ref))
        lw1_ref, lw2_ref, lb_ref = next(it), next(it), next(it)
        dft_ref = next(it)
        wave_ref, mag_ref = next(it), next(it)
        fr_scr = next(it)

        def sel(x, g_ref):
            # one matmul pulls all K shifted / strided tap columns (zero
            # padding and upsampling zeros are encoded in G): (Ci,Lin)->(Ci,K*Lout)
            return jnp.dot(x.astype(jnp.bfloat16), g_ref[...],
                           preferred_element_type=jnp.float32)

        def taps(z, w_ref, lout):
            y = None
            for k in range(K):
                zk = z[:, k * lout:(k + 1) * lout].astype(jnp.bfloat16)
                yk = jnp.dot(w_ref[k], zk, preferred_element_type=jnp.float32)
                y = yk if y is None else y + yk
            return y

        def conv1(x, g_ref, w_ref, s_ref, lout):
            return jnp.maximum(taps(sel(x, g_ref), w_ref, lout) + s_ref[...], 0.0)

        def conv2(x1, x2, g_ref, w1_ref, w2_ref, s_ref, lout):
            y = (taps(sel(x1, g_ref), w1_ref, lout)
                 + taps(sel(x2, g_ref), w2_ref, lout) + s_ref[...])
            return jnp.maximum(y, 0.0)

        # first layer: 1x1 conv with Cin=1 -> outer product on the VPU + tanh
        xb = x_ref[0]                                              # (1, L)
        h = jnp.tanh(fw_ref[...] * xb + fb_ref[...])               # (C0, L)

        # encoder (Dropout = identity at inference)
        skips = [h]
        for i in range(n_layers):
            skips.append(h)
            g_ref, w_ref, s_ref = enc_r[i]
            h = conv1(h, g_ref, w_ref, s_ref, enc_lout[i])

        # decoder: skip connection via split weights (no concat, no HBM)
        h1, h2 = h, None
        for i in range(n_layers):
            g_ref, w1_ref, w2_ref, s_ref = dec_r[i]
            if i == 0:
                y = conv1(h1, g_ref, w1_ref, s_ref, dec_lout[i])
            else:
                y = conv2(h1, h2, g_ref, w1_ref, w2_ref, s_ref, dec_lout[i])
            h1, h2 = y, skips[-i - 1]

        # last layer: 1x1 conv over [dec_out ; skip] + tanh
        wave = jnp.tanh(
            jnp.dot(lw1_ref[...], h1.astype(jnp.bfloat16),
                    preferred_element_type=jnp.float32)
            + jnp.dot(lw2_ref[...], h2.astype(jnp.bfloat16),
                      preferred_element_type=jnp.float32)
            + lb_ref[...])                                         # (1, L)
        wave_ref[0] = wave.astype(wave_ref.dtype)

        # fused STFT magnitude (center=False framing), frames from VMEM wave
        for t in range(T):
            fr_scr[pl.ds(t, 1), :] = wave[:, t * hop: t * hop + frame_len]
        rei = jnp.dot(fr_scr[...].astype(jnp.bfloat16), dft_ref[...],
                      preferred_element_type=jnp.float32)          # (T, 2F)
        re, im = rei[:, :F], rei[:, F:]
        mag_ref[0] = jnp.sqrt(re * re + im * im + 1e-12)

    # ---- advisory cost estimate -------------------------------------------
    flops = 0
    for i in range(n_layers):
        flops += (2 * enc_ch[i] * plan["enc_lin"][i] * K * enc_lout[i]
                  + 2 * K * enc_ch[i + 1] * enc_ch[i] * enc_lout[i])
    for i in range(n_layers):
        nin = 1 if i == 0 else 2
        flops += nin * (2 * dec_ch[i] * plan["dec_lin"][i] * K * dec_lout[i]
                        + 2 * K * dec_ch[i + 1] * dec_ch[i] * dec_lout[i])
    flops += 2 * enc_ch[0] * L + 4 * dec_ch[-1] * L + 4 * T * frame_len * F
    flops *= B
    bytes_accessed = (sum(int(np.prod(a.shape)) * a.dtype.itemsize for a in operands)
                      + B * L * 4 + B * T * F * 4)
    cost = pl.CostEstimate(flops=int(flops),
                           transcendentals=int(B * (enc_ch[0] * L + L + T * F)),
                           bytes_accessed=int(bytes_accessed))

    out_shape = (jax.ShapeDtypeStruct((B, 1, L), jnp.float32),
                 jax.ShapeDtypeStruct((B, T, F), jnp.float32))
    out_specs = (pl.BlockSpec((1, 1, L), lambda b: (b, 0, 0)),
                 pl.BlockSpec((1, T, F), lambda b: (b, 0, 0)))

    wave_out, mag_btf = pl.pallas_call(
        kernel,
        out_shape=out_shape,
        grid=(B,),
        in_specs=in_specs,
        out_specs=out_specs,
        scratch_shapes=[pltpu.VMEM((T, frame_len), jnp.float32)],
        compiler_params=pltpu.CompilerParams(dimension_semantics=("parallel",)),
        cost_estimate=cost,
    )(*operands)

    # (B, T, F) -> (B, F, T): tiny (few KB) layout fix-up outside the kernel.
    mag_out = jnp.transpose(mag_btf, (0, 2, 1))
    return wave_out, mag_out


if __name__ == "__main__":
    # 5 stride-2 encoder layers -> input length must be divisible by 2**5.
    enc_channels = [8, 8, 8, 16, 16, 16]
    cfg = dict(enc_channels=enc_channels, kernel_size=3, padding=1,
               frame_len=64, frame_shift=16)

    key = jax.random.PRNGKey(0)
    pkey, xkey = jax.random.split(key)
    params = init_params(pkey, cfg)

    B, L = 2, 256
    x = jax.random.normal(xkey, (B, 1, L), jnp.float32)

    fwd = jax.jit(partial(cnns_forward, cfg=cfg))
    wave_out, mag_out = fwd(params, x)
    jax.block_until_ready((wave_out, mag_out))

    T = (L - cfg["frame_len"]) // cfg["frame_shift"] + 1
    F = cfg["frame_len"] // 2 + 1
    assert wave_out.shape == (B, 1, L), wave_out.shape
    assert mag_out.shape == (B, F, T), mag_out.shape
    assert bool(jnp.all(jnp.isfinite(wave_out)))
    assert bool(jnp.all(jnp.isfinite(mag_out)))
    print("KERNEL_OK")
</pallas_src>

<mosaic_0001>
module attributes {stable_mosaic.version = 11 : i64} {
  func.func @kernel(%arg0: i32, %arg1: memref<1x1x256xf32, #tpu.memory_space<vmem>>, %arg2: memref<8x1xf32, #tpu.memory_space<vmem>>, %arg3: memref<8x1xf32, #tpu.memory_space<vmem>>, %arg4: memref<256x384xbf16, #tpu.memory_space<vmem>>, %arg5: memref<3x8x8xbf16, #tpu.memory_space<vmem>>, %arg6: memref<8x1xf32, #tpu.memory_space<vmem>>, %arg7: memref<128x192xbf16, #tpu.memory_space<vmem>>, %arg8: memref<3x8x8xbf16, #tpu.memory_space<vmem>>, %arg9: memref<8x1xf32, #tpu.memory_space<vmem>>, %arg10: memref<64x96xbf16, #tpu.memory_space<vmem>>, %arg11: memref<3x16x8xbf16, #tpu.memory_space<vmem>>, %arg12: memref<16x1xf32, #tpu.memory_space<vmem>>, %arg13: memref<32x48xbf16, #tpu.memory_space<vmem>>, %arg14: memref<3x16x16xbf16, #tpu.memory_space<vmem>>, %arg15: memref<16x1xf32, #tpu.memory_space<vmem>>, %arg16: memref<16x24xbf16, #tpu.memory_space<vmem>>, %arg17: memref<3x16x16xbf16, #tpu.memory_space<vmem>>, %arg18: memref<16x1xf32, #tpu.memory_space<vmem>>, %arg19: memref<8x48xbf16, #tpu.memory_space<vmem>>, %arg20: memref<3x16x16xbf16, #tpu.memory_space<vmem>>, %arg21: memref<16x1xf32, #tpu.memory_space<vmem>>, %arg22: memref<16x96xbf16, #tpu.memory_space<vmem>>, %arg23: memref<3x16x16xbf16, #tpu.memory_space<vmem>>, %arg24: memref<3x16x16xbf16, #tpu.memory_space<vmem>>, %arg25: memref<16x1xf32, #tpu.memory_space<vmem>>, %arg26: memref<32x192xbf16, #tpu.memory_space<vmem>>, %arg27: memref<3x8x16xbf16, #tpu.memory_space<vmem>>, %arg28: memref<3x8x16xbf16, #tpu.memory_space<vmem>>, %arg29: memref<8x1xf32, #tpu.memory_space<vmem>>, %arg30: memref<64x384xbf16, #tpu.memory_space<vmem>>, %arg31: memref<3x8x8xbf16, #tpu.memory_space<vmem>>, %arg32: memref<3x8x8xbf16, #tpu.memory_space<vmem>>, %arg33: memref<8x1xf32, #tpu.memory_space<vmem>>, %arg34: memref<128x768xbf16, #tpu.memory_space<vmem>>, %arg35: memref<3x8x8xbf16, #tpu.memory_space<vmem>>, %arg36: memref<3x8x8xbf16, #tpu.memory_space<vmem>>, %arg37: memref<8x1xf32, #tpu.memory_space<vmem>>, %arg38: memref<1x8xbf16, #tpu.memory_space<vmem>>, %arg39: memref<1x8xbf16, #tpu.memory_space<vmem>>, %arg40: memref<1x1xf32, #tpu.memory_space<vmem>>, %arg41: memref<64x66xbf16, #tpu.memory_space<vmem>>, %arg42: memref<1x1x256xf32, #tpu.memory_space<vmem>>, %arg43: memref<1x13x33xf32, #tpu.memory_space<vmem>>, %arg44: memref<13x64xf32, #tpu.memory_space<vmem>>) attributes {dimension_semantics = [#tpu.dimension_semantics<parallel>], iteration_bounds = array<i64: 2>, scalar_prefetch = 0 : i64, scratch_operands = 1 : i64, tpu.core_type = #tpu.core_type<tc>, window_params = [{transform_indices = @transform_0, window_bounds = array<i64: 1, 1, 256>}, {pipeline_mode = #tpu.pipeline_mode<synchronous>, transform_indices = @transform_1, window_bounds = array<i64: 8, 1>}, {pipeline_mode = #tpu.pipeline_mode<synchronous>, transform_indices = @transform_2, window_bounds = array<i64: 8, 1>}, {pipeline_mode = #tpu.pipeline_mode<synchronous>, transform_indices = @transform_3, window_bounds = array<i64: 256, 384>}, {pipeline_mode = #tpu.pipeline_mode<synchronous>, transform_indices = @transform_4, window_bounds = array<i64: 3, 8, 8>}, {pipeline_mode = #tpu.pipeline_mode<synchronous>, transform_indices = @transform_5, window_bounds = array<i64: 8, 1>}, {pipeline_mode = #tpu.pipeline_mode<synchronous>, transform_indices = @transform_6, window_bounds = array<i64: 128, 192>}, {pipeline_mode = #tpu.pipeline_mode<synchronous>, transform_indices = @transform_7, window_bounds = array<i64: 3, 8, 8>}, {pipeline_mode = #tpu.pipeline_mode<synchronous>, transform_indices = @transform_8, window_bounds = array<i64: 8, 1>}, {pipeline_mode = #tpu.pipeline_mode<synchronous>, transform_indices = @transform_9, window_bounds = array<i64: 64, 96>}, {pipeline_mode = #tpu.pipeline_mode<synchronous>, transform_indices = @transform_10, window_bounds = array<i64: 3, 16, 8>}, {pipeline_mode = #tpu.pipeline_mode<synchronous>, transform_indices = @transform_11, window_bounds = array<i64: 16, 1>}, {pipeline_mode = #tpu.pipeline_mode<synchronous>, transform_indices = @transform_12, window_bounds = array<i64: 32, 48>}, {pipeline_mode = #tpu.pipeline_mode<synchronous>, transform_indices = @transform_13, window_bounds = array<i64: 3, 16, 16>}, {pipeline_mode = #tpu.pipeline_mode<synchronous>, transform_indices = @transform_14, window_bounds = array<i64: 16, 1>}, {pipeline_mode = #tpu.pipeline_mode<synchronous>, transform_indices = @transform_15, window_bounds = array<i64: 16, 24>}, {pipeline_mode = #tpu.pipeline_mode<synchronous>, transform_indices = @transform_16, window_bounds = array<i64: 3, 16, 16>}, {pipeline_mode = #tpu.pipeline_mode<synchronous>, transform_indices = @transform_17, window_bounds = array<i64: 16, 1>}, {pipeline_mode = #tpu.pipeline_mode<synchronous>, transform_indices = @transform_18, window_bounds = array<i64: 8, 48>}, {pipeline_mode = #tpu.pipeline_mode<synchronous>, transform_indices = @transform_19, window_bounds = array<i64: 3, 16, 16>}, {pipeline_mode = #tpu.pipeline_mode<synchronous>, transform_indices = @transform_20, window_bounds = array<i64: 16, 1>}, {pipeline_mode = #tpu.pipeline_mode<synchronous>, transform_indices = @transform_21, window_bounds = array<i64: 16, 96>}, {pipeline_mode = #tpu.pipeline_mode<synchronous>, transform_indices = @transform_22, window_bounds = array<i64: 3, 16, 16>}, {pipeline_mode = #tpu.pipeline_mode<synchronous>, transform_indices = @transform_23, window_bounds = array<i64: 3, 16, 16>}, {pipeline_mode = #tpu.pipeline_mode<synchronous>, transform_indices = @transform_24, window_bounds = array<i64: 16, 1>}, {pipeline_mode = #tpu.pipeline_mode<synchronous>, transform_indices = @transform_25, window_bounds = array<i64: 32, 192>}, {pipeline_mode = #tpu.pipeline_mode<synchronous>, transform_indices = @transform_26, window_bounds = array<i64: 3, 8, 16>}, {pipeline_mode = #tpu.pipeline_mode<synchronous>, transform_indices = @transform_27, window_bounds = array<i64: 3, 8, 16>}, {pipeline_mode = #tpu.pipeline_mode<synchronous>, transform_indices = @transform_28, window_bounds = array<i64: 8, 1>}, {pipeline_mode = #tpu.pipeline_mode<synchronous>, transform_indices = @transform_29, window_bounds = array<i64: 64, 384>}, {pipeline_mode = #tpu.pipeline_mode<synchronous>, transform_indices = @transform_30, window_bounds = array<i64: 3, 8, 8>}, {pipeline_mode = #tpu.pipeline_mode<synchronous>, transform_indices = @transform_31, window_bounds = array<i64: 3, 8, 8>}, {pipeline_mode = #tpu.pipeline_mode<synchronous>, transform_indices = @transform_32, window_bounds = array<i64: 8, 1>}, {pipeline_mode = #tpu.pipeline_mode<synchronous>, transform_indices = @transform_33, window_bounds = array<i64: 128, 768>}, {pipeline_mode = #tpu.pipeline_mode<synchronous>, transform_indices = @transform_34, window_bounds = array<i64: 3, 8, 8>}, {pipeline_mode = #tpu.pipeline_mode<synchronous>, transform_indices = @transform_35, window_bounds = array<i64: 3, 8, 8>}, {pipeline_mode = #tpu.pipeline_mode<synchronous>, transform_indices = @transform_36, window_bounds = array<i64: 8, 1>}, {pipeline_mode = #tpu.pipeline_mode<synchronous>, transform_indices = @transform_37, window_bounds = array<i64: 1, 8>}, {pipeline_mode = #tpu.pipeline_mode<synchronous>, transform_indices = @transform_38, window_bounds = array<i64: 1, 8>}, {pipeline_mode = #tpu.pipeline_mode<synchronous>, transform_indices = @transform_39, window_bounds = array<i64: 1, 1>}, {pipeline_mode = #tpu.pipeline_mode<synchronous>, transform_indices = @transform_40, window_bounds = array<i64: 64, 66>}, {transform_indices = @transform_41, window_bounds = array<i64: 1, 1, 256>}, {transform_indices = @transform_42, window_bounds = array<i64: 1, 13, 33>}]} {
    %c0 = arith.constant 0 : index
    %c0_0 = arith.constant 0 : index
    %c0_1 = arith.constant 0 : index
    %0 = vector.load %arg1[%c0, %c0_0, %c0_1] : memref<1x1x256xf32, #tpu.memory_space<vmem>>, vector<1x1x256xf32>
    %1 = vector.shape_cast %0 : vector<1x1x256xf32> to vector<1x256xf32>
    %c0_2 = arith.constant 0 : index
    %c0_3 = arith.constant 0 : index
    %2 = vector.load %arg2[%c0_2, %c0_3] : memref<8x1xf32, #tpu.memory_space<vmem>>, vector<8x1xf32>
    %3 = vector.broadcast %2 : vector<8x1xf32> to vector<8x256xf32>
    %4 = vector.broadcast %1 : vector<1x256xf32> to vector<8x256xf32>
    %5 = arith.mulf %3, %4 : vector<8x256xf32>
    %c0_4 = arith.constant 0 : index
    %c0_5 = arith.constant 0 : index
    %6 = vector.load %arg3[%c0_4, %c0_5] : memref<8x1xf32, #tpu.memory_space<vmem>>, vector<8x1xf32>
    %7 = vector.broadcast %6 : vector<8x1xf32> to vector<8x256xf32>
    %8 = arith.addf %5, %7 : vector<8x256xf32>
    %9 = math.tanh %8 : vector<8x256xf32>
    %10 = arith.truncf %9 : vector<8x256xf32> to vector<8x256xbf16>
    %c0_6 = arith.constant 0 : index
    %c0_7 = arith.constant 0 : index
    %11 = vector.load %arg4[%c0_6, %c0_7] : memref<256x384xbf16, #tpu.memory_space<vmem>>, vector<256x384xbf16>
    %cst = arith.constant dense<0.000000e+00> : vector<8x384xf32>
    %12 = tpu.matmul %10, %11, %cst {dimension_numbers = #tpu.dot_dimension_numbers<[1], [0], [0], [1], [0, 0, 1, 1], [], []>} : vector<8x256xbf16>, vector<256x384xbf16>, vector<8x384xf32> -> vector<8x384xf32>
    %13 = vector.extract_strided_slice %12 {offsets = [0, 0], sizes = [8, 128], strides = [1, 1]} : vector<8x384xf32> to vector<8x128xf32>
    %14 = arith.truncf %13 : vector<8x128xf32> to vector<8x128xbf16>
    %c0_8 = arith.constant 0 : index
    %c0_9 = arith.constant 0 : index
    %c0_10 = arith.constant 0 : index
    %15 = vector.load %arg5[%c0_8, %c0_9, %c0_10] : memref<3x8x8xbf16, #tpu.memory_space<vmem>>, vector<1x8x8xbf16>
    %16 = vector.shape_cast %15 : vector<1x8x8xbf16> to vector<8x8xbf16>
    %cst_11 = arith.constant dense<0.000000e+00> : vector<8x128xf32>
    %17 = tpu.matmul %16, %14, %cst_11 {dimension_numbers = #tpu.dot_dimension_numbers<[1], [0], [0], [1], [0, 0, 1, 1], [], []>} : vector<8x8xbf16>, vector<8x128xbf16>, vector<8x128xf32> -> vector<8x128xf32>
    %18 = vector.extract_strided_slice %12 {offsets = [0, 128], sizes = [8, 128], strides = [1, 1]} : vector<8x384xf32> to vector<8x128xf32>
    %19 = arith.truncf %18 : vector<8x128xf32> to vector<8x128xbf16>
    %c1 = arith.constant 1 : index
    %c0_12 = arith.constant 0 : index
    %c0_13 = arith.constant 0 : index
    %20 = vector.load %arg5[%c1, %c0_12, %c0_13] : memref<3x8x8xbf16, #tpu.memory_space<vmem>>, vector<1x8x8xbf16>
    %21 = vector.shape_cast %20 : vector<1x8x8xbf16> to vector<8x8xbf16>
    %cst_14 = arith.constant dense<0.000000e+00> : vector<8x128xf32>
    %22 = tpu.matmul %21, %19, %cst_14 {dimension_numbers = #tpu.dot_dimension_numbers<[1], [0], [0], [1], [0, 0, 1, 1], [], []>} : vector<8x8xbf16>, vector<8x128xbf16>, vector<8x128xf32> -> vector<8x128xf32>
    %23 = arith.addf %17, %22 : vector<8x128xf32>
    %24 = vector.extract_strided_slice %12 {offsets = [0, 256], sizes = [8, 128], strides = [1, 1]} : vector<8x384xf32> to vector<8x128xf32>
    %25 = arith.truncf %24 : vector<8x128xf32> to vector<8x128xbf16>
    %c2 = arith.constant 2 : index
    %c0_15 = arith.constant 0 : index
    %c0_16 = arith.constant 0 : index
    %26 = vector.load %arg5[%c2, %c0_15, %c0_16] : memref<3x8x8xbf16, #tpu.memory_space<vmem>>, vector<1x8x8xbf16>
    %27 = vector.shape_cast %26 : vector<1x8x8xbf16> to vector<8x8xbf16>
    %cst_17 = arith.constant dense<0.000000e+00> : vector<8x128xf32>
    %28 = tpu.matmul %27, %25, %cst_17 {dimension_numbers = #tpu.dot_dimension_numbers<[1], [0], [0], [1], [0, 0, 1, 1], [], []>} : vector<8x8xbf16>, vector<8x128xbf16>, vector<8x128xf32> -> vector<8x128xf32>
    %29 = arith.addf %23, %28 : vector<8x128xf32>
    %c0_18 = arith.constant 0 : index
    %c0_19 = arith.constant 0 : index
    %30 = vector.load %arg6[%c0_18, %c0_19] : memref<8x1xf32, #tpu.memory_space<vmem>>, vector<8x1xf32>
    %31 = vector.broadcast %30 : vector<8x1xf32> to vector<8x128xf32>
    %32 = arith.addf %29, %31 : vector<8x128xf32>
    %cst_20 = arith.constant 0.000000e+00 : f32
    %33 = vector.broadcast %cst_20 : f32 to vector<8x128xf32>
    %34 = arith.maximumf %32, %33 : vector<8x128xf32>
    %35 = arith.truncf %34 : vector<8x128xf32> to vector<8x128xbf16>
    %c0_21 = arith.constant 0 : index
    %c0_22 = arith.constant 0 : index
    %36 = vector.load %arg7[%c0_21, %c0_22] : memref<128x192xbf16, #tpu.memory_space<vmem>>, vector<128x192xbf16>
    %cst_23 = arith.constant dense<0.000000e+00> : vector<8x192xf32>
    %37 = tpu.matmul %35, %36, %cst_23 {dimension_numbers = #tpu.dot_dimension_numbers<[1], [0], [0], [1], [0, 0, 1, 1], [], []>} : vector<8x128xbf16>, vector<128x192xbf16>, vector<8x192xf32> -> vector<8x192xf32>
    %38 = vector.extract_strided_slice %37 {offsets = [0, 0], sizes = [8, 64], strides = [1, 1]} : vector<8x192xf32> to vector<8x64xf32>
    %39 = arith.truncf %38 : vector<8x64xf32> to vector<8x64xbf16>
    %c0_24 = arith.constant 0 : index
    %c0_25 = arith.constant 0 : index
    %c0_26 = arith.constant 0 : index
    %40 = vector.load %arg8[%c0_24, %c0_25, %c0_26] : memref<3x8x8xbf16, #tpu.memory_space<vmem>>, vector<1x8x8xbf16>
    %41 = vector.shape_cast %40 : vector<1x8x8xbf16> to vector<8x8xbf16>
    %cst_27 = arith.constant dense<0.000000e+00> : vector<8x64xf32>
    %42 = tpu.matmul %41, %39, %cst_27 {dimension_numbers = #tpu.dot_dimension_numbers<[1], [0], [0], [1], [0, 0, 1, 1], [], []>} : vector<8x8xbf16>, vector<8x64xbf16>, vector<8x64xf32> -> vector<8x64xf32>
    %43 = vector.extract_strided_slice %37 {offsets = [0, 64], sizes = [8, 64], strides = [1, 1]} : vector<8x192xf32> to vector<8x64xf32>
    %44 = arith.truncf %43 : vector<8x64xf32> to vector<8x64xbf16>
    %c1_28 = arith.constant 1 : index
    %c0_29 = arith.constant 0 : index
    %c0_30 = arith.constant 0 : index
    %45 = vector.load %arg8[%c1_28, %c0_29, %c0_30] : memref<3x8x8xbf16, #tpu.memory_space<vmem>>, vector<1x8x8xbf16>
    %46 = vector.shape_cast %45 : vector<1x8x8xbf16> to vector<8x8xbf16>
    %cst_31 = arith.constant dense<0.000000e+00> : vector<8x64xf32>
    %47 = tpu.matmul %46, %44, %cst_31 {dimension_numbers = #tpu.dot_dimension_numbers<[1], [0], [0], [1], [0, 0, 1, 1], [], []>} : vector<8x8xbf16>, vector<8x64xbf16>, vector<8x64xf32> -> vector<8x64xf32>
    %48 = arith.addf %42, %47 : vector<8x64xf32>
    %49 = vector.extract_strided_slice %37 {offsets = [0, 128], sizes = [8, 64], strides = [1, 1]} : vector<8x192xf32> to vector<8x64xf32>
    %50 = arith.truncf %49 : vector<8x64xf32> to vector<8x64xbf16>
    %c2_32 = arith.constant 2 : index
    %c0_33 = arith.constant 0 : index
    %c0_34 = arith.constant 0 : index
    %51 = vector.load %arg8[%c2_32, %c0_33, %c0_34] : memref<3x8x8xbf16, #tpu.memory_space<vmem>>, vector<1x8x8xbf16>
    %52 = vector.shape_cast %51 : vector<1x8x8xbf16> to vector<8x8xbf16>
    %cst_35 = arith.constant dense<0.000000e+00> : vector<8x64xf32>
    %53 = tpu.matmul %52, %50, %cst_35 {dimension_numbers = #tpu.dot_dimension_numbers<[1], [0], [0], [1], [0, 0, 1, 1], [], []>} : vector<8x8xbf16>, vector<8x64xbf16>, vector<8x64xf32> -> vector<8x64xf32>
    %54 = arith.addf %48, %53 : vector<8x64xf32>
    %c0_36 = arith.constant 0 : index
    %c0_37 = arith.constant 0 : index
    %55 = vector.load %arg9[%c0_36, %c0_37] : memref<8x1xf32, #tpu.memory_space<vmem>>, vector<8x1xf32>
    %56 = vector.broadcast %55 : vector<8x1xf32> to vector<8x64xf32>
    %57 = arith.addf %54, %56 : vector<8x64xf32>
    %cst_38 = arith.constant 0.000000e+00 : f32
    %58 = vector.broadcast %cst_38 : f32 to vector<8x64xf32>
    %59 = arith.maximumf %57, %58 : vector<8x64xf32>
    %60 = arith.truncf %59 : vector<8x64xf32> to vector<8x64xbf16>
    %c0_39 = arith.constant 0 : index
    %c0_40 = arith.constant 0 : index
    %61 = vector.load %arg10[%c0_39, %c0_40] : memref<64x96xbf16, #tpu.memory_space<vmem>>, vector<64x96xbf16>
    %cst_41 = arith.constant dense<0.000000e+00> : vector<8x96xf32>
    %62 = tpu.matmul %60, %61, %cst_41 {dimension_numbers = #tpu.dot_dimension_numbers<[1], [0], [0], [1], [0, 0, 1, 1], [], []>} : vector<8x64xbf16>, vector<64x96xbf16>, vector<8x96xf32> -> vector<8x96xf32>
    %63 = vector.extract_strided_slice %62 {offsets = [0, 0], sizes = [8, 32], strides = [1, 1]} : vector<8x96xf32> to vector<8x32xf32>
    %64 = arith.truncf %63 : vector<8x32xf32> to vector<8x32xbf16>
    %c0_42 = arith.constant 0 : index
    %c0_43 = arith.constant 0 : index
    %c0_44 = arith.constant 0 : index
    %65 = vector.load %arg11[%c0_42, %c0_43, %c0_44] : memref<3x16x8xbf16, #tpu.memory_space<vmem>>, vector<1x16x8xbf16>
    %66 = vector.shape_cast %65 : vector<1x16x8xbf16> to vector<16x8xbf16>
    %cst_45 = arith.constant dense<0.000000e+00> : vector<16x32xf32>
    %67 = tpu.matmul %66, %64, %cst_45 {dimension_numbers = #tpu.dot_dimension_numbers<[1], [0], [0], [1], [0, 0, 1, 1], [], []>} : vector<16x8xbf16>, vector<8x32xbf16>, vector<16x32xf32> -> vector<16x32xf32>
    %68 = vector.extract_strided_slice %62 {offsets = [0, 32], sizes = [8, 32], strides = [1, 1]} : vector<8x96xf32> to vector<8x32xf32>
    %69 = arith.truncf %68 : vector<8x32xf32> to vector<8x32xbf16>
    %c1_46 = arith.constant 1 : index
    %c0_47 = arith.constant 0 : index
    %c0_48 = arith.constant 0 : index
    %70 = vector.load %arg11[%c1_46, %c0_47, %c0_48] : memref<3x16x8xbf16, #tpu.memory_space<vmem>>, vector<1x16x8xbf16>
    %71 = vector.shape_cast %70 : vector<1x16x8xbf16> to vector<16x8xbf16>
    %cst_49 = arith.constant dense<0.000000e+00> : vector<16x32xf32>
    %72 = tpu.matmul %71, %69, %cst_49 {dimension_numbers = #tpu.dot_dimension_numbers<[1], [0], [0], [1], [0, 0, 1, 1], [], []>} : vector<16x8xbf16>, vector<8x32xbf16>, vector<16x32xf32> -> vector<16x32xf32>
    %73 = arith.addf %67, %72 : vector<16x32xf32>
    %74 = vector.extract_strided_slice %62 {offsets = [0, 64], sizes = [8, 32], strides = [1, 1]} : vector<8x96xf32> to vector<8x32xf32>
    %75 = arith.truncf %74 : vector<8x32xf32> to vector<8x32xbf16>
    %c2_50 = arith.constant 2 : index
    %c0_51 = arith.constant 0 : index
    %c0_52 = arith.constant 0 : index
    %76 = vector.load %arg11[%c2_50, %c0_51, %c0_52] : memref<3x16x8xbf16, #tpu.memory_space<vmem>>, vector<1x16x8xbf16>
    %77 = vector.shape_cast %76 : vector<1x16x8xbf16> to vector<16x8xbf16>
    %cst_53 = arith.constant dense<0.000000e+00> : vector<16x32xf32>
    %78 = tpu.matmul %77, %75, %cst_53 {dimension_numbers = #tpu.dot_dimension_numbers<[1], [0], [0], [1], [0, 0, 1, 1], [], []>} : vector<16x8xbf16>, vector<8x32xbf16>, vector<16x32xf32> -> vector<16x32xf32>
    %79 = arith.addf %73, %78 : vector<16x32xf32>
    %c0_54 = arith.constant 0 : index
    %c0_55 = arith.constant 0 : index
    %80 = vector.load %arg12[%c0_54, %c0_55] : memref<16x1xf32, #tpu.memory_space<vmem>>, vector<16x1xf32>
    %81 = vector.broadcast %80 : vector<16x1xf32> to vector<16x32xf32>
    %82 = arith.addf %79, %81 : vector<16x32xf32>
    %cst_56 = arith.constant 0.000000e+00 : f32
    %83 = vector.broadcast %cst_56 : f32 to vector<16x32xf32>
    %84 = arith.maximumf %82, %83 : vector<16x32xf32>
    %85 = arith.truncf %84 : vector<16x32xf32> to vector<16x32xbf16>
    %c0_57 = arith.constant 0 : index
    %c0_58 = arith.constant 0 : index
    %86 = vector.load %arg13[%c0_57, %c0_58] : memref<32x48xbf16, #tpu.memory_space<vmem>>, vector<32x48xbf16>
    %cst_59 = arith.constant dense<0.000000e+00> : vector<16x48xf32>
    %87 = tpu.matmul %85, %86, %cst_59 {dimension_numbers = #tpu.dot_dimension_numbers<[1], [0], [0], [1], [0, 0, 1, 1], [], []>} : vector<16x32xbf16>, vector<32x48xbf16>, vector<16x48xf32> -> vector<16x48xf32>
    %88 = vector.extract_strided_slice %87 {offsets = [0, 0], sizes = [16, 16], strides = [1, 1]} : vector<16x48xf32> to vector<16x16xf32>
    %89 = arith.truncf %88 : vector<16x16xf32> to vector<16x16xbf16>
    %c0_60 = arith.constant 0 : index
    %c0_61 = arith.constant 0 : index
    %c0_62 = arith.constant 0 : index
    %90 = vector.load %arg14[%c0_60, %c0_61, %c0_62] : memref<3x16x16xbf16, #tpu.memory_space<vmem>>, vector<1x16x16xbf16>
    %91 = vector.shape_cast %90 : vector<1x16x16xbf16> to vector<16x16xbf16>
    %cst_63 = arith.constant dense<0.000000e+00> : vector<16x16xf32>
    %92 = tpu.matmul %91, %89, %cst_63 {dimension_numbers = #tpu.dot_dimension_numbers<[1], [0], [0], [1], [0, 0, 1, 1], [], []>} : vector<16x16xbf16>, vector<16x16xbf16>, vector<16x16xf32> -> vector<16x16xf32>
    %93 = vector.extract_strided_slice %87 {offsets = [0, 16], sizes = [16, 16], strides = [1, 1]} : vector<16x48xf32> to vector<16x16xf32>
    %94 = arith.truncf %93 : vector<16x16xf32> to vector<16x16xbf16>
    %c1_64 = arith.constant 1 : index
    %c0_65 = arith.constant 0 : index
    %c0_66 = arith.constant 0 : index
    %95 = vector.load %arg14[%c1_64, %c0_65, %c0_66] : memref<3x16x16xbf16, #tpu.memory_space<vmem>>, vector<1x16x16xbf16>
    %96 = vector.shape_cast %95 : vector<1x16x16xbf16> to vector<16x16xbf16>
    %cst_67 = arith.constant dense<0.000000e+00> : vector<16x16xf32>
    %97 = tpu.matmul %96, %94, %cst_67 {dimension_numbers = #tpu.dot_dimension_numbers<[1], [0], [0], [1], [0, 0, 1, 1], [], []>} : vector<16x16xbf16>, vector<16x16xbf16>, vector<16x16xf32> -> vector<16x16xf32>
    %98 = arith.addf %92, %97 : vector<16x16xf32>
    %99 = vector.extract_strided_slice %87 {offsets = [0, 32], sizes = [16, 16], strides = [1, 1]} : vector<16x48xf32> to vector<16x16xf32>
    %100 = arith.truncf %99 : vector<16x16xf32> to vector<16x16xbf16>
    %c2_68 = arith.constant 2 : index
    %c0_69 = arith.constant 0 : index
    %c0_70 = arith.constant 0 : index
    %101 = vector.load %arg14[%c2_68, %c0_69, %c0_70] : memref<3x16x16xbf16, #tpu.memory_space<vmem>>, vector<1x16x16xbf16>
    %102 = vector.shape_cast %101 : vector<1x16x16xbf16> to vector<16x16xbf16>
    %cst_71 = arith.constant dense<0.000000e+00> : vector<16x16xf32>
    %103 = tpu.matmul %102, %100, %cst_71 {dimension_numbers = #tpu.dot_dimension_numbers<[1], [0], [0], [1], [0, 0, 1, 1], [], []>} : vector<16x16xbf16>, vector<16x16xbf16>, vector<16x16xf32> -> vector<16x16xf32>
    %104 = arith.addf %98, %103 : vector<16x16xf32>
    %c0_72 = arith.constant 0 : index
    %c0_73 = arith.constant 0 : index
    %105 = vector.load %arg15[%c0_72, %c0_73] : memref<16x1xf32, #tpu.memory_space<vmem>>, vector<16x1xf32>
    %106 = vector.broadcast %105 : vector<16x1xf32> to vector<16x16xf32>
    %107 = arith.addf %104, %106 : vector<16x16xf32>
    %cst_74 = arith.constant 0.000000e+00 : f32
    %108 = vector.broadcast %cst_74 : f32 to vector<16x16xf32>
    %109 = arith.maximumf %107, %108 : vector<16x16xf32>
    %110 = arith.truncf %109 : vector<16x16xf32> to vector<16x16xbf16>
    %c0_75 = arith.constant 0 : index
    %c0_76 = arith.constant 0 : index
    %111 = vector.load %arg16[%c0_75, %c0_76] : memref<16x24xbf16, #tpu.memory_space<vmem>>, vector<16x24xbf16>
    %cst_77 = arith.constant dense<0.000000e+00> : vector<16x24xf32>
    %112 = tpu.matmul %110, %111, %cst_77 {dimension_numbers = #tpu.dot_dimension_numbers<[1], [0], [0], [1], [0, 0, 1, 1], [], []>} : vector<16x16xbf16>, vector<16x24xbf16>, vector<16x24xf32> -> vector<16x24xf32>
    %113 = vector.extract_strided_slice %112 {offsets = [0, 0], sizes = [16, 8], strides = [1, 1]} : vector<16x24xf32> to vector<16x8xf32>
    %114 = arith.truncf %113 : vector<16x8xf32> to vector<16x8xbf16>
    %c0_78 = arith.constant 0 : index
    %c0_79 = arith.constant 0 : index
    %c0_80 = arith.constant 0 : index
    %115 = vector.load %arg17[%c0_78, %c0_79, %c0_80] : memref<3x16x16xbf16, #tpu.memory_space<vmem>>, vector<1x16x16xbf16>
    %116 = vector.shape_cast %115 : vector<1x16x16xbf16> to vector<16x16xbf16>
    %cst_81 = arith.constant dense<0.000000e+00> : vector<16x8xf32>
    %117 = tpu.matmul %116, %114, %cst_81 {dimension_numbers = #tpu.dot_dimension_numbers<[1], [0], [0], [1], [0, 0, 1, 1], [], []>} : vector<16x16xbf16>, vector<16x8xbf16>, vector<16x8xf32> -> vector<16x8xf32>
    %118 = vector.extract_strided_slice %112 {offsets = [0, 8], sizes = [16, 8], strides = [1, 1]} : vector<16x24xf32> to vector<16x8xf32>
    %119 = arith.truncf %118 : vector<16x8xf32> to vector<16x8xbf16>
    %c1_82 = arith.constant 1 : index
    %c0_83 = arith.constant 0 : index
    %c0_84 = arith.constant 0 : index
    %120 = vector.load %arg17[%c1_82, %c0_83, %c0_84] : memref<3x16x16xbf16, #tpu.memory_space<vmem>>, vector<1x16x16xbf16>
    %121 = vector.shape_cast %120 : vector<1x16x16xbf16> to vector<16x16xbf16>
    %cst_85 = arith.constant dense<0.000000e+00> : vector<16x8xf32>
    %122 = tpu.matmul %121, %119, %cst_85 {dimension_numbers = #tpu.dot_dimension_numbers<[1], [0], [0], [1], [0, 0, 1, 1], [], []>} : vector<16x16xbf16>, vector<16x8xbf16>, vector<16x8xf32> -> vector<16x8xf32>
    %123 = arith.addf %117, %122 : vector<16x8xf32>
    %124 = vector.extract_strided_slice %112 {offsets = [0, 16], sizes = [16, 8], strides = [1, 1]} : vector<16x24xf32> to vector<16x8xf32>
    %125 = arith.truncf %124 : vector<16x8xf32> to vector<16x8xbf16>
    %c2_86 = arith.constant 2 : index
    %c0_87 = arith.constant 0 : index
    %c0_88 = arith.constant 0 : index
    %126 = vector.load %arg17[%c2_86, %c0_87, %c0_88] : memref<3x16x16xbf16, #tpu.memory_space<vmem>>, vector<1x16x16xbf16>
    %127 = vector.shape_cast %126 : vector<1x16x16xbf16> to vector<16x16xbf16>
    %cst_89 = arith.constant dense<0.000000e+00> : vector<16x8xf32>
    %128 = tpu.matmul %127, %125, %cst_89 {dimension_numbers = #tpu.dot_dimension_numbers<[1], [0], [0], [1], [0, 0, 1, 1], [], []>} : vector<16x16xbf16>, vector<16x8xbf16>, vector<16x8xf32> -> vector<16x8xf32>
    %129 = arith.addf %123, %128 : vector<16x8xf32>
    %c0_90 = arith.constant 0 : index
    %c0_91 = arith.constant 0 : index
    %130 = vector.load %arg18[%c0_90, %c0_91] : memref<16x1xf32, #tpu.memory_space<vmem>>, vector<16x1xf32>
    %131 = vector.broadcast %130 : vector<16x1xf32> to vector<16x8xf32>
    %132 = arith.addf %129, %131 : vector<16x8xf32>
    %cst_92 = arith.constant 0.000000e+00 : f32
    %133 = vector.broadcast %cst_92 : f32 to vector<16x8xf32>
    %134 = arith.maximumf %132, %133 : vector<16x8xf32>
    %135 = arith.truncf %134 : vector<16x8xf32> to vector<16x8xbf16>
    %c0_93 = arith.constant 0 : index
    %c0_94 = arith.constant 0 : index
    %136 = vector.load %arg19[%c0_93, %c0_94] : memref<8x48xbf16, #tpu.memory_space<vmem>>, vector<8x48xbf16>
    %cst_95 = arith.constant dense<0.000000e+00> : vector<16x48xf32>
    %137 = tpu.matmul %135, %136, %cst_95 {dimension_numbers = #tpu.dot_dimension_numbers<[1], [0], [0], [1], [0, 0, 1, 1], [], []>} : vector<16x8xbf16>, vector<8x48xbf16>, vector<16x48xf32> -> vector<16x48xf32>
    %138 = vector.extract_strided_slice %137 {offsets = [0, 0], sizes = [16, 16], strides = [1, 1]} : vector<16x48xf32> to vector<16x16xf32>
    %139 = arith.truncf %138 : vector<16x16xf32> to vector<16x16xbf16>
    %c0_96 = arith.constant 0 : index
    %c0_97 = arith.constant 0 : index
    %c0_98 = arith.constant 0 : index
    %140 = vector.load %arg20[%c0_96, %c0_97, %c0_98] : memref<3x16x16xbf16, #tpu.memory_space<vmem>>, vector<1x16x16xbf16>
    %141 = vector.shape_cast %140 : vector<1x16x16xbf16> to vector<16x16xbf16>
    %cst_99 = arith.constant dense<0.000000e+00> : vector<16x16xf32>
    %142 = tpu.matmul %141, %139, %cst_99 {dimension_numbers = #tpu.dot_dimension_numbers<[1], [0], [0], [1], [0, 0, 1, 1], [], []>} : vector<16x16xbf16>, vector<16x16xbf16>, vector<16x16xf32> -> vector<16x16xf32>
    %143 = vector.extract_strided_slice %137 {offsets = [0, 16], sizes = [16, 16], strides = [1, 1]} : vector<16x48xf32> to vector<16x16xf32>
    %144 = arith.truncf %143 : vector<16x16xf32> to vector<16x16xbf16>
    %c1_100 = arith.constant 1 : index
    %c0_101 = arith.constant 0 : index
    %c0_102 = arith.constant 0 : index
    %145 = vector.load %arg20[%c1_100, %c0_101, %c0_102] : memref<3x16x16xbf16, #tpu.memory_space<vmem>>, vector<1x16x16xbf16>
    %146 = vector.shape_cast %145 : vector<1x16x16xbf16> to vector<16x16xbf16>
    %cst_103 = arith.constant dense<0.000000e+00> : vector<16x16xf32>
    %147 = tpu.matmul %146, %144, %cst_103 {dimension_numbers = #tpu.dot_dimension_numbers<[1], [0], [0], [1], [0, 0, 1, 1], [], []>} : vector<16x16xbf16>, vector<16x16xbf16>, vector<16x16xf32> -> vector<16x16xf32>
    %148 = arith.addf %142, %147 : vector<16x16xf32>
    %149 = vector.extract_strided_slice %137 {offsets = [0, 32], sizes = [16, 16], strides = [1, 1]} : vector<16x48xf32> to vector<16x16xf32>
    %150 = arith.truncf %149 : vector<16x16xf32> to vector<16x16xbf16>
    %c2_104 = arith.constant 2 : index
    %c0_105 = arith.constant 0 : index
    %c0_106 = arith.constant 0 : index
    %151 = vector.load %arg20[%c2_104, %c0_105, %c0_106] : memref<3x16x16xbf16, #tpu.memory_space<vmem>>, vector<1x16x16xbf16>
    %152 = vector.shape_cast %151 : vector<1x16x16xbf16> to vector<16x16xbf16>
    %cst_107 = arith.constant dense<0.000000e+00> : vector<16x16xf32>
    %153 = tpu.matmul %152, %150, %cst_107 {dimension_numbers = #tpu.dot_dimension_numbers<[1], [0], [0], [1], [0, 0, 1, 1], [], []>} : vector<16x16xbf16>, vector<16x16xbf16>, vector<16x16xf32> -> vector<16x16xf32>
    %154 = arith.addf %148, %153 : vector<16x16xf32>
    %c0_108 = arith.constant 0 : index
    %c0_109 = arith.constant 0 : index
    %155 = vector.load %arg21[%c0_108, %c0_109] : memref<16x1xf32, #tpu.memory_space<vmem>>, vector<16x1xf32>
    %156 = vector.broadcast %155 : vector<16x1xf32> to vector<16x16xf32>
    %157 = arith.addf %154, %156 : vector<16x16xf32>
    %cst_110 = arith.constant 0.000000e+00 : f32
    %158 = vector.broadcast %cst_110 : f32 to vector<16x16xf32>
    %159 = arith.maximumf %157, %158 : vector<16x16xf32>
    %160 = arith.truncf %159 : vector<16x16xf32> to vector<16x16xbf16>
    %c0_111 = arith.constant 0 : index
    %c0_112 = arith.constant 0 : index
    %161 = vector.load %arg22[%c0_111, %c0_112] : memref<16x96xbf16, #tpu.memory_space<vmem>>, vector<16x96xbf16>
    %cst_113 = arith.constant dense<0.000000e+00> : vector<16x96xf32>
    %162 = tpu.matmul %160, %161, %cst_113 {dimension_numbers = #tpu.dot_dimension_numbers<[1], [0], [0], [1], [0, 0, 1, 1], [], []>} : vector<16x16xbf16>, vector<16x96xbf16>, vector<16x96xf32> -> vector<16x96xf32>
    %163 = vector.extract_strided_slice %162 {offsets = [0, 0], sizes = [16, 32], strides = [1, 1]} : vector<16x96xf32> to vector<16x32xf32>
    %164 = arith.truncf %163 : vector<16x32xf32> to vector<16x32xbf16>
    %c0_114 = arith.constant 0 : index
    %c0_115 = arith.constant 0 : index
    %c0_116 = arith.constant 0 : index
    %165 = vector.load %arg23[%c0_114, %c0_115, %c0_116] : memref<3x16x16xbf16, #tpu.memory_space<vmem>>, vector<1x16x16xbf16>
    %166 = vector.shape_cast %165 : vector<1x16x16xbf16> to vector<16x16xbf16>
    %cst_117 = arith.constant dense<0.000000e+00> : vector<16x32xf32>
    %167 = tpu.matmul %166, %164, %cst_117 {dimension_numbers = #tpu.dot_dimension_numbers<[1], [0], [0], [1], [0, 0, 1, 1], [], []>} : vector<16x16xbf16>, vector<16x32xbf16>, vector<16x32xf32> -> vector<16x32xf32>
    %168 = vector.extract_strided_slice %162 {offsets = [0, 32], sizes = [16, 32], strides = [1, 1]} : vector<16x96xf32> to vector<16x32xf32>
    %169 = arith.truncf %168 : vector<16x32xf32> to vector<16x32xbf16>
    %c1_118 = arith.constant 1 : index
    %c0_119 = arith.constant 0 : index
    %c0_120 = arith.constant 0 : index
    %170 = vector.load %arg23[%c1_118, %c0_119, %c0_120] : memref<3x16x16xbf16, #tpu.memory_space<vmem>>, vector<1x16x16xbf16>
    %171 = vector.shape_cast %170 : vector<1x16x16xbf16> to vector<16x16xbf16>
    %cst_121 = arith.constant dense<0.000000e+00> : vector<16x32xf32>
    %172 = tpu.matmul %171, %169, %cst_121 {dimension_numbers = #tpu.dot_dimension_numbers<[1], [0], [0], [1], [0, 0, 1, 1], [], []>} : vector<16x16xbf16>, vector<16x32xbf16>, vector<16x32xf32> -> vector<16x32xf32>
    %173 = arith.addf %167, %172 : vector<16x32xf32>
    %174 = vector.extract_strided_slice %162 {offsets = [0, 64], sizes = [16, 32], strides = [1, 1]} : vector<16x96xf32> to vector<16x32xf32>
    %175 = arith.truncf %174 : vector<16x32xf32> to vector<16x32xbf16>
    %c2_122 = arith.constant 2 : index
    %c0_123 = arith.constant 0 : index
    %c0_124 = arith.constant 0 : index
    %176 = vector.load %arg23[%c2_122, %c0_123, %c0_124] : memref<3x16x16xbf16, #tpu.memory_space<vmem>>, vector<1x16x16xbf16>
    %177 = vector.shape_cast %176 : vector<1x16x16xbf16> to vector<16x16xbf16>
    %cst_125 = arith.constant dense<0.000000e+00> : vector<16x32xf32>
    %178 = tpu.matmul %177, %175, %cst_125 {dimension_numbers = #tpu.dot_dimension_numbers<[1], [0], [0], [1], [0, 0, 1, 1], [], []>} : vector<16x16xbf16>, vector<16x32xbf16>, vector<16x32xf32> -> vector<16x32xf32>
    %179 = arith.addf %173, %178 : vector<16x32xf32>
    %180 = arith.truncf %109 : vector<16x16xf32> to vector<16x16xbf16>
    %c0_126 = arith.constant 0 : index
    %c0_127 = arith.constant 0 : index
    %181 = vector.load %arg22[%c0_126, %c0_127] : memref<16x96xbf16, #tpu.memory_space<vmem>>, vector<16x96xbf16>
    %cst_128 = arith.constant dense<0.000000e+00> : vector<16x96xf32>
    %182 = tpu.matmul %180, %181, %cst_128 {dimension_numbers = #tpu.dot_dimension_numbers<[1], [0], [0], [1], [0, 0, 1, 1], [], []>} : vector<16x16xbf16>, vector<16x96xbf16>, vector<16x96xf32> -> vector<16x96xf32>
    %183 = vector.extract_strided_slice %182 {offsets = [0, 0], sizes = [16, 32], strides = [1, 1]} : vector<16x96xf32> to vector<16x32xf32>
    %184 = arith.truncf %183 : vector<16x32xf32> to vector<16x32xbf16>
    %c0_129 = arith.constant 0 : index
    %c0_130 = arith.constant 0 : index
    %c0_131 = arith.constant 0 : index
    %185 = vector.load %arg24[%c0_129, %c0_130, %c0_131] : memref<3x16x16xbf16, #tpu.memory_space<vmem>>, vector<1x16x16xbf16>
    %186 = vector.shape_cast %185 : vector<1x16x16xbf16> to vector<16x16xbf16>
    %cst_132 = arith.constant dense<0.000000e+00> : vector<16x32xf32>
    %187 = tpu.matmul %186, %184, %cst_132 {dimension_numbers = #tpu.dot_dimension_numbers<[1], [0], [0], [1], [0, 0, 1, 1], [], []>} : vector<16x16xbf16>, vector<16x32xbf16>, vector<16x32xf32> -> vector<16x32xf32>
    %188 = vector.extract_strided_slice %182 {offsets = [0, 32], sizes = [16, 32], strides = [1, 1]} : vector<16x96xf32> to vector<16x32xf32>
    %189 = arith.truncf %188 : vector<16x32xf32> to vector<16x32xbf16>
    %c1_133 = arith.constant 1 : index
    %c0_134 = arith.constant 0 : index
    %c0_135 = arith.constant 0 : index
    %190 = vector.load %arg24[%c1_133, %c0_134, %c0_135] : memref<3x16x16xbf16, #tpu.memory_space<vmem>>, vector<1x16x16xbf16>
    %191 = vector.shape_cast %190 : vector<1x16x16xbf16> to vector<16x16xbf16>
    %cst_136 = arith.constant dense<0.000000e+00> : vector<16x32xf32>
    %192 = tpu.matmul %191, %189, %cst_136 {dimension_numbers = #tpu.dot_dimension_numbers<[1], [0], [0], [1], [0, 0, 1, 1], [], []>} : vector<16x16xbf16>, vector<16x32xbf16>, vector<16x32xf32> -> vector<16x32xf32>
    %193 = arith.addf %187, %192 : vector<16x32xf32>
    %194 = vector.extract_strided_slice %182 {offsets = [0, 64], sizes = [16, 32], strides = [1, 1]} : vector<16x96xf32> to vector<16x32xf32>
    %195 = arith.truncf %194 : vector<16x32xf32> to vector<16x32xbf16>
    %c2_137 = arith.constant 2 : index
    %c0_138 = arith.constant 0 : index
    %c0_139 = arith.constant 0 : index
    %196 = vector.load %arg24[%c2_137, %c0_138, %c0_139] : memref<3x16x16xbf16, #tpu.memory_space<vmem>>, vector<1x16x16xbf16>
    %197 = vector.shape_cast %196 : vector<1x16x16xbf16> to vector<16x16xbf16>
    %cst_140 = arith.constant dense<0.000000e+00> : vector<16x32xf32>
    %198 = tpu.matmul %197, %195, %cst_140 {dimension_numbers = #tpu.dot_dimension_numbers<[1], [0], [0], [1], [0, 0, 1, 1], [], []>} : vector<16x16xbf16>, vector<16x32xbf16>, vector<16x32xf32> -> vector<16x32xf32>
    %199 = arith.addf %193, %198 : vector<16x32xf32>
    %200 = arith.addf %179, %199 : vector<16x32xf32>
    %c0_141 = arith.constant 0 : index
    %c0_142 = arith.constant 0 : index
    %201 = vector.load %arg25[%c0_141, %c0_142] : memref<16x1xf32, #tpu.memory_space<vmem>>, vector<16x1xf32>
    %202 = vector.broadcast %201 : vector<16x1xf32> to vector<16x32xf32>
    %203 = arith.addf %200, %202 : vector<16x32xf32>
    %cst_143 = arith.constant 0.000000e+00 : f32
    %204 = vector.broadcast %cst_143 : f32 to vector<16x32xf32>
    %205 = arith.maximumf %203, %204 : vector<16x32xf32>
    %206 = arith.truncf %205 : vector<16x32xf32> to vector<16x32xbf16>
    %c0_144 = arith.constant 0 : index
    %c0_145 = arith.constant 0 : index
    %207 = vector.load %arg26[%c0_144, %c0_145] : memref<32x192xbf16, #tpu.memory_space<vmem>>, vector<32x192xbf16>
    %cst_146 = arith.constant dense<0.000000e+00> : vector<16x192xf32>
    %208 = tpu.matmul %206, %207, %cst_146 {dimension_numbers = #tpu.dot_dimension_numbers<[1], [0], [0], [1], [0, 0, 1, 1], [], []>} : vector<16x32xbf16>, vector<32x192xbf16>, vector<16x192xf32> -> vector<16x192xf32>
    %209 = vector.extract_strided_slice %208 {offsets = [0, 0], sizes = [16, 64], strides = [1, 1]} : vector<16x192xf32> to vector<16x64xf32>
    %210 = arith.truncf %209 : vector<16x64xf32> to vector<16x64xbf16>
    %c0_147 = arith.constant 0 : index
    %c0_148 = arith.constant 0 : index
    %c0_149 = arith.constant 0 : index
    %211 = vector.load %arg27[%c0_147, %c0_148, %c0_149] : memref<3x8x16xbf16, #tpu.memory_space<vmem>>, vector<1x8x16xbf16>
    %212 = vector.shape_cast %211 : vector<1x8x16xbf16> to vector<8x16xbf16>
    %cst_150 = arith.constant dense<0.000000e+00> : vector<8x64xf32>
    %213 = tpu.matmul %212, %210, %cst_150 {dimension_numbers = #tpu.dot_dimension_numbers<[1], [0], [0], [1], [0, 0, 1, 1], [], []>} : vector<8x16xbf16>, vector<16x64xbf16>, vector<8x64xf32> -> vector<8x64xf32>
    %214 = vector.extract_strided_slice %208 {offsets = [0, 64], sizes = [16, 64], strides = [1, 1]} : vector<16x192xf32> to vector<16x64xf32>
    %215 = arith.truncf %214 : vector<16x64xf32> to vector<16x64xbf16>
    %c1_151 = arith.constant 1 : index
    %c0_152 = arith.constant 0 : index
    %c0_153 = arith.constant 0 : index
    %216 = vector.load %arg27[%c1_151, %c0_152, %c0_153] : memref<3x8x16xbf16, #tpu.memory_space<vmem>>, vector<1x8x16xbf16>
    %217 = vector.shape_cast %216 : vector<1x8x16xbf16> to vector<8x16xbf16>
    %cst_154 = arith.constant dense<0.000000e+00> : vector<8x64xf32>
    %218 = tpu.matmul %217, %215, %cst_154 {dimension_numbers = #tpu.dot_dimension_numbers<[1], [0], [0], [1], [0, 0, 1, 1], [], []>} : vector<8x16xbf16>, vector<16x64xbf16>, vector<8x64xf32> -> vector<8x64xf32>
    %219 = arith.addf %213, %218 : vector<8x64xf32>
    %220 = vector.extract_strided_slice %208 {offsets = [0, 128], sizes = [16, 64], strides = [1, 1]} : vector<16x192xf32> to vector<16x64xf32>
    %221 = arith.truncf %220 : vector<16x64xf32> to vector<16x64xbf16>
    %c2_155 = arith.constant 2 : index
    %c0_156 = arith.constant 0 : index
    %c0_157 = arith.constant 0 : index
    %222 = vector.load %arg27[%c2_155, %c0_156, %c0_157] : memref<3x8x16xbf16, #tpu.memory_space<vmem>>, vector<1x8x16xbf16>
    %223 = vector.shape_cast %222 : vector<1x8x16xbf16> to vector<8x16xbf16>
    %cst_158 = arith.constant dense<0.000000e+00> : vector<8x64xf32>
    %224 = tpu.matmul %223, %221, %cst_158 {dimension_numbers = #tpu.dot_dimension_numbers<[1], [0], [0], [1], [0, 0, 1, 1], [], []>} : vector<8x16xbf16>, vector<16x64xbf16>, vector<8x64xf32> -> vector<8x64xf32>
    %225 = arith.addf %219, %224 : vector<8x64xf32>
    %226 = arith.truncf %84 : vector<16x32xf32> to vector<16x32xbf16>
    %c0_159 = arith.constant 0 : index
    %c0_160 = arith.constant 0 : index
    %227 = vector.load %arg26[%c0_159, %c0_160] : memref<32x192xbf16, #tpu.memory_space<vmem>>, vector<32x192xbf16>
    %cst_161 = arith.constant dense<0.000000e+00> : vector<16x192xf32>
    %228 = tpu.matmul %226, %227, %cst_161 {dimension_numbers = #tpu.dot_dimension_numbers<[1], [0], [0], [1], [0, 0, 1, 1], [], []>} : vector<16x32xbf16>, vector<32x192xbf16>, vector<16x192xf32> -> vector<16x192xf32>
    %229 = vector.extract_strided_slice %228 {offsets = [0, 0], sizes = [16, 64], strides = [1, 1]} : vector<16x192xf32> to vector<16x64xf32>
    %230 = arith.truncf %229 : vector<16x64xf32> to vector<16x64xbf16>
    %c0_162 = arith.constant 0 : index
    %c0_163 = arith.constant 0 : index
    %c0_164 = arith.constant 0 : index
    %231 = vector.load %arg28[%c0_162, %c0_163, %c0_164] : memref<3x8x16xbf16, #tpu.memory_space<vmem>>, vector<1x8x16xbf16>
    %232 = vector.shape_cast %231 : vector<1x8x16xbf16> to vector<8x16xbf16>
    %cst_165 = arith.constant dense<0.000000e+00> : vector<8x64xf32>
    %233 = tpu.matmul %232, %230, %cst_165 {dimension_numbers = #tpu.dot_dimension_numbers<[1], [0], [0], [1], [0, 0, 1, 1], [], []>} : vector<8x16xbf16>, vector<16x64xbf16>, vector<8x64xf32> -> vector<8x64xf32>
    %234 = vector.extract_strided_slice %228 {offsets = [0, 64], sizes = [16, 64], strides = [1, 1]} : vector<16x192xf32> to vector<16x64xf32>
    %235 = arith.truncf %234 : vector<16x64xf32> to vector<16x64xbf16>
    %c1_166 = arith.constant 1 : index
    %c0_167 = arith.constant 0 : index
    %c0_168 = arith.constant 0 : index
    %236 = vector.load %arg28[%c1_166, %c0_167, %c0_168] : memref<3x8x16xbf16, #tpu.memory_space<vmem>>, vector<1x8x16xbf16>
    %237 = vector.shape_cast %236 : vector<1x8x16xbf16> to vector<8x16xbf16>
    %cst_169 = arith.constant dense<0.000000e+00> : vector<8x64xf32>
    %238 = tpu.matmul %237, %235, %cst_169 {dimension_numbers = #tpu.dot_dimension_numbers<[1], [0], [0], [1], [0, 0, 1, 1], [], []>} : vector<8x16xbf16>, vector<16x64xbf16>, vector<8x64xf32> -> vector<8x64xf32>
    %239 = arith.addf %233, %238 : vector<8x64xf32>
    %240 = vector.extract_strided_slice %228 {offsets = [0, 128], sizes = [16, 64], strides = [1, 1]} : vector<16x192xf32> to vector<16x64xf32>
    %241 = arith.truncf %240 : vector<16x64xf32> to vector<16x64xbf16>
    %c2_170 = arith.constant 2 : index
    %c0_171 = arith.constant 0 : index
    %c0_172 = arith.constant 0 : index
    %242 = vector.load %arg28[%c2_170, %c0_171, %c0_172] : memref<3x8x16xbf16, #tpu.memory_space<vmem>>, vector<1x8x16xbf16>
    %243 = vector.shape_cast %242 : vector<1x8x16xbf16> to vector<8x16xbf16>
    %cst_173 = arith.constant dense<0.000000e+00> : vector<8x64xf32>
    %244 = tpu.matmul %243, %241, %cst_173 {dimension_numbers = #tpu.dot_dimension_numbers<[1], [0], [0], [1], [0, 0, 1, 1], [], []>} : vector<8x16xbf16>, vector<16x64xbf16>, vector<8x64xf32> -> vector<8x64xf32>
    %245 = arith.addf %239, %244 : vector<8x64xf32>
    %246 = arith.addf %225, %245 : vector<8x64xf32>
    %c0_174 = arith.constant 0 : index
    %c0_175 = arith.constant 0 : index
    %247 = vector.load %arg29[%c0_174, %c0_175] : memref<8x1xf32, #tpu.memory_space<vmem>>, vector<8x1xf32>
    %248 = vector.broadcast %247 : vector<8x1xf32> to vector<8x64xf32>
    %249 = arith.addf %246, %248 : vector<8x64xf32>
    %cst_176 = arith.constant 0.000000e+00 : f32
    %250 = vector.broadcast %cst_176 : f32 to vector<8x64xf32>
    %251 = arith.maximumf %249, %250 : vector<8x64xf32>
    %252 = arith.truncf %251 : vector<8x64xf32> to vector<8x64xbf16>
    %c0_177 = arith.constant 0 : index
    %c0_178 = arith.constant 0 : index
    %253 = vector.load %arg30[%c0_177, %c0_178] : memref<64x384xbf16, #tpu.memory_space<vmem>>, vector<64x384xbf16>
    %cst_179 = arith.constant dense<0.000000e+00> : vector<8x384xf32>
    %254 = tpu.matmul %252, %253, %cst_179 {dimension_numbers = #tpu.dot_dimension_numbers<[1], [0], [0], [1], [0, 0, 1, 1], [], []>} : vector<8x64xbf16>, vector<64x384xbf16>, vector<8x384xf32> -> vector<8x384xf32>
    %255 = vector.extract_strided_slice %254 {offsets = [0, 0], sizes = [8, 128], strides = [1, 1]} : vector<8x384xf32> to vector<8x128xf32>
    %256 = arith.truncf %255 : vector<8x128xf32> to vector<8x128xbf16>
    %c0_180 = arith.constant 0 : index
    %c0_181 = arith.constant 0 : index
    %c0_182 = arith.constant 0 : index
    %257 = vector.load %arg31[%c0_180, %c0_181, %c0_182] : memref<3x8x8xbf16, #tpu.memory_space<vmem>>, vector<1x8x8xbf16>
    %258 = vector.shape_cast %257 : vector<1x8x8xbf16> to vector<8x8xbf16>
    %cst_183 = arith.constant dense<0.000000e+00> : vector<8x128xf32>
    %259 = tpu.matmul %258, %256, %cst_183 {dimension_numbers = #tpu.dot_dimension_numbers<[1], [0], [0], [1], [0, 0, 1, 1], [], []>} : vector<8x8xbf16>, vector<8x128xbf16>, vector<8x128xf32> -> vector<8x128xf32>
    %260 = vector.extract_strided_slice %254 {offsets = [0, 128], sizes = [8, 128], strides = [1, 1]} : vector<8x384xf32> to vector<8x128xf32>
    %261 = arith.truncf %260 : vector<8x128xf32> to vector<8x128xbf16>
    %c1_184 = arith.constant 1 : index
    %c0_185 = arith.constant 0 : index
    %c0_186 = arith.constant 0 : index
    %262 = vector.load %arg31[%c1_184, %c0_185, %c0_186] : memref<3x8x8xbf16, #tpu.memory_space<vmem>>, vector<1x8x8xbf16>
    %263 = vector.shape_cast %262 : vector<1x8x8xbf16> to vector<8x8xbf16>
    %cst_187 = arith.constant dense<0.000000e+00> : vector<8x128xf32>
    %264 = tpu.matmul %263, %261, %cst_187 {dimension_numbers = #tpu.dot_dimension_numbers<[1], [0], [0], [1], [0, 0, 1, 1], [], []>} : vector<8x8xbf16>, vector<8x128xbf16>, vector<8x128xf32> -> vector<8x128xf32>
    %265 = arith.addf %259, %264 : vector<8x128xf32>
    %266 = vector.extract_strided_slice %254 {offsets = [0, 256], sizes = [8, 128], strides = [1, 1]} : vector<8x384xf32> to vector<8x128xf32>
    %267 = arith.truncf %266 : vector<8x128xf32> to vector<8x128xbf16>
    %c2_188 = arith.constant 2 : index
    %c0_189 = arith.constant 0 : index
    %c0_190 = arith.constant 0 : index
    %268 = vector.load %arg31[%c2_188, %c0_189, %c0_190] : memref<3x8x8xbf16, #tpu.memory_space<vmem>>, vector<1x8x8xbf16>
    %269 = vector.shape_cast %268 : vector<1x8x8xbf16> to vector<8x8xbf16>
    %cst_191 = arith.constant dense<0.000000e+00> : vector<8x128xf32>
    %270 = tpu.matmul %269, %267, %cst_191 {dimension_numbers = #tpu.dot_dimension_numbers<[1], [0], [0], [1], [0, 0, 1, 1], [], []>} : vector<8x8xbf16>, vector<8x128xbf16>, vector<8x128xf32> -> vector<8x128xf32>
    %271 = arith.addf %265, %270 : vector<8x128xf32>
    %272 = arith.truncf %59 : vector<8x64xf32> to vector<8x64xbf16>
    %c0_192 = arith.constant 0 : index
    %c0_193 = arith.constant 0 : index
    %273 = vector.load %arg30[%c0_192, %c0_193] : memref<64x384xbf16, #tpu.memory_space<vmem>>, vector<64x384xbf16>
    %cst_194 = arith.constant dense<0.000000e+00> : vector<8x384xf32>
    %274 = tpu.matmul %272, %273, %cst_194 {dimension_numbers = #tpu.dot_dimension_numbers<[1], [0], [0], [1], [0, 0, 1, 1], [], []>} : vector<8x64xbf16>, vector<64x384xbf16>, vector<8x384xf32> -> vector<8x384xf32>
    %275 = vector.extract_strided_slice %274 {offsets = [0, 0], sizes = [8, 128], strides = [1, 1]} : vector<8x384xf32> to vector<8x128xf32>
    %276 = arith.truncf %275 : vector<8x128xf32> to vector<8x128xbf16>
    %c0_195 = arith.constant 0 : index
    %c0_196 = arith.constant 0 : index
    %c0_197 = arith.constant 0 : index
    %277 = vector.load %arg32[%c0_195, %c0_196, %c0_197] : memref<3x8x8xbf16, #tpu.memory_space<vmem>>, vector<1x8x8xbf16>
    %278 = vector.shape_cast %277 : vector<1x8x8xbf16> to vector<8x8xbf16>
    %cst_198 = arith.constant dense<0.000000e+00> : vector<8x128xf32>
    %279 = tpu.matmul %278, %276, %cst_198 {dimension_numbers = #tpu.dot_dimension_numbers<[1], [0], [0], [1], [0, 0, 1, 1], [], []>} : vector<8x8xbf16>, vector<8x128xbf16>, vector<8x128xf32> -> vector<8x128xf32>
    %280 = vector.extract_strided_slice %274 {offsets = [0, 128], sizes = [8, 128], strides = [1, 1]} : vector<8x384xf32> to vector<8x128xf32>
    %281 = arith.truncf %280 : vector<8x128xf32> to vector<8x128xbf16>
    %c1_199 = arith.constant 1 : index
    %c0_200 = arith.constant 0 : index
    %c0_201 = arith.constant 0 : index
    %282 = vector.load %arg32[%c1_199, %c0_200, %c0_201] : memref<3x8x8xbf16, #tpu.memory_space<vmem>>, vector<1x8x8xbf16>
    %283 = vector.shape_cast %282 : vector<1x8x8xbf16> to vector<8x8xbf16>
    %cst_202 = arith.constant dense<0.000000e+00> : vector<8x128xf32>
    %284 = tpu.matmul %283, %281, %cst_202 {dimension_numbers = #tpu.dot_dimension_numbers<[1], [0], [0], [1], [0, 0, 1, 1], [], []>} : vector<8x8xbf16>, vector<8x128xbf16>, vector<8x128xf32> -> vector<8x128xf32>
    %285 = arith.addf %279, %284 : vector<8x128xf32>
    %286 = vector.extract_strided_slice %274 {offsets = [0, 256], sizes = [8, 128], strides = [1, 1]} : vector<8x384xf32> to vector<8x128xf32>
    %287 = arith.truncf %286 : vector<8x128xf32> to vector<8x128xbf16>
    %c2_203 = arith.constant 2 : index
    %c0_204 = arith.constant 0 : index
    %c0_205 = arith.constant 0 : index
    %288 = vector.load %arg32[%c2_203, %c0_204, %c0_205] : memref<3x8x8xbf16, #tpu.memory_space<vmem>>, vector<1x8x8xbf16>
    %289 = vector.shape_cast %288 : vector<1x8x8xbf16> to vector<8x8xbf16>
    %cst_206 = arith.constant dense<0.000000e+00> : vector<8x128xf32>
    %290 = tpu.matmul %289, %287, %cst_206 {dimension_numbers = #tpu.dot_dimension_numbers<[1], [0], [0], [1], [0, 0, 1, 1], [], []>} : vector<8x8xbf16>, vector<8x128xbf16>, vector<8x128xf32> -> vector<8x128xf32>
    %291 = arith.addf %285, %290 : vector<8x128xf32>
    %292 = arith.addf %271, %291 : vector<8x128xf32>
    %c0_207 = arith.constant 0 : index
    %c0_208 = arith.constant 0 : index
    %293 = vector.load %arg33[%c0_207, %c0_208] : memref<8x1xf32, #tpu.memory_space<vmem>>, vector<8x1xf32>
    %294 = vector.broadcast %293 : vector<8x1xf32> to vector<8x128xf32>
    %295 = arith.addf %292, %294 : vector<8x128xf32>
    %cst_209 = arith.constant 0.000000e+00 : f32
    %296 = vector.broadcast %cst_209 : f32 to vector<8x128xf32>
    %297 = arith.maximumf %295, %296 : vector<8x128xf32>
    %298 = arith.truncf %297 : vector<8x128xf32> to vector<8x128xbf16>
    %c0_210 = arith.constant 0 : index
    %c0_211 = arith.constant 0 : index
    %299 = vector.load %arg34[%c0_210, %c0_211] : memref<128x768xbf16, #tpu.memory_space<vmem>>, vector<128x768xbf16>
    %cst_212 = arith.constant dense<0.000000e+00> : vector<8x768xf32>
    %300 = tpu.matmul %298, %299, %cst_212 {dimension_numbers = #tpu.dot_dimension_numbers<[1], [0], [0], [1], [0, 0, 1, 1], [], []>} : vector<8x128xbf16>, vector<128x768xbf16>, vector<8x768xf32> -> vector<8x768xf32>
    %301 = vector.extract_strided_slice %300 {offsets = [0, 0], sizes = [8, 256], strides = [1, 1]} : vector<8x768xf32> to vector<8x256xf32>
    %302 = arith.truncf %301 : vector<8x256xf32> to vector<8x256xbf16>
    %c0_213 = arith.constant 0 : index
    %c0_214 = arith.constant 0 : index
    %c0_215 = arith.constant 0 : index
    %303 = vector.load %arg35[%c0_213, %c0_214, %c0_215] : memref<3x8x8xbf16, #tpu.memory_space<vmem>>, vector<1x8x8xbf16>
    %304 = vector.shape_cast %303 : vector<1x8x8xbf16> to vector<8x8xbf16>
    %cst_216 = arith.constant dense<0.000000e+00> : vector<8x256xf32>
    %305 = tpu.matmul %304, %302, %cst_216 {dimension_numbers = #tpu.dot_dimension_numbers<[1], [0], [0], [1], [0, 0, 1, 1], [], []>} : vector<8x8xbf16>, vector<8x256xbf16>, vector<8x256xf32> -> vector<8x256xf32>
    %306 = vector.extract_strided_slice %300 {offsets = [0, 256], sizes = [8, 256], strides = [1, 1]} : vector<8x768xf32> to vector<8x256xf32>
    %307 = arith.truncf %306 : vector<8x256xf32> to vector<8x256xbf16>
    %c1_217 = arith.constant 1 : index
    %c0_218 = arith.constant 0 : index
    %c0_219 = arith.constant 0 : index
    %308 = vector.load %arg35[%c1_217, %c0_218, %c0_219] : memref<3x8x8xbf16, #tpu.memory_space<vmem>>, vector<1x8x8xbf16>
    %309 = vector.shape_cast %308 : vector<1x8x8xbf16> to vector<8x8xbf16>
    %cst_220 = arith.constant dense<0.000000e+00> : vector<8x256xf32>
    %310 = tpu.matmul %309, %307, %cst_220 {dimension_numbers = #tpu.dot_dimension_numbers<[1], [0], [0], [1], [0, 0, 1, 1], [], []>} : vector<8x8xbf16>, vector<8x256xbf16>, vector<8x256xf32> -> vector<8x256xf32>
    %311 = arith.addf %305, %310 : vector<8x256xf32>
    %312 = vector.extract_strided_slice %300 {offsets = [0, 512], sizes = [8, 256], strides = [1, 1]} : vector<8x768xf32> to vector<8x256xf32>
    %313 = arith.truncf %312 : vector<8x256xf32> to vector<8x256xbf16>
    %c2_221 = arith.constant 2 : index
    %c0_222 = arith.constant 0 : index
    %c0_223 = arith.constant 0 : index
    %314 = vector.load %arg35[%c2_221, %c0_222, %c0_223] : memref<3x8x8xbf16, #tpu.memory_space<vmem>>, vector<1x8x8xbf16>
    %315 = vector.shape_cast %314 : vector<1x8x8xbf16> to vector<8x8xbf16>
    %cst_224 = arith.constant dense<0.000000e+00> : vector<8x256xf32>
    %316 = tpu.matmul %315, %313, %cst_224 {dimension_numbers = #tpu.dot_dimension_numbers<[1], [0], [0], [1], [0, 0, 1, 1], [], []>} : vector<8x8xbf16>, vector<8x256xbf16>, vector<8x256xf32> -> vector<8x256xf32>
    %317 = arith.addf %311, %316 : vector<8x256xf32>
    %318 = arith.truncf %34 : vector<8x128xf32> to vector<8x128xbf16>
    %c0_225 = arith.constant 0 : index
    %c0_226 = arith.constant 0 : index
    %319 = vector.load %arg34[%c0_225, %c0_226] : memref<128x768xbf16, #tpu.memory_space<vmem>>, vector<128x768xbf16>
    %cst_227 = arith.constant dense<0.000000e+00> : vector<8x768xf32>
    %320 = tpu.matmul %318, %319, %cst_227 {dimension_numbers = #tpu.dot_dimension_numbers<[1], [0], [0], [1], [0, 0, 1, 1], [], []>} : vector<8x128xbf16>, vector<128x768xbf16>, vector<8x768xf32> -> vector<8x768xf32>
    %321 = vector.extract_strided_slice %320 {offsets = [0, 0], sizes = [8, 256], strides = [1, 1]} : vector<8x768xf32> to vector<8x256xf32>
    %322 = arith.truncf %321 : vector<8x256xf32> to vector<8x256xbf16>
    %c0_228 = arith.constant 0 : index
    %c0_229 = arith.constant 0 : index
    %c0_230 = arith.constant 0 : index
    %323 = vector.load %arg36[%c0_228, %c0_229, %c0_230] : memref<3x8x8xbf16, #tpu.memory_space<vmem>>, vector<1x8x8xbf16>
    %324 = vector.shape_cast %323 : vector<1x8x8xbf16> to vector<8x8xbf16>
    %cst_231 = arith.constant dense<0.000000e+00> : vector<8x256xf32>
    %325 = tpu.matmul %324, %322, %cst_231 {dimension_numbers = #tpu.dot_dimension_numbers<[1], [0], [0], [1], [0, 0, 1, 1], [], []>} : vector<8x8xbf16>, vector<8x256xbf16>, vector<8x256xf32> -> vector<8x256xf32>
    %326 = vector.extract_strided_slice %320 {offsets = [0, 256], sizes = [8, 256], strides = [1, 1]} : vector<8x768xf32> to vector<8x256xf32>
    %327 = arith.truncf %326 : vector<8x256xf32> to vector<8x256xbf16>
    %c1_232 = arith.constant 1 : index
    %c0_233 = arith.constant 0 : index
    %c0_234 = arith.constant 0 : index
    %328 = vector.load %arg36[%c1_232, %c0_233, %c0_234] : memref<3x8x8xbf16, #tpu.memory_space<vmem>>, vector<1x8x8xbf16>
    %329 = vector.shape_cast %328 : vector<1x8x8xbf16> to vector<8x8xbf16>
    %cst_235 = arith.constant dense<0.000000e+00> : vector<8x256xf32>
    %330 = tpu.matmul %329, %327, %cst_235 {dimension_numbers = #tpu.dot_dimension_numbers<[1], [0], [0], [1], [0, 0, 1, 1], [], []>} : vector<8x8xbf16>, vector<8x256xbf16>, vector<8x256xf32> -> vector<8x256xf32>
    %331 = arith.addf %325, %330 : vector<8x256xf32>
    %332 = vector.extract_strided_slice %320 {offsets = [0, 512], sizes = [8, 256], strides = [1, 1]} : vector<8x768xf32> to vector<8x256xf32>
    %333 = arith.truncf %332 : vector<8x256xf32> to vector<8x256xbf16>
    %c2_236 = arith.constant 2 : index
    %c0_237 = arith.constant 0 : index
    %c0_238 = arith.constant 0 : index
    %334 = vector.load %arg36[%c2_236, %c0_237, %c0_238] : memref<3x8x8xbf16, #tpu.memory_space<vmem>>, vector<1x8x8xbf16>
    %335 = vector.shape_cast %334 : vector<1x8x8xbf16> to vector<8x8xbf16>
    %cst_239 = arith.constant dense<0.000000e+00> : vector<8x256xf32>
    %336 = tpu.matmul %335, %333, %cst_239 {dimension_numbers = #tpu.dot_dimension_numbers<[1], [0], [0], [1], [0, 0, 1, 1], [], []>} : vector<8x8xbf16>, vector<8x256xbf16>, vector<8x256xf32> -> vector<8x256xf32>
    %337 = arith.addf %331, %336 : vector<8x256xf32>
    %338 = arith.addf %317, %337 : vector<8x256xf32>
    %c0_240 = arith.constant 0 : index
    %c0_241 = arith.constant 0 : index
    %339 = vector.load %arg37[%c0_240, %c0_241] : memref<8x1xf32, #tpu.memory_space<vmem>>, vector<8x1xf32>
    %340 = vector.broadcast %339 : vector<8x1xf32> to vector<8x256xf32>
    %341 = arith.addf %338, %340 : vector<8x256xf32>
    %cst_242 = arith.constant 0.000000e+00 : f32
    %342 = vector.broadcast %cst_242 : f32 to vector<8x256xf32>
    %343 = arith.maximumf %341, %342 : vector<8x256xf32>
    %c0_243 = arith.constant 0 : index
    %c0_244 = arith.constant 0 : index
    %344 = vector.load %arg38[%c0_243, %c0_244] : memref<1x8xbf16, #tpu.memory_space<vmem>>, vector<1x8xbf16>
    %345 = arith.truncf %343 : vector<8x256xf32> to vector<8x256xbf16>
    %cst_245 = arith.constant dense<0.000000e+00> : vector<1x256xf32>
    %346 = tpu.matmul %344, %345, %cst_245 {dimension_numbers = #tpu.dot_dimension_numbers<[1], [0], [0], [1], [0, 0, 1, 1], [], []>} : vector<1x8xbf16>, vector<8x256xbf16>, vector<1x256xf32> -> vector<1x256xf32>
    %c0_246 = arith.constant 0 : index
    %c0_247 = arith.constant 0 : index
    %347 = vector.load %arg39[%c0_246, %c0_247] : memref<1x8xbf16, #tpu.memory_space<vmem>>, vector<1x8xbf16>
    %348 = arith.truncf %9 : vector<8x256xf32> to vector<8x256xbf16>
    %cst_248 = arith.constant dense<0.000000e+00> : vector<1x256xf32>
    %349 = tpu.matmul %347, %348, %cst_248 {dimension_numbers = #tpu.dot_dimension_numbers<[1], [0], [0], [1], [0, 0, 1, 1], [], []>} : vector<1x8xbf16>, vector<8x256xbf16>, vector<1x256xf32> -> vector<1x256xf32>
    %350 = arith.addf %346, %349 : vector<1x256xf32>
    %c0_249 = arith.constant 0 : index
    %c0_250 = arith.constant 0 : index
    %351 = vector.load %arg40[%c0_249, %c0_250] : memref<1x1xf32, #tpu.memory_space<vmem>>, vector<1x1xf32>
    %352 = vector.broadcast %351 : vector<1x1xf32> to vector<1x256xf32>
    %353 = arith.addf %350, %352 : vector<1x256xf32>
    %354 = math.tanh %353 : vector<1x256xf32>
    %c0_251 = arith.constant 0 : index
    %c0_252 = arith.constant 0 : index
    %c0_253 = arith.constant 0 : index
    %355 = vector.load %arg42[%c0_251, %c0_252, %c0_253] : memref<1x1x256xf32, #tpu.memory_space<vmem>>, vector<1x1x256xf32>
    %356 = vector.shape_cast %355 : vector<1x1x256xf32> to vector<1x256xf32>
    %357 = vector.shape_cast %354 : vector<1x256xf32> to vector<1x1x256xf32>
    tpu.vector_store %arg42[%c0_251, %c0_252, %c0_253], %357 {strides = array<i32>} : memref<1x1x256xf32, #tpu.memory_space<vmem>>, vector<1x1x256xf32>,
    %358 = vector.extract_strided_slice %354 {offsets = [0, 0], sizes = [1, 64], strides = [1, 1]} : vector<1x256xf32> to vector<1x64xf32>
    %c0_254 = arith.constant 0 : index
    %c0_255 = arith.constant 0 : index
    %359 = vector.load %arg44[%c0_254, %c0_255] : memref<13x64xf32, #tpu.memory_space<vmem>>, vector<1x64xf32>
    tpu.vector_store %arg44[%c0_254, %c0_255], %358 {strides = array<i32>} : memref<13x64xf32, #tpu.memory_space<vmem>>, vector<1x64xf32>,
    %360 = vector.extract_strided_slice %354 {offsets = [0, 16], sizes = [1, 64], strides = [1, 1]} : vector<1x256xf32> to vector<1x64xf32>
    %c1_256 = arith.constant 1 : index
    %c0_257 = arith.constant 0 : index
    %361 = vector.load %arg44[%c1_256, %c0_257] : memref<13x64xf32, #tpu.memory_space<vmem>>, vector<1x64xf32>
    tpu.vector_store %arg44[%c1_256, %c0_257], %360 {strides = array<i32>} : memref<13x64xf32, #tpu.memory_space<vmem>>, vector<1x64xf32>,
    %362 = vector.extract_strided_slice %354 {offsets = [0, 32], sizes = [1, 64], strides = [1, 1]} : vector<1x256xf32> to vector<1x64xf32>
    %c2_258 = arith.constant 2 : index
    %c0_259 = arith.constant 0 : index
    %363 = vector.load %arg44[%c2_258, %c0_259] : memref<13x64xf32, #tpu.memory_space<vmem>>, vector<1x64xf32>
    tpu.vector_store %arg44[%c2_258, %c0_259], %362 {strides = array<i32>} : memref<13x64xf32, #tpu.memory_space<vmem>>, vector<1x64xf32>,
    %364 = vector.extract_strided_slice %354 {offsets = [0, 48], sizes = [1, 64], strides = [1, 1]} : vector<1x256xf32> to vector<1x64xf32>
    %c3 = arith.constant 3 : index
    %c0_260 = arith.constant 0 : index
    %365 = vector.load %arg44[%c3, %c0_260] : memref<13x64xf32, #tpu.memory_space<vmem>>, vector<1x64xf32>
    tpu.vector_store %arg44[%c3, %c0_260], %364 {strides = array<i32>} : memref<13x64xf32, #tpu.memory_space<vmem>>, vector<1x64xf32>,
    %366 = vector.extract_strided_slice %354 {offsets = [0, 64], sizes = [1, 64], strides = [1, 1]} : vector<1x256xf32> to vector<1x64xf32>
    %c4 = arith.constant 4 : index
    %c0_261 = arith.constant 0 : index
    %367 = vector.load %arg44[%c4, %c0_261] : memref<13x64xf32, #tpu.memory_space<vmem>>, vector<1x64xf32>
    tpu.vector_store %arg44[%c4, %c0_261], %366 {strides = array<i32>} : memref<13x64xf32, #tpu.memory_space<vmem>>, vector<1x64xf32>,
    %368 = vector.extract_strided_slice %354 {offsets = [0, 80], sizes = [1, 64], strides = [1, 1]} : vector<1x256xf32> to vector<1x64xf32>
    %c5 = arith.constant 5 : index
    %c0_262 = arith.constant 0 : index
    %369 = vector.load %arg44[%c5, %c0_262] : memref<13x64xf32, #tpu.memory_space<vmem>>, vector<1x64xf32>
    tpu.vector_store %arg44[%c5, %c0_262], %368 {strides = array<i32>} : memref<13x64xf32, #tpu.memory_space<vmem>>, vector<1x64xf32>,
    %370 = vector.extract_strided_slice %354 {offsets = [0, 96], sizes = [1, 64], strides = [1, 1]} : vector<1x256xf32> to vector<1x64xf32>
    %c6 = arith.constant 6 : index
    %c0_263 = arith.constant 0 : index
    %371 = vector.load %arg44[%c6, %c0_263] : memref<13x64xf32, #tpu.memory_space<vmem>>, vector<1x64xf32>
    tpu.vector_store %arg44[%c6, %c0_263], %370 {strides = array<i32>} : memref<13x64xf32, #tpu.memory_space<vmem>>, vector<1x64xf32>,
    %372 = vector.extract_strided_slice %354 {offsets = [0, 112], sizes = [1, 64], strides = [1, 1]} : vector<1x256xf32> to vector<1x64xf32>
    %c7 = arith.constant 7 : index
    %c0_264 = arith.constant 0 : index
    %373 = vector.load %arg44[%c7, %c0_264] : memref<13x64xf32, #tpu.memory_space<vmem>>, vector<1x64xf32>
    tpu.vector_store %arg44[%c7, %c0_264], %372 {strides = array<i32>} : memref<13x64xf32, #tpu.memory_space<vmem>>, vector<1x64xf32>,
    %374 = vector.extract_strided_slice %354 {offsets = [0, 128], sizes = [1, 64], strides = [1, 1]} : vector<1x256xf32> to vector<1x64xf32>
    %c8 = arith.constant 8 : index
    %c0_265 = arith.constant 0 : index
    %375 = vector.load %arg44[%c8, %c0_265] : memref<13x64xf32, #tpu.memory_space<vmem>>, vector<1x64xf32>
    tpu.vector_store %arg44[%c8, %c0_265], %374 {strides = array<i32>} : memref<13x64xf32, #tpu.memory_space<vmem>>, vector<1x64xf32>,
    %376 = vector.extract_strided_slice %354 {offsets = [0, 144], sizes = [1, 64], strides = [1, 1]} : vector<1x256xf32> to vector<1x64xf32>
    %c9 = arith.constant 9 : index
    %c0_266 = arith.constant 0 : index
    %377 = vector.load %arg44[%c9, %c0_266] : memref<13x64xf32, #tpu.memory_space<vmem>>, vector<1x64xf32>
    tpu.vector_store %arg44[%c9, %c0_266], %376 {strides = array<i32>} : memref<13x64xf32, #tpu.memory_space<vmem>>, vector<1x64xf32>,
    %378 = vector.extract_strided_slice %354 {offsets = [0, 160], sizes = [1, 64], strides = [1, 1]} : vector<1x256xf32> to vector<1x64xf32>
    %c10 = arith.constant 10 : index
    %c0_267 = arith.constant 0 : index
    %379 = vector.load %arg44[%c10, %c0_267] : memref<13x64xf32, #tpu.memory_space<vmem>>, vector<1x64xf32>
    tpu.vector_store %arg44[%c10, %c0_267], %378 {strides = array<i32>} : memref<13x64xf32, #tpu.memory_space<vmem>>, vector<1x64xf32>,
    %380 = vector.extract_strided_slice %354 {offsets = [0, 176], sizes = [1, 64], strides = [1, 1]} : vector<1x256xf32> to vector<1x64xf32>
    %c11 = arith.constant 11 : index
    %c0_268 = arith.constant 0 : index
    %381 = vector.load %arg44[%c11, %c0_268] : memref<13x64xf32, #tpu.memory_space<vmem>>, vector<1x64xf32>
    tpu.vector_store %arg44[%c11, %c0_268], %380 {strides = array<i32>} : memref<13x64xf32, #tpu.memory_space<vmem>>, vector<1x64xf32>,
    %382 = vector.extract_strided_slice %354 {offsets = [0, 192], sizes = [1, 64], strides = [1, 1]} : vector<1x256xf32> to vector<1x64xf32>
    %c12 = arith.constant 12 : index
    %c0_269 = arith.constant 0 : index
    %383 = vector.load %arg44[%c12, %c0_269] : memref<13x64xf32, #tpu.memory_space<vmem>>, vector<1x64xf32>
    tpu.vector_store %arg44[%c12, %c0_269], %382 {strides = array<i32>} : memref<13x64xf32, #tpu.memory_space<vmem>>, vector<1x64xf32>,
    %c0_270 = arith.constant 0 : index
    %c0_271 = arith.constant 0 : index
    %384 = vector.load %arg44[%c0_270, %c0_271] : memref<13x64xf32, #tpu.memory_space<vmem>>, vector<13x64xf32>
    %385 = arith.truncf %384 : vector<13x64xf32> to vector<13x64xbf16>
    %c0_272 = arith.constant 0 : index
    %c0_273 = arith.constant 0 : index
    %386 = vector.load %arg41[%c0_272, %c0_273] : memref<64x66xbf16, #tpu.memory_space<vmem>>, vector<64x66xbf16>
    %cst_274 = arith.constant dense<0.000000e+00> : vector<13x66xf32>
    %387 = tpu.matmul %385, %386, %cst_274 {dimension_numbers = #tpu.dot_dimension_numbers<[1], [0], [0], [1], [0, 0, 1, 1], [], []>} : vector<13x64xbf16>, vector<64x66xbf16>, vector<13x66xf32> -> vector<13x66xf32>
    %388 = vector.extract_strided_slice %387 {offsets = [0, 0], sizes = [13, 33], strides = [1, 1]} : vector<13x66xf32> to vector<13x33xf32>
    %389 = vector.extract_strided_slice %387 {offsets = [0, 33], sizes = [13, 33], strides = [1, 1]} : vector<13x66xf32> to vector<13x33xf32>
    %390 = arith.mulf %388, %388 : vector<13x33xf32>
    %391 = arith.mulf %389, %389 : vector<13x33xf32>
    %392 = arith.addf %390, %391 : vector<13x33xf32>
    %cst_275 = arith.constant 9.99999996E-13 : f32
    %393 = vector.broadcast %cst_275 : f32 to vector<13x33xf32>
    %394 = arith.addf %392, %393 : vector<13x33xf32>
    %395 = math.sqrt %394 : vector<13x33xf32>
    %c0_276 = arith.constant 0 : index
    %c0_277 = arith.constant 0 : index
    %c0_278 = arith.constant 0 : index
    %396 = vector.load %arg43[%c0_276, %c0_277, %c0_278] : memref<1x13x33xf32, #tpu.memory_space<vmem>>, vector<1x13x33xf32>
    %397 = vector.shape_cast %396 : vector<1x13x33xf32> to vector<13x33xf32>
    %398 = vector.shape_cast %395 : vector<13x33xf32> to vector<1x13x33xf32>
    tpu.vector_store %arg43[%c0_276, %c0_277, %c0_278], %398 {strides = array<i32>} : memref<1x13x33xf32, #tpu.memory_space<vmem>>, vector<1x13x33xf32>,
    return
  }
  func.func @transform_0(%arg0: i32) -> (i32, i32, i32) {
    %c0_i32 = arith.constant 0 : i32
    %c0_i32_0 = arith.constant 0 : i32
    %c0_i32_1 = arith.constant 0 : i32
    return %arg0, %c0_i32, %c0_i32_0 : i32, i32, i32
  }
  func.func @transform_1(%arg0: i32) -> (i32, i32) {
    %c0_i32 = arith.constant 0 : i32
    %c0_i32_0 = arith.constant 0 : i32
    %c0_i32_1 = arith.constant 0 : i32
    return %c0_i32, %c0_i32_0 : i32, i32
  }
  func.func @transform_2(%arg0: i32) -> (i32, i32) {
    %c0_i32 = arith.constant 0 : i32
    %c0_i32_0 = arith.constant 0 : i32
    %c0_i32_1 = arith.constant 0 : i32
    return %c0_i32, %c0_i32_0 : i32, i32
  }
  func.func @transform_3(%arg0: i32) -> (i32, i32) {
    %c0_i32 = arith.constant 0 : i32
    %c0_i32_0 = arith.constant 0 : i32
    %c0_i32_1 = arith.constant 0 : i32
    return %c0_i32, %c0_i32_0 : i32, i32
  }
  func.func @transform_4(%arg0: i32) -> (i32, i32, i32) {
    %c0_i32 = arith.constant 0 : i32
    %c0_i32_0 = arith.constant 0 : i32
    %c0_i32_1 = arith.constant 0 : i32
    %c0_i32_2 = arith.constant 0 : i32
    return %c0_i32, %c0_i32_0, %c0_i32_1 : i32, i32, i32
  }
  func.func @transform_5(%arg0: i32) -> (i32, i32) {
    %c0_i32 = arith.constant 0 : i32
    %c0_i32_0 = arith.constant 0 : i32
    %c0_i32_1 = arith.constant 0 : i32
    return %c0_i32, %c0_i32_0 : i32, i32
  }
  func.func @transform_6(%arg0: i32) -> (i32, i32) {
    %c0_i32 = arith.constant 0 : i32
    %c0_i32_0 = arith.constant 0 : i32
    %c0_i32_1 = arith.constant 0 : i32
    return %c0_i32, %c0_i32_0 : i32, i32
  }
  func.func @transform_7(%arg0: i32) -> (i32, i32, i32) {
    %c0_i32 = arith.constant 0 : i32
    %c0_i32_0 = arith.constant 0 : i32
    %c0_i32_1 = arith.constant 0 : i32
    %c0_i32_2 = arith.constant 0 : i32
    return %c0_i32, %c0_i32_0, %c0_i32_1 : i32, i32, i32
  }
  func.func @transform_8(%arg0: i32) -> (i32, i32) {
    %c0_i32 = arith.constant 0 : i32
    %c0_i32_0 = arith.constant 0 : i32
    %c0_i32_1 = arith.constant 0 : i32
    return %c0_i32, %c0_i32_0 : i32, i32
  }
  func.func @transform_9(%arg0: i32) -> (i32, i32) {
    %c0_i32 = arith.constant 0 : i32
    %c0_i32_0 = arith.constant 0 : i32
    %c0_i32_1 = arith.constant 0 : i32
    return %c0_i32, %c0_i32_0 : i32, i32
  }
  func.func @transform_10(%arg0: i32) -> (i32, i32, i32) {
    %c0_i32 = arith.constant 0 : i32
    %c0_i32_0 = arith.constant 0 : i32
    %c0_i32_1 = arith.constant 0 : i32
    %c0_i32_2 = arith.constant 0 : i32
    return %c0_i32, %c0_i32_0, %c0_i32_1 : i32, i32, i32
  }
  func.func @transform_11(%arg0: i32) -> (i32, i32) {
    %c0_i32 = arith.constant 0 : i32
    %c0_i32_0 = arith.constant 0 : i32
    %c0_i32_1 = arith.constant 0 : i32
    return %c0_i32, %c0_i32_0 : i32, i32
  }
  func.func @transform_12(%arg0: i32) -> (i32, i32) {
    %c0_i32 = arith.constant 0 : i32
    %c0_i32_0 = arith.constant 0 : i32
    %c0_i32_1 = arith.constant 0 : i32
    return %c0_i32, %c0_i32_0 : i32, i32
  }
  func.func @transform_13(%arg0: i32) -> (i32, i32, i32) {
    %c0_i32 = arith.constant 0 : i32
    %c0_i32_0 = arith.constant 0 : i32
    %c0_i32_1 = arith.constant 0 : i32
    %c0_i32_2 = arith.constant 0 : i32
    return %c0_i32, %c0_i32_0, %c0_i32_1 : i32, i32, i32
  }
  func.func @transform_14(%arg0: i32) -> (i32, i32) {
    %c0_i32 = arith.constant 0 : i32
    %c0_i32_0 = arith.constant 0 : i32
    %c0_i32_1 = arith.constant 0 : i32
    return %c0_i32, %c0_i32_0 : i32, i32
  }
  func.func @transform_15(%arg0: i32) -> (i32, i32) {
    %c0_i32 = arith.constant 0 : i32
    %c0_i32_0 = arith.constant 0 : i32
    %c0_i32_1 = arith.constant 0 : i32
    return %c0_i32, %c0_i32_0 : i32, i32
  }
  func.func @transform_16(%arg0: i32) -> (i32, i32, i32) {
    %c0_i32 = arith.constant 0 : i32
    %c0_i32_0 = arith.constant 0 : i32
    %c0_i32_1 = arith.constant 0 : i32
    %c0_i32_2 = arith.constant 0 : i32
    return %c0_i32, %c0_i32_0, %c0_i32_1 : i32, i32, i32
  }
  func.func @transform_17(%arg0: i32) -> (i32, i32) {
    %c0_i32 = arith.constant 0 : i32
    %c0_i32_0 = arith.constant 0 : i32
    %c0_i32_1 = arith.constant 0 : i32
    return %c0_i32, %c0_i32_0 : i32, i32
  }
  func.func @transform_18(%arg0: i32) -> (i32, i32) {
    %c0_i32 = arith.constant 0 : i32
    %c0_i32_0 = arith.constant 0 : i32
    %c0_i32_1 = arith.constant 0 : i32
    return %c0_i32, %c0_i32_0 : i32, i32
  }
  func.func @transform_19(%arg0: i32) -> (i32, i32, i32) {
    %c0_i32 = arith.constant 0 : i32
    %c0_i32_0 = arith.constant 0 : i32
    %c0_i32_1 = arith.constant 0 : i32
    %c0_i32_2 = arith.constant 0 : i32
    return %c0_i32, %c0_i32_0, %c0_i32_1 : i32, i32, i32
  }
  func.func @transform_20(%arg0: i32) -> (i32, i32) {
    %c0_i32 = arith.constant 0 : i32
    %c0_i32_0 = arith.constant 0 : i32
    %c0_i32_1 = arith.constant 0 : i32
    return %c0_i32, %c0_i32_0 : i32, i32
  }
  func.func @transform_21(%arg0: i32) -> (i32, i32) {
    %c0_i32 = arith.constant 0 : i32
    %c0_i32_0 = arith.constant 0 : i32
    %c0_i32_1 = arith.constant 0 : i32
    return %c0_i32, %c0_i32_0 : i32, i32
  }
  func.func @transform_22(%arg0: i32) -> (i32, i32, i32) {
    %c0_i32 = arith.constant 0 : i32
    %c0_i32_0 = arith.constant 0 : i32
    %c0_i32_1 = arith.constant 0 : i32
    %c0_i32_2 = arith.constant 0 : i32
    return %c0_i32, %c0_i32_0, %c0_i32_1 : i32, i32, i32
  }
  func.func @transform_23(%arg0: i32) -> (i32, i32, i32) {
    %c0_i32 = arith.constant 0 : i32
    %c0_i32_0 = arith.constant 0 : i32
    %c0_i32_1 = arith.constant 0 : i32
    %c0_i32_2 = arith.constant 0 : i32
    return %c0_i32, %c0_i32_0, %c0_i32_1 : i32, i32, i32
  }
  func.func @transform_24(%arg0: i32) -> (i32, i32) {
    %c0_i32 = arith.constant 0 : i32
    %c0_i32_0 = arith.constant 0 : i32
    %c0_i32_1 = arith.constant 0 : i32
    return %c0_i32, %c0_i32_0 : i32, i32
  }
  func.func @transform_25(%arg0: i32) -> (i32, i32) {
    %c0_i32 = arith.constant 0 : i32
    %c0_i32_0 = arith.constant 0 : i32
    %c0_i32_1 = arith.constant 0 : i32
    return %c0_i32, %c0_i32_0 : i32, i32
  }
  func.func @transform_26(%arg0: i32) -> (i32, i32, i32) {
    %c0_i32 = arith.constant 0 : i32
    %c0_i32_0 = arith.constant 0 : i32
    %c0_i32_1 = arith.constant 0 : i32
    %c0_i32_2 = arith.constant 0 : i32
    return %c0_i32, %c0_i32_0, %c0_i32_1 : i32, i32, i32
  }
  func.func @transform_27(%arg0: i32) -> (i32, i32, i32) {
    %c0_i32 = arith.constant 0 : i32
    %c0_i32_0 = arith.constant 0 : i32
    %c0_i32_1 = arith.constant 0 : i32
    %c0_i32_2 = arith.constant 0 : i32
    return %c0_i32, %c0_i32_0, %c0_i32_1 : i32, i32, i32
  }
  func.func @transform_28(%arg0: i32) -> (i32, i32) {
    %c0_i32 = arith.constant 0 : i32
    %c0_i32_0 = arith.constant 0 : i32
    %c0_i32_1 = arith.constant 0 : i32
    return %c0_i32, %c0_i32_0 : i32, i32
  }
  func.func @transform_29(%arg0: i32) -> (i32, i32) {
    %c0_i32 = arith.constant 0 : i32
    %c0_i32_0 = arith.constant 0 : i32
    %c0_i32_1 = arith.constant 0 : i32
    return %c0_i32, %c0_i32_0 : i32, i32
  }
  func.func @transform_30(%arg0: i32) -> (i32, i32, i32) {
    %c0_i32 = arith.constant 0 : i32
    %c0_i32_0 = arith.constant 0 : i32
    %c0_i32_1 = arith.constant 0 : i32
    %c0_i32_2 = arith.constant 0 : i32
    return %c0_i32, %c0_i32_0, %c0_i32_1 : i32, i32, i32
  }
  func.func @transform_31(%arg0: i32) -> (i32, i32, i32) {
    %c0_i32 = arith.constant 0 : i32
    %c0_i32_0 = arith.constant 0 : i32
    %c0_i32_1 = arith.constant 0 : i32
    %c0_i32_2 = arith.constant 0 : i32
    return %c0_i32, %c0_i32_0, %c0_i32_1 : i32, i32, i32
  }
  func.func @transform_32(%arg0: i32) -> (i32, i32) {
    %c0_i32 = arith.constant 0 : i32
    %c0_i32_0 = arith.constant 0 : i32
    %c0_i32_1 = arith.constant 0 : i32
    return %c0_i32, %c0_i32_0 : i32, i32
  }
  func.func @transform_33(%arg0: i32) -> (i32, i32) {
    %c0_i32 = arith.constant 0 : i32
    %c0_i32_0 = arith.constant 0 : i32
    %c0_i32_1 = arith.constant 0 : i32
    return %c0_i32, %c0_i32_0 : i32, i32
  }
  func.func @transform_34(%arg0: i32) -> (i32, i32, i32) {
    %c0_i32 = arith.constant 0 : i32
    %c0_i32_0 = arith.constant 0 : i32
    %c0_i32_1 = arith.constant 0 : i32
    %c0_i32_2 = arith.constant 0 : i32
    return %c0_i32, %c0_i32_0, %c0_i32_1 : i32, i32, i32
  }
  func.func @transform_35(%arg0: i32) -> (i32, i32, i32) {
    %c0_i32 = arith.constant 0 : i32
    %c0_i32_0 = arith.constant 0 : i32
    %c0_i32_1 = arith.constant 0 : i32
    %c0_i32_2 = arith.constant 0 : i32
    return %c0_i32, %c0_i32_0, %c0_i32_1 : i32, i32, i32
  }
  func.func @transform_36(%arg0: i32) -> (i32, i32) {
    %c0_i32 = arith.constant 0 : i32
    %c0_i32_0 = arith.constant 0 : i32
    %c0_i32_1 = arith.constant 0 : i32
    return %c0_i32, %c0_i32_0 : i32, i32
  }
  func.func @transform_37(%arg0: i32) -> (i32, i32) {
    %c0_i32 = arith.constant 0 : i32
    %c0_i32_0 = arith.constant 0 : i32
    %c0_i32_1 = arith.constant 0 : i32
    return %c0_i32, %c0_i32_0 : i32, i32
  }
  func.func @transform_38(%arg0: i32) -> (i32, i32) {
    %c0_i32 = arith.constant 0 : i32
    %c0_i32_0 = arith.constant 0 : i32
    %c0_i32_1 = arith.constant 0 : i32
    return %c0_i32, %c0_i32_0 : i32, i32
  }
  func.func @transform_39(%arg0: i32) -> (i32, i32) {
    %c0_i32 = arith.constant 0 : i32
    %c0_i32_0 = arith.constant 0 : i32
    %c0_i32_1 = arith.constant 0 : i32
    return %c0_i32, %c0_i32_0 : i32, i32
  }
  func.func @transform_40(%arg0: i32) -> (i32, i32) {
    %c0_i32 = arith.constant 0 : i32
    %c0_i32_0 = arith.constant 0 : i32
    %c0_i32_1 = arith.constant 0 : i32
    return %c0_i32, %c0_i32_0 : i32, i32
  }
  func.func @transform_41(%arg0: i32) -> (i32, i32, i32) {
    %c0_i32 = arith.constant 0 : i32
    %c0_i32_0 = arith.constant 0 : i32
    %c0_i32_1 = arith.constant 0 : i32
    return %arg0, %c0_i32, %c0_i32_0 : i32, i32, i32
  }
  func.func @transform_42(%arg0: i32) -> (i32, i32, i32) {
    %c0_i32 = arith.constant 0 : i32
    %c0_i32_0 = arith.constant 0 : i32
    %c0_i32_1 = arith.constant 0 : i32
    return %arg0, %c0_i32, %c0_i32_0 : i32, i32, i32
  }
}

</mosaic_0001>

<llo_original>
// kernel: cnns_forward.1
$region0: #{cnns_forward.1}
  #allocation0 [shape = 'u32[]', space=smem, size = 0x4, offset = 0x4, fixed_abs, tag = 'smem constant byte address 0x4 - core index']
  #allocation1 [shape = 'u32[144,128]{1,0:T(1,128)}', space=vmem, size = 0x12000, scoped, tag = 'internal scratch']
  #allocation2 [shape = 'f32[13,64]{1,0:T(8,128)}', space=vmem, size = 0x2000, scoped, tag = 'scratch operand']
  #allocation3 [shape = 'f32[1,1]{1,0:T(1,128)S(1)}', space=vmem, size = 0x200, scoped, tag = 'scoped memory for cnns_forward.1']
  %s0 = inlined_call_operand.smem [shape: u32[43], index: -1, kind: input, shape index: {}]
  %s1 = sld [smem:[%s0]]
  %s2 = scalar_lea.smem %s0, 1
  %s3 = sld [smem:[%s2]]
  %s4 = scalar_lea.smem %s0, 2
  %s5 = sld [smem:[%s4]]
  %s6 = scalar_lea.smem %s0, 3
  %s7 = sld [smem:[%s6]]
  %s8 = scalar_lea.smem %s0, 4
  %s9 = sld [smem:[%s8]]
  %s10 = scalar_lea.smem %s0, 5
  %s11 = sld [smem:[%s10]]
  %s12 = scalar_lea.smem %s0, 6
  %s13 = sld [smem:[%s12]]
  %s14 = scalar_lea.smem %s0, 7
  %s15 = sld [smem:[%s14]]
  %s16 = scalar_lea.smem %s0, 8
  %s17 = sld [smem:[%s16]]
  %s18 = scalar_lea.smem %s0, 9
  %s19 = sld [smem:[%s18]]
  %s20 = scalar_lea.smem %s0, 10
  %s21 = sld [smem:[%s20]]
  %s22 = scalar_lea.smem %s0, 11
  %s23 = sld [smem:[%s22]]
  %s24 = scalar_lea.smem %s0, 12
  %s25 = sld [smem:[%s24]]
  %s26 = scalar_lea.smem %s0, 13
  %s27 = sld [smem:[%s26]]
  %s28 = scalar_lea.smem %s0, 14
  %s29 = sld [smem:[%s28]]
  %s30 = scalar_lea.smem %s0, 15
  %s31 = sld [smem:[%s30]]
  %s32 = scalar_lea.smem %s0, 16
  %s33 = sld [smem:[%s32]]
  %s34 = scalar_lea.smem %s0, 17
  %s35 = sld [smem:[%s34]]
  %s36 = scalar_lea.smem %s0, 18
  %s37 = sld [smem:[%s36]]
  %s38 = scalar_lea.smem %s0, 19
  %s39 = sld [smem:[%s38]]
  %s40 = scalar_lea.smem %s0, 20
  %s41 = sld [smem:[%s40]]
  %s42 = scalar_lea.smem %s0, 21
  %s43 = sld [smem:[%s42]]
  %s44 = scalar_lea.smem %s0, 22
  %s45 = sld [smem:[%s44]]
  %s46 = scalar_lea.smem %s0, 23
  %s47 = sld [smem:[%s46]]
  %s48 = scalar_lea.smem %s0, 24
  %s49 = sld [smem:[%s48]]
  %s50 = scalar_lea.smem %s0, 25
  %s51 = sld [smem:[%s50]]
  %s52 = scalar_lea.smem %s0, 26
  %s53 = sld [smem:[%s52]]
  %s54 = scalar_lea.smem %s0, 27
  %s55 = sld [smem:[%s54]]
  %s56 = scalar_lea.smem %s0, 28
  %s57 = sld [smem:[%s56]]
  %s58 = scalar_lea.smem %s0, 29
  %s59 = sld [smem:[%s58]]
  %s60 = scalar_lea.smem %s0, 30
  %s61 = sld [smem:[%s60]]
  %s62 = scalar_lea.smem %s0, 31
  %s63 = sld [smem:[%s62]]
  %s64 = scalar_lea.smem %s0, 32
  %s65 = sld [smem:[%s64]]
  %s66 = scalar_lea.smem %s0, 33
  %s67 = sld [smem:[%s66]]
  %s68 = scalar_lea.smem %s0, 34
  %s69 = sld [smem:[%s68]]
  %s70 = scalar_lea.smem %s0, 35
  %s71 = sld [smem:[%s70]]
  %s72 = scalar_lea.smem %s0, 36
  %s73 = sld [smem:[%s72]]
  %s74 = scalar_lea.smem %s0, 37
  %s75 = sld [smem:[%s74]]
  %s76 = scalar_lea.smem %s0, 38
  %s77 = sld [smem:[%s76]]
  %s78 = scalar_lea.smem %s0, 39
  %s79 = sld [smem:[%s78]]
  %s80 = scalar_lea.smem %s0, 40
  %s81 = sld [smem:[%s80]]
  %s82 = scalar_lea.smem %s0, 41
  %s83 = sld [smem:[%s82]]
  %s84 = scalar_lea.smem %s0, 42
  %s85 = sld [smem:[%s84]]
  %86 = xla_tuple %s83, %s85
  %s87 = sld [smem:[#allocation0]]
  $region205: #{cnns_forward.1} parent=0
    _
  %s89 = ssub.s32 1, %s87
  %s90 = scalar_select 0, %s89, %s87
  %v91 = vstv %s79
  %92 = vst [vmem:[#allocation3] sm:$0x1] %v91
  $region1: #{cnns_forward.1} parent=0
    #allocation4 [shape = 'u8[2048]{0}', space=vmem, size = 0x800, scoped, tag = 'output window, operand 0']
    #allocation5 [shape = 's32[2]{0}', space=sflag, size = 0x8, scoped, tag = 'scoped memory for cnns_forward.1']
    %93 = vsyncpa [#allocation5], 0
    %s94 = scalar_lea.sflag [#allocation5], 1
    %95 = vsyncpa %s94, 0
    loop: start=0, step=1, limit=4
    $region2: #{cnns_forward.1} parent=1 // loop_pre_header
      _
    $region3: #{cnns_forward.1} parent=1 // loop_header
      %s97 = sphi 0, %s101
      %p98 = scmp.ge.s32.totalorder %s97, 4
      %s107 = sphi 0, %s109
      %s110 = sphi 0, %s107
      %s111 = sphi 0, %s110
      %s127 = sphi 0, %s111
      %s131 = sphi 0, %s131
      %s133 = sphi 0, %s131
      %s134 = sphi 0, %s133
      %s148 = sphi 0, %s134
      %s152 = sphi 0, %s152
      %s154 = sphi 0, %s152
      %s155 = sphi 0, %s154
      %s169 = sphi 0, %s155
      %s173 = sphi 0, %s173
      %s175 = sphi 0, %s173
      %s176 = sphi 0, %s175
      %s190 = sphi 0, %s176
      %s194 = sphi 0, %s194
      %s196 = sphi 0, %s194
      %s197 = sphi 0, %s196
      %s211 = sphi 0, %s197
      %s215 = sphi 0, %s215
      %s217 = sphi 0, %s215
      %s218 = sphi 0, %s217
      %s232 = sphi 0, %s218
      %s236 = sphi 0, %s236
      %s238 = sphi 0, %s236
      %s239 = sphi 0, %s238
      %s253 = sphi 0, %s239
      %s257 = sphi 0, %s257
      %s259 = sphi 0, %s257
      %s260 = sphi 0, %s259
      %s274 = sphi 0, %s260
      %s278 = sphi 0, %s278
      %s280 = sphi 0, %s278
      %s281 = sphi 0, %s280
      %s295 = sphi 0, %s281
      %s299 = sphi 0, %s299
      %s301 = sphi 0, %s299
      %s302 = sphi 0, %s301
      %s316 = sphi 0, %s302
      %s320 = sphi 0, %s320
      %s322 = sphi 0, %s320
      %s323 = sphi 0, %s322
      %s337 = sphi 0, %s323
      %s341 = sphi 0, %s341
      %s343 = sphi 0, %s341
      %s344 = sphi 0, %s343
      %s358 = sphi 0, %s344
      %s362 = sphi 0, %s362
      %s364 = sphi 0, %s362
      %s365 = sphi 0, %s364
      %s379 = sphi 0, %s365
      %s383 = sphi 0, %s383
      %s385 = sphi 0, %s383
      %s386 = sphi 0, %s385
      %s400 = sphi 0, %s386
      %s404 = sphi 0, %s404
      %s406 = sphi 0, %s404
      %s407 = sphi 0, %s406
      %s421 = sphi 0, %s407
      %s425 = sphi 0, %s425
      %s427 = sphi 0, %s425
      %s428 = sphi 0, %s427
      %s442 = sphi 0, %s428
      %s446 = sphi 0, %s446
      %s448 = sphi 0, %s446
      %s449 = sphi 0, %s448
      %s463 = sphi 0, %s449
      %s467 = sphi 0, %s467
      %s469 = sphi 0, %s467
      %s470 = sphi 0, %s469
      %s484 = sphi 0, %s470
      %s488 = sphi 0, %s488
      %s490 = sphi 0, %s488
      %s491 = sphi 0, %s490
      %s505 = sphi 0, %s491
      %s509 = sphi 0, %s509
      %s511 = sphi 0, %s509
      %s512 = sphi 0, %s511
      %s526 = sphi 0, %s512
      %s530 = sphi 0, %s530
      %s532 = sphi 0, %s530
      %s533 = sphi 0, %s532
      %s547 = sphi 0, %s533
      %s551 = sphi 0, %s551
      %s553 = sphi 0, %s551
      %s554 = sphi 0, %s553
      %s568 = sphi 0, %s554
      %s572 = sphi 0, %s572
      %s574 = sphi 0, %s572
      %s575 = sphi 0, %s574
      %s589 = sphi 0, %s575
      %s593 = sphi 0, %s593
      %s595 = sphi 0, %s593
      %s596 = sphi 0, %s595
      %s610 = sphi 0, %s596
      %s614 = sphi 0, %s614
      %s616 = sphi 0, %s614
      %s617 = sphi 0, %s616
      %s631 = sphi 0, %s617
      %s635 = sphi 0, %s635
      %s637 = sphi 0, %s635
      %s638 = sphi 0, %s637
      %s652 = sphi 0, %s638
      %s656 = sphi 0, %s656
      %s658 = sphi 0, %s656
      %s659 = sphi 0, %s658
      %s673 = sphi 0, %s659
      %s677 = sphi 0, %s677
      %s679 = sphi 0, %s677
      %s680 = sphi 0, %s679
      %s694 = sphi 0, %s680
      %s698 = sphi 0, %s698
      %s700 = sphi 0, %s698
      %s701 = sphi 0, %s700
      %s715 = sphi 0, %s701
      %s719 = sphi 0, %s719
      %s721 = sphi 0, %s719
      %s722 = sphi 0, %s721
      %s736 = sphi 0, %s722
      %s740 = sphi 0, %s740
      %s742 = sphi 0, %s740
      %s743 = sphi 0, %s742
      %s757 = sphi 0, %s743
      %s761 = sphi 0, %s761
      %s763 = sphi 0, %s761
      %s764 = sphi 0, %s763
      %s778 = sphi 0, %s764
      %s782 = sphi 0, %s782
      %s784 = sphi 0, %s782
      %s785 = sphi 0, %s784
      %s799 = sphi 0, %s785
      %s803 = sphi 0, %s803
      %s805 = sphi 0, %s803
      %s806 = sphi 0, %s805
      %s820 = sphi 0, %s806
      %s824 = sphi 0, %s824
      %s826 = sphi 0, %s824
      %s827 = sphi 0, %s826
      %s841 = sphi 0, %s827
      %s845 = sphi 0, %s845
      %s847 = sphi 0, %s845
      %s848 = sphi 0, %s847
      %s862 = sphi 0, %s848
      %s866 = sphi 0, %s866
      %s868 = sphi 0, %s866
      %s869 = sphi 0, %s868
      %s883 = sphi 0, %s869
      %s887 = sphi 0, %s887
      %s889 = sphi 0, %s887
      %s890 = sphi 0, %s889
      %s904 = sphi 0, %s890
      %s908 = sphi 0, %s908
      %s910 = sphi 0, %s908
      %s911 = sphi 0, %s910
      %s925 = sphi 0, %s911
      %s929 = sphi 0, %s929
      %s931 = sphi 0, %s929
      %s932 = sphi 0, %s931
      %s946 = sphi 0, %s932
      %s950 = sphi 0, %s950
      %s952 = sphi 0, %s950
      %s953 = sphi 0, %s952
      %s967 = sphi 0, %s953
      %s973 = sphi 0, %s975
      %s976 = sphi 0, %s973
      %s977 = sphi 0, %s976
      %s993 = sphi 0, %s977
      %s999 = sphi 0, %s1001
      %s1002 = sphi 0, %s999
      %s1003 = sphi 0, %s1002
      %s1019 = sphi 0, %s1003
    $region4: #{cnns_forward.1} parent=1 // loop_header_branch
      %100 = sbr.rel (%p98) target = $region8
    $region5: #{cnns_forward.1} parent=1 // loop_body
      %s102 = ssub.s32 %s97, 1
      %s103 = ssub.s32 %s97, 2
      %s104 = sadd.s32 %s97, 1
      %s105 = ssub.s32 %s97, %s104
      %p106 = scmp.eq.s32.totalorder %s105, 0
      %s108 = sadd.s32 %s107, 1
      %s109 = scalar_select %p106, %s107, %s108
      %p112 = pneg %p106
      %p113 = scmp.eq.s32.totalorder %s97, 1
      %p114 = por %p112, %p113
      %p115 = scmp.ne.s32.totalorder %s107, %s110
      %p116 = scmp.eq.s32.totalorder %s97, 0
      %p117 = por %p115, %p116
      %p118 = scmp.ne.s32.totalorder %s107, %s110
      %p119 = scmp.eq.s32.totalorder %s102, 1
      %p120 = por %p118, %p119
      %p121 = scmp.ne.s32.totalorder %s110, %s111
      %p122 = scmp.eq.s32.totalorder %s102, 0
      %p123 = por %p121, %p122
      %p124 = scmp.ne.s32.totalorder %s110, %s111
      %p125 = scmp.eq.s32.totalorder %s103, 1
      %p126 = por %p124, %p125
      %p128 = scmp.ne.s32.totalorder %s111, %s127
      %p129 = scmp.eq.s32.totalorder %s103, 0
      %p130 = por %p128, %p129
      %s132 = sadd.s32 %s131, 1
      %p135 = scmp.eq.s32.totalorder %s97, 1
      %p136 = scmp.ne.s32.totalorder %s131, %s133
      %p137 = scmp.eq.s32.totalorder %s97, 0
      %p138 = por %p136, %p137
      %p139 = scmp.ne.s32.totalorder %s131, %s133
      %p140 = scmp.eq.s32.totalorder %s102, 1
      %p141 = por %p139, %p140
      %p142 = scmp.ne.s32.totalorder %s133, %s134
      %p143 = scmp.eq.s32.totalorder %s102, 0
      %p144 = por %p142, %p143
      %p145 = scmp.ne.s32.totalorder %s133, %s134
      %p146 = scmp.eq.s32.totalorder %s103, 1
      %p147 = por %p145, %p146
      %p149 = scmp.ne.s32.totalorder %s134, %s148
      %p150 = scmp.eq.s32.totalorder %s103, 0
      %p151 = por %p149, %p150
      %s153 = sadd.s32 %s152, 1
      %p156 = scmp.eq.s32.totalorder %s97, 1
      %p157 = scmp.ne.s32.totalorder %s152, %s154
      %p158 = scmp.eq.s32.totalorder %s97, 0
      %p159 = por %p157, %p158
      %p160 = scmp.ne.s32.totalorder %s152, %s154
      %p161 = scmp.eq.s32.totalorder %s102, 1
      %p162 = por %p160, %p161
      %p163 = scmp.ne.s32.totalorder %s154, %s155
      %p164 = scmp.eq.s32.totalorder %s102, 0
      %p165 = por %p163, %p164
      %p166 = scmp.ne.s32.totalorder %s154, %s155
      %p167 = scmp.eq.s32.totalorder %s103, 1
      %p168 = por %p166, %p167
      %p170 = scmp.ne.s32.totalorder %s155, %s169
      %p171 = scmp.eq.s32.totalorder %s103, 0
      %p172 = por %p170, %p171
      %s174 = sadd.s32 %s173, 1
      %p177 = scmp.eq.s32.totalorder %s97, 1
      %p178 = scmp.ne.s32.totalorder %s173, %s175
      %p179 = scmp.eq.s32.totalorder %s97, 0
      %p180 = por %p178, %p179
      %p181 = scmp.ne.s32.totalorder %s173, %s175
      %p182 = scmp.eq.s32.totalorder %s102, 1
      %p183 = por %p181, %p182
      %p184 = scmp.ne.s32.totalorder %s175, %s176
      %p185 = scmp.eq.s32.totalorder %s102, 0
      %p186 = por %p184, %p185
      %p187 = scmp.ne.s32.totalorder %s175, %s176
      %p188 = scmp.eq.s32.totalorder %s103, 1
      %p189 = por %p187, %p188
      %p191 = scmp.ne.s32.totalorder %s176, %s190
      %p192 = scmp.eq.s32.totalorder %s103, 0
      %p193 = por %p191, %p192
      %s195 = sadd.s32 %s194, 1
      %p198 = scmp.eq.s32.totalorder %s97, 1
      %p199 = scmp.ne.s32.totalorder %s194, %s196
      %p200 = scmp.eq.s32.totalorder %s97, 0
      %p201 = por %p199, %p200
      %p202 = scmp.ne.s32.totalorder %s194, %s196
      %p203 = scmp.eq.s32.totalorder %s102, 1
      %p204 = por %p202, %p203
      %p205 = scmp.ne.s32.totalorder %s196, %s197
      %p206 = scmp.eq.s32.totalorder %s102, 0
      %p207 = por %p205, %p206
      %p208 = scmp.ne.s32.totalorder %s196, %s197
      %p209 = scmp.eq.s32.totalorder %s103, 1
      %p210 = por %p208, %p209
      %p212 = scmp.ne.s32.totalorder %s197, %s211
      %p213 = scmp.eq.s32.totalorder %s103, 0
      %p214 = por %p212, %p213
      %s216 = sadd.s32 %s215, 1
      %p219 = scmp.eq.s32.totalorder %s97, 1
      %p220 = scmp.ne.s32.totalorder %s215, %s217
      %p221 = scmp.eq.s32.totalorder %s97, 0
      %p222 = por %p220, %p221
      %p223 = scmp.ne.s32.totalorder %s215, %s217
      %p224 = scmp.eq.s32.totalorder %s102, 1
      %p225 = por %p223, %p224
      %p226 = scmp.ne.s32.totalorder %s217, %s218
      %p227 = scmp.eq.s32.totalorder %s102, 0
      %p228 = por %p226, %p227
      %p229 = scmp.ne.s32.totalorder %s217, %s218
      %p230 = scmp.eq.s32.totalorder %s103, 1
      %p231 = por %p229, %p230
      %p233 = scmp.ne.s32.totalorder %s218, %s232
      %p234 = scmp.eq.s32.totalorder %s103, 0
      %p235 = por %p233, %p234
      %s237 = sadd.s32 %s236, 1
      %p240 = scmp.eq.s32.totalorder %s97, 1
      %p241 = scmp.ne.s32.totalorder %s236, %s238
      %p242 = scmp.eq.s32.totalorder %s97, 0
      %p243 = por %p241, %p242
      %p244 = scmp.ne.s32.totalorder %s236, %s238
      %p245 = scmp.eq.s32.totalorder %s102, 1
      %p246 = por %p244, %p245
      %p247 = scmp.ne.s32.totalorder %s238, %s239
      %p248 = scmp.eq.s32.totalorder %s102, 0
      %p249 = por %p247, %p248
      %p250 = scmp.ne.s32.totalorder %s238, %s239
      %p251 = scmp.eq.s32.totalorder %s103, 1
      %p252 = por %p250, %p251
      %p254 = scmp.ne.s32.totalorder %s239, %s253
      %p255 = scmp.eq.s32.totalorder %s103, 0
      %p256 = por %p254, %p255
      %s258 = sadd.s32 %s257, 1
      %p261 = scmp.eq.s32.totalorder %s97, 1
      %p262 = scmp.ne.s32.totalorder %s257, %s259
      %p263 = scmp.eq.s32.totalorder %s97, 0
      %p264 = por %p262, %p263
      %p265 = scmp.ne.s32.totalorder %s257, %s259
      %p266 = scmp.eq.s32.totalorder %s102, 1
      %p267 = por %p265, %p266
      %p268 = scmp.ne.s32.totalorder %s259, %s260
      %p269 = scmp.eq.s32.totalorder %s102, 0
      %p270 = por %p268, %p269
      %p271 = scmp.ne.s32.totalorder %s259, %s260
      %p272 = scmp.eq.s32.totalorder %s103, 1
      %p273 = por %p271, %p272
      %p275 = scmp.ne.s32.totalorder %s260, %s274
      %p276 = scmp.eq.s32.totalorder %s103, 0
      %p277 = por %p275, %p276
      %s279 = sadd.s32 %s278, 1
      %p282 = scmp.eq.s32.totalorder %s97, 1
      %p283 = scmp.ne.s32.totalorder %s278, %s280
      %p284 = scmp.eq.s32.totalorder %s97, 0
      %p285 = por %p283, %p284
      %p286 = scmp.ne.s32.totalorder %s278, %s280
      %p287 = scmp.eq.s32.totalorder %s102, 1
      %p288 = por %p286, %p287
      %p289 = scmp.ne.s32.totalorder %s280, %s281
      %p290 = scmp.eq.s32.totalorder %s102, 0
      %p291 = por %p289, %p290
      %p292 = scmp.ne.s32.totalorder %s280, %s281
      %p293 = scmp.eq.s32.totalorder %s103, 1
      %p294 = por %p292, %p293
      %p296 = scmp.ne.s32.totalorder %s281, %s295
      %p297 = scmp.eq.s32.totalorder %s103, 0
      %p298 = por %p296, %p297
      %s300 = sadd.s32 %s299, 1
      %p303 = scmp.eq.s32.totalorder %s97, 1
      %p304 = scmp.ne.s32.totalorder %s299, %s301
      %p305 = scmp.eq.s32.totalorder %s97, 0
      %p306 = por %p304, %p305
      %p307 = scmp.ne.s32.totalorder %s299, %s301
      %p308 = scmp.eq.s32.totalorder %s102, 1
      %p309 = por %p307, %p308
      %p310 = scmp.ne.s32.totalorder %s301, %s302
      %p311 = scmp.eq.s32.totalorder %s102, 0
      %p312 = por %p310, %p311
      %p313 = scmp.ne.s32.totalorder %s301, %s302
      %p314 = scmp.eq.s32.totalorder %s103, 1
      %p315 = por %p313, %p314
      %p317 = scmp.ne.s32.totalorder %s302, %s316
      %p318 = scmp.eq.s32.totalorder %s103, 0
      %p319 = por %p317, %p318
      %s321 = sadd.s32 %s320, 1
      %p324 = scmp.eq.s32.totalorder %s97, 1
      %p325 = scmp.ne.s32.totalorder %s320, %s322
      %p326 = scmp.eq.s32.totalorder %s97, 0
      %p327 = por %p325, %p326
      %p328 = scmp.ne.s32.totalorder %s320, %s322
      %p329 = scmp.eq.s32.totalorder %s102, 1
      %p330 = por %p328, %p329
      %p331 = scmp.ne.s32.totalorder %s322, %s323
      %p332 = scmp.eq.s32.totalorder %s102, 0
      %p333 = por %p331, %p332
      %p334 = scmp.ne.s32.totalorder %s322, %s323
      %p335 = scmp.eq.s32.totalorder %s103, 1
      %p336 = por %p334, %p335
      %p338 = scmp.ne.s32.totalorder %s323, %s337
      %p339 = scmp.eq.s32.totalorder %s103, 0
      %p340 = por %p338, %p339
      %s342 = sadd.s32 %s341, 1
      %p345 = scmp.eq.s32.totalorder %s97, 1
      %p346 = scmp.ne.s32.totalorder %s341, %s343
      %p347 = scmp.eq.s32.totalorder %s97, 0
      %p348 = por %p346, %p347
      %p349 = scmp.ne.s32.totalorder %s341, %s343
      %p350 = scmp.eq.s32.totalorder %s102, 1
      %p351 = por %p349, %p350
      %p352 = scmp.ne.s32.totalorder %s343, %s344
      %p353 = scmp.eq.s32.totalorder %s102, 0
      %p354 = por %p352, %p353
      %p355 = scmp.ne.s32.totalorder %s343, %s344
      %p356 = scmp.eq.s32.totalorder %s103, 1
      %p357 = por %p355, %p356
      %p359 = scmp.ne.s32.totalorder %s344, %s358
      %p360 = scmp.eq.s32.totalorder %s103, 0
      %p361 = por %p359, %p360
      %s363 = sadd.s32 %s362, 1
      %p366 = scmp.eq.s32.totalorder %s97, 1
      %p367 = scmp.ne.s32.totalorder %s362, %s364
      %p368 = scmp.eq.s32.totalorder %s97, 0
      %p369 = por %p367, %p368
      %p370 = scmp.ne.s32.totalorder %s362, %s364
      %p371 = scmp.eq.s32.totalorder %s102, 1
      %p372 = por %p370, %p371
      %p373 = scmp.ne.s32.totalorder %s364, %s365
      %p374 = scmp.eq.s32.totalorder %s102, 0
      %p375 = por %p373, %p374
      %p376 = scmp.ne.s32.totalorder %s364, %s365
      %p377 = scmp.eq.s32.totalorder %s103, 1
      %p378 = por %p376, %p377
      %p380 = scmp.ne.s32.totalorder %s365, %s379
      %p381 = scmp.eq.s32.totalorder %s103, 0
      %p382 = por %p380, %p381
      %s384 = sadd.s32 %s383, 1
      %p387 = scmp.eq.s32.totalorder %s97, 1
      %p388 = scmp.ne.s32.totalorder %s383, %s385
      %p389 = scmp.eq.s32.totalorder %s97, 0
      %p390 = por %p388, %p389
      %p391 = scmp.ne.s32.totalorder %s383, %s385
      %p392 = scmp.eq.s32.totalorder %s102, 1
      %p393 = por %p391, %p392
      %p394 = scmp.ne.s32.totalorder %s385, %s386
      %p395 = scmp.eq.s32.totalorder %s102, 0
      %p396 = por %p394, %p395
      %p397 = scmp.ne.s32.totalorder %s385, %s386
      %p398 = scmp.eq.s32.totalorder %s103, 1
      %p399 = por %p397, %p398
      %p401 = scmp.ne.s32.totalorder %s386, %s400
      %p402 = scmp.eq.s32.totalorder %s103, 0
      %p403 = por %p401, %p402
      %s405 = sadd.s32 %s404, 1
      %p408 = scmp.eq.s32.totalorder %s97, 1
      %p409 = scmp.ne.s32.totalorder %s404, %s406
      %p410 = scmp.eq.s32.totalorder %s97, 0
      %p411 = por %p409, %p410
      %p412 = scmp.ne.s32.totalorder %s404, %s406
      %p413 = scmp.eq.s32.totalorder %s102, 1
      %p414 = por %p412, %p413
      %p415 = scmp.ne.s32.totalorder %s406, %s407
      %p416 = scmp.eq.s32.totalorder %s102, 0
      %p417 = por %p415, %p416
      %p418 = scmp.ne.s32.totalorder %s406, %s407
      %p419 = scmp.eq.s32.totalorder %s103, 1
      %p420 = por %p418, %p419
      %p422 = scmp.ne.s32.totalorder %s407, %s421
      %p423 = scmp.eq.s32.totalorder %s103, 0
      %p424 = por %p422, %p423
      %s426 = sadd.s32 %s425, 1
      %p429 = scmp.eq.s32.totalorder %s97, 1
      %p430 = scmp.ne.s32.totalorder %s425, %s427
      %p431 = scmp.eq.s32.totalorder %s97, 0
      %p432 = por %p430, %p431
      %p433 = scmp.ne.s32.totalorder %s425, %s427
      %p434 = scmp.eq.s32.totalorder %s102, 1
      %p435 = por %p433, %p434
      %p436 = scmp.ne.s32.totalorder %s427, %s428
      %p437 = scmp.eq.s32.totalorder %s102, 0
      %p438 = por %p436, %p437
      %p439 = scmp.ne.s32.totalorder %s427, %s428
      %p440 = scmp.eq.s32.totalorder %s103, 1
      %p441 = por %p439, %p440
      %p443 = scmp.ne.s32.totalorder %s428, %s442
      %p444 = scmp.eq.s32.totalorder %s103, 0
      %p445 = por %p443, %p444
      %s447 = sadd.s32 %s446, 1
      %p450 = scmp.eq.s32.totalorder %s97, 1
      %p451 = scmp.ne.s32.totalorder %s446, %s448
      %p452 = scmp.eq.s32.totalorder %s97, 0
      %p453 = por %p451, %p452
      %p454 = scmp.ne.s32.totalorder %s446, %s448
      %p455 = scmp.eq.s32.totalorder %s102, 1
      %p456 = por %p454, %p455
      %p457 = scmp.ne.s32.totalorder %s448, %s449
      %p458 = scmp.eq.s32.totalorder %s102, 0
      %p459 = por %p457, %p458
      %p460 = scmp.ne.s32.totalorder %s448, %s449
      %p461 = scmp.eq.s32.totalorder %s103, 1
      %p462 = por %p460, %p461
      %p464 = scmp.ne.s32.totalorder %s449, %s463
      %p465 = scmp.eq.s32.totalorder %s103, 0
      %p466 = por %p464, %p465
      %s468 = sadd.s32 %s467, 1
      %p471 = scmp.eq.s32.totalorder %s97, 1
      %p472 = scmp.ne.s32.totalorder %s467, %s469
      %p473 = scmp.eq.s32.totalorder %s97, 0
      %p474 = por %p472, %p473
      %p475 = scmp.ne.s32.totalorder %s467, %s469
      %p476 = scmp.eq.s32.totalorder %s102, 1
      %p477 = por %p475, %p476
      %p478 = scmp.ne.s32.totalorder %s469, %s470
      %p479 = scmp.eq.s32.totalorder %s102, 0
      %p480 = por %p478, %p479
      %p481 = scmp.ne.s32.totalorder %s469, %s470
      %p482 = scmp.eq.s32.totalorder %s103, 1
      %p483 = por %p481, %p482
      %p485 = scmp.ne.s32.totalorder %s470, %s484
      %p486 = scmp.eq.s32.totalorder %s103, 0
      %p487 = por %p485, %p486
      %s489 = sadd.s32 %s488, 1
      %p492 = scmp.eq.s32.totalorder %s97, 1
      %p493 = scmp.ne.s32.totalorder %s488, %s490
      %p494 = scmp.eq.s32.totalorder %s97, 0
      %p495 = por %p493, %p494
      %p496 = scmp.ne.s32.totalorder %s488, %s490
      %p497 = scmp.eq.s32.totalorder %s102, 1
      %p498 = por %p496, %p497
      %p499 = scmp.ne.s32.totalorder %s490, %s491
      %p500 = scmp.eq.s32.totalorder %s102, 0
      %p501 = por %p499, %p500
      %p502 = scmp.ne.s32.totalorder %s490, %s491
      %p503 = scmp.eq.s32.totalorder %s103, 1
      %p504 = por %p502, %p503
      %p506 = scmp.ne.s32.totalorder %s491, %s505
      %p507 = scmp.eq.s32.totalorder %s103, 0
      %p508 = por %p506, %p507
      %s510 = sadd.s32 %s509, 1
      %p513 = scmp.eq.s32.totalorder %s97, 1
      %p514 = scmp.ne.s32.totalorder %s509, %s511
      %p515 = scmp.eq.s32.totalorder %s97, 0
      %p516 = por %p514, %p515
      %p517 = scmp.ne.s32.totalorder %s509, %s511
      %p518 = scmp.eq.s32.totalorder %s102, 1
      %p519 = por %p517, %p518
      %p520 = scmp.ne.s32.totalorder %s511, %s512
      %p521 = scmp.eq.s32.totalorder %s102, 0
      %p522 = por %p520, %p521
      %p523 = scmp.ne.s32.totalorder %s511, %s512
      %p524 = scmp.eq.s32.totalorder %s103, 1
      %p525 = por %p523, %p524
      %p527 = scmp.ne.s32.totalorder %s512, %s526
      %p528 = scmp.eq.s32.totalorder %s103, 0
      %p529 = por %p527, %p528
      %s531 = sadd.s32 %s530, 1
      %p534 = scmp.eq.s32.totalorder %s97, 1
      %p535 = scmp.ne.s32.totalorder %s530, %s532
      %p536 = scmp.eq.s32.totalorder %s97, 0
      %p537 = por %p535, %p536
      %p538 = scmp.ne.s32.totalorder %s530, %s532
      %p539 = scmp.eq.s32.totalorder %s102, 1
      %p540 = por %p538, %p539
      %p541 = scmp.ne.s32.totalorder %s532, %s533
      %p542 = scmp.eq.s32.totalorder %s102, 0
      %p543 = por %p541, %p542
      %p544 = scmp.ne.s32.totalorder %s532, %s533
      %p545 = scmp.eq.s32.totalorder %s103, 1
      %p546 = por %p544, %p545
      %p548 = scmp.ne.s32.totalorder %s533, %s547
      %p549 = scmp.eq.s32.totalorder %s103, 0
      %p550 = por %p548, %p549
      %s552 = sadd.s32 %s551, 1
      %p555 = scmp.eq.s32.totalorder %s97, 1
      %p556 = scmp.ne.s32.totalorder %s551, %s553
      %p557 = scmp.eq.s32.totalorder %s97, 0
      %p558 = por %p556, %p557
      %p559 = scmp.ne.s32.totalorder %s551, %s553
      %p560 = scmp.eq.s32.totalorder %s102, 1
      %p561 = por %p559, %p560
      %p562 = scmp.ne.s32.totalorder %s553, %s554
      %p563 = scmp.eq.s32.totalorder %s102, 0
      %p564 = por %p562, %p563
      %p565 = scmp.ne.s32.totalorder %s553, %s554
      %p566 = scmp.eq.s32.totalorder %s103, 1
      %p567 = por %p565, %p566
      %p569 = scmp.ne.s32.totalorder %s554, %s568
      %p570 = scmp.eq.s32.totalorder %s103, 0
      %p571 = por %p569, %p570
      %s573 = sadd.s32 %s572, 1
      %p576 = scmp.eq.s32.totalorder %s97, 1
      %p577 = scmp.ne.s32.totalorder %s572, %s574
      %p578 = scmp.eq.s32.totalorder %s97, 0
      %p579 = por %p577, %p578
      %p580 = scmp.ne.s32.totalorder %s572, %s574
      %p581 = scmp.eq.s32.totalorder %s102, 1
      %p582 = por %p580, %p581
      %p583 = scmp.ne.s32.totalorder %s574, %s575
      %p584 = scmp.eq.s32.totalorder %s102, 0
      %p585 = por %p583, %p584
      %p586 = scmp.ne.s32.totalorder %s574, %s575
      %p587 = scmp.eq.s32.totalorder %s103, 1
      %p588 = por %p586, %p587
      %p590 = scmp.ne.s32.totalorder %s575, %s589
      %p591 = scmp.eq.s32.totalorder %s103, 0
      %p592 = por %p590, %p591
      %s594 = sadd.s32 %s593, 1
      %p597 = scmp.eq.s32.totalorder %s97, 1
      %p598 = scmp.ne.s32.totalorder %s593, %s595
      %p599 = scmp.eq.s32.totalorder %s97, 0
      %p600 = por %p598, %p599
      %p601 = scmp.ne.s32.totalorder %s593, %s595
      %p602 = scmp.eq.s32.totalorder %s102, 1
      %p603 = por %p601, %p602
      %p604 = scmp.ne.s32.totalorder %s595, %s596
      %p605 = scmp.eq.s32.totalorder %s102, 0
      %p606 = por %p604, %p605
      %p607 = scmp.ne.s32.totalorder %s595, %s596
      %p608 = scmp.eq.s32.totalorder %s103, 1
      %p609 = por %p607, %p608
      %p611 = scmp.ne.s32.totalorder %s596, %s610
      %p612 = scmp.eq.s32.totalorder %s103, 0
      %p613 = por %p611, %p612
      %s615 = sadd.s32 %s614, 1
      %p618 = scmp.eq.s32.totalorder %s97, 1
      %p619 = scmp.ne.s32.totalorder %s614, %s616
      %p620 = scmp.eq.s32.totalorder %s97, 0
      %p621 = por %p619, %p620
      %p622 = scmp.ne.s32.totalorder %s614, %s616
      %p623 = scmp.eq.s32.totalorder %s102, 1
      %p624 = por %p622, %p623
      %p625 = scmp.ne.s32.totalorder %s616, %s617
      %p626 = scmp.eq.s32.totalorder %s102, 0
      %p627 = por %p625, %p626
      %p628 = scmp.ne.s32.totalorder %s616, %s617
      %p629 = scmp.eq.s32.totalorder %s103, 1
      %p630 = por %p628, %p629
      %p632 = scmp.ne.s32.totalorder %s617, %s631
      %p633 = scmp.eq.s32.totalorder %s103, 0
      %p634 = por %p632, %p633
      %s636 = sadd.s32 %s635, 1
      %p639 = scmp.eq.s32.totalorder %s97, 1
      %p640 = scmp.ne.s32.totalorder %s635, %s637
      %p641 = scmp.eq.s32.totalorder %s97, 0
      %p642 = por %p640, %p641
      %p643 = scmp.ne.s32.totalorder %s635, %s637
      %p644 = scmp.eq.s32.totalorder %s102, 1
      %p645 = por %p643, %p644
      %p646 = scmp.ne.s32.totalorder %s637, %s638
      %p647 = scmp.eq.s32.totalorder %s102, 0
      %p648 = por %p646, %p647
      %p649 = scmp.ne.s32.totalorder %s637, %s638
      %p650 = scmp.eq.s32.totalorder %s103, 1
      %p651 = por %p649, %p650
      %p653 = scmp.ne.s32.totalorder %s638, %s652
      %p654 = scmp.eq.s32.totalorder %s103, 0
      %p655 = por %p653, %p654
      %s657 = sadd.s32 %s656, 1
      %p660 = scmp.eq.s32.totalorder %s97, 1
      %p661 = scmp.ne.s32.totalorder %s656, %s658
      %p662 = scmp.eq.s32.totalorder %s97, 0
      %p663 = por %p661, %p662
      %p664 = scmp.ne.s32.totalorder %s656, %s658
      %p665 = scmp.eq.s32.totalorder %s102, 1
      %p666 = por %p664, %p665
      %p667 = scmp.ne.s32.totalorder %s658, %s659
      %p668 = scmp.eq.s32.totalorder %s102, 0
      %p669 = por %p667, %p668
      %p670 = scmp.ne.s32.totalorder %s658, %s659
      %p671 = scmp.eq.s32.totalorder %s103, 1
      %p672 = por %p670, %p671
      %p674 = scmp.ne.s32.totalorder %s659, %s673
      %p675 = scmp.eq.s32.totalorder %s103, 0
      %p676 = por %p674, %p675
      %s678 = sadd.s32 %s677, 1
      %p681 = scmp.eq.s32.totalorder %s97, 1
      %p682 = scmp.ne.s32.totalorder %s677, %s679
      %p683 = scmp.eq.s32.totalorder %s97, 0
      %p684 = por %p682, %p683
      %p685 = scmp.ne.s32.totalorder %s677, %s679
      %p686 = scmp.eq.s32.totalorder %s102, 1
      %p687 = por %p685, %p686
      %p688 = scmp.ne.s32.totalorder %s679, %s680
      %p689 = scmp.eq.s32.totalorder %s102, 0
      %p690 = por %p688, %p689
      %p691 = scmp.ne.s32.totalorder %s679, %s680
      %p692 = scmp.eq.s32.totalorder %s103, 1
      %p693 = por %p691, %p692
      %p695 = scmp.ne.s32.totalorder %s680, %s694
      %p696 = scmp.eq.s32.totalorder %s103, 0
      %p697 = por %p695, %p696
      %s699 = sadd.s32 %s698, 1
      %p702 = scmp.eq.s32.totalorder %s97, 1
      %p703 = scmp.ne.s32.totalorder %s698, %s700
      %p704 = scmp.eq.s32.totalorder %s97, 0
      %p705 = por %p703, %p704
      %p706 = scmp.ne.s32.totalorder %s698, %s700
      %p707 = scmp.eq.s32.totalorder %s102, 1
      %p708 = por %p706, %p707
      %p709 = scmp.ne.s32.totalorder %s700, %s701
      %p710 = scmp.eq.s32.totalorder %s102, 0
      %p711 = por %p709, %p710
      %p712 = scmp.ne.s32.totalorder %s700, %s701
      %p713 = scmp.eq.s32.totalorder %s103, 1
      %p714 = por %p712, %p713
      %p716 = scmp.ne.s32.totalorder %s701, %s715
      %p717 = scmp.eq.s32.totalorder %s103, 0
      %p718 = por %p716, %p717
      %s720 = sadd.s32 %s719, 1
      %p723 = scmp.eq.s32.totalorder %s97, 1
      %p724 = scmp.ne.s32.totalorder %s719, %s721
      %p725 = scmp.eq.s32.totalorder %s97, 0
      %p726 = por %p724, %p725
      %p727 = scmp.ne.s32.totalorder %s719, %s721
      %p728 = scmp.eq.s32.totalorder %s102, 1
      %p729 = por %p727, %p728
      %p730 = scmp.ne.s32.totalorder %s721, %s722
      %p731 = scmp.eq.s32.totalorder %s102, 0
      %p732 = por %p730, %p731
      %p733 = scmp.ne.s32.totalorder %s721, %s722
      %p734 = scmp.eq.s32.totalorder %s103, 1
      %p735 = por %p733, %p734
      %p737 = scmp.ne.s32.totalorder %s722, %s736
      %p738 = scmp.eq.s32.totalorder %s103, 0
      %p739 = por %p737, %p738
      %s741 = sadd.s32 %s740, 1
      %p744 = scmp.eq.s32.totalorder %s97, 1
      %p745 = scmp.ne.s32.totalorder %s740, %s742
      %p746 = scmp.eq.s32.totalorder %s97, 0
      %p747 = por %p745, %p746
      %p748 = scmp.ne.s32.totalorder %s740, %s742
      %p749 = scmp.eq.s32.totalorder %s102, 1
      %p750 = por %p748, %p749
      %p751 = scmp.ne.s32.totalorder %s742, %s743
      %p752 = scmp.eq.s32.totalorder %s102, 0
      %p753 = por %p751, %p752
      %p754 = scmp.ne.s32.totalorder %s742, %s743
      %p755 = scmp.eq.s32.totalorder %s103, 1
      %p756 = por %p754, %p755
      %p758 = scmp.ne.s32.totalorder %s743, %s757
      %p759 = scmp.eq.s32.totalorder %s103, 0
      %p760 = por %p758, %p759
      %s762 = sadd.s32 %s761, 1
      %p765 = scmp.eq.s32.totalorder %s97, 1
      %p766 = scmp.ne.s32.totalorder %s761, %s763
      %p767 = scmp.eq.s32.totalorder %s97, 0
      %p768 = por %p766, %p767
      %p769 = scmp.ne.s32.totalorder %s761, %s763
      %p770 = scmp.eq.s32.totalorder %s102, 1
      %p771 = por %p769, %p770
      %p772 = scmp.ne.s32.totalorder %s763, %s764
      %p773 = scmp.eq.s32.totalorder %s102, 0
      %p774 = por %p772, %p773
      %p775 = scmp.ne.s32.totalorder %s763, %s764
      %p776 = scmp.eq.s32.totalorder %s103, 1
      %p777 = por %p775, %p776
      %p779 = scmp.ne.s32.totalorder %s764, %s778
      %p780 = scmp.eq.s32.totalorder %s103, 0
      %p781 = por %p779, %p780
      %s783 = sadd.s32 %s782, 1
      %p786 = scmp.eq.s32.totalorder %s97, 1
      %p787 = scmp.ne.s32.totalorder %s782, %s784
      %p788 = scmp.eq.s32.totalorder %s97, 0
      %p789 = por %p787, %p788
      %p790 = scmp.ne.s32.totalorder %s782, %s784
      %p791 = scmp.eq.s32.totalorder %s102, 1
      %p792 = por %p790, %p791
      %p793 = scmp.ne.s32.totalorder %s784, %s785
      %p794 = scmp.eq.s32.totalorder %s102, 0
      %p795 = por %p793, %p794
      %p796 = scmp.ne.s32.totalorder %s784, %s785
      %p797 = scmp.eq.s32.totalorder %s103, 1
      %p798 = por %p796, %p797
      %p800 = scmp.ne.s32.totalorder %s785, %s799
      %p801 = scmp.eq.s32.totalorder %s103, 0
      %p802 = por %p800, %p801
      %s804 = sadd.s32 %s803, 1
      %p807 = scmp.eq.s32.totalorder %s97, 1
      %p808 = scmp.ne.s32.totalorder %s803, %s805
      %p809 = scmp.eq.s32.totalorder %s97, 0
      %p810 = por %p808, %p809
      %p811 = scmp.ne.s32.totalorder %s803, %s805
      %p812 = scmp.eq.s32.totalorder %s102, 1
      %p813 = por %p811, %p812
      %p814 = scmp.ne.s32.totalorder %s805, %s806
      %p815 = scmp.eq.s32.totalorder %s102, 0
      %p816 = por %p814, %p815
      %p817 = scmp.ne.s32.totalorder %s805, %s806
      %p818 = scmp.eq.s32.totalorder %s103, 1
      %p819 = por %p817, %p818
      %p821 = scmp.ne.s32.totalorder %s806, %s820
      %p822 = scmp.eq.s32.totalorder %s103, 0
      %p823 = por %p821, %p822
      %s825 = sadd.s32 %s824, 1
      %p828 = scmp.eq.s32.totalorder %s97, 1
      %p829 = scmp.ne.s32.totalorder %s824, %s826
      %p830 = scmp.eq.s32.totalorder %s97, 0
      %p831 = por %p829, %p830
      %p832 = scmp.ne.s32.totalorder %s824, %s826
      %p833 = scmp.eq.s32.totalorder %s102, 1
      %p834 = por %p832, %p833
      %p835 = scmp.ne.s32.totalorder %s826, %s827
      %p836 = scmp.eq.s32.totalorder %s102, 0
      %p837 = por %p835, %p836
      %p838 = scmp.ne.s32.totalorder %s826, %s827
      %p839 = scmp.eq.s32.totalorder %s103, 1
      %p840 = por %p838, %p839
      %p842 = scmp.ne.s32.totalorder %s827, %s841
      %p843 = scmp.eq.s32.totalorder %s103, 0
      %p844 = por %p842, %p843
      %s846 = sadd.s32 %s845, 1
      %p849 = scmp.eq.s32.totalorder %s97, 1
      %p850 = scmp.ne.s32.totalorder %s845, %s847
      %p851 = scmp.eq.s32.totalorder %s97, 0
      %p852 = por %p850, %p851
      %p853 = scmp.ne.s32.totalorder %s845, %s847
      %p854 = scmp.eq.s32.totalorder %s102, 1
      %p855 = por %p853, %p854
      %p856 = scmp.ne.s32.totalorder %s847, %s848
      %p857 = scmp.eq.s32.totalorder %s102, 0
      %p858 = por %p856, %p857
      %p859 = scmp.ne.s32.totalorder %s847, %s848
      %p860 = scmp.eq.s32.totalorder %s103, 1
      %p861 = por %p859, %p860
      %p863 = scmp.ne.s32.totalorder %s848, %s862
      %p864 = scmp.eq.s32.totalorder %s103, 0
      %p865 = por %p863, %p864
      %s867 = sadd.s32 %s866, 1
      %p870 = scmp.eq.s32.totalorder %s97, 1
      %p871 = scmp.ne.s32.totalorder %s866, %s868
      %p872 = scmp.eq.s32.totalorder %s97, 0
      %p873 = por %p871, %p872
      %p874 = scmp.ne.s32.totalorder %s866, %s868
      %p875 = scmp.eq.s32.totalorder %s102, 1
      %p876 = por %p874, %p875
      %p877 = scmp.ne.s32.totalorder %s868, %s869
      %p878 = scmp.eq.s32.totalorder %s102, 0
      %p879 = por %p877, %p878
      %p880 = scmp.ne.s32.totalorder %s868, %s869
      %p881 = scmp.eq.s32.totalorder %s103, 1
      %p882 = por %p880, %p881
      %p884 = scmp.ne.s32.totalorder %s869, %s883
      %p885 = scmp.eq.s32.totalorder %s103, 0
      %p886 = por %p884, %p885
      %s888 = sadd.s32 %s887, 1
      %p891 = scmp.eq.s32.totalorder %s97, 1
      %p892 = scmp.ne.s32.totalorder %s887, %s889
      %p893 = scmp.eq.s32.totalorder %s97, 0
      %p894 = por %p892, %p893
      %p895 = scmp.ne.s32.totalorder %s887, %s889
      %p896 = scmp.eq.s32.totalorder %s102, 1
      %p897 = por %p895, %p896
      %p898 = scmp.ne.s32.totalorder %s889, %s890
      %p899 = scmp.eq.s32.totalorder %s102, 0
      %p900 = por %p898, %p899
      %p901 = scmp.ne.s32.totalorder %s889, %s890
      %p902 = scmp.eq.s32.totalorder %s103, 1
      %p903 = por %p901, %p902
      %p905 = scmp.ne.s32.totalorder %s890, %s904
      %p906 = scmp.eq.s32.totalorder %s103, 0
      %p907 = por %p905, %p906
      %s909 = sadd.s32 %s908, 1
      %p912 = scmp.eq.s32.totalorder %s97, 1
      %p913 = scmp.ne.s32.totalorder %s908, %s910
      %p914 = scmp.eq.s32.totalorder %s97, 0
      %p915 = por %p913, %p914
      %p916 = scmp.ne.s32.totalorder %s908, %s910
      %p917 = scmp.eq.s32.totalorder %s102, 1
      %p918 = por %p916, %p917
      %p919 = scmp.ne.s32.totalorder %s910, %s911
      %p920 = scmp.eq.s32.totalorder %s102, 0
      %p921 = por %p919, %p920
      %p922 = scmp.ne.s32.totalorder %s910, %s911
      %p923 = scmp.eq.s32.totalorder %s103, 1
      %p924 = por %p922, %p923
      %p926 = scmp.ne.s32.totalorder %s911, %s925
      %p927 = scmp.eq.s32.totalorder %s103, 0
      %p928 = por %p926, %p927
      %s930 = sadd.s32 %s929, 1
      %p933 = scmp.eq.s32.totalorder %s97, 1
      %p934 = scmp.ne.s32.totalorder %s929, %s931
      %p935 = scmp.eq.s32.totalorder %s97, 0
      %p936 = por %p934, %p935
      %p937 = scmp.ne.s32.totalorder %s929, %s931
      %p938 = scmp.eq.s32.totalorder %s102, 1
      %p939 = por %p937, %p938
      %p940 = scmp.ne.s32.totalorder %s931, %s932
      %p941 = scmp.eq.s32.totalorder %s102, 0
      %p942 = por %p940, %p941
      %p943 = scmp.ne.s32.totalorder %s931, %s932
      %p944 = scmp.eq.s32.totalorder %s103, 1
      %p945 = por %p943, %p944
      %p947 = scmp.ne.s32.totalorder %s932, %s946
      %p948 = scmp.eq.s32.totalorder %s103, 0
      %p949 = por %p947, %p948
      %s951 = sadd.s32 %s950, 1
      %p954 = scmp.eq.s32.totalorder %s97, 1
      %p955 = scmp.ne.s32.totalorder %s950, %s952
      %p956 = scmp.eq.s32.totalorder %s97, 0
      %p957 = por %p955, %p956
      %p958 = scmp.ne.s32.totalorder %s950, %s952
      %p959 = scmp.eq.s32.totalorder %s102, 1
      %p960 = por %p958, %p959
      %p961 = scmp.ne.s32.totalorder %s952, %s953
      %p962 = scmp.eq.s32.totalorder %s102, 0
      %p963 = por %p961, %p962
      %p964 = scmp.ne.s32.totalorder %s952, %s953
      %p965 = scmp.eq.s32.totalorder %s103, 1
      %p966 = por %p964, %p965
      %p968 = scmp.ne.s32.totalorder %s953, %s967
      %p969 = scmp.eq.s32.totalorder %s103, 0
      %p970 = por %p968, %p969
      %s971 = ssub.s32 %s97, %s104
      %p972 = scmp.eq.s32.totalorder %s971, 0
      %s974 = sadd.s32 %s973, 1
      %s975 = scalar_select %p972, %s973, %s974
      %p978 = pneg %p972
      %p979 = scmp.eq.s32.totalorder %s97, 1
      %p980 = por %p978, %p979
      %p981 = scmp.ne.s32.totalorder %s973, %s976
      %p982 = scmp.eq.s32.totalorder %s97, 0
      %p983 = por %p981, %p982
      %p984 = scmp.ne.s32.totalorder %s973, %s976
      %p985 = scmp.eq.s32.totalorder %s102, 1
      %p986 = por %p984, %p985
      %p987 = scmp.ne.s32.totalorder %s976, %s977
      %p988 = scmp.eq.s32.totalorder %s102, 0
      %p989 = por %p987, %p988
      %p990 = scmp.ne.s32.totalorder %s976, %s977
      %p991 = scmp.eq.s32.totalorder %s103, 1
      %p992 = por %p990, %p991
      %p994 = scmp.ne.s32.totalorder %s977, %s993
      %p995 = scmp.eq.s32.totalorder %s103, 0
      %p996 = por %p994, %p995
      %s997 = ssub.s32 %s97, %s104
      %p998 = scmp.eq.s32.totalorder %s997, 0
      %s1000 = sadd.s32 %s999, 1
      %s1001 = scalar_select %p998, %s999, %s1000
      %p1004 = pneg %p998
      %p1005 = scmp.eq.s32.totalorder %s97, 1
      %p1006 = por %p1004, %p1005
      %p1007 = scmp.ne.s32.totalorder %s999, %s1002
      %p1008 = scmp.eq.s32.totalorder %s97, 0
      %p1009 = por %p1007, %p1008
      %p1010 = scmp.ne.s32.totalorder %s999, %s1002
      %p1011 = scmp.eq.s32.totalorder %s102, 1
      %p1012 = por %p1010, %p1011
      %p1013 = scmp.ne.s32.totalorder %s1002, %s1003
      %p1014 = scmp.eq.s32.totalorder %s102, 0
      %p1015 = por %p1013, %p1014
      %p1016 = scmp.ne.s32.totalorder %s1002, %s1003
      %p1017 = scmp.eq.s32.totalorder %s103, 1
      %p1018 = por %p1016, %p1017
      %p1020 = scmp.ne.s32.totalorder %s1003, %s1019
      %p1021 = scmp.eq.s32.totalorder %s103, 0
      %p1022 = por %p1020, %p1021
      %p1023 = scmp.le.s32.totalorder 1, %s97
      %p1024 = scmp.lt.s32.totalorder %s97, 3
      %p1025 = pnand %p1023, %p1024
      %p1026 = pneg %p1025
      // Predicated region
      $region9: #{cnns_forward.1} parent=5 // pred_check
        _
      $region10: #{cnns_forward.1} parent=5 // pred_check_branch
        %1028 = sbr.rel (%p1025) target = $region12
      $region11: #{cnns_forward.1} parent=5 // pred_region
        %s1029 = ssub.s32 %s97, 1
        // Predicated region
        $region13: #{cnns_forward.1} parent=11 // pred_check
          %p1030 = pneg %p144
        $region14: #{cnns_forward.1} parent=11 // pred_check_branch
          %1032 = sbr.rel (%p1030) target = $region16
        $region15: #{cnns_forward.1} parent=11 // pred_region
          _
        $region16: #{cnns_forward.1} parent=11 // pred_fallthru
          _
        // Predicated region
        $region17: #{cnns_forward.1} parent=11 // pred_check
          %p1033 = pneg %p165
        $region18: #{cnns_forward.1} parent=11 // pred_check_branch
          %1035 = sbr.rel (%p1033) target = $region20
        $region19: #{cnns_forward.1} parent=11 // pred_region
          _
        $region20: #{cnns_forward.1} parent=11 // pred_fallthru
          _
        // Predicated region
        $region21: #{cnns_forward.1} parent=11 // pred_check
          %p1036 = pneg %p186
        $region22: #{cnns_forward.1} parent=11 // pred_check_branch
          %1038 = sbr.rel (%p1036) target = $region24
        $region23: #{cnns_forward.1} parent=11 // pred_region
          _
        $region24: #{cnns_forward.1} parent=11 // pred_fallthru
          _
        // Predicated region
        $region25: #{cnns_forward.1} parent=11 // pred_check
          %p1039 = pneg %p207
        $region26: #{cnns_forward.1} parent=11 // pred_check_branch
          %1041 = sbr.rel (%p1039) target = $region28
        $region27: #{cnns_forward.1} parent=11 // pred_region
          _
        $region28: #{cnns_forward.1} parent=11 // pred_fallthru
          _
        // Predicated region
        $region29: #{cnns_forward.1} parent=11 // pred_check
          %p1042 = pneg %p228
        $region30: #{cnns_forward.1} parent=11 // pred_check_branch
          %1044 = sbr.rel (%p1042) target = $region32
        $region31: #{cnns_forward.1} parent=11 // pred_region
          _
        $region32: #{cnns_forward.1} parent=11 // pred_fallthru
          _
        // Predicated region
        $region33: #{cnns_forward.1} parent=11 // pred_check
          %p1045 = pneg %p249
        $region34: #{cnns_forward.1} parent=11 // pred_check_branch
          %1047 = sbr.rel (%p1045) target = $region36
        $region35: #{cnns_forward.1} parent=11 // pred_region
          _
        $region36: #{cnns_forward.1} parent=11 // pred_fallthru
          _
        // Predicated region
        $region37: #{cnns_forward.1} parent=11 // pred_check
          %p1048 = pneg %p270
        $region38: #{cnns_forward.1} parent=11 // pred_check_branch
          %1050 = sbr.rel (%p1048) target = $region40
        $region39: #{cnns_forward.1} parent=11 // pred_region
          _
        $region40: #{cnns_forward.1} parent=11 // pred_fallthru
          _
        // Predicated region
        $region41: #{cnns_forward.1} parent=11 // pred_check
          %p1051 = pneg %p291
        $region42: #{cnns_forward.1} parent=11 // pred_check_branch
          %1053 = sbr.rel (%p1051) target = $region44
        $region43: #{cnns_forward.1} parent=11 // pred_region
          _
        $region44: #{cnns_forward.1} parent=11 // pred_fallthru
          _
        // Predicated region
        $region45: #{cnns_forward.1} parent=11 // pred_check
          %p1054 = pneg %p312
        $region46: #{cnns_forward.1} parent=11 // pred_check_branch
          %1056 = sbr.rel (%p1054) target = $region48
        $region47: #{cnns_forward.1} parent=11 // pred_region
          _
        $region48: #{cnns_forward.1} parent=11 // pred_fallthru
          _
        // Predicated region
        $region49: #{cnns_forward.1} parent=11 // pred_check
          %p1057 = pneg %p333
        $region50: #{cnns_forward.1} parent=11 // pred_check_branch
          %1059 = sbr.rel (%p1057) target = $region52
        $region51: #{cnns_forward.1} parent=11 // pred_region
          _
        $region52: #{cnns_forward.1} parent=11 // pred_fallthru
          _
        // Predicated region
        $region53: #{cnns_forward.1} parent=11 // pred_check
          %p1060 = pneg %p354
        $region54: #{cnns_forward.1} parent=11 // pred_check_branch
          %1062 = sbr.rel (%p1060) target = $region56
        $region55: #{cnns_forward.1} parent=11 // pred_region
          _
        $region56: #{cnns_forward.1} parent=11 // pred_fallthru
          _
        // Predicated region
        $region57: #{cnns_forward.1} parent=11 // pred_check
          %p1063 = pneg %p375
        $region58: #{cnns_forward.1} parent=11 // pred_check_branch
          %1065 = sbr.rel (%p1063) target = $region60
        $region59: #{cnns_forward.1} parent=11 // pred_region
          _
        $region60: #{cnns_forward.1} parent=11 // pred_fallthru
          _
        // Predicated region
        $region61: #{cnns_forward.1} parent=11 // pred_check
          %p1066 = pneg %p396
        $region62: #{cnns_forward.1} parent=11 // pred_check_branch
          %1068 = sbr.rel (%p1066) target = $region64
        $region63: #{cnns_forward.1} parent=11 // pred_region
          _
        $region64: #{cnns_forward.1} parent=11 // pred_fallthru
          _
        // Predicated region
        $region65: #{cnns_forward.1} parent=11 // pred_check
          %p1069 = pneg %p417
        $region66: #{cnns_forward.1} parent=11 // pred_check_branch
          %1071 = sbr.rel (%p1069) target = $region68
        $region67: #{cnns_forward.1} parent=11 // pred_region
          _
        $region68: #{cnns_forward.1} parent=11 // pred_fallthru
          _
        // Predicated region
        $region69: #{cnns_forward.1} parent=11 // pred_check
          %p1072 = pneg %p438
        $region70: #{cnns_forward.1} parent=11 // pred_check_branch
          %1074 = sbr.rel (%p1072) target = $region72
        $region71: #{cnns_forward.1} parent=11 // pred_region
          _
        $region72: #{cnns_forward.1} parent=11 // pred_fallthru
          _
        // Predicated region
        $region73: #{cnns_forward.1} parent=11 // pred_check
          %p1075 = pneg %p459
        $region74: #{cnns_forward.1} parent=11 // pred_check_branch
          %1077 = sbr.rel (%p1075) target = $region76
        $region75: #{cnns_forward.1} parent=11 // pred_region
          _
        $region76: #{cnns_forward.1} parent=11 // pred_fallthru
          _
        // Predicated region
        $region77: #{cnns_forward.1} parent=11 // pred_check
          %p1078 = pneg %p480
        $region78: #{cnns_forward.1} parent=11 // pred_check_branch
          %1080 = sbr.rel (%p1078) target = $region80
        $region79: #{cnns_forward.1} parent=11 // pred_region
          _
        $region80: #{cnns_forward.1} parent=11 // pred_fallthru
          _
        // Predicated region
        $region81: #{cnns_forward.1} parent=11 // pred_check
          %p1081 = pneg %p501
        $region82: #{cnns_forward.1} parent=11 // pred_check_branch
          %1083 = sbr.rel (%p1081) target = $region84
        $region83: #{cnns_forward.1} parent=11 // pred_region
          _
        $region84: #{cnns_forward.1} parent=11 // pred_fallthru
          _
        // Predicated region
        $region85: #{cnns_forward.1} parent=11 // pred_check
          %p1084 = pneg %p522
        $region86: #{cnns_forward.1} parent=11 // pred_check_branch
          %1086 = sbr.rel (%p1084) target = $region88
        $region87: #{cnns_forward.1} parent=11 // pred_region
          _
        $region88: #{cnns_forward.1} parent=11 // pred_fallthru
          _
        // Predicated region
        $region89: #{cnns_forward.1} parent=11 // pred_check
          %p1087 = pneg %p543
        $region90: #{cnns_forward.1} parent=11 // pred_check_branch
          %1089 = sbr.rel (%p1087) target = $region92
        $region91: #{cnns_forward.1} parent=11 // pred_region
          _
        $region92: #{cnns_forward.1} parent=11 // pred_fallthru
          _
        // Predicated region
        $region93: #{cnns_forward.1} parent=11 // pred_check
          %p1090 = pneg %p564
        $region94: #{cnns_forward.1} parent=11 // pred_check_branch
          %1092 = sbr.rel (%p1090) target = $region96
        $region95: #{cnns_forward.1} parent=11 // pred_region
          _
        $region96: #{cnns_forward.1} parent=11 // pred_fallthru
          _
        // Predicated region
        $region97: #{cnns_forward.1} parent=11 // pred_check
          %p1093 = pneg %p585
        $region98: #{cnns_forward.1} parent=11 // pred_check_branch
          %1095 = sbr.rel (%p1093) target = $region100
        $region99: #{cnns_forward.1} parent=11 // pred_region
          _
        $region100: #{cnns_forward.1} parent=11 // pred_fallthru
          _
        // Predicated region
        $region101: #{cnns_forward.1} parent=11 // pred_check
          %p1096 = pneg %p606
        $region102: #{cnns_forward.1} parent=11 // pred_check_branch
          %1098 = sbr.rel (%p1096) target = $region104
        $region103: #{cnns_forward.1} parent=11 // pred_region
          _
        $region104: #{cnns_forward.1} parent=11 // pred_fallthru
          _
        // Predicated region
        $region105: #{cnns_forward.1} parent=11 // pred_check
          %p1099 = pneg %p627
        $region106: #{cnns_forward.1} parent=11 // pred_check_branch
          %1101 = sbr.rel (%p1099) target = $region108
        $region107: #{cnns_forward.1} parent=11 // pred_region
          _
        $region108: #{cnns_forward.1} parent=11 // pred_fallthru
          _
        // Predicated region
        $region109: #{cnns_forward.1} parent=11 // pred_check
          %p1102 = pneg %p648
        $region110: #{cnns_forward.1} parent=11 // pred_check_branch
          %1104 = sbr.rel (%p1102) target = $region112
        $region111: #{cnns_forward.1} parent=11 // pred_region
          _
        $region112: #{cnns_forward.1} parent=11 // pred_fallthru
          _
        // Predicated region
        $region113: #{cnns_forward.1} parent=11 // pred_check
          %p1105 = pneg %p669
        $region114: #{cnns_forward.1} parent=11 // pred_check_branch
          %1107 = sbr.rel (%p1105) target = $region116
        $region115: #{cnns_forward.1} parent=11 // pred_region
          _
        $region116: #{cnns_forward.1} parent=11 // pred_fallthru
          _
        // Predicated region
        $region117: #{cnns_forward.1} parent=11 // pred_check
          %p1108 = pneg %p690
        $region118: #{cnns_forward.1} parent=11 // pred_check_branch
          %1110 = sbr.rel (%p1108) target = $region120
        $region119: #{cnns_forward.1} parent=11 // pred_region
          _
        $region120: #{cnns_forward.1} parent=11 // pred_fallthru
          _
        // Predicated region
        $region121: #{cnns_forward.1} parent=11 // pred_check
          %p1111 = pneg %p711
        $region122: #{cnns_forward.1} parent=11 // pred_check_branch
          %1113 = sbr.rel (%p1111) target = $region124
        $region123: #{cnns_forward.1} parent=11 // pred_region
          _
        $region124: #{cnns_forward.1} parent=11 // pred_fallthru
          _
        // Predicated region
        $region125: #{cnns_forward.1} parent=11 // pred_check
          %p1114 = pneg %p732
        $region126: #{cnns_forward.1} parent=11 // pred_check_branch
          %1116 = sbr.rel (%p1114) target = $region128
        $region127: #{cnns_forward.1} parent=11 // pred_region
          _
        $region128: #{cnns_forward.1} parent=11 // pred_fallthru
          _
        // Predicated region
        $region129: #{cnns_forward.1} parent=11 // pred_check
          %p1117 = pneg %p753
        $region130: #{cnns_forward.1} parent=11 // pred_check_branch
          %1119 = sbr.rel (%p1117) target = $region132
        $region131: #{cnns_forward.1} parent=11 // pred_region
          _
        $region132: #{cnns_forward.1} parent=11 // pred_fallthru
          _
        // Predicated region
        $region133: #{cnns_forward.1} parent=11 // pred_check
          %p1120 = pneg %p774
        $region134: #{cnns_forward.1} parent=11 // pred_check_branch
          %1122 = sbr.rel (%p1120) target = $region136
        $region135: #{cnns_forward.1} parent=11 // pred_region
          _
        $region136: #{cnns_forward.1} parent=11 // pred_fallthru
          _
        // Predicated region
        $region137: #{cnns_forward.1} parent=11 // pred_check
          %p1123 = pneg %p795
        $region138: #{cnns_forward.1} parent=11 // pred_check_branch
          %1125 = sbr.rel (%p1123) target = $region140
        $region139: #{cnns_forward.1} parent=11 // pred_region
          _
        $region140: #{cnns_forward.1} parent=11 // pred_fallthru
          _
        // Predicated region
        $region141: #{cnns_forward.1} parent=11 // pred_check
          %p1126 = pneg %p816
        $region142: #{cnns_forward.1} parent=11 // pred_check_branch
          %1128 = sbr.rel (%p1126) target = $region144
        $region143: #{cnns_forward.1} parent=11 // pred_region
          _
        $region144: #{cnns_forward.1} parent=11 // pred_fallthru
          _
        // Predicated region
        $region145: #{cnns_forward.1} parent=11 // pred_check
          %p1129 = pneg %p837
        $region146: #{cnns_forward.1} parent=11 // pred_check_branch
          %1131 = sbr.rel (%p1129) target = $region148
        $region147: #{cnns_forward.1} parent=11 // pred_region
          _
        $region148: #{cnns_forward.1} parent=11 // pred_fallthru
          _
        // Predicated region
        $region149: #{cnns_forward.1} parent=11 // pred_check
          %p1132 = pneg %p858
        $region150: #{cnns_forward.1} parent=11 // pred_check_branch
          %1134 = sbr.rel (%p1132) target = $region152
        $region151: #{cnns_forward.1} parent=11 // pred_region
          _
        $region152: #{cnns_forward.1} parent=11 // pred_fallthru
          _
        // Predicated region
        $region153: #{cnns_forward.1} parent=11 // pred_check
          %p1135 = pneg %p879
        $region154: #{cnns_forward.1} parent=11 // pred_check_branch
          %1137 = sbr.rel (%p1135) target = $region156
        $region155: #{cnns_forward.1} parent=11 // pred_region
          _
        $region156: #{cnns_forward.1} parent=11 // pred_fallthru
          _
        // Predicated region
        $region157: #{cnns_forward.1} parent=11 // pred_check
          %p1138 = pneg %p900
        $region158: #{cnns_forward.1} parent=11 // pred_check_branch
          %1140 = sbr.rel (%p1138) target = $region160
        $region159: #{cnns_forward.1} parent=11 // pred_region
          _
        $region160: #{cnns_forward.1} parent=11 // pred_fallthru
          _
        // Predicated region
        $region161: #{cnns_forward.1} parent=11 // pred_check
          %p1141 = pneg %p921
        $region162: #{cnns_forward.1} parent=11 // pred_check_branch
          %1143 = sbr.rel (%p1141) target = $region164
        $region163: #{cnns_forward.1} parent=11 // pred_region
          _
        $region164: #{cnns_forward.1} parent=11 // pred_fallthru
          _
        // Predicated region
        $region165: #{cnns_forward.1} parent=11 // pred_check
          %p1144 = pneg %p942
        $region166: #{cnns_forward.1} parent=11 // pred_check_branch
          %1146 = sbr.rel (%p1144) target = $region168
        $region167: #{cnns_forward.1} parent=11 // pred_region
          _
        $region168: #{cnns_forward.1} parent=11 // pred_fallthru
          _
        // Predicated region
        $region169: #{cnns_forward.1} parent=11 // pred_check
          %p1147 = pneg %p963
        $region170: #{cnns_forward.1} parent=11 // pred_check_branch
          %1149 = sbr.rel (%p1147) target = $region172
        $region171: #{cnns_forward.1} parent=11 // pred_region
          _
        $region172: #{cnns_forward.1} parent=11 // pred_fallthru
          _
      $region12: #{cnns_forward.1} parent=5 // pred_fallthru
        _
      %p1150 = scmp.lt.s32.totalorder %s97, 2
      // Predicated region
      $region173: #{cnns_forward.1} parent=5 // pred_check
        %p1151 = pneg %p1150
      $region174: #{cnns_forward.1} parent=5 // pred_check_branch
        %1153 = sbr.rel (%p1151) target = $region176
      $region175: #{cnns_forward.1} parent=5 // pred_region
        // Predicated region
        $region177: #{cnns_forward.1} parent=175 // pred_check
          %p1154 = pneg %p117
        $region178: #{cnns_forward.1} parent=175 // pred_check_branch
          %1156 = sbr.rel (%p1154) target = $region180
        $region179: #{cnns_forward.1} parent=175 // pred_region
          %p1157 = scmp.lt.s32.totalorder %s97, 1
          %s1158 = scalar_select %p1157, %s97, 1
          %s1159 = smul.addr %s1158, 2
          %s1160 = scalar_lea.vmem %s1, %s1159
        $region180: #{cnns_forward.1} parent=175 // pred_fallthru
          _
      $region176: #{cnns_forward.1} parent=5 // pred_fallthru
        _
      %p1161 = scmp.le.s32.totalorder 1, %s97
      %p1162 = scmp.lt.s32.totalorder %s97, 3
      %p1163 = pnand %p1161, %p1162
      %p1164 = pneg %p1163
      // Predicated region
      $region181: #{cnns_forward.1} parent=5 // pred_check
        _
      $region182: #{cnns_forward.1} parent=5 // pred_check_branch
        %1166 = sbr.rel (%p1163) target = $region184
      $region183: #{cnns_forward.1} parent=5 // pred_region
        %s1167 = ssub.s32 %s97, 1
        %p1168 = scmp.lt.s32.totalorder %s102, 1
        %s1169 = scalar_select %p1168, %s102, 1
        %s1170 = smul.addr %s1169, 2
        %s1171 = scalar_lea.vmem %s1, %s1170
        %p1172 = pneg %p123
        %p1173 = pneg %p120
        %p1174 = pneg %p144
        %p1175 = pneg %p141
        %p1176 = pneg %p165
        %p1177 = pneg %p162
        %p1178 = pneg %p186
        %p1179 = pneg %p183
        %p1180 = pneg %p207
        %p1181 = pneg %p204
        %p1182 = pneg %p228
        %p1183 = pneg %p225
        %p1184 = pneg %p249
        %p1185 = pneg %p246
        %p1186 = pneg %p270
        %p1187 = pneg %p267
        %p1188 = pneg %p291
        %p1189 = pneg %p288
        %p1190 = pneg %p312
        %p1191 = pneg %p309
        %p1192 = pneg %p333
        %p1193 = pneg %p330
        %p1194 = pneg %p354
        %p1195 = pneg %p351
        %p1196 = pneg %p375
        %p1197 = pneg %p372
        %p1198 = pneg %p396
        %p1199 = pneg %p393
        %p1200 = pneg %p417
        %p1201 = pneg %p414
        %p1202 = pneg %p438
        %p1203 = pneg %p435
        %p1204 = pneg %p459
        %p1205 = pneg %p456
        %p1206 = pneg %p480
        %p1207 = pneg %p477
        %p1208 = pneg %p501
        %p1209 = pneg %p498
        %p1210 = pneg %p522
        %p1211 = pneg %p519
        %p1212 = pneg %p543
        %p1213 = pneg %p540
        %p1214 = pneg %p564
        %p1215 = pneg %p561
        %p1216 = pneg %p585
        %p1217 = pneg %p582
        %p1218 = pneg %p606
        %p1219 = pneg %p603
        %p1220 = pneg %p627
        %p1221 = pneg %p624
        %p1222 = pneg %p648
        %p1223 = pneg %p645
        %p1224 = pneg %p669
        %p1225 = pneg %p666
        %p1226 = pneg %p690
        %p1227 = pneg %p687
        %p1228 = pneg %p711
        %p1229 = pneg %p708
        %p1230 = pneg %p732
        %p1231 = pneg %p729
        %p1232 = pneg %p753
        %p1233 = pneg %p750
        %p1234 = pneg %p774
        %p1235 = pneg %p771
        %p1236 = pneg %p795
        %p1237 = pneg %p792
        %p1238 = pneg %p816
        %p1239 = pneg %p813
        %p1240 = pneg %p837
        %p1241 = pneg %p834
        %p1242 = pneg %p858
        %p1243 = pneg %p855
        %p1244 = pneg %p879
        %p1245 = pneg %p876
        %p1246 = pneg %p900
        %p1247 = pneg %p897
        %p1248 = pneg %p921
        %p1249 = pneg %p918
        %p1250 = pneg %p942
        %p1251 = pneg %p939
        %p1252 = pneg %p963
        %p1253 = pneg %p960
        %p1254 = pneg %p989
        %p1255 = pneg %p986
        %s1256 = sand.u32 %s976, 1
        %s1257 = scalar_lea.sflag [#allocation5], %s1256
        %s1258 = sand.u32 %s976, 1
        %s1259 = smul.addr %s1258, 2
        %s1260 = scalar_lea.vmem [#allocation4], %s1259
        %p1261 = pneg %p1015
        %p1262 = pneg %p1012
        %p1263 = scmp.lt.s32.totalorder %s102, 1
        %s1264 = scalar_select %p1263, %s102, 1
        %s1265 = smul.addr %s1264, 2
        %s1266 = smul.addr %s1265, 8
        %s1267 = scalar_lea.vmem %s85, %s1266
        %p1268 = scmp.lt.s32.totalorder %s102, 1
        %s1269 = scalar_select %p1268, %s102, 1
        %s1270 = smul.addr %s1269, 2
        %s1271 = scalar_lea.vmem %s1, %s1270
        %p1272 = scmp.lt.s32.totalorder %s102, 1
        %s1273 = scalar_select %p1272, %s102, 1
        %s1274 = smul.addr %s1273, 2
        %s1275 = smul.addr %s1274, 8
        %s1276 = scalar_lea.vmem %s85, %s1275
        %v1278 = vld [vmem:[%s1271] sm:$0x3]
        %v1279 = vld [vmem:[%s3] sm:$0xff]
        %1281 = vset.pattern.permute.xlu0 0
        %1282 = vperm.xlu0 %1281, %v1279
        %v1283 = vpop.permute.xlu0 %1282
        %v1286 = vlaneseq
        %v1287 = vshrl.u32 %v1286, 7
        %v1288 = vsub.s32 0, %v1287
        %v1289 = vrot.slane %v1278, %v1288
        %v1290 = vlaneseq
        %v1291 = vshrl.u32 %v1290, 7
        %v1292 = vsub.s32 1, %v1291
        %v1293 = vrot.slane %v1278, %v1292
        %v1296 = vmul.f32 %v1283, %v1289
        %v1297 = vmul.f32 %v1283, %v1293
        %v1298 = vld [vmem:[%s5] sm:$0xff]
        %1300 = vset.pattern.permute.xlu0 0
        %1301 = vperm.xlu0 %1300, %v1298
        %v1302 = vpop.permute.xlu0 %1301
        %v1304 = vadd.f32 %v1296, %v1302
        %v1305 = vadd.f32 %v1297, %v1302
        %v1306 = vtanh.pop %v1304
        %v1307 = vtanh.pop %v1305
        %v1308 = vpack.c.bf16 %v1306, %v1306
        %v1309 = vpack.c.bf16 %v1307, %v1307
        %v1310 = vld [vmem:[%s7] sm:$0xff]
        %v1311 = vld [vmem:[%s7 + $0x8] sm:$0xf]
        %v1312 = vld [vmem:[%s7 + $0xc] sm:$0xff]
        %v1313 = vld [vmem:[%s7 + $0x14] sm:$0xf]
        %v1314 = vld [vmem:[%s7 + $0x18] sm:$0xff]
        %v1315 = vld [vmem:[%s7 + $0x20] sm:$0xf]
        %v1316 = vld [vmem:[%s7 + $0x24] sm:$0xff]
        %v1317 = vld [vmem:[%s7 + $0x2c] sm:$0xf]
        %v1318 = vld [vmem:[%s7 + $0x30] sm:$0xff]
        %v1319 = vld [vmem:[%s7 + $0x38] sm:$0xf]
        %v1320 = vld [vmem:[%s7 + $0x3c] sm:$0xff]
        %v1321 = vld [vmem:[%s7 + $0x44] sm:$0xf]
        %v1322 = vld [vmem:[%s7 + $0x48] sm:$0xff]
        %v1323 = vld [vmem:[%s7 + $0x50] sm:$0xf]
        %v1324 = vld [vmem:[%s7 + $0x54] sm:$0xff]
        %v1325 = vld [vmem:[%s7 + $0x5c] sm:$0xf]
        %v1326 = vld [vmem:[%s7 + $0x60] sm:$0xff]
        %v1327 = vld [vmem:[%s7 + $0x68] sm:$0xf]
        %v1328 = vld [vmem:[%s7 + $0x6c] sm:$0xff]
        %v1329 = vld [vmem:[%s7 + $0x74] sm:$0xf]
        %v1330 = vld [vmem:[%s7 + $0x78] sm:$0xff]
        %v1331 = vld [vmem:[%s7 + $0x80] sm:$0xf]
        %v1332 = vld [vmem:[%s7 + $0x84] sm:$0xff]
        %v1333 = vld [vmem:[%s7 + $0x8c] sm:$0xf]
        %v1334 = vld [vmem:[%s7 + $0x90] sm:$0xff]
        %v1335 = vld [vmem:[%s7 + $0x98] sm:$0xf]
        %v1336 = vld [vmem:[%s7 + $0x9c] sm:$0xff]
        %v1337 = vld [vmem:[%s7 + $0xa4] sm:$0xf]
        %v1338 = vld [vmem:[%s7 + $0xa8] sm:$0xff]
        %v1339 = vld [vmem:[%s7 + $0xb0] sm:$0xf]
        %v1340 = vld [vmem:[%s7 + $0xb4] sm:$0xff]
        %v1341 = vld [vmem:[%s7 + $0xbc] sm:$0xf]
        %v1342 = vld [vmem:[%s7 + $0xc0] sm:$0xff]
        %v1343 = vld [vmem:[%s7 + $0xc8] sm:$0xf]
        %v1344 = vld [vmem:[%s7 + $0xcc] sm:$0xff]
        %v1345 = vld [vmem:[%s7 + $0xd4] sm:$0xf]
        %v1346 = vld [vmem:[%s7 + $0xd8] sm:$0xff]
        %v1347 = vld [vmem:[%s7 + $0xe0] sm:$0xf]
        %v1348 = vld [vmem:[%s7 + $0xe4] sm:$0xff]
        %v1349 = vld [vmem:[%s7 + $0xec] sm:$0xf]
        %v1350 = vld [vmem:[%s7 + $0xf0] sm:$0xff]
        %v1351 = vld [vmem:[%s7 + $0xf8] sm:$0xf]
        %v1352 = vld [vmem:[%s7 + $0xfc] sm:$0xff]
        %v1353 = vld [vmem:[%s7 + $0x104] sm:$0xf]
        %v1354 = vld [vmem:[%s7 + $0x108] sm:$0xff]
        %v1355 = vld [vmem:[%s7 + $0x110] sm:$0xf]
        %v1356 = vld [vmem:[%s7 + $0x114] sm:$0xff]
        %v1357 = vld [vmem:[%s7 + $0x11c] sm:$0xf]
        %v1358 = vld [vmem:[%s7 + $0x120] sm:$0xff]
        %v1359 = vld [vmem:[%s7 + $0x128] sm:$0xf]
        %v1360 = vld [vmem:[%s7 + $0x12c] sm:$0xff]
        %v1361 = vld [vmem:[%s7 + $0x134] sm:$0xf]
        %v1362 = vld [vmem:[%s7 + $0x138] sm:$0xff]
        %v1363 = vld [vmem:[%s7 + $0x140] sm:$0xf]
        %v1364 = vld [vmem:[%s7 + $0x144] sm:$0xff]
        %v1365 = vld [vmem:[%s7 + $0x14c] sm:$0xf]
        %v1366 = vld [vmem:[%s7 + $0x150] sm:$0xff]
        %v1367 = vld [vmem:[%s7 + $0x158] sm:$0xf]
        %v1368 = vld [vmem:[%s7 + $0x15c] sm:$0xff]
        %v1369 = vld [vmem:[%s7 + $0x164] sm:$0xf]
        %v1370 = vld [vmem:[%s7 + $0x168] sm:$0xff]
        %v1371 = vld [vmem:[%s7 + $0x170] sm:$0xf]
        %v1372 = vld [vmem:[%s7 + $0x174] sm:$0xff]
        %v1373 = vld [vmem:[%s7 + $0x17c] sm:$0xf]
        %v1438 = vunpack.c.l.b16 %v1310
        %v1439 = vunpack.c.h.b16 %v1310
        %v1440 = vunpack.c.l.b16 %v1311
        %v1441 = vunpack.c.l.b16 %v1312
        %v1442 = vunpack.c.h.b16 %v1312
        %v1443 = vunpack.c.l.b16 %v1313
        %v1444 = vunpack.c.l.b16 %v1314
        %v1445 = vunpack.c.h.b16 %v1314
        %v1446 = vunpack.c.l.b16 %v1315
        %v1447 = vunpack.c.l.b16 %v1316
        %v1448 = vunpack.c.h.b16 %v1316
        %v1449 = vunpack.c.l.b16 %v1317
        %v1450 = vunpack.c.l.b16 %v1318
        %v1451 = vunpack.c.h.b16 %v1318
        %v1452 = vunpack.c.l.b16 %v1319
        %v1453 = vunpack.c.l.b16 %v1320
        %v1454 = vunpack.c.h.b16 %v1320
        %v1455 = vunpack.c.l.b16 %v1321
        %v1456 = vunpack.c.l.b16 %v1322
        %v1457 = vunpack.c.h.b16 %v1322
        %v1458 = vunpack.c.l.b16 %v1323
        %v1459 = vunpack.c.l.b16 %v1324
        %v1460 = vunpack.c.h.b16 %v1324
        %v1461 = vunpack.c.l.b16 %v1325
        %v1462 = vunpack.c.l.b16 %v1326
        %v1463 = vunpack.c.h.b16 %v1326
        %v1464 = vunpack.c.l.b16 %v1327
        %v1465 = vunpack.c.l.b16 %v1328
        %v1466 = vunpack.c.h.b16 %v1328
        %v1467 = vunpack.c.l.b16 %v1329
        %v1468 = vunpack.c.l.b16 %v1330
        %v1469 = vunpack.c.h.b16 %v1330
        %v1470 = vunpack.c.l.b16 %v1331
        %v1471 = vunpack.c.l.b16 %v1332
        %v1472 = vunpack.c.h.b16 %v1332
        %v1473 = vunpack.c.l.b16 %v1333
        %v1474 = vunpack.c.l.b16 %v1334
        %v1475 = vunpack.c.h.b16 %v1334
        %v1476 = vunpack.c.l.b16 %v1335
        %v1477 = vunpack.c.l.b16 %v1336
        %v1478 = vunpack.c.h.b16 %v1336
        %v1479 = vunpack.c.l.b16 %v1337
        %v1480 = vunpack.c.l.b16 %v1338
        %v1481 = vunpack.c.h.b16 %v1338
        %v1482 = vunpack.c.l.b16 %v1339
        %v1483 = vunpack.c.l.b16 %v1340
        %v1484 = vunpack.c.h.b16 %v1340
        %v1485 = vunpack.c.l.b16 %v1341
        %v1486 = vunpack.c.l.b16 %v1342
        %v1487 = vunpack.c.h.b16 %v1342
        %v1488 = vunpack.c.l.b16 %v1343
        %v1489 = vunpack.c.l.b16 %v1344
        %v1490 = vunpack.c.h.b16 %v1344
        %v1491 = vunpack.c.l.b16 %v1345
        %v1492 = vunpack.c.l.b16 %v1346
        %v1493 = vunpack.c.h.b16 %v1346
        %v1494 = vunpack.c.l.b16 %v1347
        %v1495 = vunpack.c.l.b16 %v1348
        %v1496 = vunpack.c.h.b16 %v1348
        %v1497 = vunpack.c.l.b16 %v1349
        %v1498 = vunpack.c.l.b16 %v1350
        %v1499 = vunpack.c.h.b16 %v1350
        %v1500 = vunpack.c.l.b16 %v1351
        %v1501 = vunpack.c.l.b16 %v1352
        %v1502 = vunpack.c.h.b16 %v1352
        %v1503 = vunpack.c.l.b16 %v1353
        %v1504 = vunpack.c.l.b16 %v1354
        %v1505 = vunpack.c.h.b16 %v1354
        %v1506 = vunpack.c.l.b16 %v1355
        %v1507 = vunpack.c.l.b16 %v1356
        %v1508 = vunpack.c.h.b16 %v1356
        %v1509 = vunpack.c.l.b16 %v1357
        %v1510 = vunpack.c.l.b16 %v1358
        %v1511 = vunpack.c.h.b16 %v1358
        %v1512 = vunpack.c.l.b16 %v1359
        %v1513 = vunpack.c.l.b16 %v1360
        %v1514 = vunpack.c.h.b16 %v1360
        %v1515 = vunpack.c.l.b16 %v1361
        %v1516 = vunpack.c.l.b16 %v1362
        %v1517 = vunpack.c.h.b16 %v1362
        %v1518 = vunpack.c.l.b16 %v1363
        %v1519 = vunpack.c.l.b16 %v1364
        %v1520 = vunpack.c.h.b16 %v1364
        %v1521 = vunpack.c.l.b16 %v1365
        %v1522 = vunpack.c.l.b16 %v1366
        %v1523 = vunpack.c.h.b16 %v1366
        %v1524 = vunpack.c.l.b16 %v1367
        %v1525 = vunpack.c.l.b16 %v1368
        %v1526 = vunpack.c.h.b16 %v1368
        %v1527 = vunpack.c.l.b16 %v1369
        %v1528 = vunpack.c.l.b16 %v1370
        %v1529 = vunpack.c.h.b16 %v1370
        %v1530 = vunpack.c.l.b16 %v1371
        %v1531 = vunpack.c.l.b16 %v1372
        %v1532 = vunpack.c.h.b16 %v1372
        %v1533 = vunpack.c.l.b16 %v1373
        %v1534 = vpack.c.b16 %v1441, %v1438
        %v1535 = vpack.c.b16 %v1442, %v1439
        %v1536 = vpack.c.b16 %v1443, %v1440
        %v1537 = vpack.c.b16 %v1447, %v1444
        %v1538 = vpack.c.b16 %v1448, %v1445
        %v1539 = vpack.c.b16 %v1449, %v1446
        %v1540 = vpack.c.b16 %v1453, %v1450
        %v1541 = vpack.c.b16 %v1454, %v1451
        %v1542 = vpack.c.b16 %v1455, %v1452
        %v1543 = vpack.c.b16 %v1459, %v1456
        %v1544 = vpack.c.b16 %v1460, %v1457
        %v1545 = vpack.c.b16 %v1461, %v1458
        %v1546 = vpack.c.b16 %v1465, %v1462
        %v1547 = vpack.c.b16 %v1466, %v1463
        %v1548 = vpack.c.b16 %v1467, %v1464
        %v1549 = vpack.c.b16 %v1471, %v1468
        %v1550 = vpack.c.b16 %v1472, %v1469
        %v1551 = vpack.c.b16 %v1473, %v1470
        %v1552 = vpack.c.b16 %v1477, %v1474
        %v1553 = vpack.c.b16 %v1478, %v1475
        %v1554 = vpack.c.b16 %v1479, %v1476
        %v1555 = vpack.c.b16 %v1483, %v1480
        %v1556 = vpack.c.b16 %v1484, %v1481
        %v1557 = vpack.c.b16 %v1485, %v1482
        %v1558 = vpack.c.b16 %v1489, %v1486
        %v1559 = vpack.c.b16 %v1490, %v1487
        %v1560 = vpack.c.b16 %v1491, %v1488
        %v1561 = vpack.c.b16 %v1495, %v1492
        %v1562 = vpack.c.b16 %v1496, %v1493
        %v1563 = vpack.c.b16 %v1497, %v1494
        %v1564 = vpack.c.b16 %v1501, %v1498
        %v1565 = vpack.c.b16 %v1502, %v1499
        %v1566 = vpack.c.b16 %v1503, %v1500
        %v1567 = vpack.c.b16 %v1507, %v1504
        %v1568 = vpack.c.b16 %v1508, %v1505
        %v1569 = vpack.c.b16 %v1509, %v1506
        %v1570 = vpack.c.b16 %v1513, %v1510
        %v1571 = vpack.c.b16 %v1514, %v1511
        %v1572 = vpack.c.b16 %v1515, %v1512
        %v1573 = vpack.c.b16 %v1519, %v1516
        %v1574 = vpack.c.b16 %v1520, %v1517
        %v1575 = vpack.c.b16 %v1521, %v1518
        %v1576 = vpack.c.b16 %v1525, %v1522
        %v1577 = vpack.c.b16 %v1526, %v1523
        %v1578 = vpack.c.b16 %v1527, %v1524
        %v1579 = vpack.c.b16 %v1531, %v1528
        %v1580 = vpack.c.b16 %v1532, %v1529
        %v1581 = vpack.c.b16 %v1533, %v1530
        %1630 = vmatprep.subr.bf16.mxu0 %v1535
        %1631 = vmatpush1.bf16.msra.mxu0 %v1534
        %1632 = vmatprep.subr.bf16.mxu0 %v1538
        %1633 = vmatpush1.bf16.msra.mxu0 %v1537
        %1634 = vmatprep.subr.bf16.mxu0 %v1541
        %1635 = vmatpush1.bf16.msra.mxu0 %v1540
        %1636 = vmatprep.subr.bf16.mxu0 %v1544
        %1637 = vmatpush1.bf16.msra.mxu0 %v1543
        %1638 = vmatprep.subr.bf16.mxu0 %v1547
        %1639 = vmatpush1.bf16.msra.mxu0 %v1546
        %1640 = vmatprep.subr.bf16.mxu0 %v1550
        %1641 = vmatpush1.bf16.msra.mxu0 %v1549
        %1642 = vmatprep.subr.bf16.mxu0 %v1553
        %1643 = vmatpush1.bf16.msra.mxu0 %v1552
        %1644 = vmatprep.subr.bf16.mxu0 %v1556
        %1645 = vmatpush1.bf16.msra.mxu0 %v1555
        %1646 = vmatprep.subr.bf16.mxu0 %v1559
        %1647 = vmatpush1.bf16.msra.mxu0 %v1558
        %1648 = vmatprep.subr.bf16.mxu0 %v1562
        %1649 = vmatpush1.bf16.msra.mxu0 %v1561
        %1650 = vmatprep.subr.bf16.mxu0 %v1565
        %1651 = vmatpush1.bf16.msra.mxu0 %v1564
        %1652 = vmatprep.subr.bf16.mxu0 %v1568
        %1653 = vmatpush1.bf16.msra.mxu0 %v1567
        %1654 = vmatprep.subr.bf16.mxu0 %v1571
        %1655 = vmatpush1.bf16.msra.mxu0 %v1570
        %1656 = vmatprep.subr.bf16.mxu0 %v1574
        %1657 = vmatpush1.bf16.msra.mxu0 %v1573
        %1658 = vmatprep.subr.bf16.mxu0 %v1577
        %1659 = vmatpush1.bf16.msra.mxu0 %v1576
        %1660 = vmatprep.subr.bf16.mxu0 %v1580
        %1661 = vmatpush1.bf16.msra.mxu0 %v1579
        %1662 = vmatprep.mubr.bf16.mxu0 %v1309
        %1663 = vmatmul.mubr.bf16.gmra.mrb[0].mxu0 %v1308
        %v1664 = vpop.f32.mrb[0].mxu0
        %v1665 = vadd.f32 0.0, %v1664
        %v1666 = vpop.f32.mrb[0].mxu0
        %v1667 = vadd.f32 0.0, %v1666
        %v1668 = vpop.f32.mrb[0].mxu0
        %v1669 = vpop.f32.mrb[0].mxu0
        %1670 = vdwg.mxu0
        %1671 = vmatprep.subr.bf16.mxu0 0
        %1672 = vmatpush1.bf16.msra.mxu0 %v1536
        %1673 = vmatprep.subr.bf16.mxu0 0
        %1674 = vmatpush1.bf16.msra.mxu0 %v1539
        %1675 = vmatprep.subr.bf16.mxu0 0
        %1676 = vmatpush1.bf16.msra.mxu0 %v1542
        %1677 = vmatprep.subr.bf16.mxu0 0
        %1678 = vmatpush1.bf16.msra.mxu0 %v1545
        %1679 = vmatprep.subr.bf16.mxu0 0
        %1680 = vmatpush1.bf16.msra.mxu0 %v1548
        %1681 = vmatprep.subr.bf16.mxu0 0
        %1682 = vmatpush1.bf16.msra.mxu0 %v1551
        %1683 = vmatprep.subr.bf16.mxu0 0
        %1684 = vmatpush1.bf16.msra.mxu0 %v1554
        %1685 = vmatprep.subr.bf16.mxu0 0
        %1686 = vmatpush1.bf16.msra.mxu0 %v1557
        %1687 = vmatprep.subr.bf16.mxu0 0
        %1688 = vmatpush1.bf16.msra.mxu0 %v1560
        %1689 = vmatprep.subr.bf16.mxu0 0
        %1690 = vmatpush1.bf16.msra.mxu0 %v1563
        %1691 = vmatprep.subr.bf16.mxu0 0
        %1692 = vmatpush1.bf16.msra.mxu0 %v1566
        %1693 = vmatprep.subr.bf16.mxu0 0
        %1694 = vmatpush1.bf16.msra.mxu0 %v1569
        %1695 = vmatprep.subr.bf16.mxu0 0
        %1696 = vmatpush1.bf16.msra.mxu0 %v1572
        %1697 = vmatprep.subr.bf16.mxu0 0
        %1698 = vmatpush1.bf16.msra.mxu0 %v1575
        %1699 = vmatprep.subr.bf16.mxu0 0
        %1700 = vmatpush1.bf16.msra.mxu0 %v1578
        %1701 = vmatprep.subr.bf16.mxu0 0
        %1702 = vmatpush1.bf16.msra.mxu0 %v1581
        %1703 = vmatprep.mubr.bf16.mxu0 %v1309
        %1704 = vmatmul.mubr.bf16.gmra.mrb[0].mxu0 %v1308
        %v1705 = vpop.f32.mrb[0].mxu0
        %v1706 = vadd.f32 0.0, %v1705
        %v1707 = vpop.f32.mrb[0].mxu0
        %v1708 = vpop.f32.mrb[0].mxu0
        %v1709 = vpop.f32.mrb[0].mxu0
        %1710 = vdwg.mxu0
        %v1711 = vpack.c.bf16 %v1665, %v1665
        %v1712 = vld [vmem:[%s9] sm:$0xf]
        %v1713 = vpack.c.bf16 %v1667, %v1667
        %s1714 = scalar_lea.vmem %s9, 4
        %v1715 = vld [vmem:[%s1714] sm:$0xf]
        %vm1716 = vcmask 64512
        %v1718 = vsel %vm1716, %v1715, 0
        %vm1720 = vcmask 1043456
        %v1722 = vsel %vm1720, %v1713, 0
        %1724 = vmatprep.subr.bf16.mxu0 0
        %1725 = vmatpush1.bf16.msra.mxu0 %v1722
        %1726 = vmatprep.subr.bf16.mxu0 0
        %1727 = vmatpush1.bf16.msra.mxu0 0
        %1728 = vmatprep.subr.bf16.mxu0 0
        %1729 = vmatpush1.bf16.msra.mxu0 0
        %1730 = vmatprep.subr.bf16.mxu0 0
        %1731 = vmatpush1.bf16.msra.mxu0 0
        %1732 = vmatprep.subr.bf16.mxu0 0
        %1733 = vmatpush1.bf16.msra.mxu0 0
        %1734 = vmatprep.subr.bf16.mxu0 0
        %1735 = vmatpush1.bf16.msra.mxu0 0
        %1736 = vmatprep.subr.bf16.mxu0 0
        %1737 = vmatpush1.bf16.msra.mxu0 0
        %1738 = vmatprep.subr.bf16.mxu0 0
        %1739 = vmatpush1.bf16.msra.mxu0 0
        %1740 = vmatprep.subr.bf16.mxu0 0
        %1741 = vmatpush1.bf16.msra.mxu0 0
        %1742 = vmatprep.subr.bf16.mxu0 0
        %1743 = vmatpush1.bf16.msra.mxu0 0
        %1744 = vmatprep.subr.bf16.mxu0 0
        %1745 = vmatpush1.bf16.msra.mxu0 0
        %1746 = vmatprep.subr.bf16.mxu0 0
        %1747 = vmatpush1.bf16.msra.mxu0 0
        %1748 = vmatprep.subr.bf16.mxu0 0
        %1749 = vmatpush1.bf16.msra.mxu0 0
        %1750 = vmatprep.subr.bf16.mxu0 0
        %1751 = vmatpush1.bf16.msra.mxu0 0
        %1752 = vmatprep.subr.bf16.mxu0 0
        %1753 = vmatpush1.bf16.msra.mxu0 0
        %1754 = vmatprep.subr.bf16.mxu0 0
        %1755 = vmatpush1.bf16.msra.mxu0 0
        %1756 = vmatprep.mubr.bf16.mxu0 0
        %1757 = vmatmul.mubr.bf16.gmra.mrb[0].mxu0 %v1718
        %v1758 = vpop.f32.mrb[0].mxu0
        %v1759 = vadd.f32 0.0, %v1758
        %v1760 = vpop.f32.mrb[0].mxu0
        %v1761 = vpop.f32.mrb[0].mxu0
        %v1762 = vpop.f32.mrb[0].mxu0
        %1763 = vdwg.mxu0
        %v1765 = vsel %vm1716, %v1712, 0
        %v1768 = vsel %vm1720, %v1711, 0
        %1770 = vmatprep.subr.bf16.mxu0 0
        %1771 = vmatpush1.bf16.msra.mxu0 %v1768
        %1772 = vmatprep.subr.bf16.mxu0 0
        %1773 = vmatpush1.bf16.msra.mxu0 0
        %1774 = vmatprep.subr.bf16.mxu0 0
        %1775 = vmatpush1.bf16.msra.mxu0 0
        %1776 = vmatprep.subr.bf16.mxu0 0
        %1777 = vmatpush1.bf16.msra.mxu0 0
        %1778 = vmatprep.subr.bf16.mxu0 0
        %1779 = vmatpush1.bf16.msra.mxu0 0
        %1780 = vmatprep.subr.bf16.mxu0 0
        %1781 = vmatpush1.bf16.msra.mxu0 0
        %1782 = vmatprep.subr.bf16.mxu0 0
        %1783 = vmatpush1.bf16.msra.mxu0 0
        %1784 = vmatprep.subr.bf16.mxu0 0
        %1785 = vmatpush1.bf16.msra.mxu0 0
        %1786 = vmatprep.subr.bf16.mxu0 0
        %1787 = vmatpush1.bf16.msra.mxu0 0
        %1788 = vmatprep.subr.bf16.mxu0 0
        %1789 = vmatpush1.bf16.msra.mxu0 0
        %1790 = vmatprep.subr.bf16.mxu0 0
        %1791 = vmatpush1.bf16.msra.mxu0 0
        %1792 = vmatprep.subr.bf16.mxu0 0
        %1793 = vmatpush1.bf16.msra.mxu0 0
        %1794 = vmatprep.subr.bf16.mxu0 0
        %1795 = vmatpush1.bf16.msra.mxu0 0
        %1796 = vmatprep.subr.bf16.mxu0 0
        %1797 = vmatpush1.bf16.msra.mxu0 0
        %1798 = vmatprep.subr.bf16.mxu0 0
        %1799 = vmatpush1.bf16.msra.mxu0 0
        %1800 = vmatprep.subr.bf16.mxu0 0
        %1801 = vmatpush1.bf16.msra.mxu0 0
        %1802 = vmatprep.mubr.bf16.mxu0 0
        %1803 = vmatmul.mubr.bf16.gmra.mrb[0].mxu0 %v1765
        %v1804 = vpop.f32.mrb[0].mxu0
        %v1805 = vadd.f32 %v1759, %v1804
        %v1806 = vpop.f32.mrb[0].mxu0
        %v1807 = vpop.f32.mrb[0].mxu0
        %v1808 = vpop.f32.mrb[0].mxu0
        %1809 = vdwg.mxu0
        %v1810 = vpack.c.bf16 %v1706, %v1706
        %s1811 = scalar_lea.vmem %s9, 8
        %v1812 = vld [vmem:[%s1811] sm:$0xf]
        %v1814 = vsel %vm1716, %v1812, 0
        %v1817 = vsel %vm1720, %v1810, 0
        %1819 = vmatprep.subr.bf16.mxu0 0
        %1820 = vmatpush1.bf16.msra.mxu0 %v1817
        %1821 = vmatprep.subr.bf16.mxu0 0
        %1822 = vmatpush1.bf16.msra.mxu0 0
        %1823 = vmatprep.subr.bf16.mxu0 0
        %1824 = vmatpush1.bf16.msra.mxu0 0
        %1825 = vmatprep.subr.bf16.mxu0 0
        %1826 = vmatpush1.bf16.msra.mxu0 0
        %1827 = vmatprep.subr.bf16.mxu0 0
        %1828 = vmatpush1.bf16.msra.mxu0 0
        %1829 = vmatprep.subr.bf16.mxu0 0
        %1830 = vmatpush1.bf16.msra.mxu0 0
        %1831 = vmatprep.subr.bf16.mxu0 0
        %1832 = vmatpush1.bf16.msra.mxu0 0
        %1833 = vmatprep.subr.bf16.mxu0 0
        %1834 = vmatpush1.bf16.msra.mxu0 0
        %1835 = vmatprep.subr.bf16.mxu0 0
        %1836 = vmatpush1.bf16.msra.mxu0 0
        %1837 = vmatprep.subr.bf16.mxu0 0
        %1838 = vmatpush1.bf16.msra.mxu0 0
        %1839 = vmatprep.subr.bf16.mxu0 0
        %1840 = vmatpush1.bf16.msra.mxu0 0
        %1841 = vmatprep.subr.bf16.mxu0 0
        %1842 = vmatpush1.bf16.msra.mxu0 0
        %1843 = vmatprep.subr.bf16.mxu0 0
        %1844 = vmatpush1.bf16.msra.mxu0 0
        %1845 = vmatprep.subr.bf16.mxu0 0
        %1846 = vmatpush1.bf16.msra.mxu0 0
        %1847 = vmatprep.subr.bf16.mxu0 0
        %1848 = vmatpush1.bf16.msra.mxu0 0
        %1849 = vmatprep.subr.bf16.mxu0 0
        %1850 = vmatpush1.bf16.msra.mxu0 0
        %1851 = vmatprep.mubr.bf16.mxu0 0
        %1852 = vmatmul.mubr.bf16.gmra.mrb[0].mxu0 %v1814
        %v1853 = vpop.f32.mrb[0].mxu0
        %v1854 = vadd.f32 0.0, %v1853
        %v1855 = vpop.f32.mrb[0].mxu0
        %v1856 = vpop.f32.mrb[0].mxu0
        %v1857 = vpop.f32.mrb[0].mxu0
        %1858 = vdwg.mxu0
        %v1859 = vadd.f32 %v1805, %v1854
        %v1860 = vld [vmem:[%s11] sm:$0xff]
        %1862 = vset.pattern.permute.xlu0 0
        %1863 = vperm.xlu0 %1862, %v1860
        %v1864 = vpop.permute.xlu0 %1863
        %v1866 = vadd.f32 %v1859, %v1864
        %v1867 = vmax.f32 %v1866, 0.0
        %v1868 = vpack.c.bf16 %v1867, %v1867
        %v1869 = vld [vmem:[%s13] sm:$0xff]
        %v1870 = vld [vmem:[%s13 + $0x8] sm:$0xff]
        %v1871 = vld [vmem:[%s13 + $0x10] sm:$0xff]
        %v1872 = vld [vmem:[%s13 + $0x18] sm:$0xff]
        %v1873 = vld [vmem:[%s13 + $0x20] sm:$0xff]
        %v1874 = vld [vmem:[%s13 + $0x28] sm:$0xff]
        %v1875 = vld [vmem:[%s13 + $0x30] sm:$0xff]
        %v1876 = vld [vmem:[%s13 + $0x38] sm:$0xff]
        %v1877 = vld [vmem:[%s13 + $0x40] sm:$0xff]
        %v1878 = vld [vmem:[%s13 + $0x48] sm:$0xff]
        %v1879 = vld [vmem:[%s13 + $0x50] sm:$0xff]
        %v1880 = vld [vmem:[%s13 + $0x58] sm:$0xff]
        %v1881 = vld [vmem:[%s13 + $0x60] sm:$0xff]
        %v1882 = vld [vmem:[%s13 + $0x68] sm:$0xff]
        %v1883 = vld [vmem:[%s13 + $0x70] sm:$0xff]
        %v1884 = vld [vmem:[%s13 + $0x78] sm:$0xff]
        %v1901 = vunpack.c.l.b16 %v1869
        %v1902 = vunpack.c.h.b16 %v1869
        %v1903 = vunpack.c.l.b16 %v1870
        %v1904 = vunpack.c.h.b16 %v1870
        %v1905 = vunpack.c.l.b16 %v1871
        %v1906 = vunpack.c.h.b16 %v1871
        %v1907 = vunpack.c.l.b16 %v1872
        %v1908 = vunpack.c.h.b16 %v1872
        %v1909 = vunpack.c.l.b16 %v1873
        %v1910 = vunpack.c.h.b16 %v1873
        %v1911 = vunpack.c.l.b16 %v1874
        %v1912 = vunpack.c.h.b16 %v1874
        %v1913 = vunpack.c.l.b16 %v1875
        %v1914 = vunpack.c.h.b16 %v1875
        %v1915 = vunpack.c.l.b16 %v1876
        %v1916 = vunpack.c.h.b16 %v1876
        %v1917 = vunpack.c.l.b16 %v1877
        %v1918 = vunpack.c.h.b16 %v1877
        %v1919 = vunpack.c.l.b16 %v1878
        %v1920 = vunpack.c.h.b16 %v1878
        %v1921 = vunpack.c.l.b16 %v1879
        %v1922 = vunpack.c.h.b16 %v1879
        %v1923 = vunpack.c.l.b16 %v1880
        %v1924 = vunpack.c.h.b16 %v1880
        %v1925 = vunpack.c.l.b16 %v1881
        %v1926 = vunpack.c.h.b16 %v1881
        %v1927 = vunpack.c.l.b16 %v1882
        %v1928 = vunpack.c.h.b16 %v1882
        %v1929 = vunpack.c.l.b16 %v1883
        %v1930 = vunpack.c.h.b16 %v1883
        %v1931 = vunpack.c.l.b16 %v1884
        %v1932 = vunpack.c.h.b16 %v1884
        %v1933 = vpack.c.b16 %v1903, %v1901
        %v1934 = vpack.c.b16 %v1904, %v1902
        %v1935 = vpack.c.b16 %v1907, %v1905
        %v1936 = vpack.c.b16 %v1908, %v1906
        %v1937 = vpack.c.b16 %v1911, %v1909
        %v1938 = vpack.c.b16 %v1912, %v1910
        %v1939 = vpack.c.b16 %v1915, %v1913
        %v1940 = vpack.c.b16 %v1916, %v1914
        %v1941 = vpack.c.b16 %v1919, %v1917
        %v1942 = vpack.c.b16 %v1920, %v1918
        %v1943 = vpack.c.b16 %v1923, %v1921
        %v1944 = vpack.c.b16 %v1924, %v1922
        %v1945 = vpack.c.b16 %v1927, %v1925
        %v1946 = vpack.c.b16 %v1928, %v1926
        %v1947 = vpack.c.b16 %v1931, %v1929
        %v1948 = vpack.c.b16 %v1932, %v1930
        %1965 = vmatprep.subr.bf16.mxu0 %v1934
        %1966 = vmatpush1.bf16.msra.mxu0 %v1933
        %1967 = vmatprep.subr.bf16.mxu0 %v1936
        %1968 = vmatpush1.bf16.msra.mxu0 %v1935
        %1969 = vmatprep.subr.bf16.mxu0 %v1938
        %1970 = vmatpush1.bf16.msra.mxu0 %v1937
        %1971 = vmatprep.subr.bf16.mxu0 %v1940
        %1972 = vmatpush1.bf16.msra.mxu0 %v1939
        %1973 = vmatprep.subr.bf16.mxu0 %v1942
        %1974 = vmatpush1.bf16.msra.mxu0 %v1941
        %1975 = vmatprep.subr.bf16.mxu0 %v1944
        %1976 = vmatpush1.bf16.msra.mxu0 %v1943
        %1977 = vmatprep.subr.bf16.mxu0 %v1946
        %1978 = vmatpush1.bf16.msra.mxu0 %v1945
        %1979 = vmatprep.subr.bf16.mxu0 %v1948
        %1980 = vmatpush1.bf16.msra.mxu0 %v1947
        %1981 = vmatprep.subr.bf16.mxu0 0
        %1982 = vmatpush1.bf16.msra.mxu0 0
        %1983 = vmatprep.subr.bf16.mxu0 0
        %1984 = vmatpush1.bf16.msra.mxu0 0
        %1985 = vmatprep.subr.bf16.mxu0 0
        %1986 = vmatpush1.bf16.msra.mxu0 0
        %1987 = vmatprep.subr.bf16.mxu0 0
        %1988 = vmatpush1.bf16.msra.mxu0 0
        %1989 = vmatprep.subr.bf16.mxu0 0
        %1990 = vmatpush1.bf16.msra.mxu0 0
        %1991 = vmatprep.subr.bf16.mxu0 0
        %1992 = vmatpush1.bf16.msra.mxu0 0
        %1993 = vmatprep.subr.bf16.mxu0 0
        %1994 = vmatpush1.bf16.msra.mxu0 0
        %1995 = vmatprep.subr.bf16.mxu0 0
        %1996 = vmatpush1.bf16.msra.mxu0 0
        %1997 = vmatprep.mubr.bf16.mxu0 0
        %1998 = vmatmul.mubr.bf16.gmra.mrb[0].mxu0 %v1868
        %v1999 = vpop.f32.mrb[0].mxu0
        %v2000 = vadd.f32 0.0, %v1999
        %v2001 = vpop.f32.mrb[0].mxu0
        %v2002 = vadd.f32 0.0, %v2001
        %v2003 = vpop.f32.mrb[0].mxu0
        %v2004 = vpop.f32.mrb[0].mxu0
        %2005 = vdwg.mxu0
        %v2006 = vpack.c.bf16 %v2000, %v2000
        %v2007 = vld [vmem:[%s15] sm:$0xf]
        %s2008 = scalar_lea.vmem %s15, 4
        %v2009 = vld [vmem:[%s2008] sm:$0xf]
        %2011 = vrot.lane.b32.xlu0 %v2006, 64
        %v2012 = vpop.permute.xlu0 %2011
        %v2014 = vsel %vm1716, %v2009, 0
        %v2017 = vsel %vm1720, %v2012, 0
        %2019 = vmatprep.subr.bf16.mxu0 0
        %2020 = vmatpush1.bf16.msra.mxu0 %v2017
        %2021 = vmatprep.subr.bf16.mxu0 0
        %2022 = vmatpush1.bf16.msra.mxu0 0
        %2023 = vmatprep.subr.bf16.mxu0 0
        %2024 = vmatpush1.bf16.msra.mxu0 0
        %2025 = vmatprep.subr.bf16.mxu0 0
        %2026 = vmatpush1.bf16.msra.mxu0 0
        %2027 = vmatprep.subr.bf16.mxu0 0
        %2028 = vmatpush1.bf16.msra.mxu0 0
        %2029 = vmatprep.subr.bf16.mxu0 0
        %2030 = vmatpush1.bf16.msra.mxu0 0
        %2031 = vmatprep.subr.bf16.mxu0 0
        %2032 = vmatpush1.bf16.msra.mxu0 0
        %2033 = vmatprep.subr.bf16.mxu0 0
        %2034 = vmatpush1.bf16.msra.mxu0 0
        %2035 = vmatprep.subr.bf16.mxu0 0
        %2036 = vmatpush1.bf16.msra.mxu0 0
        %2037 = vmatprep.subr.bf16.mxu0 0
        %2038 = vmatpush1.bf16.msra.mxu0 0
        %2039 = vmatprep.subr.bf16.mxu0 0
        %2040 = vmatpush1.bf16.msra.mxu0 0
        %2041 = vmatprep.subr.bf16.mxu0 0
        %2042 = vmatpush1.bf16.msra.mxu0 0
        %2043 = vmatprep.subr.bf16.mxu0 0
        %2044 = vmatpush1.bf16.msra.mxu0 0
        %2045 = vmatprep.subr.bf16.mxu0 0
        %2046 = vmatpush1.bf16.msra.mxu0 0
        %2047 = vmatprep.subr.bf16.mxu0 0
        %2048 = vmatpush1.bf16.msra.mxu0 0
        %2049 = vmatprep.subr.bf16.mxu0 0
        %2050 = vmatpush1.bf16.msra.mxu0 0
        %2051 = vmatprep.mubr.bf16.mxu0 0
        %2052 = vmatmul.mubr.bf16.gmra.mrb[0].mxu0 %v2014
        %v2053 = vpop.f32.mrb[0].mxu0
        %v2054 = vadd.f32 0.0, %v2053
        %v2055 = vpop.f32.mrb[0].mxu0
        %v2056 = vpop.f32.mrb[0].mxu0
        %v2057 = vpop.f32.mrb[0].mxu0
        %2058 = vdwg.mxu0
        %v2060 = vsel %vm1716, %v2007, 0
        %v2063 = vsel %vm1720, %v2006, 0
        %2065 = vmatprep.subr.bf16.mxu0 0
        %2066 = vmatpush1.bf16.msra.mxu0 %v2063
        %2067 = vmatprep.subr.bf16.mxu0 0
        %2068 = vmatpush1.bf16.msra.mxu0 0
        %2069 = vmatprep.subr.bf16.mxu0 0
        %2070 = vmatpush1.bf16.msra.mxu0 0
        %2071 = vmatprep.subr.bf16.mxu0 0
        %2072 = vmatpush1.bf16.msra.mxu0 0
        %2073 = vmatprep.subr.bf16.mxu0 0
        %2074 = vmatpush1.bf16.msra.mxu0 0
        %2075 = vmatprep.subr.bf16.mxu0 0
        %2076 = vmatpush1.bf16.msra.mxu0 0
        %2077 = vmatprep.subr.bf16.mxu0 0
        %2078 = vmatpush1.bf16.msra.mxu0 0
        %2079 = vmatprep.subr.bf16.mxu0 0
        %2080 = vmatpush1.bf16.msra.mxu0 0
        %2081 = vmatprep.subr.bf16.mxu0 0
        %2082 = vmatpush1.bf16.msra.mxu0 0
        %2083 = vmatprep.subr.bf16.mxu0 0
        %2084 = vmatpush1.bf16.msra.mxu0 0
        %2085 = vmatprep.subr.bf16.mxu0 0
        %2086 = vmatpush1.bf16.msra.mxu0 0
        %2087 = vmatprep.subr.bf16.mxu0 0
        %2088 = vmatpush1.bf16.msra.mxu0 0
        %2089 = vmatprep.subr.bf16.mxu0 0
        %2090 = vmatpush1.bf16.msra.mxu0 0
        %2091 = vmatprep.subr.bf16.mxu0 0
        %2092 = vmatpush1.bf16.msra.mxu0 0
        %2093 = vmatprep.subr.bf16.mxu0 0
        %2094 = vmatpush1.bf16.msra.mxu0 0
        %2095 = vmatprep.subr.bf16.mxu0 0
        %2096 = vmatpush1.bf16.msra.mxu0 0
        %2097 = vmatprep.mubr.bf16.mxu0 0
        %2098 = vmatmul.mubr.bf16.gmra.mrb[0].mxu0 %v2060
        %v2099 = vpop.f32.mrb[0].mxu0
        %v2100 = vadd.f32 %v2054, %v2099
        %v2101 = vpop.f32.mrb[0].mxu0
        %v2102 = vpop.f32.mrb[0].mxu0
        %v2103 = vpop.f32.mrb[0].mxu0
        %2104 = vdwg.mxu0
        %v2105 = vpack.c.bf16 %v2002, %v2002
        %s2106 = scalar_lea.vmem %s15, 8
        %v2107 = vld [vmem:[%s2106] sm:$0xf]
        %v2109 = vsel %vm1716, %v2107, 0
        %v2112 = vsel %vm1720, %v2105, 0
        %2114 = vmatprep.subr.bf16.mxu0 0
        %2115 = vmatpush1.bf16.msra.mxu0 %v2112
        %2116 = vmatprep.subr.bf16.mxu0 0
        %2117 = vmatpush1.bf16.msra.mxu0 0
        %2118 = vmatprep.subr.bf16.mxu0 0
        %2119 = vmatpush1.bf16.msra.mxu0 0
        %2120 = vmatprep.subr.bf16.mxu0 0
        %2121 = vmatpush1.bf16.msra.mxu0 0
        %2122 = vmatprep.subr.bf16.mxu0 0
        %2123 = vmatpush1.bf16.msra.mxu0 0
        %2124 = vmatprep.subr.bf16.mxu0 0
        %2125 = vmatpush1.bf16.msra.mxu0 0
        %2126 = vmatprep.subr.bf16.mxu0 0
        %2127 = vmatpush1.bf16.msra.mxu0 0
        %2128 = vmatprep.subr.bf16.mxu0 0
        %2129 = vmatpush1.bf16.msra.mxu0 0
        %2130 = vmatprep.subr.bf16.mxu0 0
        %2131 = vmatpush1.bf16.msra.mxu0 0
        %2132 = vmatprep.subr.bf16.mxu0 0
        %2133 = vmatpush1.bf16.msra.mxu0 0
        %2134 = vmatprep.subr.bf16.mxu0 0
        %2135 = vmatpush1.bf16.msra.mxu0 0
        %2136 = vmatprep.subr.bf16.mxu0 0
        %2137 = vmatpush1.bf16.msra.mxu0 0
        %2138 = vmatprep.subr.bf16.mxu0 0
        %2139 = vmatpush1.bf16.msra.mxu0 0
        %2140 = vmatprep.subr.bf16.mxu0 0
        %2141 = vmatpush1.bf16.msra.mxu0 0
        %2142 = vmatprep.subr.bf16.mxu0 0
        %2143 = vmatpush1.bf16.msra.mxu0 0
        %2144 = vmatprep.subr.bf16.mxu0 0
        %2145 = vmatpush1.bf16.msra.mxu0 0
        %2146 = vmatprep.mubr.bf16.mxu0 0
        %2147 = vmatmul.mubr.bf16.gmra.mrb[0].mxu0 %v2109
        %v2148 = vpop.f32.mrb[0].mxu0
        %v2149 = vadd.f32 0.0, %v2148
        %v2150 = vpop.f32.mrb[0].mxu0
        %v2151 = vpop.f32.mrb[0].mxu0
        %v2152 = vpop.f32.mrb[0].mxu0
        %2153 = vdwg.mxu0
        %v2154 = vadd.f32 %v2100, %v2149
        %v2155 = vld [vmem:[%s17] sm:$0xff]
        %2157 = vset.pattern.permute.xlu0 0
        %2158 = vperm.xlu0 %2157, %v2155
        %v2159 = vpop.permute.xlu0 %2158
        %v2161 = vadd.f32 %v2154, %v2159
        %v2162 = vmax.f32 %v2161, 0.0
        %v2163 = vpack.c.bf16 %v2162, %v2162
        %v2164 = vld [vmem:[%s19] sm:$0xf]
        %v2165 = vld [vmem:[%s19 + $0x4] sm:$0xf]
        %v2166 = vld [vmem:[%s19 + $0x8] sm:$0xf]
        %v2167 = vld [vmem:[%s19 + $0xc] sm:$0xf]
        %v2168 = vld [vmem:[%s19 + $0x10] sm:$0xf]
        %v2169 = vld [vmem:[%s19 + $0x14] sm:$0xf]
        %v2170 = vld [vmem:[%s19 + $0x18] sm:$0xf]
        %v2171 = vld [vmem:[%s19 + $0x1c] sm:$0xf]
        %v2180 = vunpack.c.l.b16 %v2164
        %v2181 = vunpack.c.l.b16 %v2165
        %v2182 = vunpack.c.l.b16 %v2166
        %v2183 = vunpack.c.l.b16 %v2167
        %v2184 = vunpack.c.l.b16 %v2168
        %v2185 = vunpack.c.l.b16 %v2169
        %v2186 = vunpack.c.l.b16 %v2170
        %v2187 = vunpack.c.l.b16 %v2171
        %v2188 = vpack.c.b16 %v2181, %v2180
        %v2189 = vpack.c.b16 %v2183, %v2182
        %v2190 = vpack.c.b16 %v2185, %v2184
        %v2191 = vpack.c.b16 %v2187, %v2186
        %vm2196 = vcmask 523264
        %v2198 = vsel %vm2196, %v2163, 0
        %2200 = vmatprep.subr.bf16.mxu0 0
        %2201 = vmatpush1.bf16.msra.mxu0 %v2188
        %2202 = vmatprep.subr.bf16.mxu0 0
        %2203 = vmatpush1.bf16.msra.mxu0 %v2189
        %2204 = vmatprep.subr.bf16.mxu0 0
        %2205 = vmatpush1.bf16.msra.mxu0 %v2190
        %2206 = vmatprep.subr.bf16.mxu0 0
        %2207 = vmatpush1.bf16.msra.mxu0 %v2191
        %2208 = vmatprep.subr.bf16.mxu0 0
        %2209 = vmatpush1.bf16.msra.mxu0 0
        %2210 = vmatprep.subr.bf16.mxu0 0
        %2211 = vmatpush1.bf16.msra.mxu0 0
        %2212 = vmatprep.subr.bf16.mxu0 0
        %2213 = vmatpush1.bf16.msra.mxu0 0
        %2214 = vmatprep.subr.bf16.mxu0 0
        %2215 = vmatpush1.bf16.msra.mxu0 0
        %2216 = vmatprep.subr.bf16.mxu0 0
        %2217 = vmatpush1.bf16.msra.mxu0 0
        %2218 = vmatprep.subr.bf16.mxu0 0
        %2219 = vmatpush1.bf16.msra.mxu0 0
        %2220 = vmatprep.subr.bf16.mxu0 0
        %2221 = vmatpush1.bf16.msra.mxu0 0
        %2222 = vmatprep.subr.bf16.mxu0 0
        %2223 = vmatpush1.bf16.msra.mxu0 0
        %2224 = vmatprep.subr.bf16.mxu0 0
        %2225 = vmatpush1.bf16.msra.mxu0 0
        %2226 = vmatprep.subr.bf16.mxu0 0
        %2227 = vmatpush1.bf16.msra.mxu0 0
        %2228 = vmatprep.subr.bf16.mxu0 0
        %2229 = vmatpush1.bf16.msra.mxu0 0
        %2230 = vmatprep.subr.bf16.mxu0 0
        %2231 = vmatpush1.bf16.msra.mxu0 0
        %2232 = vmatprep.mubr.bf16.mxu0 0
        %2233 = vmatmul.mubr.bf16.gmra.mrb[0].mxu0 %v2198
        %v2234 = vpop.f32.mrb[0].mxu0
        %v2235 = vadd.f32 0.0, %v2234
        %v2236 = vpop.f32.mrb[0].mxu0
        %v2237 = vpop.f32.mrb[0].mxu0
        %v2238 = vpop.f32.mrb[0].mxu0
        %2239 = vdwg.mxu0
        %v2240 = vpack.c.bf16 %v2235, %v2235
        %v2241 = vld [vmem:[%s21] sm:$0xf]
        %v2242 = vld [vmem:[%s21 + $0x4] sm:$0xf]
        %s2243 = scalar_lea.vmem %s21, 8
        %v2244 = vld [vmem:[%s2243] sm:$0xf]
        %v2245 = vld [vmem:[%s2243 + $0x4] sm:$0xf]
        %v2248 = vunpack.c.l.b16 %v2244
        %v2249 = vunpack.c.l.b16 %v2245
        %v2250 = vpack.c.b16 %v2249, %v2248
        %2252 = vrot.lane.b32.xlu0 %v2240, 96
        %v2253 = vpop.permute.xlu0 %2252
        %v2255 = vsel %vm1716, %v2250, 0
        %v2258 = vsel %vm1720, %v2253, 0
        %2260 = vmatprep.subr.bf16.mxu0 0
        %2261 = vmatpush1.bf16.msra.mxu0 %v2258
        %2262 = vmatprep.subr.bf16.mxu0 0
        %2263 = vmatpush1.bf16.msra.mxu0 0
        %2264 = vmatprep.subr.bf16.mxu0 0
        %2265 = vmatpush1.bf16.msra.mxu0 0
        %2266 = vmatprep.subr.bf16.mxu0 0
        %2267 = vmatpush1.bf16.msra.mxu0 0
        %2268 = vmatprep.subr.bf16.mxu0 0
        %2269 = vmatpush1.bf16.msra.mxu0 0
        %2270 = vmatprep.subr.bf16.mxu0 0
        %2271 = vmatpush1.bf16.msra.mxu0 0
        %2272 = vmatprep.subr.bf16.mxu0 0
        %2273 = vmatpush1.bf16.msra.mxu0 0
        %2274 = vmatprep.subr.bf16.mxu0 0
        %2275 = vmatpush1.bf16.msra.mxu0 0
        %2276 = vmatprep.subr.bf16.mxu0 0
        %2277 = vmatpush1.bf16.msra.mxu0 0
        %2278 = vmatprep.subr.bf16.mxu0 0
        %2279 = vmatpush1.bf16.msra.mxu0 0
        %2280 = vmatprep.subr.bf16.mxu0 0
        %2281 = vmatpush1.bf16.msra.mxu0 0
        %2282 = vmatprep.subr.bf16.mxu0 0
        %2283 = vmatpush1.bf16.msra.mxu0 0
        %2284 = vmatprep.subr.bf16.mxu0 0
        %2285 = vmatpush1.bf16.msra.mxu0 0
        %2286 = vmatprep.subr.bf16.mxu0 0
        %2287 = vmatpush1.bf16.msra.mxu0 0
        %2288 = vmatprep.subr.bf16.mxu0 0
        %2289 = vmatpush1.bf16.msra.mxu0 0
        %2290 = vmatprep.subr.bf16.mxu0 0
        %2291 = vmatpush1.bf16.msra.mxu0 0
        %2292 = vmatprep.mubr.bf16.mxu0 0
        %2293 = vmatmul.mubr.bf16.gmra.mrb[0].mxu0 %v2255
        %v2294 = vpop.f32.mrb[0].mxu0
        %v2295 = vadd.f32 0.0, %v2294
        %v2296 = vpop.f32.mrb[0].mxu0
        %v2297 = vpop.f32.mrb[0].mxu0
        %v2298 = vadd.f32 0.0, %v2297
        %v2299 = vpop.f32.mrb[0].mxu0
        %2300 = vdwg.mxu0
        %v2303 = vunpack.c.l.b16 %v2241
        %v2304 = vunpack.c.l.b16 %v2242
        %v2305 = vpack.c.b16 %v2304, %v2303
        %v2307 = vsel %vm1716, %v2305, 0
        %v2310 = vsel %vm1720, %v2240, 0
        %2312 = vmatprep.subr.bf16.mxu0 0
        %2313 = vmatpush1.bf16.msra.mxu0 %v2310
        %2314 = vmatprep.subr.bf16.mxu0 0
        %2315 = vmatpush1.bf16.msra.mxu0 0
        %2316 = vmatprep.subr.bf16.mxu0 0
        %2317 = vmatpush1.bf16.msra.mxu0 0
        %2318 = vmatprep.subr.bf16.mxu0 0
        %2319 = vmatpush1.bf16.msra.mxu0 0
        %2320 = vmatprep.subr.bf16.mxu0 0
        %2321 = vmatpush1.bf16.msra.mxu0 0
        %2322 = vmatprep.subr.bf16.mxu0 0
        %2323 = vmatpush1.bf16.msra.mxu0 0
        %2324 = vmatprep.subr.bf16.mxu0 0
        %2325 = vmatpush1.bf16.msra.mxu0 0
        %2326 = vmatprep.subr.bf16.mxu0 0
        %2327 = vmatpush1.bf16.msra.mxu0 0
        %2328 = vmatprep.subr.bf16.mxu0 0
        %2329 = vmatpush1.bf16.msra.mxu0 0
        %2330 = vmatprep.subr.bf16.mxu0 0
        %2331 = vmatpush1.bf16.msra.mxu0 0
        %2332 = vmatprep.subr.bf16.mxu0 0
        %2333 = vmatpush1.bf16.msra.mxu0 0
        %2334 = vmatprep.subr.bf16.mxu0 0
        %2335 = vmatpush1.bf16.msra.mxu0 0
        %2336 = vmatprep.subr.bf16.mxu0 0
        %2337 = vmatpush1.bf16.msra.mxu0 0
        %2338 = vmatprep.subr.bf16.mxu0 0
        %2339 = vmatpush1.bf16.msra.mxu0 0
        %2340 = vmatprep.subr.bf16.mxu0 0
        %2341 = vmatpush1.bf16.msra.mxu0 0
        %2342 = vmatprep.subr.bf16.mxu0 0
        %2343 = vmatpush1.bf16.msra.mxu0 0
        %2344 = vmatprep.mubr.bf16.mxu0 0
        %2345 = vmatmul.mubr.bf16.gmra.mrb[0].mxu0 %v2307
        %v2346 = vpop.f32.mrb[0].mxu0
        %v2347 = vadd.f32 %v2295, %v2346
        %v2348 = vpop.f32.mrb[0].mxu0
        %v2349 = vpop.f32.mrb[0].mxu0
        %v2350 = vadd.f32 %v2298, %v2349
        %v2351 = vpop.f32.mrb[0].mxu0
        %2352 = vdwg.mxu0
        %s2353 = scalar_lea.vmem %s21, 16
        %v2354 = vld [vmem:[%s2353] sm:$0xf]
        %v2355 = vld [vmem:[%s2353 + $0x4] sm:$0xf]
        %v2358 = vunpack.c.l.b16 %v2354
        %v2359 = vunpack.c.l.b16 %v2355
        %v2360 = vpack.c.b16 %v2359, %v2358
        %2361 = vrot.lane.b32.xlu0 %v2240, 64
        %v2362 = vpop.permute.xlu0 %2361
        %v2364 = vsel %vm1716, %v2360, 0
        %v2367 = vsel %vm1720, %v2362, 0
        %2369 = vmatprep.subr.bf16.mxu0 0
        %2370 = vmatpush1.bf16.msra.mxu0 %v2367
        %2371 = vmatprep.subr.bf16.mxu0 0
        %2372 = vmatpush1.bf16.msra.mxu0 0
        %2373 = vmatprep.subr.bf16.mxu0 0
        %2374 = vmatpush1.bf16.msra.mxu0 0
        %2375 = vmatprep.subr.bf16.mxu0 0
        %2376 = vmatpush1.bf16.msra.mxu0 0
        %2377 = vmatprep.subr.bf16.mxu0 0
        %2378 = vmatpush1.bf16.msra.mxu0 0
        %2379 = vmatprep.subr.bf16.mxu0 0
        %2380 = vmatpush1.bf16.msra.mxu0 0
        %2381 = vmatprep.subr.bf16.mxu0 0
        %2382 = vmatpush1.bf16.msra.mxu0 0
        %2383 = vmatprep.subr.bf16.mxu0 0
        %2384 = vmatpush1.bf16.msra.mxu0 0
        %2385 = vmatprep.subr.bf16.mxu0 0
        %2386 = vmatpush1.bf16.msra.mxu0 0
        %2387 = vmatprep.subr.bf16.mxu0 0
        %2388 = vmatpush1.bf16.msra.mxu0 0
        %2389 = vmatprep.subr.bf16.mxu0 0
        %2390 = vmatpush1.bf16.msra.mxu0 0
        %2391 = vmatprep.subr.bf16.mxu0 0
        %2392 = vmatpush1.bf16.msra.mxu0 0
        %2393 = vmatprep.subr.bf16.mxu0 0
        %2394 = vmatpush1.bf16.msra.mxu0 0
        %2395 = vmatprep.subr.bf16.mxu0 0
        %2396 = vmatpush1.bf16.msra.mxu0 0
        %2397 = vmatprep.subr.bf16.mxu0 0
        %2398 = vmatpush1.bf16.msra.mxu0 0
        %2399 = vmatprep.subr.bf16.mxu0 0
        %2400 = vmatpush1.bf16.msra.mxu0 0
        %2401 = vmatprep.mubr.bf16.mxu0 0
        %2402 = vmatmul.mubr.bf16.gmra.mrb[0].mxu0 %v2364
        %v2403 = vpop.f32.mrb[0].mxu0
        %v2404 = vadd.f32 0.0, %v2403
        %v2405 = vpop.f32.mrb[0].mxu0
        %v2406 = vpop.f32.mrb[0].mxu0
        %v2407 = vadd.f32 0.0, %v2406
        %v2408 = vpop.f32.mrb[0].mxu0
        %2409 = vdwg.mxu0
        %v2410 = vadd.f32 %v2347, %v2404
        %v2411 = vadd.f32 %v2350, %v2407
        %v2412 = vld [vmem:[%s23] sm:$0xff]
        %v2413 = vld [vmem:[%s23 + $0x8] sm:$0xff]
        %2415 = vset.pattern.permute.xlu0 0
        %2416 = vperm.xlu0 %2415, %v2412
        %v2417 = vpop.permute.xlu0 %2416
        %2420 = vset.pattern.permute.xlu0 0
        %2421 = vperm.xlu0 %2420, %v2413
        %v2422 = vpop.permute.xlu0 %2421
        %v2424 = vadd.f32 %v2410, %v2417
        %v2425 = vadd.f32 %v2411, %v2422
        %v2426 = vmax.f32 %v2424, 0.0
        %v2427 = vmax.f32 %v2425, 0.0
        %v2428 = vpack.c.bf16 %v2427, %v2426
        %v2429 = vld [vmem:[%s25] sm:$0xf]
        %v2430 = vld [vmem:[%s25 + $0x4] sm:$0xf]
        %v2431 = vld [vmem:[%s25 + $0x8] sm:$0xf]
        %v2432 = vld [vmem:[%s25 + $0xc] sm:$0xf]
        %v2437 = vunpack.c.l.b16 %v2429
        %v2438 = vunpack.c.l.b16 %v2430
        %v2439 = vunpack.c.l.b16 %v2431
        %v2440 = vunpack.c.l.b16 %v2432
        %v2441 = vpack.c.b16 %v2438, %v2437
        %v2442 = vpack.c.b16 %v2440, %v2439
        %vm2445 = vcmask 261120
        %v2447 = vsel %vm2445, %v2428, 0
        %2449 = vmatprep.subr.bf16.mxu0 0
        %2450 = vmatpush1.bf16.msra.mxu0 %v2441
        %2451 = vmatprep.subr.bf16.mxu0 0
        %2452 = vmatpush1.bf16.msra.mxu0 %v2442
        %2453 = vmatprep.subr.bf16.mxu0 0
        %2454 = vmatpush1.bf16.msra.mxu0 0
        %2455 = vmatprep.subr.bf16.mxu0 0
        %2456 = vmatpush1.bf16.msra.mxu0 0
        %2457 = vmatprep.subr.bf16.mxu0 0
        %2458 = vmatpush1.bf16.msra.mxu0 0
        %2459 = vmatprep.subr.bf16.mxu0 0
        %2460 = vmatpush1.bf16.msra.mxu0 0
        %2461 = vmatprep.subr.bf16.mxu0 0
        %2462 = vmatpush1.bf16.msra.mxu0 0
        %2463 = vmatprep.subr.bf16.mxu0 0
        %2464 = vmatpush1.bf16.msra.mxu0 0
        %2465 = vmatprep.subr.bf16.mxu0 0
        %2466 = vmatpush1.bf16.msra.mxu0 0
        %2467 = vmatprep.subr.bf16.mxu0 0
        %2468 = vmatpush1.bf16.msra.mxu0 0
        %2469 = vmatprep.subr.bf16.mxu0 0
        %2470 = vmatpush1.bf16.msra.mxu0 0
        %2471 = vmatprep.subr.bf16.mxu0 0
        %2472 = vmatpush1.bf16.msra.mxu0 0
        %2473 = vmatprep.subr.bf16.mxu0 0
        %2474 = vmatpush1.bf16.msra.mxu0 0
        %2475 = vmatprep.subr.bf16.mxu0 0
        %2476 = vmatpush1.bf16.msra.mxu0 0
        %2477 = vmatprep.subr.bf16.mxu0 0
        %2478 = vmatpush1.bf16.msra.mxu0 0
        %2479 = vmatprep.subr.bf16.mxu0 0
        %2480 = vmatpush1.bf16.msra.mxu0 0
        %2481 = vmatprep.mubr.bf16.mxu0 0
        %2482 = vmatmul.mubr.bf16.gmra.mrb[0].mxu0 %v2447
        %v2483 = vpop.f32.mrb[0].mxu0
        %v2484 = vadd.f32 0.0, %v2483
        %v2485 = vpop.f32.mrb[0].mxu0
        %v2486 = vpop.f32.mrb[0].mxu0
        %v2487 = vadd.f32 0.0, %v2486
        %v2488 = vpop.f32.mrb[0].mxu0
        %2489 = vdwg.mxu0
        %v2490 = vpack.c.bf16 %v2487, %v2484
        %v2491 = vld [vmem:[%s27] sm:$0xf]
        %v2492 = vld [vmem:[%s27 + $0x4] sm:$0xf]
        %s2493 = scalar_lea.vmem %s27, 8
        %v2494 = vld [vmem:[%s2493] sm:$0xf]
        %v2495 = vld [vmem:[%s2493 + $0x4] sm:$0xf]
        %v2498 = vunpack.c.l.b16 %v2494
        %v2499 = vunpack.c.l.b16 %v2495
        %v2500 = vpack.c.b16 %v2499, %v2498
        %2502 = vrot.lane.b32.xlu0 %v2490, 112
        %v2503 = vpop.permute.xlu0 %2502
        %vm2505 = vcmask 130048
        %v2507 = vsel %vm2505, %v2500, 0
        %2509 = vmatprep.subr.bf16.mxu0 0
        %2510 = vmatpush1.bf16.msra.mxu0 %v2503
        %2511 = vmatprep.subr.bf16.mxu0 0
        %2512 = vmatpush1.bf16.msra.mxu0 0
        %2513 = vmatprep.subr.bf16.mxu0 0
        %2514 = vmatpush1.bf16.msra.mxu0 0
        %2515 = vmatprep.subr.bf16.mxu0 0
        %2516 = vmatpush1.bf16.msra.mxu0 0
        %2517 = vmatprep.subr.bf16.mxu0 0
        %2518 = vmatpush1.bf16.msra.mxu0 0
        %2519 = vmatprep.subr.bf16.mxu0 0
        %2520 = vmatpush1.bf16.msra.mxu0 0
        %2521 = vmatprep.subr.bf16.mxu0 0
        %2522 = vmatpush1.bf16.msra.mxu0 0
        %2523 = vmatprep.subr.bf16.mxu0 0
        %2524 = vmatpush1.bf16.msra.mxu0 0
        %2525 = vmatprep.subr.bf16.mxu0 0
        %2526 = vmatpush1.bf16.msra.mxu0 0
        %2527 = vmatprep.subr.bf16.mxu0 0
        %2528 = vmatpush1.bf16.msra.mxu0 0
        %2529 = vmatprep.subr.bf16.mxu0 0
        %2530 = vmatpush1.bf16.msra.mxu0 0
        %2531 = vmatprep.subr.bf16.mxu0 0
        %2532 = vmatpush1.bf16.msra.mxu0 0
        %2533 = vmatprep.subr.bf16.mxu0 0
        %2534 = vmatpush1.bf16.msra.mxu0 0
        %2535 = vmatprep.subr.bf16.mxu0 0
        %2536 = vmatpush1.bf16.msra.mxu0 0
        %2537 = vmatprep.subr.bf16.mxu0 0
        %2538 = vmatpush1.bf16.msra.mxu0 0
        %2539 = vmatprep.subr.bf16.mxu0 0
        %2540 = vmatpush1.bf16.msra.mxu0 0
        %2541 = vmatprep.mubr.bf16.mxu0 0
        %2542 = vmatmul.mubr.bf16.gmra.mrb[0].mxu0 %v2507
        %v2543 = vpop.f32.mrb[0].mxu0
        %v2544 = vadd.f32 0.0, %v2543
        %v2545 = vpop.f32.mrb[0].mxu0
        %v2546 = vpop.f32.mrb[0].mxu0
        %v2547 = vadd.f32 0.0, %v2546
        %v2548 = vpop.f32.mrb[0].mxu0
        %2549 = vdwg.mxu0
        %v2552 = vunpack.c.l.b16 %v2491
        %v2553 = vunpack.c.l.b16 %v2492
        %v2554 = vpack.c.b16 %v2553, %v2552
        %v2556 = vsel %vm2505, %v2554, 0
        %2558 = vmatprep.subr.bf16.mxu0 0
        %2559 = vmatpush1.bf16.msra.mxu0 %v2490
        %2560 = vmatprep.subr.bf16.mxu0 0
        %2561 = vmatpush1.bf16.msra.mxu0 0
        %2562 = vmatprep.subr.bf16.mxu0 0
        %2563 = vmatpush1.bf16.msra.mxu0 0
        %2564 = vmatprep.subr.bf16.mxu0 0
        %2565 = vmatpush1.bf16.msra.mxu0 0
        %2566 = vmatprep.subr.bf16.mxu0 0
        %2567 = vmatpush1.bf16.msra.mxu0 0
        %2568 = vmatprep.subr.bf16.mxu0 0
        %2569 = vmatpush1.bf16.msra.mxu0 0
        %2570 = vmatprep.subr.bf16.mxu0 0
        %2571 = vmatpush1.bf16.msra.mxu0 0
        %2572 = vmatprep.subr.bf16.mxu0 0
        %2573 = vmatpush1.bf16.msra.mxu0 0
        %2574 = vmatprep.subr.bf16.mxu0 0
        %2575 = vmatpush1.bf16.msra.mxu0 0
        %2576 = vmatprep.subr.bf16.mxu0 0
        %2577 = vmatpush1.bf16.msra.mxu0 0
        %2578 = vmatprep.subr.bf16.mxu0 0
        %2579 = vmatpush1.bf16.msra.mxu0 0
        %2580 = vmatprep.subr.bf16.mxu0 0
        %2581 = vmatpush1.bf16.msra.mxu0 0
        %2582 = vmatprep.subr.bf16.mxu0 0
        %2583 = vmatpush1.bf16.msra.mxu0 0
        %2584 = vmatprep.subr.bf16.mxu0 0
        %2585 = vmatpush1.bf16.msra.mxu0 0
        %2586 = vmatprep.subr.bf16.mxu0 0
        %2587 = vmatpush1.bf16.msra.mxu0 0
        %2588 = vmatprep.subr.bf16.mxu0 0
        %2589 = vmatpush1.bf16.msra.mxu0 0
        %2590 = vmatprep.mubr.bf16.mxu0 0
        %2591 = vmatmul.mubr.bf16.gmra.mrb[0].mxu0 %v2556
        %v2592 = vpop.f32.mrb[0].mxu0
        %v2593 = vadd.f32 %v2544, %v2592
        %v2594 = vpop.f32.mrb[0].mxu0
        %v2595 = vpop.f32.mrb[0].mxu0
        %v2596 = vadd.f32 %v2547, %v2595
        %v2597 = vpop.f32.mrb[0].mxu0
        %2598 = vdwg.mxu0
        %s2599 = scalar_lea.vmem %s27, 16
        %v2600 = vld [vmem:[%s2599] sm:$0xf]
        %v2601 = vld [vmem:[%s2599 + $0x4] sm:$0xf]
        %v2604 = vunpack.c.l.b16 %v2600
        %v2605 = vunpack.c.l.b16 %v2601
        %v2606 = vpack.c.b16 %v2605, %v2604
        %2607 = vrot.lane.b32.xlu0 %v2490, 96
        %v2608 = vpop.permute.xlu0 %2607
        %v2611 = vsel %vm2505, %v2606, 0
        %2613 = vmatprep.subr.bf16.mxu0 0
        %2614 = vmatpush1.bf16.msra.mxu0 %v2608
        %2615 = vmatprep.subr.bf16.mxu0 0
        %2616 = vmatpush1.bf16.msra.mxu0 0
        %2617 = vmatprep.subr.bf16.mxu0 0
        %2618 = vmatpush1.bf16.msra.mxu0 0
        %2619 = vmatprep.subr.bf16.mxu0 0
        %2620 = vmatpush1.bf16.msra.mxu0 0
        %2621 = vmatprep.subr.bf16.mxu0 0
        %2622 = vmatpush1.bf16.msra.mxu0 0
        %2623 = vmatprep.subr.bf16.mxu0 0
        %2624 = vmatpush1.bf16.msra.mxu0 0
        %2625 = vmatprep.subr.bf16.mxu0 0
        %2626 = vmatpush1.bf16.msra.mxu0 0
        %2627 = vmatprep.subr.bf16.mxu0 0
        %2628 = vmatpush1.bf16.msra.mxu0 0
        %2629 = vmatprep.subr.bf16.mxu0 0
        %2630 = vmatpush1.bf16.msra.mxu0 0
        %2631 = vmatprep.subr.bf16.mxu0 0
        %2632 = vmatpush1.bf16.msra.mxu0 0
        %2633 = vmatprep.subr.bf16.mxu0 0
        %2634 = vmatpush1.bf16.msra.mxu0 0
        %2635 = vmatprep.subr.bf16.mxu0 0
        %2636 = vmatpush1.bf16.msra.mxu0 0
        %2637 = vmatprep.subr.bf16.mxu0 0
        %2638 = vmatpush1.bf16.msra.mxu0 0
        %2639 = vmatprep.subr.bf16.mxu0 0
        %2640 = vmatpush1.bf16.msra.mxu0 0
        %2641 = vmatprep.subr.bf16.mxu0 0
        %2642 = vmatpush1.bf16.msra.mxu0 0
        %2643 = vmatprep.subr.bf16.mxu0 0
        %2644 = vmatpush1.bf16.msra.mxu0 0
        %2645 = vmatprep.mubr.bf16.mxu0 0
        %2646 = vmatmul.mubr.bf16.gmra.mrb[0].mxu0 %v2611
        %v2647 = vpop.f32.mrb[0].mxu0
        %v2648 = vadd.f32 0.0, %v2647
        %v2649 = vpop.f32.mrb[0].mxu0
        %v2650 = vpop.f32.mrb[0].mxu0
        %v2651 = vadd.f32 0.0, %v2650
        %v2652 = vpop.f32.mrb[0].mxu0
        %2653 = vdwg.mxu0
        %v2654 = vadd.f32 %v2593, %v2648
        %v2655 = vadd.f32 %v2596, %v2651
        %v2656 = vld [vmem:[%s29] sm:$0xff]
        %v2657 = vld [vmem:[%s29 + $0x8] sm:$0xff]
        %2659 = vset.pattern.permute.xlu0 0
        %2660 = vperm.xlu0 %2659, %v2656
        %v2661 = vpop.permute.xlu0 %2660
        %2664 = vset.pattern.permute.xlu0 0
        %2665 = vperm.xlu0 %2664, %v2657
        %v2666 = vpop.permute.xlu0 %2665
        %v2668 = vadd.f32 %v2654, %v2661
        %v2669 = vadd.f32 %v2655, %v2666
        %v2670 = vmax.f32 %v2668, 0.0
        %v2671 = vmax.f32 %v2669, 0.0
        %v2672 = vpack.c.bf16 %v2671, %v2670
        %v2673 = vld [vmem:[%s31] sm:$0xf]
        %v2674 = vld [vmem:[%s31 + $0x4] sm:$0xf]
        %v2677 = vunpack.c.l.b16 %v2673
        %v2678 = vunpack.c.l.b16 %v2674
        %v2679 = vpack.c.b16 %v2678, %v2677
        %v2682 = vsel %vm2505, %v2672, 0
        %2684 = vmatprep.subr.bf16.mxu0 0
        %2685 = vmatpush1.bf16.msra.mxu0 %v2679
        %2686 = vmatprep.subr.bf16.mxu0 0
        %2687 = vmatpush1.bf16.msra.mxu0 0
        %2688 = vmatprep.subr.bf16.mxu0 0
        %2689 = vmatpush1.bf16.msra.mxu0 0
        %2690 = vmatprep.subr.bf16.mxu0 0
        %2691 = vmatpush1.bf16.msra.mxu0 0
        %2692 = vmatprep.subr.bf16.mxu0 0
        %2693 = vmatpush1.bf16.msra.mxu0 0
        %2694 = vmatprep.subr.bf16.mxu0 0
        %2695 = vmatpush1.bf16.msra.mxu0 0
        %2696 = vmatprep.subr.bf16.mxu0 0
        %2697 = vmatpush1.bf16.msra.mxu0 0
        %2698 = vmatprep.subr.bf16.mxu0 0
        %2699 = vmatpush1.bf16.msra.mxu0 0
        %2700 = vmatprep.subr.bf16.mxu0 0
        %2701 = vmatpush1.bf16.msra.mxu0 0
        %2702 = vmatprep.subr.bf16.mxu0 0
        %2703 = vmatpush1.bf16.msra.mxu0 0
        %2704 = vmatprep.subr.bf16.mxu0 0
        %2705 = vmatpush1.bf16.msra.mxu0 0
        %2706 = vmatprep.subr.bf16.mxu0 0
        %2707 = vmatpush1.bf16.msra.mxu0 0
        %2708 = vmatprep.subr.bf16.mxu0 0
        %2709 = vmatpush1.bf16.msra.mxu0 0
        %2710 = vmatprep.subr.bf16.mxu0 0
        %2711 = vmatpush1.bf16.msra.mxu0 0
        %2712 = vmatprep.subr.bf16.mxu0 0
        %2713 = vmatpush1.bf16.msra.mxu0 0
        %2714 = vmatprep.subr.bf16.mxu0 0
        %2715 = vmatpush1.bf16.msra.mxu0 0
        %2716 = vmatprep.mubr.bf16.mxu0 0
        %2717 = vmatmul.mubr.bf16.gmra.mrb[0].mxu0 %v2682
        %v2718 = vpop.f32.mrb[0].mxu0
        %v2719 = vadd.f32 0.0, %v2718
        %v2720 = vpop.f32.mrb[0].mxu0
        %v2721 = vpop.f32.mrb[0].mxu0
        %v2722 = vadd.f32 0.0, %v2721
        %v2723 = vpop.f32.mrb[0].mxu0
        %2724 = vdwg.mxu0
        %v2725 = vpack.c.bf16 %v2722, %v2719
        %v2726 = vld [vmem:[%s33] sm:$0xf]
        %v2727 = vld [vmem:[%s33 + $0x4] sm:$0xf]
        %s2728 = scalar_lea.vmem %s33, 8
        %v2729 = vld [vmem:[%s2728] sm:$0xf]
        %v2730 = vld [vmem:[%s2728 + $0x4] sm:$0xf]
        %v2733 = vunpack.c.l.b16 %v2729
        %v2734 = vunpack.c.l.b16 %v2730
        %v2735 = vpack.c.b16 %v2734, %v2733
        %2737 = vrot.lane.b32.xlu0 %v2725, 120
        %v2738 = vpop.permute.xlu0 %2737
        %v2741 = vsel %vm2505, %v2735, 0
        %2743 = vmatprep.subr.bf16.mxu0 0
        %2744 = vmatpush1.bf16.msra.mxu0 %v2738
        %2745 = vmatprep.subr.bf16.mxu0 0
        %2746 = vmatpush1.bf16.msra.mxu0 0
        %2747 = vmatprep.subr.bf16.mxu0 0
        %2748 = vmatpush1.bf16.msra.mxu0 0
        %2749 = vmatprep.subr.bf16.mxu0 0
        %2750 = vmatpush1.bf16.msra.mxu0 0
        %2751 = vmatprep.subr.bf16.mxu0 0
        %2752 = vmatpush1.bf16.msra.mxu0 0
        %2753 = vmatprep.subr.bf16.mxu0 0
        %2754 = vmatpush1.bf16.msra.mxu0 0
        %2755 = vmatprep.subr.bf16.mxu0 0
        %2756 = vmatpush1.bf16.msra.mxu0 0
        %2757 = vmatprep.subr.bf16.mxu0 0
        %2758 = vmatpush1.bf16.msra.mxu0 0
        %2759 = vmatprep.subr.bf16.mxu0 0
        %2760 = vmatpush1.bf16.msra.mxu0 0
        %2761 = vmatprep.subr.bf16.mxu0 0
        %2762 = vmatpush1.bf16.msra.mxu0 0
        %2763 = vmatprep.subr.bf16.mxu0 0
        %2764 = vmatpush1.bf16.msra.mxu0 0
        %2765 = vmatprep.subr.bf16.mxu0 0
        %2766 = vmatpush1.bf16.msra.mxu0 0
        %2767 = vmatprep.subr.bf16.mxu0 0
        %2768 = vmatpush1.bf16.msra.mxu0 0
        %2769 = vmatprep.subr.bf16.mxu0 0
        %2770 = vmatpush1.bf16.msra.mxu0 0
        %2771 = vmatprep.subr.bf16.mxu0 0
        %2772 = vmatpush1.bf16.msra.mxu0 0
        %2773 = vmatprep.subr.bf16.mxu0 0
        %2774 = vmatpush1.bf16.msra.mxu0 0
        %2775 = vmatprep.mubr.bf16.mxu0 0
        %2776 = vmatmul.mubr.bf16.gmra.mrb[0].mxu0 %v2741
        %v2777 = vpop.f32.mrb[0].mxu0
        %v2778 = vadd.f32 0.0, %v2777
        %v2779 = vpop.f32.mrb[0].mxu0
        %v2780 = vpop.f32.mrb[0].mxu0
        %v2781 = vadd.f32 0.0, %v2780
        %v2782 = vpop.f32.mrb[0].mxu0
        %2783 = vdwg.mxu0
        %v2786 = vunpack.c.l.b16 %v2726
        %v2787 = vunpack.c.l.b16 %v2727
        %v2788 = vpack.c.b16 %v2787, %v2786
        %v2790 = vsel %vm2505, %v2788, 0
        %2792 = vmatprep.subr.bf16.mxu0 0
        %2793 = vmatpush1.bf16.msra.mxu0 %v2725
        %2794 = vmatprep.subr.bf16.mxu0 0
        %2795 = vmatpush1.bf16.msra.mxu0 0
        %2796 = vmatprep.subr.bf16.mxu0 0
        %2797 = vmatpush1.bf16.msra.mxu0 0
        %2798 = vmatprep.subr.bf16.mxu0 0
        %2799 = vmatpush1.bf16.msra.mxu0 0
        %2800 = vmatprep.subr.bf16.mxu0 0
        %2801 = vmatpush1.bf16.msra.mxu0 0
        %2802 = vmatprep.subr.bf16.mxu0 0
        %2803 = vmatpush1.bf16.msra.mxu0 0
        %2804 = vmatprep.subr.bf16.mxu0 0
        %2805 = vmatpush1.bf16.msra.mxu0 0
        %2806 = vmatprep.subr.bf16.mxu0 0
        %2807 = vmatpush1.bf16.msra.mxu0 0
        %2808 = vmatprep.subr.bf16.mxu0 0
        %2809 = vmatpush1.bf16.msra.mxu0 0
        %2810 = vmatprep.subr.bf16.mxu0 0
        %2811 = vmatpush1.bf16.msra.mxu0 0
        %2812 = vmatprep.subr.bf16.mxu0 0
        %2813 = vmatpush1.bf16.msra.mxu0 0
        %2814 = vmatprep.subr.bf16.mxu0 0
        %2815 = vmatpush1.bf16.msra.mxu0 0
        %2816 = vmatprep.subr.bf16.mxu0 0
        %2817 = vmatpush1.bf16.msra.mxu0 0
        %2818 = vmatprep.subr.bf16.mxu0 0
        %2819 = vmatpush1.bf16.msra.mxu0 0
        %2820 = vmatprep.subr.bf16.mxu0 0
        %2821 = vmatpush1.bf16.msra.mxu0 0
        %2822 = vmatprep.subr.bf16.mxu0 0
        %2823 = vmatpush1.bf16.msra.mxu0 0
        %2824 = vmatprep.mubr.bf16.mxu0 0
        %2825 = vmatmul.mubr.bf16.gmra.mrb[0].mxu0 %v2790
        %v2826 = vpop.f32.mrb[0].mxu0
        %v2827 = vadd.f32 %v2778, %v2826
        %v2828 = vpop.f32.mrb[0].mxu0
        %v2829 = vpop.f32.mrb[0].mxu0
        %v2830 = vadd.f32 %v2781, %v2829
        %v2831 = vpop.f32.mrb[0].mxu0
        %2832 = vdwg.mxu0
        %s2833 = scalar_lea.vmem %s33, 16
        %v2834 = vld [vmem:[%s2833] sm:$0xf]
        %v2835 = vld [vmem:[%s2833 + $0x4] sm:$0xf]
        %v2838 = vunpack.c.l.b16 %v2834
        %v2839 = vunpack.c.l.b16 %v2835
        %v2840 = vpack.c.b16 %v2839, %v2838
        %2841 = vrot.lane.b32.xlu0 %v2725, 112
        %v2842 = vpop.permute.xlu0 %2841
        %v2845 = vsel %vm2505, %v2840, 0
        %2847 = vmatprep.subr.bf16.mxu0 0
        %2848 = vmatpush1.bf16.msra.mxu0 %v2842
        %2849 = vmatprep.subr.bf16.mxu0 0
        %2850 = vmatpush1.bf16.msra.mxu0 0
        %2851 = vmatprep.subr.bf16.mxu0 0
        %2852 = vmatpush1.bf16.msra.mxu0 0
        %2853 = vmatprep.subr.bf16.mxu0 0
        %2854 = vmatpush1.bf16.msra.mxu0 0
        %2855 = vmatprep.subr.bf16.mxu0 0
        %2856 = vmatpush1.bf16.msra.mxu0 0
        %2857 = vmatprep.subr.bf16.mxu0 0
        %2858 = vmatpush1.bf16.msra.mxu0 0
        %2859 = vmatprep.subr.bf16.mxu0 0
        %2860 = vmatpush1.bf16.msra.mxu0 0
        %2861 = vmatprep.subr.bf16.mxu0 0
        %2862 = vmatpush1.bf16.msra.mxu0 0
        %2863 = vmatprep.subr.bf16.mxu0 0
        %2864 = vmatpush1.bf16.msra.mxu0 0
        %2865 = vmatprep.subr.bf16.mxu0 0
        %2866 = vmatpush1.bf16.msra.mxu0 0
        %2867 = vmatprep.subr.bf16.mxu0 0
        %2868 = vmatpush1.bf16.msra.mxu0 0
        %2869 = vmatprep.subr.bf16.mxu0 0
        %2870 = vmatpush1.bf16.msra.mxu0 0
        %2871 = vmatprep.subr.bf16.mxu0 0
        %2872 = vmatpush1.bf16.msra.mxu0 0
        %2873 = vmatprep.subr.bf16.mxu0 0
        %2874 = vmatpush1.bf16.msra.mxu0 0
        %2875 = vmatprep.subr.bf16.mxu0 0
        %2876 = vmatpush1.bf16.msra.mxu0 0
        %2877 = vmatprep.subr.bf16.mxu0 0
        %2878 = vmatpush1.bf16.msra.mxu0 0
        %2879 = vmatprep.mubr.bf16.mxu0 0
        %2880 = vmatmul.mubr.bf16.gmra.mrb[0].mxu0 %v2845
        %v2881 = vpop.f32.mrb[0].mxu0
        %v2882 = vadd.f32 0.0, %v2881
        %v2883 = vpop.f32.mrb[0].mxu0
        %v2884 = vpop.f32.mrb[0].mxu0
        %v2885 = vadd.f32 0.0, %v2884
        %v2886 = vpop.f32.mrb[0].mxu0
        %2887 = vdwg.mxu0
        %v2888 = vadd.f32 %v2827, %v2882
        %v2889 = vadd.f32 %v2830, %v2885
        %v2890 = vld [vmem:[%s35] sm:$0xff]
        %v2891 = vld [vmem:[%s35 + $0x8] sm:$0xff]
        %2893 = vset.pattern.permute.xlu0 0
        %2894 = vperm.xlu0 %2893, %v2890
        %v2895 = vpop.permute.xlu0 %2894
        %2898 = vset.pattern.permute.xlu0 0
        %2899 = vperm.xlu0 %2898, %v2891
        %v2900 = vpop.permute.xlu0 %2899
        %v2902 = vadd.f32 %v2888, %v2895
        %v2903 = vadd.f32 %v2889, %v2900
        %v2904 = vmax.f32 %v2902, 0.0
        %v2905 = vmax.f32 %v2903, 0.0
        %v2906 = vpack.c.bf16 %v2905, %v2904
        %v2907 = vld [vmem:[%s37] sm:$0xf]
        %v2909 = vsel %vm1716, %v2906, 0
        %v2912 = vsel %vm1720, %v2907, 0
        %2914 = vmatprep.subr.bf16.mxu0 0
        %2915 = vmatpush1.bf16.msra.mxu0 %v2912
        %2916 = vmatprep.subr.bf16.mxu0 0
        %2917 = vmatpush1.bf16.msra.mxu0 0
        %2918 = vmatprep.subr.bf16.mxu0 0
        %2919 = vmatpush1.bf16.msra.mxu0 0
        %2920 = vmatprep.subr.bf16.mxu0 0
        %2921 = vmatpush1.bf16.msra.mxu0 0
        %2922 = vmatprep.subr.bf16.mxu0 0
        %2923 = vmatpush1.bf16.msra.mxu0 0
        %2924 = vmatprep.subr.bf16.mxu0 0
        %2925 = vmatpush1.bf16.msra.mxu0 0
        %2926 = vmatprep.subr.bf16.mxu0 0
        %2927 = vmatpush1.bf16.msra.mxu0 0
        %2928 = vmatprep.subr.bf16.mxu0 0
        %2929 = vmatpush1.bf16.msra.mxu0 0
        %2930 = vmatprep.subr.bf16.mxu0 0
        %2931 = vmatpush1.bf16.msra.mxu0 0
        %2932 = vmatprep.subr.bf16.mxu0 0
        %2933 = vmatpush1.bf16.msra.mxu0 0
        %2934 = vmatprep.subr.bf16.mxu0 0
        %2935 = vmatpush1.bf16.msra.mxu0 0
        %2936 = vmatprep.subr.bf16.mxu0 0
        %2937 = vmatpush1.bf16.msra.mxu0 0
        %2938 = vmatprep.subr.bf16.mxu0 0
        %2939 = vmatpush1.bf16.msra.mxu0 0
        %2940 = vmatprep.subr.bf16.mxu0 0
        %2941 = vmatpush1.bf16.msra.mxu0 0
        %2942 = vmatprep.subr.bf16.mxu0 0
        %2943 = vmatpush1.bf16.msra.mxu0 0
        %2944 = vmatprep.subr.bf16.mxu0 0
        %2945 = vmatpush1.bf16.msra.mxu0 0
        %2946 = vmatprep.mubr.bf16.mxu0 0
        %2947 = vmatmul.mubr.bf16.gmra.mrb[0].mxu0 %v2909
        %v2948 = vpop.f32.mrb[0].mxu0
        %v2949 = vadd.f32 0.0, %v2948
        %v2950 = vpop.f32.mrb[0].mxu0
        %v2951 = vpop.f32.mrb[0].mxu0
        %v2952 = vadd.f32 0.0, %v2951
        %v2953 = vpop.f32.mrb[0].mxu0
        %2954 = vdwg.mxu0
        %v2955 = vpack.c.bf16 %v2952, %v2949
        %v2956 = vld [vmem:[%s39] sm:$0xf]
        %v2957 = vld [vmem:[%s39 + $0x4] sm:$0xf]
        %s2958 = scalar_lea.vmem %s39, 8
        %v2959 = vld [vmem:[%s2958] sm:$0xf]
        %v2960 = vld [vmem:[%s2958 + $0x4] sm:$0xf]
        %v2963 = vunpack.c.l.b16 %v2959
        %v2964 = vunpack.c.l.b16 %v2960
        %v2965 = vpack.c.b16 %v2964, %v2963
        %2967 = vrot.lane.b32.xlu0 %v2955, 112
        %v2968 = vpop.permute.xlu0 %2967
        %v2971 = vsel %vm2505, %v2965, 0
        %2973 = vmatprep.subr.bf16.mxu0 0
        %2974 = vmatpush1.bf16.msra.mxu0 %v2968
        %2975 = vmatprep.subr.bf16.mxu0 0
        %2976 = vmatpush1.bf16.msra.mxu0 0
        %2977 = vmatprep.subr.bf16.mxu0 0
        %2978 = vmatpush1.bf16.msra.mxu0 0
        %2979 = vmatprep.subr.bf16.mxu0 0
        %2980 = vmatpush1.bf16.msra.mxu0 0
        %2981 = vmatprep.subr.bf16.mxu0 0
        %2982 = vmatpush1.bf16.msra.mxu0 0
        %2983 = vmatprep.subr.bf16.mxu0 0
        %2984 = vmatpush1.bf16.msra.mxu0 0
        %2985 = vmatprep.subr.bf16.mxu0 0
        %2986 = vmatpush1.bf16.msra.mxu0 0
        %2987 = vmatprep.subr.bf16.mxu0 0
        %2988 = vmatpush1.bf16.msra.mxu0 0
        %2989 = vmatprep.subr.bf16.mxu0 0
        %2990 = vmatpush1.bf16.msra.mxu0 0
        %2991 = vmatprep.subr.bf16.mxu0 0
        %2992 = vmatpush1.bf16.msra.mxu0 0
        %2993 = vmatprep.subr.bf16.mxu0 0
        %2994 = vmatpush1.bf16.msra.mxu0 0
        %2995 = vmatprep.subr.bf16.mxu0 0
        %2996 = vmatpush1.bf16.msra.mxu0 0
        %2997 = vmatprep.subr.bf16.mxu0 0
        %2998 = vmatpush1.bf16.msra.mxu0 0
        %2999 = vmatprep.subr.bf16.mxu0 0
        %3000 = vmatpush1.bf16.msra.mxu0 0
        %3001 = vmatprep.subr.bf16.mxu0 0
        %3002 = vmatpush1.bf16.msra.mxu0 0
        %3003 = vmatprep.subr.bf16.mxu0 0
        %3004 = vmatpush1.bf16.msra.mxu0 0
        %3005 = vmatprep.mubr.bf16.mxu0 0
        %3006 = vmatmul.mubr.bf16.gmra.mrb[0].mxu0 %v2971
        %v3007 = vpop.f32.mrb[0].mxu0
        %v3008 = vadd.f32 0.0, %v3007
        %v3009 = vpop.f32.mrb[0].mxu0
        %v3010 = vpop.f32.mrb[0].mxu0
        %v3011 = vadd.f32 0.0, %v3010
        %v3012 = vpop.f32.mrb[0].mxu0
        %3013 = vdwg.mxu0
        %v3016 = vunpack.c.l.b16 %v2956
        %v3017 = vunpack.c.l.b16 %v2957
        %v3018 = vpack.c.b16 %v3017, %v3016
        %v3020 = vsel %vm2505, %v3018, 0
        %3022 = vmatprep.subr.bf16.mxu0 0
        %3023 = vmatpush1.bf16.msra.mxu0 %v2955
        %3024 = vmatprep.subr.bf16.mxu0 0
        %3025 = vmatpush1.bf16.msra.mxu0 0
        %3026 = vmatprep.subr.bf16.mxu0 0
        %3027 = vmatpush1.bf16.msra.mxu0 0
        %3028 = vmatprep.subr.bf16.mxu0 0
        %3029 = vmatpush1.bf16.msra.mxu0 0
        %3030 = vmatprep.subr.bf16.mxu0 0
        %3031 = vmatpush1.bf16.msra.mxu0 0
        %3032 = vmatprep.subr.bf16.mxu0 0
        %3033 = vmatpush1.bf16.msra.mxu0 0
        %3034 = vmatprep.subr.bf16.mxu0 0
        %3035 = vmatpush1.bf16.msra.mxu0 0
        %3036 = vmatprep.subr.bf16.mxu0 0
        %3037 = vmatpush1.bf16.msra.mxu0 0
        %3038 = vmatprep.subr.bf16.mxu0 0
        %3039 = vmatpush1.bf16.msra.mxu0 0
        %3040 = vmatprep.subr.bf16.mxu0 0
        %3041 = vmatpush1.bf16.msra.mxu0 0
        %3042 = vmatprep.subr.bf16.mxu0 0
        %3043 = vmatpush1.bf16.msra.mxu0 0
        %3044 = vmatprep.subr.bf16.mxu0 0
        %3045 = vmatpush1.bf16.msra.mxu0 0
        %3046 = vmatprep.subr.bf16.mxu0 0
        %3047 = vmatpush1.bf16.msra.mxu0 0
        %3048 = vmatprep.subr.bf16.mxu0 0
        %3049 = vmatpush1.bf16.msra.mxu0 0
        %3050 = vmatprep.subr.bf16.mxu0 0
        %3051 = vmatpush1.bf16.msra.mxu0 0
        %3052 = vmatprep.subr.bf16.mxu0 0
        %3053 = vmatpush1.bf16.msra.mxu0 0
        %3054 = vmatprep.mubr.bf16.mxu0 0
        %3055 = vmatmul.mubr.bf16.gmra.mrb[0].mxu0 %v3020
        %v3056 = vpop.f32.mrb[0].mxu0
        %v3057 = vadd.f32 %v3008, %v3056
        %v3058 = vpop.f32.mrb[0].mxu0
        %v3059 = vpop.f32.mrb[0].mxu0
        %v3060 = vadd.f32 %v3011, %v3059
        %v3061 = vpop.f32.mrb[0].mxu0
        %3062 = vdwg.mxu0
        %s3063 = scalar_lea.vmem %s39, 16
        %v3064 = vld [vmem:[%s3063] sm:$0xf]
        %v3065 = vld [vmem:[%s3063 + $0x4] sm:$0xf]
        %v3068 = vunpack.c.l.b16 %v3064
        %v3069 = vunpack.c.l.b16 %v3065
        %v3070 = vpack.c.b16 %v3069, %v3068
        %3071 = vrot.lane.b32.xlu0 %v2955, 96
        %v3072 = vpop.permute.xlu0 %3071
        %v3075 = vsel %vm2505, %v3070, 0
        %3077 = vmatprep.subr.bf16.mxu0 0
        %3078 = vmatpush1.bf16.msra.mxu0 %v3072
        %3079 = vmatprep.subr.bf16.mxu0 0
        %3080 = vmatpush1.bf16.msra.mxu0 0
        %3081 = vmatprep.subr.bf16.mxu0 0
        %3082 = vmatpush1.bf16.msra.mxu0 0
        %3083 = vmatprep.subr.bf16.mxu0 0
        %3084 = vmatpush1.bf16.msra.mxu0 0
        %3085 = vmatprep.subr.bf16.mxu0 0
        %3086 = vmatpush1.bf16.msra.mxu0 0
        %3087 = vmatprep.subr.bf16.mxu0 0
        %3088 = vmatpush1.bf16.msra.mxu0 0
        %3089 = vmatprep.subr.bf16.mxu0 0
        %3090 = vmatpush1.bf16.msra.mxu0 0
        %3091 = vmatprep.subr.bf16.mxu0 0
        %3092 = vmatpush1.bf16.msra.mxu0 0
        %3093 = vmatprep.subr.bf16.mxu0 0
        %3094 = vmatpush1.bf16.msra.mxu0 0
        %3095 = vmatprep.subr.bf16.mxu0 0
        %3096 = vmatpush1.bf16.msra.mxu0 0
        %3097 = vmatprep.subr.bf16.mxu0 0
        %3098 = vmatpush1.bf16.msra.mxu0 0
        %3099 = vmatprep.subr.bf16.mxu0 0
        %3100 = vmatpush1.bf16.msra.mxu0 0
        %3101 = vmatprep.subr.bf16.mxu0 0
        %3102 = vmatpush1.bf16.msra.mxu0 0
        %3103 = vmatprep.subr.bf16.mxu0 0
        %3104 = vmatpush1.bf16.msra.mxu0 0
        %3105 = vmatprep.subr.bf16.mxu0 0
        %3106 = vmatpush1.bf16.msra.mxu0 0
        %3107 = vmatprep.subr.bf16.mxu0 0
        %3108 = vmatpush1.bf16.msra.mxu0 0
        %3109 = vmatprep.mubr.bf16.mxu0 0
        %3110 = vmatmul.mubr.bf16.gmra.mrb[0].mxu0 %v3075
        %v3111 = vpop.f32.mrb[0].mxu0
        %v3112 = vadd.f32 0.0, %v3111
        %v3113 = vpop.f32.mrb[0].mxu0
        %v3114 = vpop.f32.mrb[0].mxu0
        %v3115 = vadd.f32 0.0, %v3114
        %v3116 = vpop.f32.mrb[0].mxu0
        %3117 = vdwg.mxu0
        %v3118 = vadd.f32 %v3057, %v3112
        %v3119 = vadd.f32 %v3060, %v3115
        %v3120 = vld [vmem:[%s41] sm:$0xff]
        %v3121 = vld [vmem:[%s41 + $0x8] sm:$0xff]
        %3123 = vset.pattern.permute.xlu0 0
        %3124 = vperm.xlu0 %3123, %v3120
        %v3125 = vpop.permute.xlu0 %3124
        %3128 = vset.pattern.permute.xlu0 0
        %3129 = vperm.xlu0 %3128, %v3121
        %v3130 = vpop.permute.xlu0 %3129
        %v3132 = vadd.f32 %v3118, %v3125
        %v3133 = vadd.f32 %v3119, %v3130
        %v3134 = vmax.f32 %v3132, 0.0
        %v3135 = vmax.f32 %v3133, 0.0
        %v3136 = vpack.c.bf16 %v3135, %v3134
        %v3137 = vld [vmem:[%s43] sm:$0xf]
        %v3138 = vld [vmem:[%s43 + $0x4] sm:$0xf]
        %v3141 = vunpack.c.l.b16 %v3137
        %v3142 = vunpack.c.l.b16 %v3138
        %v3143 = vpack.c.b16 %v3142, %v3141
        %v3146 = vsel %vm2505, %v3136, 0
        %3148 = vmatprep.subr.bf16.mxu0 0
        %3149 = vmatpush1.bf16.msra.mxu0 %v3143
        %3150 = vmatprep.subr.bf16.mxu0 0
        %3151 = vmatpush1.bf16.msra.mxu0 0
        %3152 = vmatprep.subr.bf16.mxu0 0
        %3153 = vmatpush1.bf16.msra.mxu0 0
        %3154 = vmatprep.subr.bf16.mxu0 0
        %3155 = vmatpush1.bf16.msra.mxu0 0
        %3156 = vmatprep.subr.bf16.mxu0 0
        %3157 = vmatpush1.bf16.msra.mxu0 0
        %3158 = vmatprep.subr.bf16.mxu0 0
        %3159 = vmatpush1.bf16.msra.mxu0 0
        %3160 = vmatprep.subr.bf16.mxu0 0
        %3161 = vmatpush1.bf16.msra.mxu0 0
        %3162 = vmatprep.subr.bf16.mxu0 0
        %3163 = vmatpush1.bf16.msra.mxu0 0
        %3164 = vmatprep.subr.bf16.mxu0 0
        %3165 = vmatpush1.bf16.msra.mxu0 0
        %3166 = vmatprep.subr.bf16.mxu0 0
        %3167 = vmatpush1.bf16.msra.mxu0 0
        %3168 = vmatprep.subr.bf16.mxu0 0
        %3169 = vmatpush1.bf16.msra.mxu0 0
        %3170 = vmatprep.subr.bf16.mxu0 0
        %3171 = vmatpush1.bf16.msra.mxu0 0
        %3172 = vmatprep.subr.bf16.mxu0 0
        %3173 = vmatpush1.bf16.msra.mxu0 0
        %3174 = vmatprep.subr.bf16.mxu0 0
        %3175 = vmatpush1.bf16.msra.mxu0 0
        %3176 = vmatprep.subr.bf16.mxu0 0
        %3177 = vmatpush1.bf16.msra.mxu0 0
        %3178 = vmatprep.subr.bf16.mxu0 0
        %3179 = vmatpush1.bf16.msra.mxu0 0
        %3180 = vmatprep.mubr.bf16.mxu0 0
        %3181 = vmatmul.mubr.bf16.gmra.mrb[0].mxu0 %v3146
        %v3182 = vpop.f32.mrb[0].mxu0
        %v3183 = vadd.f32 0.0, %v3182
        %v3184 = vpop.f32.mrb[0].mxu0
        %v3185 = vpop.f32.mrb[0].mxu0
        %v3186 = vadd.f32 0.0, %v3185
        %v3187 = vpop.f32.mrb[0].mxu0
        %3188 = vdwg.mxu0
        %v3189 = vpack.c.bf16 %v3186, %v3183
        %v3190 = vld [vmem:[%s45] sm:$0xf]
        %v3191 = vld [vmem:[%s45 + $0x4] sm:$0xf]
        %s3192 = scalar_lea.vmem %s45, 8
        %v3193 = vld [vmem:[%s3192] sm:$0xf]
        %v3194 = vld [vmem:[%s3192 + $0x4] sm:$0xf]
        %v3197 = vunpack.c.l.b16 %v3193
        %v3198 = vunpack.c.l.b16 %v3194
        %v3199 = vpack.c.b16 %v3198, %v3197
        %3201 = vrot.lane.b32.xlu0 %v3189, 96
        %v3202 = vpop.permute.xlu0 %3201
        %v3205 = vsel %vm2505, %v3199, 0
        %3207 = vmatprep.subr.bf16.mxu0 0
        %3208 = vmatpush1.bf16.msra.mxu0 %v3202
        %3209 = vmatprep.subr.bf16.mxu0 0
        %3210 = vmatpush1.bf16.msra.mxu0 0
        %3211 = vmatprep.subr.bf16.mxu0 0
        %3212 = vmatpush1.bf16.msra.mxu0 0
        %3213 = vmatprep.subr.bf16.mxu0 0
        %3214 = vmatpush1.bf16.msra.mxu0 0
        %3215 = vmatprep.subr.bf16.mxu0 0
        %3216 = vmatpush1.bf16.msra.mxu0 0
        %3217 = vmatprep.subr.bf16.mxu0 0
        %3218 = vmatpush1.bf16.msra.mxu0 0
        %3219 = vmatprep.subr.bf16.mxu0 0
        %3220 = vmatpush1.bf16.msra.mxu0 0
        %3221 = vmatprep.subr.bf16.mxu0 0
        %3222 = vmatpush1.bf16.msra.mxu0 0
        %3223 = vmatprep.subr.bf16.mxu0 0
        %3224 = vmatpush1.bf16.msra.mxu0 0
        %3225 = vmatprep.subr.bf16.mxu0 0
        %3226 = vmatpush1.bf16.msra.mxu0 0
        %3227 = vmatprep.subr.bf16.mxu0 0
        %3228 = vmatpush1.bf16.msra.mxu0 0
        %3229 = vmatprep.subr.bf16.mxu0 0
        %3230 = vmatpush1.bf16.msra.mxu0 0
        %3231 = vmatprep.subr.bf16.mxu0 0
        %3232 = vmatpush1.bf16.msra.mxu0 0
        %3233 = vmatprep.subr.bf16.mxu0 0
        %3234 = vmatpush1.bf16.msra.mxu0 0
        %3235 = vmatprep.subr.bf16.mxu0 0
        %3236 = vmatpush1.bf16.msra.mxu0 0
        %3237 = vmatprep.subr.bf16.mxu0 0
        %3238 = vmatpush1.bf16.msra.mxu0 0
        %3239 = vmatprep.mubr.bf16.mxu0 0
        %3240 = vmatmul.mubr.bf16.gmra.mrb[0].mxu0 %v3205
        %v3241 = vpop.f32.mrb[0].mxu0
        %v3242 = vadd.f32 0.0, %v3241
        %v3243 = vpop.f32.mrb[0].mxu0
        %v3244 = vpop.f32.mrb[0].mxu0
        %v3245 = vadd.f32 0.0, %v3244
        %v3246 = vpop.f32.mrb[0].mxu0
        %3247 = vdwg.mxu0
        %v3250 = vunpack.c.l.b16 %v3190
        %v3251 = vunpack.c.l.b16 %v3191
        %v3252 = vpack.c.b16 %v3251, %v3250
        %v3254 = vsel %vm2505, %v3252, 0
        %3256 = vmatprep.subr.bf16.mxu0 0
        %3257 = vmatpush1.bf16.msra.mxu0 %v3189
        %3258 = vmatprep.subr.bf16.mxu0 0
        %3259 = vmatpush1.bf16.msra.mxu0 0
        %3260 = vmatprep.subr.bf16.mxu0 0
        %3261 = vmatpush1.bf16.msra.mxu0 0
        %3262 = vmatprep.subr.bf16.mxu0 0
        %3263 = vmatpush1.bf16.msra.mxu0 0
        %3264 = vmatprep.subr.bf16.mxu0 0
        %3265 = vmatpush1.bf16.msra.mxu0 0
        %3266 = vmatprep.subr.bf16.mxu0 0
        %3267 = vmatpush1.bf16.msra.mxu0 0
        %3268 = vmatprep.subr.bf16.mxu0 0
        %3269 = vmatpush1.bf16.msra.mxu0 0
        %3270 = vmatprep.subr.bf16.mxu0 0
        %3271 = vmatpush1.bf16.msra.mxu0 0
        %3272 = vmatprep.subr.bf16.mxu0 0
        %3273 = vmatpush1.bf16.msra.mxu0 0
        %3274 = vmatprep.subr.bf16.mxu0 0
        %3275 = vmatpush1.bf16.msra.mxu0 0
        %3276 = vmatprep.subr.bf16.mxu0 0
        %3277 = vmatpush1.bf16.msra.mxu0 0
        %3278 = vmatprep.subr.bf16.mxu0 0
        %3279 = vmatpush1.bf16.msra.mxu0 0
        %3280 = vmatprep.subr.bf16.mxu0 0
        %3281 = vmatpush1.bf16.msra.mxu0 0
        %3282 = vmatprep.subr.bf16.mxu0 0
        %3283 = vmatpush1.bf16.msra.mxu0 0
        %3284 = vmatprep.subr.bf16.mxu0 0
        %3285 = vmatpush1.bf16.msra.mxu0 0
        %3286 = vmatprep.subr.bf16.mxu0 0
        %3287 = vmatpush1.bf16.msra.mxu0 0
        %3288 = vmatprep.mubr.bf16.mxu0 0
        %3289 = vmatmul.mubr.bf16.gmra.mrb[0].mxu0 %v3254
        %v3290 = vpop.f32.mrb[0].mxu0
        %v3291 = vadd.f32 %v3242, %v3290
        %v3292 = vpop.f32.mrb[0].mxu0
        %v3293 = vpop.f32.mrb[0].mxu0
        %v3294 = vadd.f32 %v3245, %v3293
        %v3295 = vpop.f32.mrb[0].mxu0
        %3296 = vdwg.mxu0
        %s3297 = scalar_lea.vmem %s45, 16
        %v3298 = vld [vmem:[%s3297] sm:$0xf]
        %v3299 = vld [vmem:[%s3297 + $0x4] sm:$0xf]
        %v3302 = vunpack.c.l.b16 %v3298
        %v3303 = vunpack.c.l.b16 %v3299
        %v3304 = vpack.c.b16 %v3303, %v3302
        %3305 = vrot.lane.b32.xlu0 %v3189, 64
        %v3306 = vpop.permute.xlu0 %3305
        %v3309 = vsel %vm2505, %v3304, 0
        %3311 = vmatprep.subr.bf16.mxu0 0
        %3312 = vmatpush1.bf16.msra.mxu0 %v3306
        %3313 = vmatprep.subr.bf16.mxu0 0
        %3314 = vmatpush1.bf16.msra.mxu0 0
        %3315 = vmatprep.subr.bf16.mxu0 0
        %3316 = vmatpush1.bf16.msra.mxu0 0
        %3317 = vmatprep.subr.bf16.mxu0 0
        %3318 = vmatpush1.bf16.msra.mxu0 0
        %3319 = vmatprep.subr.bf16.mxu0 0
        %3320 = vmatpush1.bf16.msra.mxu0 0
        %3321 = vmatprep.subr.bf16.mxu0 0
        %3322 = vmatpush1.bf16.msra.mxu0 0
        %3323 = vmatprep.subr.bf16.mxu0 0
        %3324 = vmatpush1.bf16.msra.mxu0 0
        %3325 = vmatprep.subr.bf16.mxu0 0
        %3326 = vmatpush1.bf16.msra.mxu0 0
        %3327 = vmatprep.subr.bf16.mxu0 0
        %3328 = vmatpush1.bf16.msra.mxu0 0
        %3329 = vmatprep.subr.bf16.mxu0 0
        %3330 = vmatpush1.bf16.msra.mxu0 0
        %3331 = vmatprep.subr.bf16.mxu0 0
        %3332 = vmatpush1.bf16.msra.mxu0 0
        %3333 = vmatprep.subr.bf16.mxu0 0
        %3334 = vmatpush1.bf16.msra.mxu0 0
        %3335 = vmatprep.subr.bf16.mxu0 0
        %3336 = vmatpush1.bf16.msra.mxu0 0
        %3337 = vmatprep.subr.bf16.mxu0 0
        %3338 = vmatpush1.bf16.msra.mxu0 0
        %3339 = vmatprep.subr.bf16.mxu0 0
        %3340 = vmatpush1.bf16.msra.mxu0 0
        %3341 = vmatprep.subr.bf16.mxu0 0
        %3342 = vmatpush1.bf16.msra.mxu0 0
        %3343 = vmatprep.mubr.bf16.mxu0 0
        %3344 = vmatmul.mubr.bf16.gmra.mrb[0].mxu0 %v3309
        %v3345 = vpop.f32.mrb[0].mxu0
        %v3346 = vadd.f32 0.0, %v3345
        %v3347 = vpop.f32.mrb[0].mxu0
        %v3348 = vpop.f32.mrb[0].mxu0
        %v3349 = vadd.f32 0.0, %v3348
        %v3350 = vpop.f32.mrb[0].mxu0
        %3351 = vdwg.mxu0
        %v3352 = vadd.f32 %v3291, %v3346
        %v3353 = vadd.f32 %v3294, %v3349
        %3354 = vmatprep.subr.bf16.mxu0 0
        %3355 = vmatpush1.bf16.msra.mxu0 %v3143
        %3356 = vmatprep.subr.bf16.mxu0 0
        %3357 = vmatpush1.bf16.msra.mxu0 0
        %3358 = vmatprep.subr.bf16.mxu0 0
        %3359 = vmatpush1.bf16.msra.mxu0 0
        %3360 = vmatprep.subr.bf16.mxu0 0
        %3361 = vmatpush1.bf16.msra.mxu0 0
        %3362 = vmatprep.subr.bf16.mxu0 0
        %3363 = vmatpush1.bf16.msra.mxu0 0
        %3364 = vmatprep.subr.bf16.mxu0 0
        %3365 = vmatpush1.bf16.msra.mxu0 0
        %3366 = vmatprep.subr.bf16.mxu0 0
        %3367 = vmatpush1.bf16.msra.mxu0 0
        %3368 = vmatprep.subr.bf16.mxu0 0
        %3369 = vmatpush1.bf16.msra.mxu0 0
        %3370 = vmatprep.subr.bf16.mxu0 0
        %3371 = vmatpush1.bf16.msra.mxu0 0
        %3372 = vmatprep.subr.bf16.mxu0 0
        %3373 = vmatpush1.bf16.msra.mxu0 0
        %3374 = vmatprep.subr.bf16.mxu0 0
        %3375 = vmatpush1.bf16.msra.mxu0 0
        %3376 = vmatprep.subr.bf16.mxu0 0
        %3377 = vmatpush1.bf16.msra.mxu0 0
        %3378 = vmatprep.subr.bf16.mxu0 0
        %3379 = vmatpush1.bf16.msra.mxu0 0
        %3380 = vmatprep.subr.bf16.mxu0 0
        %3381 = vmatpush1.bf16.msra.mxu0 0
        %3382 = vmatprep.subr.bf16.mxu0 0
        %3383 = vmatpush1.bf16.msra.mxu0 0
        %3384 = vmatprep.subr.bf16.mxu0 0
        %3385 = vmatpush1.bf16.msra.mxu0 0
        %3386 = vmatprep.mubr.bf16.mxu0 0
        %3387 = vmatmul.mubr.bf16.gmra.mrb[0].mxu0 %v2682
        %v3388 = vpop.f32.mrb[0].mxu0
        %v3389 = vadd.f32 0.0, %v3388
        %v3390 = vpop.f32.mrb[0].mxu0
        %v3391 = vpop.f32.mrb[0].mxu0
        %v3392 = vadd.f32 0.0, %v3391
        %v3393 = vpop.f32.mrb[0].mxu0
        %3394 = vdwg.mxu0
        %v3395 = vpack.c.bf16 %v3392, %v3389
        %v3396 = vld [vmem:[%s47] sm:$0xf]
        %v3397 = vld [vmem:[%s47 + $0x4] sm:$0xf]
        %s3398 = scalar_lea.vmem %s47, 8
        %v3399 = vld [vmem:[%s3398] sm:$0xf]
        %v3400 = vld [vmem:[%s3398 + $0x4] sm:$0xf]
        %v3403 = vunpack.c.l.b16 %v3399
        %v3404 = vunpack.c.l.b16 %v3400
        %v3405 = vpack.c.b16 %v3404, %v3403
        %3407 = vrot.lane.b32.xlu0 %v3395, 96
        %v3408 = vpop.permute.xlu0 %3407
        %v3411 = vsel %vm2505, %v3405, 0
        %3413 = vmatprep.subr.bf16.mxu0 0
        %3414 = vmatpush1.bf16.msra.mxu0 %v3408
        %3415 = vmatprep.subr.bf16.mxu0 0
        %3416 = vmatpush1.bf16.msra.mxu0 0
        %3417 = vmatprep.subr.bf16.mxu0 0
        %3418 = vmatpush1.bf16.msra.mxu0 0
        %3419 = vmatprep.subr.bf16.mxu0 0
        %3420 = vmatpush1.bf16.msra.mxu0 0
        %3421 = vmatprep.subr.bf16.mxu0 0
        %3422 = vmatpush1.bf16.msra.mxu0 0
        %3423 = vmatprep.subr.bf16.mxu0 0
        %3424 = vmatpush1.bf16.msra.mxu0 0
        %3425 = vmatprep.subr.bf16.mxu0 0
        %3426 = vmatpush1.bf16.msra.mxu0 0
        %3427 = vmatprep.subr.bf16.mxu0 0
        %3428 = vmatpush1.bf16.msra.mxu0 0
        %3429 = vmatprep.subr.bf16.mxu0 0
        %3430 = vmatpush1.bf16.msra.mxu0 0
        %3431 = vmatprep.subr.bf16.mxu0 0
        %3432 = vmatpush1.bf16.msra.mxu0 0
        %3433 = vmatprep.subr.bf16.mxu0 0
        %3434 = vmatpush1.bf16.msra.mxu0 0
        %3435 = vmatprep.subr.bf16.mxu0 0
        %3436 = vmatpush1.bf16.msra.mxu0 0
        %3437 = vmatprep.subr.bf16.mxu0 0
        %3438 = vmatpush1.bf16.msra.mxu0 0
        %3439 = vmatprep.subr.bf16.mxu0 0
        %3440 = vmatpush1.bf16.msra.mxu0 0
        %3441 = vmatprep.subr.bf16.mxu0 0
        %3442 = vmatpush1.bf16.msra.mxu0 0
        %3443 = vmatprep.subr.bf16.mxu0 0
        %3444 = vmatpush1.bf16.msra.mxu0 0
        %3445 = vmatprep.mubr.bf16.mxu0 0
        %3446 = vmatmul.mubr.bf16.gmra.mrb[0].mxu0 %v3411
        %v3447 = vpop.f32.mrb[0].mxu0
        %v3448 = vadd.f32 0.0, %v3447
        %v3449 = vpop.f32.mrb[0].mxu0
        %v3450 = vpop.f32.mrb[0].mxu0
        %v3451 = vadd.f32 0.0, %v3450
        %v3452 = vpop.f32.mrb[0].mxu0
        %3453 = vdwg.mxu0
        %v3456 = vunpack.c.l.b16 %v3396
        %v3457 = vunpack.c.l.b16 %v3397
        %v3458 = vpack.c.b16 %v3457, %v3456
        %v3460 = vsel %vm2505, %v3458, 0
        %3462 = vmatprep.subr.bf16.mxu0 0
        %3463 = vmatpush1.bf16.msra.mxu0 %v3395
        %3464 = vmatprep.subr.bf16.mxu0 0
        %3465 = vmatpush1.bf16.msra.mxu0 0
        %3466 = vmatprep.subr.bf16.mxu0 0
        %3467 = vmatpush1.bf16.msra.mxu0 0
        %3468 = vmatprep.subr.bf16.mxu0 0
        %3469 = vmatpush1.bf16.msra.mxu0 0
        %3470 = vmatprep.subr.bf16.mxu0 0
        %3471 = vmatpush1.bf16.msra.mxu0 0
        %3472 = vmatprep.subr.bf16.mxu0 0
        %3473 = vmatpush1.bf16.msra.mxu0 0
        %3474 = vmatprep.subr.bf16.mxu0 0
        %3475 = vmatpush1.bf16.msra.mxu0 0
        %3476 = vmatprep.subr.bf16.mxu0 0
        %3477 = vmatpush1.bf16.msra.mxu0 0
        %3478 = vmatprep.subr.bf16.mxu0 0
        %3479 = vmatpush1.bf16.msra.mxu0 0
        %3480 = vmatprep.subr.bf16.mxu0 0
        %3481 = vmatpush1.bf16.msra.mxu0 0
        %3482 = vmatprep.subr.bf16.mxu0 0
        %3483 = vmatpush1.bf16.msra.mxu0 0
        %3484 = vmatprep.subr.bf16.mxu0 0
        %3485 = vmatpush1.bf16.msra.mxu0 0
        %3486 = vmatprep.subr.bf16.mxu0 0
        %3487 = vmatpush1.bf16.msra.mxu0 0
        %3488 = vmatprep.subr.bf16.mxu0 0
        %3489 = vmatpush1.bf16.msra.mxu0 0
        %3490 = vmatprep.subr.bf16.mxu0 0
        %3491 = vmatpush1.bf16.msra.mxu0 0
        %3492 = vmatprep.subr.bf16.mxu0 0
        %3493 = vmatpush1.bf16.msra.mxu0 0
        %3494 = vmatprep.mubr.bf16.mxu0 0
        %3495 = vmatmul.mubr.bf16.gmra.mrb[0].mxu0 %v3460
        %v3496 = vpop.f32.mrb[0].mxu0
        %v3497 = vadd.f32 %v3448, %v3496
        %v3498 = vpop.f32.mrb[0].mxu0
        %v3499 = vpop.f32.mrb[0].mxu0
        %v3500 = vadd.f32 %v3451, %v3499
        %v3501 = vpop.f32.mrb[0].mxu0
        %3502 = vdwg.mxu0
        %s3503 = scalar_lea.vmem %s47, 16
        %v3504 = vld [vmem:[%s3503] sm:$0xf]
        %v3505 = vld [vmem:[%s3503 + $0x4] sm:$0xf]
        %v3508 = vunpack.c.l.b16 %v3504
        %v3509 = vunpack.c.l.b16 %v3505
        %v3510 = vpack.c.b16 %v3509, %v3508
        %3511 = vrot.lane.b32.xlu0 %v3395, 64
        %v3512 = vpop.permute.xlu0 %3511
        %v3515 = vsel %vm2505, %v3510, 0
        %3517 = vmatprep.subr.bf16.mxu0 0
        %3518 = vmatpush1.bf16.msra.mxu0 %v3512
        %3519 = vmatprep.subr.bf16.mxu0 0
        %3520 = vmatpush1.bf16.msra.mxu0 0
        %3521 = vmatprep.subr.bf16.mxu0 0
        %3522 = vmatpush1.bf16.msra.mxu0 0
        %3523 = vmatprep.subr.bf16.mxu0 0
        %3524 = vmatpush1.bf16.msra.mxu0 0
        %3525 = vmatprep.subr.bf16.mxu0 0
        %3526 = vmatpush1.bf16.msra.mxu0 0
        %3527 = vmatprep.subr.bf16.mxu0 0
        %3528 = vmatpush1.bf16.msra.mxu0 0
        %3529 = vmatprep.subr.bf16.mxu0 0
        %3530 = vmatpush1.bf16.msra.mxu0 0
        %3531 = vmatprep.subr.bf16.mxu0 0
        %3532 = vmatpush1.bf16.msra.mxu0 0
        %3533 = vmatprep.subr.bf16.mxu0 0
        %3534 = vmatpush1.bf16.msra.mxu0 0
        %3535 = vmatprep.subr.bf16.mxu0 0
        %3536 = vmatpush1.bf16.msra.mxu0 0
        %3537 = vmatprep.subr.bf16.mxu0 0
        %3538 = vmatpush1.bf16.msra.mxu0 0
        %3539 = vmatprep.subr.bf16.mxu0 0
        %3540 = vmatpush1.bf16.msra.mxu0 0
        %3541 = vmatprep.subr.bf16.mxu0 0
        %3542 = vmatpush1.bf16.msra.mxu0 0
        %3543 = vmatprep.subr.bf16.mxu0 0
        %3544 = vmatpush1.bf16.msra.mxu0 0
        %3545 = vmatprep.subr.bf16.mxu0 0
        %3546 = vmatpush1.bf16.msra.mxu0 0
        %3547 = vmatprep.subr.bf16.mxu0 0
        %3548 = vmatpush1.bf16.msra.mxu0 0
        %3549 = vmatprep.mubr.bf16.mxu0 0
        %3550 = vmatmul.mubr.bf16.gmra.mrb[0].mxu0 %v3515
        %v3551 = vpop.f32.mrb[0].mxu0
        %v3552 = vadd.f32 0.0, %v3551
        %v3553 = vpop.f32.mrb[0].mxu0
        %v3554 = vpop.f32.mrb[0].mxu0
        %v3555 = vadd.f32 0.0, %v3554
        %v3556 = vpop.f32.mrb[0].mxu0
        %3557 = vdwg.mxu0
        %v3558 = vadd.f32 %v3497, %v3552
        %v3559 = vadd.f32 %v3500, %v3555
        %v3560 = vadd.f32 %v3352, %v3558
        %v3561 = vadd.f32 %v3353, %v3559
        %v3562 = vld [vmem:[%s49] sm:$0xff]
        %v3563 = vld [vmem:[%s49 + $0x8] sm:$0xff]
        %3565 = vset.pattern.permute.xlu0 0
        %3566 = vperm.xlu0 %3565, %v3562
        %v3567 = vpop.permute.xlu0 %3566
        %3570 = vset.pattern.permute.xlu0 0
        %3571 = vperm.xlu0 %3570, %v3563
        %v3572 = vpop.permute.xlu0 %3571
        %v3574 = vadd.f32 %v3560, %v3567
        %v3575 = vadd.f32 %v3561, %v3572
        %v3576 = vmax.f32 %v3574, 0.0
        %v3577 = vmax.f32 %v3575, 0.0
        %v3578 = vpack.c.bf16 %v3577, %v3576
        %v3579 = vld [vmem:[%s51] sm:$0xff]
        %v3580 = vld [vmem:[%s51 + $0x8] sm:$0xff]
        %v3581 = vld [vmem:[%s51 + $0x10] sm:$0xff]
        %v3582 = vld [vmem:[%s51 + $0x18] sm:$0xff]
        %v3587 = vunpack.c.l.b16 %v3579
        %v3588 = vunpack.c.h.b16 %v3579
        %v3589 = vunpack.c.l.b16 %v3580
        %v3590 = vunpack.c.h.b16 %v3580
        %v3591 = vunpack.c.l.b16 %v3581
        %v3592 = vunpack.c.h.b16 %v3581
        %v3593 = vunpack.c.l.b16 %v3582
        %v3594 = vunpack.c.h.b16 %v3582
        %v3595 = vpack.c.b16 %v3589, %v3587
        %v3596 = vpack.c.b16 %v3590, %v3588
        %v3597 = vpack.c.b16 %v3593, %v3591
        %v3598 = vpack.c.b16 %v3594, %v3592
        %v3604 = vsel %vm2445, %v3578, 0
        %3606 = vmatprep.subr.bf16.mxu0 %v3596
        %3607 = vmatpush1.bf16.msra.mxu0 %v3595
        %3608 = vmatprep.subr.bf16.mxu0 %v3598
        %3609 = vmatpush1.bf16.msra.mxu0 %v3597
        %3610 = vmatprep.subr.bf16.mxu0 0
        %3611 = vmatpush1.bf16.msra.mxu0 0
        %3612 = vmatprep.subr.bf16.mxu0 0
        %3613 = vmatpush1.bf16.msra.mxu0 0
        %3614 = vmatprep.subr.bf16.mxu0 0
        %3615 = vmatpush1.bf16.msra.mxu0 0
        %3616 = vmatprep.subr.bf16.mxu0 0
        %3617 = vmatpush1.bf16.msra.mxu0 0
        %3618 = vmatprep.subr.bf16.mxu0 0
        %3619 = vmatpush1.bf16.msra.mxu0 0
        %3620 = vmatprep.subr.bf16.mxu0 0
        %3621 = vmatpush1.bf16.msra.mxu0 0
        %3622 = vmatprep.subr.bf16.mxu0 0
        %3623 = vmatpush1.bf16.msra.mxu0 0
        %3624 = vmatprep.subr.bf16.mxu0 0
        %3625 = vmatpush1.bf16.msra.mxu0 0
        %3626 = vmatprep.subr.bf16.mxu0 0
        %3627 = vmatpush1.bf16.msra.mxu0 0
        %3628 = vmatprep.subr.bf16.mxu0 0
        %3629 = vmatpush1.bf16.msra.mxu0 0
        %3630 = vmatprep.subr.bf16.mxu0 0
        %3631 = vmatpush1.bf16.msra.mxu0 0
        %3632 = vmatprep.subr.bf16.mxu0 0
        %3633 = vmatpush1.bf16.msra.mxu0 0
        %3634 = vmatprep.subr.bf16.mxu0 0
        %3635 = vmatpush1.bf16.msra.mxu0 0
        %3636 = vmatprep.subr.bf16.mxu0 0
        %3637 = vmatpush1.bf16.msra.mxu0 0
        %3638 = vmatprep.mubr.bf16.mxu0 0
        %3639 = vmatmul.mubr.bf16.gmra.mrb[0].mxu0 %v3604
        %v3640 = vpop.f32.mrb[0].mxu0
        %v3641 = vadd.f32 0.0, %v3640
        %v3642 = vpop.f32.mrb[0].mxu0
        %v3643 = vadd.f32 0.0, %v3642
        %v3644 = vpop.f32.mrb[0].mxu0
        %v3645 = vadd.f32 0.0, %v3644
        %v3646 = vpop.f32.mrb[0].mxu0
        %v3647 = vadd.f32 0.0, %v3646
        %3648 = vdwg.mxu0
        %v3649 = vpack.c.bf16 %v3645, %v3641
        %v3650 = vld [vmem:[%s53] sm:$0xf]
        %s3651 = scalar_lea.vmem %s53, 4
        %v3652 = vld [vmem:[%s3651] sm:$0xf]
        %3654 = vrot.lane.b32.xlu0 %v3649, 64
        %v3655 = vpop.permute.xlu0 %3654
        %v3658 = vsel %vm2505, %v3652, 0
        %3660 = vmatprep.subr.bf16.mxu0 0
        %3661 = vmatpush1.bf16.msra.mxu0 %v3655
        %3662 = vmatprep.subr.bf16.mxu0 0
        %3663 = vmatpush1.bf16.msra.mxu0 0
        %3664 = vmatprep.subr.bf16.mxu0 0
        %3665 = vmatpush1.bf16.msra.mxu0 0
        %3666 = vmatprep.subr.bf16.mxu0 0
        %3667 = vmatpush1.bf16.msra.mxu0 0
        %3668 = vmatprep.subr.bf16.mxu0 0
        %3669 = vmatpush1.bf16.msra.mxu0 0
        %3670 = vmatprep.subr.bf16.mxu0 0
        %3671 = vmatpush1.bf16.msra.mxu0 0
        %3672 = vmatprep.subr.bf16.mxu0 0
        %3673 = vmatpush1.bf16.msra.mxu0 0
        %3674 = vmatprep.subr.bf16.mxu0 0
        %3675 = vmatpush1.bf16.msra.mxu0 0
        %3676 = vmatprep.subr.bf16.mxu0 0
        %3677 = vmatpush1.bf16.msra.mxu0 0
        %3678 = vmatprep.subr.bf16.mxu0 0
        %3679 = vmatpush1.bf16.msra.mxu0 0
        %3680 = vmatprep.subr.bf16.mxu0 0
        %3681 = vmatpush1.bf16.msra.mxu0 0
        %3682 = vmatprep.subr.bf16.mxu0 0
        %3683 = vmatpush1.bf16.msra.mxu0 0
        %3684 = vmatprep.subr.bf16.mxu0 0
        %3685 = vmatpush1.bf16.msra.mxu0 0
        %3686 = vmatprep.subr.bf16.mxu0 0
        %3687 = vmatpush1.bf16.msra.mxu0 0
        %3688 = vmatprep.subr.bf16.mxu0 0
        %3689 = vmatpush1.bf16.msra.mxu0 0
        %3690 = vmatprep.subr.bf16.mxu0 0
        %3691 = vmatpush1.bf16.msra.mxu0 0
        %3692 = vmatprep.mubr.bf16.mxu0 0
        %3693 = vmatmul.mubr.bf16.gmra.mrb[0].mxu0 %v3658
        %v3694 = vpop.f32.mrb[0].mxu0
        %v3695 = vadd.f32 0.0, %v3694
        %v3696 = vpop.f32.mrb[0].mxu0
        %v3697 = vpop.f32.mrb[0].mxu0
        %v3698 = vpop.f32.mrb[0].mxu0
        %3699 = vdwg.mxu0
        %v3701 = vsel %vm2505, %v3650, 0
        %3703 = vmatprep.subr.bf16.mxu0 0
        %3704 = vmatpush1.bf16.msra.mxu0 %v3649
        %3705 = vmatprep.subr.bf16.mxu0 0
        %3706 = vmatpush1.bf16.msra.mxu0 0
        %3707 = vmatprep.subr.bf16.mxu0 0
        %3708 = vmatpush1.bf16.msra.mxu0 0
        %3709 = vmatprep.subr.bf16.mxu0 0
        %3710 = vmatpush1.bf16.msra.mxu0 0
        %3711 = vmatprep.subr.bf16.mxu0 0
        %3712 = vmatpush1.bf16.msra.mxu0 0
        %3713 = vmatprep.subr.bf16.mxu0 0
        %3714 = vmatpush1.bf16.msra.mxu0 0
        %3715 = vmatprep.subr.bf16.mxu0 0
        %3716 = vmatpush1.bf16.msra.mxu0 0
        %3717 = vmatprep.subr.bf16.mxu0 0
        %3718 = vmatpush1.bf16.msra.mxu0 0
        %3719 = vmatprep.subr.bf16.mxu0 0
        %3720 = vmatpush1.bf16.msra.mxu0 0
        %3721 = vmatprep.subr.bf16.mxu0 0
        %3722 = vmatpush1.bf16.msra.mxu0 0
        %3723 = vmatprep.subr.bf16.mxu0 0
        %3724 = vmatpush1.bf16.msra.mxu0 0
        %3725 = vmatprep.subr.bf16.mxu0 0
        %3726 = vmatpush1.bf16.msra.mxu0 0
        %3727 = vmatprep.subr.bf16.mxu0 0
        %3728 = vmatpush1.bf16.msra.mxu0 0
        %3729 = vmatprep.subr.bf16.mxu0 0
        %3730 = vmatpush1.bf16.msra.mxu0 0
        %3731 = vmatprep.subr.bf16.mxu0 0
        %3732 = vmatpush1.bf16.msra.mxu0 0
        %3733 = vmatprep.subr.bf16.mxu0 0
        %3734 = vmatpush1.bf16.msra.mxu0 0
        %3735 = vmatprep.mubr.bf16.mxu0 0
        %3736 = vmatmul.mubr.bf16.gmra.mrb[0].mxu0 %v3701
        %v3737 = vpop.f32.mrb[0].mxu0
        %v3738 = vadd.f32 %v3695, %v3737
        %v3739 = vpop.f32.mrb[0].mxu0
        %v3740 = vpop.f32.mrb[0].mxu0
        %v3741 = vpop.f32.mrb[0].mxu0
        %3742 = vdwg.mxu0
        %v3743 = vpack.c.bf16 %v3647, %v3643
        %s3744 = scalar_lea.vmem %s53, 8
        %v3745 = vld [vmem:[%s3744] sm:$0xf]
        %v3747 = vsel %vm2505, %v3745, 0
        %3749 = vmatprep.subr.bf16.mxu0 0
        %3750 = vmatpush1.bf16.msra.mxu0 %v3743
        %3751 = vmatprep.subr.bf16.mxu0 0
        %3752 = vmatpush1.bf16.msra.mxu0 0
        %3753 = vmatprep.subr.bf16.mxu0 0
        %3754 = vmatpush1.bf16.msra.mxu0 0
        %3755 = vmatprep.subr.bf16.mxu0 0
        %3756 = vmatpush1.bf16.msra.mxu0 0
        %3757 = vmatprep.subr.bf16.mxu0 0
        %3758 = vmatpush1.bf16.msra.mxu0 0
        %3759 = vmatprep.subr.bf16.mxu0 0
        %3760 = vmatpush1.bf16.msra.mxu0 0
        %3761 = vmatprep.subr.bf16.mxu0 0
        %3762 = vmatpush1.bf16.msra.mxu0 0
        %3763 = vmatprep.subr.bf16.mxu0 0
        %3764 = vmatpush1.bf16.msra.mxu0 0
        %3765 = vmatprep.subr.bf16.mxu0 0
        %3766 = vmatpush1.bf16.msra.mxu0 0
        %3767 = vmatprep.subr.bf16.mxu0 0
        %3768 = vmatpush1.bf16.msra.mxu0 0
        %3769 = vmatprep.subr.bf16.mxu0 0
        %3770 = vmatpush1.bf16.msra.mxu0 0
        %3771 = vmatprep.subr.bf16.mxu0 0
        %3772 = vmatpush1.bf16.msra.mxu0 0
        %3773 = vmatprep.subr.bf16.mxu0 0
        %3774 = vmatpush1.bf16.msra.mxu0 0
        %3775 = vmatprep.subr.bf16.mxu0 0
        %3776 = vmatpush1.bf16.msra.mxu0 0
        %3777 = vmatprep.subr.bf16.mxu0 0
        %3778 = vmatpush1.bf16.msra.mxu0 0
        %3779 = vmatprep.subr.bf16.mxu0 0
        %3780 = vmatpush1.bf16.msra.mxu0 0
        %3781 = vmatprep.mubr.bf16.mxu0 0
        %3782 = vmatmul.mubr.bf16.gmra.mrb[0].mxu0 %v3747
        %v3783 = vpop.f32.mrb[0].mxu0
        %v3784 = vadd.f32 0.0, %v3783
        %v3785 = vpop.f32.mrb[0].mxu0
        %v3786 = vpop.f32.mrb[0].mxu0
        %v3787 = vpop.f32.mrb[0].mxu0
        %3788 = vdwg.mxu0
        %v3789 = vadd.f32 %v3738, %v3784
        %3790 = vmatprep.subr.bf16.mxu0 %v3596
        %3791 = vmatpush1.bf16.msra.mxu0 %v3595
        %3792 = vmatprep.subr.bf16.mxu0 %v3598
        %3793 = vmatpush1.bf16.msra.mxu0 %v3597
        %3794 = vmatprep.subr.bf16.mxu0 0
        %3795 = vmatpush1.bf16.msra.mxu0 0
        %3796 = vmatprep.subr.bf16.mxu0 0
        %3797 = vmatpush1.bf16.msra.mxu0 0
        %3798 = vmatprep.subr.bf16.mxu0 0
        %3799 = vmatpush1.bf16.msra.mxu0 0
        %3800 = vmatprep.subr.bf16.mxu0 0
        %3801 = vmatpush1.bf16.msra.mxu0 0
        %3802 = vmatprep.subr.bf16.mxu0 0
        %3803 = vmatpush1.bf16.msra.mxu0 0
        %3804 = vmatprep.subr.bf16.mxu0 0
        %3805 = vmatpush1.bf16.msra.mxu0 0
        %3806 = vmatprep.subr.bf16.mxu0 0
        %3807 = vmatpush1.bf16.msra.mxu0 0
        %3808 = vmatprep.subr.bf16.mxu0 0
        %3809 = vmatpush1.bf16.msra.mxu0 0
        %3810 = vmatprep.subr.bf16.mxu0 0
        %3811 = vmatpush1.bf16.msra.mxu0 0
        %3812 = vmatprep.subr.bf16.mxu0 0
        %3813 = vmatpush1.bf16.msra.mxu0 0
        %3814 = vmatprep.subr.bf16.mxu0 0
        %3815 = vmatpush1.bf16.msra.mxu0 0
        %3816 = vmatprep.subr.bf16.mxu0 0
        %3817 = vmatpush1.bf16.msra.mxu0 0
        %3818 = vmatprep.subr.bf16.mxu0 0
        %3819 = vmatpush1.bf16.msra.mxu0 0
        %3820 = vmatprep.subr.bf16.mxu0 0
        %3821 = vmatpush1.bf16.msra.mxu0 0
        %3822 = vmatprep.mubr.bf16.mxu0 0
        %3823 = vmatmul.mubr.bf16.gmra.mrb[0].mxu0 %v2447
        %v3824 = vpop.f32.mrb[0].mxu0
        %v3825 = vadd.f32 0.0, %v3824
        %v3826 = vpop.f32.mrb[0].mxu0
        %v3827 = vadd.f32 0.0, %v3826
        %v3828 = vpop.f32.mrb[0].mxu0
        %v3829 = vadd.f32 0.0, %v3828
        %v3830 = vpop.f32.mrb[0].mxu0
        %v3831 = vadd.f32 0.0, %v3830
        %3832 = vdwg.mxu0
        %v3833 = vpack.c.bf16 %v3829, %v3825
        %v3834 = vld [vmem:[%s55] sm:$0xf]
        %s3835 = scalar_lea.vmem %s55, 4
        %v3836 = vld [vmem:[%s3835] sm:$0xf]
        %3838 = vrot.lane.b32.xlu0 %v3833, 64
        %v3839 = vpop.permute.xlu0 %3838
        %v3842 = vsel %vm2505, %v3836, 0
        %3844 = vmatprep.subr.bf16.mxu0 0
        %3845 = vmatpush1.bf16.msra.mxu0 %v3839
        %3846 = vmatprep.subr.bf16.mxu0 0
        %3847 = vmatpush1.bf16.msra.mxu0 0
        %3848 = vmatprep.subr.bf16.mxu0 0
        %3849 = vmatpush1.bf16.msra.mxu0 0
        %3850 = vmatprep.subr.bf16.mxu0 0
        %3851 = vmatpush1.bf16.msra.mxu0 0
        %3852 = vmatprep.subr.bf16.mxu0 0
        %3853 = vmatpush1.bf16.msra.mxu0 0
        %3854 = vmatprep.subr.bf16.mxu0 0
        %3855 = vmatpush1.bf16.msra.mxu0 0
        %3856 = vmatprep.subr.bf16.mxu0 0
        %3857 = vmatpush1.bf16.msra.mxu0 0
        %3858 = vmatprep.subr.bf16.mxu0 0
        %3859 = vmatpush1.bf16.msra.mxu0 0
        %3860 = vmatprep.subr.bf16.mxu0 0
        %3861 = vmatpush1.bf16.msra.mxu0 0
        %3862 = vmatprep.subr.bf16.mxu0 0
        %3863 = vmatpush1.bf16.msra.mxu0 0
        %3864 = vmatprep.subr.bf16.mxu0 0
        %3865 = vmatpush1.bf16.msra.mxu0 0
        %3866 = vmatprep.subr.bf16.mxu0 0
        %3867 = vmatpush1.bf16.msra.mxu0 0
        %3868 = vmatprep.subr.bf16.mxu0 0
        %3869 = vmatpush1.bf16.msra.mxu0 0
        %3870 = vmatprep.subr.bf16.mxu0 0
        %3871 = vmatpush1.bf16.msra.mxu0 0
        %3872 = vmatprep.subr.bf16.mxu0 0
        %3873 = vmatpush1.bf16.msra.mxu0 0
        %3874 = vmatprep.subr.bf16.mxu0 0
        %3875 = vmatpush1.bf16.msra.mxu0 0
        %3876 = vmatprep.mubr.bf16.mxu0 0
        %3877 = vmatmul.mubr.bf16.gmra.mrb[0].mxu0 %v3842
        %v3878 = vpop.f32.mrb[0].mxu0
        %v3879 = vadd.f32 0.0, %v3878
        %v3880 = vpop.f32.mrb[0].mxu0
        %v3881 = vpop.f32.mrb[0].mxu0
        %v3882 = vpop.f32.mrb[0].mxu0
        %3883 = vdwg.mxu0
        %v3885 = vsel %vm2505, %v3834, 0
        %3887 = vmatprep.subr.bf16.mxu0 0
        %3888 = vmatpush1.bf16.msra.mxu0 %v3833
        %3889 = vmatprep.subr.bf16.mxu0 0
        %3890 = vmatpush1.bf16.msra.mxu0 0
        %3891 = vmatprep.subr.bf16.mxu0 0
        %3892 = vmatpush1.bf16.msra.mxu0 0
        %3893 = vmatprep.subr.bf16.mxu0 0
        %3894 = vmatpush1.bf16.msra.mxu0 0
        %3895 = vmatprep.subr.bf16.mxu0 0
        %3896 = vmatpush1.bf16.msra.mxu0 0
        %3897 = vmatprep.subr.bf16.mxu0 0
        %3898 = vmatpush1.bf16.msra.mxu0 0
        %3899 = vmatprep.subr.bf16.mxu0 0
        %3900 = vmatpush1.bf16.msra.mxu0 0
        %3901 = vmatprep.subr.bf16.mxu0 0
        %3902 = vmatpush1.bf16.msra.mxu0 0
        %3903 = vmatprep.subr.bf16.mxu0 0
        %3904 = vmatpush1.bf16.msra.mxu0 0
        %3905 = vmatprep.subr.bf16.mxu0 0
        %3906 = vmatpush1.bf16.msra.mxu0 0
        %3907 = vmatprep.subr.bf16.mxu0 0
        %3908 = vmatpush1.bf16.msra.mxu0 0
        %3909 = vmatprep.subr.bf16.mxu0 0
        %3910 = vmatpush1.bf16.msra.mxu0 0
        %3911 = vmatprep.subr.bf16.mxu0 0
        %3912 = vmatpush1.bf16.msra.mxu0 0
        %3913 = vmatprep.subr.bf16.mxu0 0
        %3914 = vmatpush1.bf16.msra.mxu0 0
        %3915 = vmatprep.subr.bf16.mxu0 0
        %3916 = vmatpush1.bf16.msra.mxu0 0
        %3917 = vmatprep.subr.bf16.mxu0 0
        %3918 = vmatpush1.bf16.msra.mxu0 0
        %3919 = vmatprep.mubr.bf16.mxu0 0
        %3920 = vmatmul.mubr.bf16.gmra.mrb[0].mxu0 %v3885
        %v3921 = vpop.f32.mrb[0].mxu0
        %v3922 = vadd.f32 %v3879, %v3921
        %v3923 = vpop.f32.mrb[0].mxu0
        %v3924 = vpop.f32.mrb[0].mxu0
        %v3925 = vpop.f32.mrb[0].mxu0
        %3926 = vdwg.mxu0
        %v3927 = vpack.c.bf16 %v3831, %v3827
        %s3928 = scalar_lea.vmem %s55, 8
        %v3929 = vld [vmem:[%s3928] sm:$0xf]
        %v3931 = vsel %vm2505, %v3929, 0
        %3933 = vmatprep.subr.bf16.mxu0 0
        %3934 = vmatpush1.bf16.msra.mxu0 %v3927
        %3935 = vmatprep.subr.bf16.mxu0 0
        %3936 = vmatpush1.bf16.msra.mxu0 0
        %3937 = vmatprep.subr.bf16.mxu0 0
        %3938 = vmatpush1.bf16.msra.mxu0 0
        %3939 = vmatprep.subr.bf16.mxu0 0
        %3940 = vmatpush1.bf16.msra.mxu0 0
        %3941 = vmatprep.subr.bf16.mxu0 0
        %3942 = vmatpush1.bf16.msra.mxu0 0
        %3943 = vmatprep.subr.bf16.mxu0 0
        %3944 = vmatpush1.bf16.msra.mxu0 0
        %3945 = vmatprep.subr.bf16.mxu0 0
        %3946 = vmatpush1.bf16.msra.mxu0 0
        %3947 = vmatprep.subr.bf16.mxu0 0
        %3948 = vmatpush1.bf16.msra.mxu0 0
        %3949 = vmatprep.subr.bf16.mxu0 0
        %3950 = vmatpush1.bf16.msra.mxu0 0
        %3951 = vmatprep.subr.bf16.mxu0 0
        %3952 = vmatpush1.bf16.msra.mxu0 0
        %3953 = vmatprep.subr.bf16.mxu0 0
        %3954 = vmatpush1.bf16.msra.mxu0 0
        %3955 = vmatprep.subr.bf16.mxu0 0
        %3956 = vmatpush1.bf16.msra.mxu0 0
        %3957 = vmatprep.subr.bf16.mxu0 0
        %3958 = vmatpush1.bf16.msra.mxu0 0
        %3959 = vmatprep.subr.bf16.mxu0 0
        %3960 = vmatpush1.bf16.msra.mxu0 0
        %3961 = vmatprep.subr.bf16.mxu0 0
        %3962 = vmatpush1.bf16.msra.mxu0 0
        %3963 = vmatprep.subr.bf16.mxu0 0
        %3964 = vmatpush1.bf16.msra.mxu0 0
        %3965 = vmatprep.mubr.bf16.mxu0 0
        %3966 = vmatmul.mubr.bf16.gmra.mrb[0].mxu0 %v3931
        %v3967 = vpop.f32.mrb[0].mxu0
        %v3968 = vadd.f32 0.0, %v3967
        %v3969 = vpop.f32.mrb[0].mxu0
        %v3970 = vpop.f32.mrb[0].mxu0
        %v3971 = vpop.f32.mrb[0].mxu0
        %3972 = vdwg.mxu0
        %v3973 = vadd.f32 %v3922, %v3968
        %v3974 = vadd.f32 %v3789, %v3973
        %v3975 = vld [vmem:[%s57] sm:$0xff]
        %3977 = vset.pattern.permute.xlu0 0
        %3978 = vperm.xlu0 %3977, %v3975
        %v3979 = vpop.permute.xlu0 %3978
        %v3981 = vadd.f32 %v3974, %v3979
        %v3982 = vmax.f32 %v3981, 0.0
        %v3983 = vpack.c.bf16 %v3982, %v3982
        %v3984 = vld [vmem:[%s59] sm:$0xff]
        %v3985 = vld [vmem:[%s59 + $0x8] sm:$0xf]
        %v3986 = vld [vmem:[%s59 + $0xc] sm:$0xff]
        %v3987 = vld [vmem:[%s59 + $0x14] sm:$0xf]
        %v3988 = vld [vmem:[%s59 + $0x18] sm:$0xff]
        %v3989 = vld [vmem:[%s59 + $0x20] sm:$0xf]
        %v3990 = vld [vmem:[%s59 + $0x24] sm:$0xff]
        %v3991 = vld [vmem:[%s59 + $0x2c] sm:$0xf]
        %v3992 = vld [vmem:[%s59 + $0x30] sm:$0xff]
        %v3993 = vld [vmem:[%s59 + $0x38] sm:$0xf]
        %v3994 = vld [vmem:[%s59 + $0x3c] sm:$0xff]
        %v3995 = vld [vmem:[%s59 + $0x44] sm:$0xf]
        %v3996 = vld [vmem:[%s59 + $0x48] sm:$0xff]
        %v3997 = vld [vmem:[%s59 + $0x50] sm:$0xf]
        %v3998 = vld [vmem:[%s59 + $0x54] sm:$0xff]
        %v3999 = vld [vmem:[%s59 + $0x5c] sm:$0xf]
        %v4016 = vunpack.c.l.b16 %v3984
        %v4017 = vunpack.c.h.b16 %v3984
        %v4018 = vunpack.c.l.b16 %v3985
        %v4019 = vunpack.c.l.b16 %v3986
        %v4020 = vunpack.c.h.b16 %v3986
        %v4021 = vunpack.c.l.b16 %v3987
        %v4022 = vunpack.c.l.b16 %v3988
        %v4023 = vunpack.c.h.b16 %v3988
        %v4024 = vunpack.c.l.b16 %v3989
        %v4025 = vunpack.c.l.b16 %v3990
        %v4026 = vunpack.c.h.b16 %v3990
        %v4027 = vunpack.c.l.b16 %v3991
        %v4028 = vunpack.c.l.b16 %v3992
        %v4029 = vunpack.c.h.b16 %v3992
        %v4030 = vunpack.c.l.b16 %v3993
        %v4031 = vunpack.c.l.b16 %v3994
        %v4032 = vunpack.c.h.b16 %v3994
        %v4033 = vunpack.c.l.b16 %v3995
        %v4034 = vunpack.c.l.b16 %v3996
        %v4035 = vunpack.c.h.b16 %v3996
        %v4036 = vunpack.c.l.b16 %v3997
        %v4037 = vunpack.c.l.b16 %v3998
        %v4038 = vunpack.c.h.b16 %v3998
        %v4039 = vunpack.c.l.b16 %v3999
        %v4040 = vpack.c.b16 %v4019, %v4016
        %v4041 = vpack.c.b16 %v4020, %v4017
        %v4042 = vpack.c.b16 %v4021, %v4018
        %v4043 = vpack.c.b16 %v4025, %v4022
        %v4044 = vpack.c.b16 %v4026, %v4023
        %v4045 = vpack.c.b16 %v4027, %v4024
        %v4046 = vpack.c.b16 %v4031, %v4028
        %v4047 = vpack.c.b16 %v4032, %v4029
        %v4048 = vpack.c.b16 %v4033, %v4030
        %v4049 = vpack.c.b16 %v4037, %v4034
        %v4050 = vpack.c.b16 %v4038, %v4035
        %v4051 = vpack.c.b16 %v4039, %v4036
        %v4065 = vsel %vm2196, %v3983, 0
        %4067 = vmatprep.subr.bf16.mxu0 %v4041
        %4068 = vmatpush1.bf16.msra.mxu0 %v4040
        %4069 = vmatprep.subr.bf16.mxu0 %v4044
        %4070 = vmatpush1.bf16.msra.mxu0 %v4043
        %4071 = vmatprep.subr.bf16.mxu0 %v4047
        %4072 = vmatpush1.bf16.msra.mxu0 %v4046
        %4073 = vmatprep.subr.bf16.mxu0 %v4050
        %4074 = vmatpush1.bf16.msra.mxu0 %v4049
        %4075 = vmatprep.subr.bf16.mxu0 0
        %4076 = vmatpush1.bf16.msra.mxu0 0
        %4077 = vmatprep.subr.bf16.mxu0 0
        %4078 = vmatpush1.bf16.msra.mxu0 0
        %4079 = vmatprep.subr.bf16.mxu0 0
        %4080 = vmatpush1.bf16.msra.mxu0 0
        %4081 = vmatprep.subr.bf16.mxu0 0
        %4082 = vmatpush1.bf16.msra.mxu0 0
        %4083 = vmatprep.subr.bf16.mxu0 0
        %4084 = vmatpush1.bf16.msra.mxu0 0
        %4085 = vmatprep.subr.bf16.mxu0 0
        %4086 = vmatpush1.bf16.msra.mxu0 0
        %4087 = vmatprep.subr.bf16.mxu0 0
        %4088 = vmatpush1.bf16.msra.mxu0 0
        %4089 = vmatprep.subr.bf16.mxu0 0
        %4090 = vmatpush1.bf16.msra.mxu0 0
        %4091 = vmatprep.subr.bf16.mxu0 0
        %4092 = vmatpush1.bf16.msra.mxu0 0
        %4093 = vmatprep.subr.bf16.mxu0 0
        %4094 = vmatpush1.bf16.msra.mxu0 0
        %4095 = vmatprep.subr.bf16.mxu0 0
        %4096 = vmatpush1.bf16.msra.mxu0 0
        %4097 = vmatprep.subr.bf16.mxu0 0
        %4098 = vmatpush1.bf16.msra.mxu0 0
        %4099 = vmatprep.mubr.bf16.mxu0 0
        %4100 = vmatmul.mubr.bf16.gmra.mrb[0].mxu0 %v4065
        %v4101 = vpop.f32.mrb[0].mxu0
        %v4102 = vadd.f32 0.0, %v4101
        %v4103 = vpop.f32.mrb[0].mxu0
        %v4104 = vadd.f32 0.0, %v4103
        %v4105 = vpop.f32.mrb[0].mxu0
        %v4106 = vpop.f32.mrb[0].mxu0
        %4107 = vdwg.mxu0
        %4108 = vmatprep.subr.bf16.mxu0 0
        %4109 = vmatpush1.bf16.msra.mxu0 %v4042
        %4110 = vmatprep.subr.bf16.mxu0 0
        %4111 = vmatpush1.bf16.msra.mxu0 %v4045
        %4112 = vmatprep.subr.bf16.mxu0 0
        %4113 = vmatpush1.bf16.msra.mxu0 %v4048
        %4114 = vmatprep.subr.bf16.mxu0 0
        %4115 = vmatpush1.bf16.msra.mxu0 %v4051
        %4116 = vmatprep.subr.bf16.mxu0 0
        %4117 = vmatpush1.bf16.msra.mxu0 0
        %4118 = vmatprep.subr.bf16.mxu0 0
        %4119 = vmatpush1.bf16.msra.mxu0 0
        %4120 = vmatprep.subr.bf16.mxu0 0
        %4121 = vmatpush1.bf16.msra.mxu0 0
        %4122 = vmatprep.subr.bf16.mxu0 0
        %4123 = vmatpush1.bf16.msra.mxu0 0
        %4124 = vmatprep.subr.bf16.mxu0 0
        %4125 = vmatpush1.bf16.msra.mxu0 0
        %4126 = vmatprep.subr.bf16.mxu0 0
        %4127 = vmatpush1.bf16.msra.mxu0 0
        %4128 = vmatprep.subr.bf16.mxu0 0
        %4129 = vmatpush1.bf16.msra.mxu0 0
        %4130 = vmatprep.subr.bf16.mxu0 0
        %4131 = vmatpush1.bf16.msra.mxu0 0
        %4132 = vmatprep.subr.bf16.mxu0 0
        %4133 = vmatpush1.bf16.msra.mxu0 0
        %4134 = vmatprep.subr.bf16.mxu0 0
        %4135 = vmatpush1.bf16.msra.mxu0 0
        %4136 = vmatprep.subr.bf16.mxu0 0
        %4137 = vmatpush1.bf16.msra.mxu0 0
        %4138 = vmatprep.subr.bf16.mxu0 0
        %4139 = vmatpush1.bf16.msra.mxu0 0
        %4140 = vmatprep.mubr.bf16.mxu0 0
        %4141 = vmatmul.mubr.bf16.gmra.mrb[0].mxu0 %v4065
        %v4142 = vpop.f32.mrb[0].mxu0
        %v4143 = vadd.f32 0.0, %v4142
        %v4144 = vpop.f32.mrb[0].mxu0
        %v4145 = vpop.f32.mrb[0].mxu0
        %v4146 = vpop.f32.mrb[0].mxu0
        %4147 = vdwg.mxu0
        %v4148 = vpack.c.bf16 %v4102, %v4102
        %v4149 = vld [vmem:[%s61] sm:$0xf]
        %v4150 = vpack.c.bf16 %v4104, %v4104
        %s4151 = scalar_lea.vmem %s61, 4
        %v4152 = vld [vmem:[%s4151] sm:$0xf]
        %v4154 = vsel %vm1716, %v4152, 0
        %v4157 = vsel %vm1720, %v4150, 0
        %4159 = vmatprep.subr.bf16.mxu0 0
        %4160 = vmatpush1.bf16.msra.mxu0 %v4157
        %4161 = vmatprep.subr.bf16.mxu0 0
        %4162 = vmatpush1.bf16.msra.mxu0 0
        %4163 = vmatprep.subr.bf16.mxu0 0
        %4164 = vmatpush1.bf16.msra.mxu0 0
        %4165 = vmatprep.subr.bf16.mxu0 0
        %4166 = vmatpush1.bf16.msra.mxu0 0
        %4167 = vmatprep.subr.bf16.mxu0 0
        %4168 = vmatpush1.bf16.msra.mxu0 0
        %4169 = vmatprep.subr.bf16.mxu0 0
        %4170 = vmatpush1.bf16.msra.mxu0 0
        %4171 = vmatprep.subr.bf16.mxu0 0
        %4172 = vmatpush1.bf16.msra.mxu0 0
        %4173 = vmatprep.subr.bf16.mxu0 0
        %4174 = vmatpush1.bf16.msra.mxu0 0
        %4175 = vmatprep.subr.bf16.mxu0 0
        %4176 = vmatpush1.bf16.msra.mxu0 0
        %4177 = vmatprep.subr.bf16.mxu0 0
        %4178 = vmatpush1.bf16.msra.mxu0 0
        %4179 = vmatprep.subr.bf16.mxu0 0
        %4180 = vmatpush1.bf16.msra.mxu0 0
        %4181 = vmatprep.subr.bf16.mxu0 0
        %4182 = vmatpush1.bf16.msra.mxu0 0
        %4183 = vmatprep.subr.bf16.mxu0 0
        %4184 = vmatpush1.bf16.msra.mxu0 0
        %4185 = vmatprep.subr.bf16.mxu0 0
        %4186 = vmatpush1.bf16.msra.mxu0 0
        %4187 = vmatprep.subr.bf16.mxu0 0
        %4188 = vmatpush1.bf16.msra.mxu0 0
        %4189 = vmatprep.subr.bf16.mxu0 0
        %4190 = vmatpush1.bf16.msra.mxu0 0
        %4191 = vmatprep.mubr.bf16.mxu0 0
        %4192 = vmatmul.mubr.bf16.gmra.mrb[0].mxu0 %v4154
        %v4193 = vpop.f32.mrb[0].mxu0
        %v4194 = vadd.f32 0.0, %v4193
        %v4195 = vpop.f32.mrb[0].mxu0
        %v4196 = vpop.f32.mrb[0].mxu0
        %v4197 = vpop.f32.mrb[0].mxu0
        %4198 = vdwg.mxu0
        %v4200 = vsel %vm1716, %v4149, 0
        %v4203 = vsel %vm1720, %v4148, 0
        %4205 = vmatprep.subr.bf16.mxu0 0
        %4206 = vmatpush1.bf16.msra.mxu0 %v4203
        %4207 = vmatprep.subr.bf16.mxu0 0
        %4208 = vmatpush1.bf16.msra.mxu0 0
        %4209 = vmatprep.subr.bf16.mxu0 0
        %4210 = vmatpush1.bf16.msra.mxu0 0
        %4211 = vmatprep.subr.bf16.mxu0 0
        %4212 = vmatpush1.bf16.msra.mxu0 0
        %4213 = vmatprep.subr.bf16.mxu0 0
        %4214 = vmatpush1.bf16.msra.mxu0 0
        %4215 = vmatprep.subr.bf16.mxu0 0
        %4216 = vmatpush1.bf16.msra.mxu0 0
        %4217 = vmatprep.subr.bf16.mxu0 0
        %4218 = vmatpush1.bf16.msra.mxu0 0
        %4219 = vmatprep.subr.bf16.mxu0 0
        %4220 = vmatpush1.bf16.msra.mxu0 0
        %4221 = vmatprep.subr.bf16.mxu0 0
        %4222 = vmatpush1.bf16.msra.mxu0 0
        %4223 = vmatprep.subr.bf16.mxu0 0
        %4224 = vmatpush1.bf16.msra.mxu0 0
        %4225 = vmatprep.subr.bf16.mxu0 0
        %4226 = vmatpush1.bf16.msra.mxu0 0
        %4227 = vmatprep.subr.bf16.mxu0 0
        %4228 = vmatpush1.bf16.msra.mxu0 0
        %4229 = vmatprep.subr.bf16.mxu0 0
        %4230 = vmatpush1.bf16.msra.mxu0 0
        %4231 = vmatprep.subr.bf16.mxu0 0
        %4232 = vmatpush1.bf16.msra.mxu0 0
        %4233 = vmatprep.subr.bf16.mxu0 0
        %4234 = vmatpush1.bf16.msra.mxu0 0
        %4235 = vmatprep.subr.bf16.mxu0 0
        %4236 = vmatpush1.bf16.msra.mxu0 0
        %4237 = vmatprep.mubr.bf16.mxu0 0
        %4238 = vmatmul.mubr.bf16.gmra.mrb[0].mxu0 %v4200
        %v4239 = vpop.f32.mrb[0].mxu0
        %v4240 = vadd.f32 %v4194, %v4239
        %v4241 = vpop.f32.mrb[0].mxu0
        %v4242 = vpop.f32.mrb[0].mxu0
        %v4243 = vpop.f32.mrb[0].mxu0
        %4244 = vdwg.mxu0
        %v4245 = vpack.c.bf16 %v4143, %v4143
        %s4246 = scalar_lea.vmem %s61, 8
        %v4247 = vld [vmem:[%s4246] sm:$0xf]
        %v4249 = vsel %vm1716, %v4247, 0
        %v4252 = vsel %vm1720, %v4245, 0
        %4254 = vmatprep.subr.bf16.mxu0 0
        %4255 = vmatpush1.bf16.msra.mxu0 %v4252
        %4256 = vmatprep.subr.bf16.mxu0 0
        %4257 = vmatpush1.bf16.msra.mxu0 0
        %4258 = vmatprep.subr.bf16.mxu0 0
        %4259 = vmatpush1.bf16.msra.mxu0 0
        %4260 = vmatprep.subr.bf16.mxu0 0
        %4261 = vmatpush1.bf16.msra.mxu0 0
        %4262 = vmatprep.subr.bf16.mxu0 0
        %4263 = vmatpush1.bf16.msra.mxu0 0
        %4264 = vmatprep.subr.bf16.mxu0 0
        %4265 = vmatpush1.bf16.msra.mxu0 0
        %4266 = vmatprep.subr.bf16.mxu0 0
        %4267 = vmatpush1.bf16.msra.mxu0 0
        %4268 = vmatprep.subr.bf16.mxu0 0
        %4269 = vmatpush1.bf16.msra.mxu0 0
        %4270 = vmatprep.subr.bf16.mxu0 0
        %4271 = vmatpush1.bf16.msra.mxu0 0
        %4272 = vmatprep.subr.bf16.mxu0 0
        %4273 = vmatpush1.bf16.msra.mxu0 0
        %4274 = vmatprep.subr.bf16.mxu0 0
        %4275 = vmatpush1.bf16.msra.mxu0 0
        %4276 = vmatprep.subr.bf16.mxu0 0
        %4277 = vmatpush1.bf16.msra.mxu0 0
        %4278 = vmatprep.subr.bf16.mxu0 0
        %4279 = vmatpush1.bf16.msra.mxu0 0
        %4280 = vmatprep.subr.bf16.mxu0 0
        %4281 = vmatpush1.bf16.msra.mxu0 0
        %4282 = vmatprep.subr.bf16.mxu0 0
        %4283 = vmatpush1.bf16.msra.mxu0 0
        %4284 = vmatprep.subr.bf16.mxu0 0
        %4285 = vmatpush1.bf16.msra.mxu0 0
        %4286 = vmatprep.mubr.bf16.mxu0 0
        %4287 = vmatmul.mubr.bf16.gmra.mrb[0].mxu0 %v4249
        %v4288 = vpop.f32.mrb[0].mxu0
        %v4289 = vadd.f32 0.0, %v4288
        %v4290 = vpop.f32.mrb[0].mxu0
        %v4291 = vpop.f32.mrb[0].mxu0
        %v4292 = vpop.f32.mrb[0].mxu0
        %4293 = vdwg.mxu0
        %v4294 = vadd.f32 %v4240, %v4289
        %4295 = vmatprep.subr.bf16.mxu0 %v4041
        %4296 = vmatpush1.bf16.msra.mxu0 %v4040
        %4297 = vmatprep.subr.bf16.mxu0 %v4044
        %4298 = vmatpush1.bf16.msra.mxu0 %v4043
        %4299 = vmatprep.subr.bf16.mxu0 %v4047
        %4300 = vmatpush1.bf16.msra.mxu0 %v4046
        %4301 = vmatprep.subr.bf16.mxu0 %v4050
        %4302 = vmatpush1.bf16.msra.mxu0 %v4049
        %4303 = vmatprep.subr.bf16.mxu0 0
        %4304 = vmatpush1.bf16.msra.mxu0 0
        %4305 = vmatprep.subr.bf16.mxu0 0
        %4306 = vmatpush1.bf16.msra.mxu0 0
        %4307 = vmatprep.subr.bf16.mxu0 0
        %4308 = vmatpush1.bf16.msra.mxu0 0
        %4309 = vmatprep.subr.bf16.mxu0 0
        %4310 = vmatpush1.bf16.msra.mxu0 0
        %4311 = vmatprep.subr.bf16.mxu0 0
        %4312 = vmatpush1.bf16.msra.mxu0 0
        %4313 = vmatprep.subr.bf16.mxu0 0
        %4314 = vmatpush1.bf16.msra.mxu0 0
        %4315 = vmatprep.subr.bf16.mxu0 0
        %4316 = vmatpush1.bf16.msra.mxu0 0
        %4317 = vmatprep.subr.bf16.mxu0 0
        %4318 = vmatpush1.bf16.msra.mxu0 0
        %4319 = vmatprep.subr.bf16.mxu0 0
        %4320 = vmatpush1.bf16.msra.mxu0 0
        %4321 = vmatprep.subr.bf16.mxu0 0
        %4322 = vmatpush1.bf16.msra.mxu0 0
        %4323 = vmatprep.subr.bf16.mxu0 0
        %4324 = vmatpush1.bf16.msra.mxu0 0
        %4325 = vmatprep.subr.bf16.mxu0 0
        %4326 = vmatpush1.bf16.msra.mxu0 0
        %4327 = vmatprep.mubr.bf16.mxu0 0
        %4328 = vmatmul.mubr.bf16.gmra.mrb[0].mxu0 %v2198
        %v4329 = vpop.f32.mrb[0].mxu0
        %v4330 = vadd.f32 0.0, %v4329
        %v4331 = vpop.f32.mrb[0].mxu0
        %v4332 = vadd.f32 0.0, %v4331
        %v4333 = vpop.f32.mrb[0].mxu0
        %v4334 = vpop.f32.mrb[0].mxu0
        %4335 = vdwg.mxu0
        %4336 = vmatprep.subr.bf16.mxu0 0
        %4337 = vmatpush1.bf16.msra.mxu0 %v4042
        %4338 = vmatprep.subr.bf16.mxu0 0
        %4339 = vmatpush1.bf16.msra.mxu0 %v4045
        %4340 = vmatprep.subr.bf16.mxu0 0
        %4341 = vmatpush1.bf16.msra.mxu0 %v4048
        %4342 = vmatprep.subr.bf16.mxu0 0
        %4343 = vmatpush1.bf16.msra.mxu0 %v4051
        %4344 = vmatprep.subr.bf16.mxu0 0
        %4345 = vmatpush1.bf16.msra.mxu0 0
        %4346 = vmatprep.subr.bf16.mxu0 0
        %4347 = vmatpush1.bf16.msra.mxu0 0
        %4348 = vmatprep.subr.bf16.mxu0 0
        %4349 = vmatpush1.bf16.msra.mxu0 0
        %4350 = vmatprep.subr.bf16.mxu0 0
        %4351 = vmatpush1.bf16.msra.mxu0 0
        %4352 = vmatprep.subr.bf16.mxu0 0
        %4353 = vmatpush1.bf16.msra.mxu0 0
        %4354 = vmatprep.subr.bf16.mxu0 0
        %4355 = vmatpush1.bf16.msra.mxu0 0
        %4356 = vmatprep.subr.bf16.mxu0 0
        %4357 = vmatpush1.bf16.msra.mxu0 0
        %4358 = vmatprep.subr.bf16.mxu0 0
        %4359 = vmatpush1.bf16.msra.mxu0 0
        %4360 = vmatprep.subr.bf16.mxu0 0
        %4361 = vmatpush1.bf16.msra.mxu0 0
        %4362 = vmatprep.subr.bf16.mxu0 0
        %4363 = vmatpush1.bf16.msra.mxu0 0
        %4364 = vmatprep.subr.bf16.mxu0 0
        %4365 = vmatpush1.bf16.msra.mxu0 0
        %4366 = vmatprep.subr.bf16.mxu0 0
        %4367 = vmatpush1.bf16.msra.mxu0 0
        %4368 = vmatprep.mubr.bf16.mxu0 0
        %4369 = vmatmul.mubr.bf16.gmra.mrb[0].mxu0 %v2198
        %v4370 = vpop.f32.mrb[0].mxu0
        %v4371 = vadd.f32 0.0, %v4370
        %v4372 = vpop.f32.mrb[0].mxu0
        %v4373 = vpop.f32.mrb[0].mxu0
        %v4374 = vpop.f32.mrb[0].mxu0
        %4375 = vdwg.mxu0
        %v4376 = vpack.c.bf16 %v4330, %v4330
        %v4377 = vld [vmem:[%s63] sm:$0xf]
        %v4378 = vpack.c.bf16 %v4332, %v4332
        %s4379 = scalar_lea.vmem %s63, 4
        %v4380 = vld [vmem:[%s4379] sm:$0xf]
        %v4382 = vsel %vm1716, %v4380, 0
        %v4385 = vsel %vm1720, %v4378, 0
        %4387 = vmatprep.subr.bf16.mxu0 0
        %4388 = vmatpush1.bf16.msra.mxu0 %v4385
        %4389 = vmatprep.subr.bf16.mxu0 0
        %4390 = vmatpush1.bf16.msra.mxu0 0
        %4391 = vmatprep.subr.bf16.mxu0 0
        %4392 = vmatpush1.bf16.msra.mxu0 0
        %4393 = vmatprep.subr.bf16.mxu0 0
        %4394 = vmatpush1.bf16.msra.mxu0 0
        %4395 = vmatprep.subr.bf16.mxu0 0
        %4396 = vmatpush1.bf16.msra.mxu0 0
        %4397 = vmatprep.subr.bf16.mxu0 0
        %4398 = vmatpush1.bf16.msra.mxu0 0
        %4399 = vmatprep.subr.bf16.mxu0 0
        %4400 = vmatpush1.bf16.msra.mxu0 0
        %4401 = vmatprep.subr.bf16.mxu0 0
        %4402 = vmatpush1.bf16.msra.mxu0 0
        %4403 = vmatprep.subr.bf16.mxu0 0
        %4404 = vmatpush1.bf16.msra.mxu0 0
        %4405 = vmatprep.subr.bf16.mxu0 0
        %4406 = vmatpush1.bf16.msra.mxu0 0
        %4407 = vmatprep.subr.bf16.mxu0 0
        %4408 = vmatpush1.bf16.msra.mxu0 0
        %4409 = vmatprep.subr.bf16.mxu0 0
        %4410 = vmatpush1.bf16.msra.mxu0 0
        %4411 = vmatprep.subr.bf16.mxu0 0
        %4412 = vmatpush1.bf16.msra.mxu0 0
        %4413 = vmatprep.subr.bf16.mxu0 0
        %4414 = vmatpush1.bf16.msra.mxu0 0
        %4415 = vmatprep.subr.bf16.mxu0 0
        %4416 = vmatpush1.bf16.msra.mxu0 0
        %4417 = vmatprep.subr.bf16.mxu0 0
        %4418 = vmatpush1.bf16.msra.mxu0 0
        %4419 = vmatprep.mubr.bf16.mxu0 0
        %4420 = vmatmul.mubr.bf16.gmra.mrb[0].mxu0 %v4382
        %v4421 = vpop.f32.mrb[0].mxu0
        %v4422 = vadd.f32 0.0, %v4421
        %v4423 = vpop.f32.mrb[0].mxu0
        %v4424 = vpop.f32.mrb[0].mxu0
        %v4425 = vpop.f32.mrb[0].mxu0
        %4426 = vdwg.mxu0
        %v4428 = vsel %vm1716, %v4377, 0
        %v4431 = vsel %vm1720, %v4376, 0
        %4433 = vmatprep.subr.bf16.mxu0 0
        %4434 = vmatpush1.bf16.msra.mxu0 %v4431
        %4435 = vmatprep.subr.bf16.mxu0 0
        %4436 = vmatpush1.bf16.msra.mxu0 0
        %4437 = vmatprep.subr.bf16.mxu0 0
        %4438 = vmatpush1.bf16.msra.mxu0 0
        %4439 = vmatprep.subr.bf16.mxu0 0
        %4440 = vmatpush1.bf16.msra.mxu0 0
        %4441 = vmatprep.subr.bf16.mxu0 0
        %4442 = vmatpush1.bf16.msra.mxu0 0
        %4443 = vmatprep.subr.bf16.mxu0 0
        %4444 = vmatpush1.bf16.msra.mxu0 0
        %4445 = vmatprep.subr.bf16.mxu0 0
        %4446 = vmatpush1.bf16.msra.mxu0 0
        %4447 = vmatprep.subr.bf16.mxu0 0
        %4448 = vmatpush1.bf16.msra.mxu0 0
        %4449 = vmatprep.subr.bf16.mxu0 0
        %4450 = vmatpush1.bf16.msra.mxu0 0
        %4451 = vmatprep.subr.bf16.mxu0 0
        %4452 = vmatpush1.bf16.msra.mxu0 0
        %4453 = vmatprep.subr.bf16.mxu0 0
        %4454 = vmatpush1.bf16.msra.mxu0 0
        %4455 = vmatprep.subr.bf16.mxu0 0
        %4456 = vmatpush1.bf16.msra.mxu0 0
        %4457 = vmatprep.subr.bf16.mxu0 0
        %4458 = vmatpush1.bf16.msra.mxu0 0
        %4459 = vmatprep.subr.bf16.mxu0 0
        %4460 = vmatpush1.bf16.msra.mxu0 0
        %4461 = vmatprep.subr.bf16.mxu0 0
        %4462 = vmatpush1.bf16.msra.mxu0 0
        %4463 = vmatprep.subr.bf16.mxu0 0
        %4464 = vmatpush1.bf16.msra.mxu0 0
        %4465 = vmatprep.mubr.bf16.mxu0 0
        %4466 = vmatmul.mubr.bf16.gmra.mrb[0].mxu0 %v4428
        %v4467 = vpop.f32.mrb[0].mxu0
        %v4468 = vadd.f32 %v4422, %v4467
        %v4469 = vpop.f32.mrb[0].mxu0
        %v4470 = vpop.f32.mrb[0].mxu0
        %v4471 = vpop.f32.mrb[0].mxu0
        %4472 = vdwg.mxu0
        %v4473 = vpack.c.bf16 %v4371, %v4371
        %s4474 = scalar_lea.vmem %s63, 8
        %v4475 = vld [vmem:[%s4474] sm:$0xf]
        %v4477 = vsel %vm1716, %v4475, 0
        %v4480 = vsel %vm1720, %v4473, 0
        %4482 = vmatprep.subr.bf16.mxu0 0
        %4483 = vmatpush1.bf16.msra.mxu0 %v4480
        %4484 = vmatprep.subr.bf16.mxu0 0
        %4485 = vmatpush1.bf16.msra.mxu0 0
        %4486 = vmatprep.subr.bf16.mxu0 0
        %4487 = vmatpush1.bf16.msra.mxu0 0
        %4488 = vmatprep.subr.bf16.mxu0 0
        %4489 = vmatpush1.bf16.msra.mxu0 0
        %4490 = vmatprep.subr.bf16.mxu0 0
        %4491 = vmatpush1.bf16.msra.mxu0 0
        %4492 = vmatprep.subr.bf16.mxu0 0
        %4493 = vmatpush1.bf16.msra.mxu0 0
        %4494 = vmatprep.subr.bf16.mxu0 0
        %4495 = vmatpush1.bf16.msra.mxu0 0
        %4496 = vmatprep.subr.bf16.mxu0 0
        %4497 = vmatpush1.bf16.msra.mxu0 0
        %4498 = vmatprep.subr.bf16.mxu0 0
        %4499 = vmatpush1.bf16.msra.mxu0 0
        %4500 = vmatprep.subr.bf16.mxu0 0
        %4501 = vmatpush1.bf16.msra.mxu0 0
        %4502 = vmatprep.subr.bf16.mxu0 0
        %4503 = vmatpush1.bf16.msra.mxu0 0
        %4504 = vmatprep.subr.bf16.mxu0 0
        %4505 = vmatpush1.bf16.msra.mxu0 0
        %4506 = vmatprep.subr.bf16.mxu0 0
        %4507 = vmatpush1.bf16.msra.mxu0 0
        %4508 = vmatprep.subr.bf16.mxu0 0
        %4509 = vmatpush1.bf16.msra.mxu0 0
        %4510 = vmatprep.subr.bf16.mxu0 0
        %4511 = vmatpush1.bf16.msra.mxu0 0
        %4512 = vmatprep.subr.bf16.mxu0 0
        %4513 = vmatpush1.bf16.msra.mxu0 0
        %4514 = vmatprep.mubr.bf16.mxu0 0
        %4515 = vmatmul.mubr.bf16.gmra.mrb[0].mxu0 %v4477
        %v4516 = vpop.f32.mrb[0].mxu0
        %v4517 = vadd.f32 0.0, %v4516
        %v4518 = vpop.f32.mrb[0].mxu0
        %v4519 = vpop.f32.mrb[0].mxu0
        %v4520 = vpop.f32.mrb[0].mxu0
        %4521 = vdwg.mxu0
        %v4522 = vadd.f32 %v4468, %v4517
        %v4523 = vadd.f32 %v4294, %v4522
        %v4524 = vld [vmem:[%s65] sm:$0xff]
        %4526 = vset.pattern.permute.xlu0 0
        %4527 = vperm.xlu0 %4526, %v4524
        %v4528 = vpop.permute.xlu0 %4527
        %v4530 = vadd.f32 %v4523, %v4528
        %v4531 = vmax.f32 %v4530, 0.0
        %v4532 = vpack.c.bf16 %v4531, %v4531
        %v4533 = vld [vmem:[%s67] sm:$0xff]
        %v4534 = vld [vmem:[%s67 + $0x8] sm:$0xff]
        %v4535 = vld [vmem:[%s67 + $0x10] sm:$0xff]
        %v4536 = vld [vmem:[%s67 + $0x18] sm:$0xff]
        %v4537 = vld [vmem:[%s67 + $0x20] sm:$0xff]
        %v4538 = vld [vmem:[%s67 + $0x28] sm:$0xff]
        %v4539 = vld [vmem:[%s67 + $0x30] sm:$0xff]
        %v4540 = vld [vmem:[%s67 + $0x38] sm:$0xff]
        %v4541 = vld [vmem:[%s67 + $0x40] sm:$0xff]
        %v4542 = vld [vmem:[%s67 + $0x48] sm:$0xff]
        %v4543 = vld [vmem:[%s67 + $0x50] sm:$0xff]
        %v4544 = vld [vmem:[%s67 + $0x58] sm:$0xff]
        %v4545 = vld [vmem:[%s67 + $0x60] sm:$0xff]
        %v4546 = vld [vmem:[%s67 + $0x68] sm:$0xff]
        %v4547 = vld [vmem:[%s67 + $0x70] sm:$0xff]
        %v4548 = vld [vmem:[%s67 + $0x78] sm:$0xff]
        %v4549 = vld [vmem:[%s67 + $0x80] sm:$0xff]
        %v4550 = vld [vmem:[%s67 + $0x88] sm:$0xff]
        %v4551 = vld [vmem:[%s67 + $0x90] sm:$0xff]
        %v4552 = vld [vmem:[%s67 + $0x98] sm:$0xff]
        %v4553 = vld [vmem:[%s67 + $0xa0] sm:$0xff]
        %v4554 = vld [vmem:[%s67 + $0xa8] sm:$0xff]
        %v4555 = vld [vmem:[%s67 + $0xb0] sm:$0xff]
        %v4556 = vld [vmem:[%s67 + $0xb8] sm:$0xff]
        %v4557 = vld [vmem:[%s67 + $0xc0] sm:$0xff]
        %v4558 = vld [vmem:[%s67 + $0xc8] sm:$0xff]
        %v4559 = vld [vmem:[%s67 + $0xd0] sm:$0xff]
        %v4560 = vld [vmem:[%s67 + $0xd8] sm:$0xff]
        %v4561 = vld [vmem:[%s67 + $0xe0] sm:$0xff]
        %v4562 = vld [vmem:[%s67 + $0xe8] sm:$0xff]
        %v4563 = vld [vmem:[%s67 + $0xf0] sm:$0xff]
        %v4564 = vld [vmem:[%s67 + $0xf8] sm:$0xff]
        %v4565 = vld [vmem:[%s67 + $0x100] sm:$0xff]
        %v4566 = vld [vmem:[%s67 + $0x108] sm:$0xff]
        %v4567 = vld [vmem:[%s67 + $0x110] sm:$0xff]
        %v4568 = vld [vmem:[%s67 + $0x118] sm:$0xff]
        %v4569 = vld [vmem:[%s67 + $0x120] sm:$0xff]
        %v4570 = vld [vmem:[%s67 + $0x128] sm:$0xff]
        %v4571 = vld [vmem:[%s67 + $0x130] sm:$0xff]
        %v4572 = vld [vmem:[%s67 + $0x138] sm:$0xff]
        %v4573 = vld [vmem:[%s67 + $0x140] sm:$0xff]
        %v4574 = vld [vmem:[%s67 + $0x148] sm:$0xff]
        %v4575 = vld [vmem:[%s67 + $0x150] sm:$0xff]
        %v4576 = vld [vmem:[%s67 + $0x158] sm:$0xff]
        %v4577 = vld [vmem:[%s67 + $0x160] sm:$0xff]
        %v4578 = vld [vmem:[%s67 + $0x168] sm:$0xff]
        %v4579 = vld [vmem:[%s67 + $0x170] sm:$0xff]
        %v4580 = vld [vmem:[%s67 + $0x178] sm:$0xff]
        %v4629 = vunpack.c.l.b16 %v4533
        %v4630 = vunpack.c.h.b16 %v4533
        %v4631 = vunpack.c.l.b16 %v4534
        %v4632 = vunpack.c.h.b16 %v4534
        %v4633 = vunpack.c.l.b16 %v4535
        %v4634 = vunpack.c.h.b16 %v4535
        %v4635 = vunpack.c.l.b16 %v4536
        %v4636 = vunpack.c.h.b16 %v4536
        %v4637 = vunpack.c.l.b16 %v4537
        %v4638 = vunpack.c.h.b16 %v4537
        %v4639 = vunpack.c.l.b16 %v4538
        %v4640 = vunpack.c.h.b16 %v4538
        %v4641 = vunpack.c.l.b16 %v4539
        %v4642 = vunpack.c.h.b16 %v4539
        %v4643 = vunpack.c.l.b16 %v4540
        %v4644 = vunpack.c.h.b16 %v4540
        %v4645 = vunpack.c.l.b16 %v4541
        %v4646 = vunpack.c.h.b16 %v4541
        %v4647 = vunpack.c.l.b16 %v4542
        %v4648 = vunpack.c.h.b16 %v4542
        %v4649 = vunpack.c.l.b16 %v4543
        %v4650 = vunpack.c.h.b16 %v4543
        %v4651 = vunpack.c.l.b16 %v4544
        %v4652 = vunpack.c.h.b16 %v4544
        %v4653 = vunpack.c.l.b16 %v4545
        %v4654 = vunpack.c.h.b16 %v4545
        %v4655 = vunpack.c.l.b16 %v4546
        %v4656 = vunpack.c.h.b16 %v4546
        %v4657 = vunpack.c.l.b16 %v4547
        %v4658 = vunpack.c.h.b16 %v4547
        %v4659 = vunpack.c.l.b16 %v4548
        %v4660 = vunpack.c.h.b16 %v4548
        %v4661 = vunpack.c.l.b16 %v4549
        %v4662 = vunpack.c.h.b16 %v4549
        %v4663 = vunpack.c.l.b16 %v4550
        %v4664 = vunpack.c.h.b16 %v4550
        %v4665 = vunpack.c.l.b16 %v4551
        %v4666 = vunpack.c.h.b16 %v4551
        %v4667 = vunpack.c.l.b16 %v4552
        %v4668 = vunpack.c.h.b16 %v4552
        %v4669 = vunpack.c.l.b16 %v4553
        %v4670 = vunpack.c.h.b16 %v4553
        %v4671 = vunpack.c.l.b16 %v4554
        %v4672 = vunpack.c.h.b16 %v4554
        %v4673 = vunpack.c.l.b16 %v4555
        %v4674 = vunpack.c.h.b16 %v4555
        %v4675 = vunpack.c.l.b16 %v4556
        %v4676 = vunpack.c.h.b16 %v4556
        %v4677 = vunpack.c.l.b16 %v4557
        %v4678 = vunpack.c.h.b16 %v4557
        %v4679 = vunpack.c.l.b16 %v4558
        %v4680 = vunpack.c.h.b16 %v4558
        %v4681 = vunpack.c.l.b16 %v4559
        %v4682 = vunpack.c.h.b16 %v4559
        %v4683 = vunpack.c.l.b16 %v4560
        %v4684 = vunpack.c.h.b16 %v4560
        %v4685 = vunpack.c.l.b16 %v4561
        %v4686 = vunpack.c.h.b16 %v4561
        %v4687 = vunpack.c.l.b16 %v4562
        %v4688 = vunpack.c.h.b16 %v4562
        %v4689 = vunpack.c.l.b16 %v4563
        %v4690 = vunpack.c.h.b16 %v4563
        %v4691 = vunpack.c.l.b16 %v4564
        %v4692 = vunpack.c.h.b16 %v4564
        %v4693 = vunpack.c.l.b16 %v4565
        %v4694 = vunpack.c.h.b16 %v4565
        %v4695 = vunpack.c.l.b16 %v4566
        %v4696 = vunpack.c.h.b16 %v4566
        %v4697 = vunpack.c.l.b16 %v4567
        %v4698 = vunpack.c.h.b16 %v4567
        %v4699 = vunpack.c.l.b16 %v4568
        %v4700 = vunpack.c.h.b16 %v4568
        %v4701 = vunpack.c.l.b16 %v4569
        %v4702 = vunpack.c.h.b16 %v4569
        %v4703 = vunpack.c.l.b16 %v4570
        %v4704 = vunpack.c.h.b16 %v4570
        %v4705 = vunpack.c.l.b16 %v4571
        %v4706 = vunpack.c.h.b16 %v4571
        %v4707 = vunpack.c.l.b16 %v4572
        %v4708 = vunpack.c.h.b16 %v4572
        %v4709 = vunpack.c.l.b16 %v4573
        %v4710 = vunpack.c.h.b16 %v4573
        %v4711 = vunpack.c.l.b16 %v4574
        %v4712 = vunpack.c.h.b16 %v4574
        %v4713 = vunpack.c.l.b16 %v4575
        %v4714 = vunpack.c.h.b16 %v4575
        %v4715 = vunpack.c.l.b16 %v4576
        %v4716 = vunpack.c.h.b16 %v4576
        %v4717 = vunpack.c.l.b16 %v4577
        %v4718 = vunpack.c.h.b16 %v4577
        %v4719 = vunpack.c.l.b16 %v4578
        %v4720 = vunpack.c.h.b16 %v4578
        %v4721 = vunpack.c.l.b16 %v4579
        %v4722 = vunpack.c.h.b16 %v4579
        %v4723 = vunpack.c.l.b16 %v4580
        %v4724 = vunpack.c.h.b16 %v4580
        %v4725 = vpack.c.b16 %v4635, %v4629
        %v4726 = vpack.c.b16 %v4636, %v4630
        %v4727 = vpack.c.b16 %v4637, %v4631
        %v4728 = vpack.c.b16 %v4638, %v4632
        %v4729 = vpack.c.b16 %v4639, %v4633
        %v4730 = vpack.c.b16 %v4640, %v4634
        %v4731 = vpack.c.b16 %v4647, %v4641
        %v4732 = vpack.c.b16 %v4648, %v4642
        %v4733 = vpack.c.b16 %v4649, %v4643
        %v4734 = vpack.c.b16 %v4650, %v4644
        %v4735 = vpack.c.b16 %v4651, %v4645
        %v4736 = vpack.c.b16 %v4652, %v4646
        %v4737 = vpack.c.b16 %v4659, %v4653
        %v4738 = vpack.c.b16 %v4660, %v4654
        %v4739 = vpack.c.b16 %v4661, %v4655
        %v4740 = vpack.c.b16 %v4662, %v4656
        %v4741 = vpack.c.b16 %v4663, %v4657
        %v4742 = vpack.c.b16 %v4664, %v4658
        %v4743 = vpack.c.b16 %v4671, %v4665
        %v4744 = vpack.c.b16 %v4672, %v4666
        %v4745 = vpack.c.b16 %v4673, %v4667
        %v4746 = vpack.c.b16 %v4674, %v4668
        %v4747 = vpack.c.b16 %v4675, %v4669
        %v4748 = vpack.c.b16 %v4676, %v4670
        %v4749 = vpack.c.b16 %v4683, %v4677
        %v4750 = vpack.c.b16 %v4684, %v4678
        %v4751 = vpack.c.b16 %v4685, %v4679
        %v4752 = vpack.c.b16 %v4686, %v4680
        %v4753 = vpack.c.b16 %v4687, %v4681
        %v4754 = vpack.c.b16 %v4688, %v4682
        %v4755 = vpack.c.b16 %v4695, %v4689
        %v4756 = vpack.c.b16 %v4696, %v4690
        %v4757 = vpack.c.b16 %v4697, %v4691
        %v4758 = vpack.c.b16 %v4698, %v4692
        %v4759 = vpack.c.b16 %v4699, %v4693
        %v4760 = vpack.c.b16 %v4700, %v4694
        %v4761 = vpack.c.b16 %v4707, %v4701
        %v4762 = vpack.c.b16 %v4708, %v4702
        %v4763 = vpack.c.b16 %v4709, %v4703
        %v4764 = vpack.c.b16 %v4710, %v4704
        %v4765 = vpack.c.b16 %v4711, %v4705
        %v4766 = vpack.c.b16 %v4712, %v4706
        %v4767 = vpack.c.b16 %v4719, %v4713
        %v4768 = vpack.c.b16 %v4720, %v4714
        %v4769 = vpack.c.b16 %v4721, %v4715
        %v4770 = vpack.c.b16 %v4722, %v4716
        %v4771 = vpack.c.b16 %v4723, %v4717
        %v4772 = vpack.c.b16 %v4724, %v4718
        %4821 = vmatprep.subr.bf16.mxu0 %v4726
        %4822 = vmatpush1.bf16.msra.mxu0 %v4725
        %4823 = vmatprep.subr.bf16.mxu0 %v4732
        %4824 = vmatpush1.bf16.msra.mxu0 %v4731
        %4825 = vmatprep.subr.bf16.mxu0 %v4738
        %4826 = vmatpush1.bf16.msra.mxu0 %v4737
        %4827 = vmatprep.subr.bf16.mxu0 %v4744
        %4828 = vmatpush1.bf16.msra.mxu0 %v4743
        %4829 = vmatprep.subr.bf16.mxu0 %v4750
        %4830 = vmatpush1.bf16.msra.mxu0 %v4749
        %4831 = vmatprep.subr.bf16.mxu0 %v4756
        %4832 = vmatpush1.bf16.msra.mxu0 %v4755
        %4833 = vmatprep.subr.bf16.mxu0 %v4762
        %4834 = vmatpush1.bf16.msra.mxu0 %v4761
        %4835 = vmatprep.subr.bf16.mxu0 %v4768
        %4836 = vmatpush1.bf16.msra.mxu0 %v4767
        %4837 = vmatprep.subr.bf16.mxu0 0
        %4838 = vmatpush1.bf16.msra.mxu0 0
        %4839 = vmatprep.subr.bf16.mxu0 0
        %4840 = vmatpush1.bf16.msra.mxu0 0
        %4841 = vmatprep.subr.bf16.mxu0 0
        %4842 = vmatpush1.bf16.msra.mxu0 0
        %4843 = vmatprep.subr.bf16.mxu0 0
        %4844 = vmatpush1.bf16.msra.mxu0 0
        %4845 = vmatprep.subr.bf16.mxu0 0
        %4846 = vmatpush1.bf16.msra.mxu0 0
        %4847 = vmatprep.subr.bf16.mxu0 0
        %4848 = vmatpush1.bf16.msra.mxu0 0
        %4849 = vmatprep.subr.bf16.mxu0 0
        %4850 = vmatpush1.bf16.msra.mxu0 0
        %4851 = vmatprep.subr.bf16.mxu0 0
        %4852 = vmatpush1.bf16.msra.mxu0 0
        %4853 = vmatprep.mubr.bf16.mxu0 0
        %4854 = vmatmul.mubr.bf16.gmra.mrb[0].mxu0 %v4532
        %v4855 = vpop.f32.mrb[0].mxu0
        %v4856 = vadd.f32 0.0, %v4855
        %v4857 = vpop.f32.mrb[0].mxu0
        %v4858 = vadd.f32 0.0, %v4857
        %v4859 = vpop.f32.mrb[0].mxu0
        %v4860 = vpop.f32.mrb[0].mxu0
        %4861 = vdwg.mxu0
        %4862 = vmatprep.subr.bf16.mxu0 %v4728
        %4863 = vmatpush1.bf16.msra.mxu0 %v4727
        %4864 = vmatprep.subr.bf16.mxu0 %v4734
        %4865 = vmatpush1.bf16.msra.mxu0 %v4733
        %4866 = vmatprep.subr.bf16.mxu0 %v4740
        %4867 = vmatpush1.bf16.msra.mxu0 %v4739
        %4868 = vmatprep.subr.bf16.mxu0 %v4746
        %4869 = vmatpush1.bf16.msra.mxu0 %v4745
        %4870 = vmatprep.subr.bf16.mxu0 %v4752
        %4871 = vmatpush1.bf16.msra.mxu0 %v4751
        %4872 = vmatprep.subr.bf16.mxu0 %v4758
        %4873 = vmatpush1.bf16.msra.mxu0 %v4757
        %4874 = vmatprep.subr.bf16.mxu0 %v4764
        %4875 = vmatpush1.bf16.msra.mxu0 %v4763
        %4876 = vmatprep.subr.bf16.mxu0 %v4770
        %4877 = vmatpush1.bf16.msra.mxu0 %v4769
        %4878 = vmatprep.subr.bf16.mxu0 0
        %4879 = vmatpush1.bf16.msra.mxu0 0
        %4880 = vmatprep.subr.bf16.mxu0 0
        %4881 = vmatpush1.bf16.msra.mxu0 0
        %4882 = vmatprep.subr.bf16.mxu0 0
        %4883 = vmatpush1.bf16.msra.mxu0 0
        %4884 = vmatprep.subr.bf16.mxu0 0
        %4885 = vmatpush1.bf16.msra.mxu0 0
        %4886 = vmatprep.subr.bf16.mxu0 0
        %4887 = vmatpush1.bf16.msra.mxu0 0
        %4888 = vmatprep.subr.bf16.mxu0 0
        %4889 = vmatpush1.bf16.msra.mxu0 0
        %4890 = vmatprep.subr.bf16.mxu0 0
        %4891 = vmatpush1.bf16.msra.mxu0 0
        %4892 = vmatprep.subr.bf16.mxu0 0
        %4893 = vmatpush1.bf16.msra.mxu0 0
        %4894 = vmatprep.mubr.bf16.mxu0 0
        %4895 = vmatmul.mubr.bf16.gmra.mrb[0].mxu0 %v4532
        %v4896 = vpop.f32.mrb[0].mxu0
        %v4897 = vadd.f32 0.0, %v4896
        %v4898 = vpop.f32.mrb[0].mxu0
        %v4899 = vadd.f32 0.0, %v4898
        %v4900 = vpop.f32.mrb[0].mxu0
        %v4901 = vpop.f32.mrb[0].mxu0
        %4902 = vdwg.mxu0
        %4903 = vmatprep.subr.bf16.mxu0 %v4730
        %4904 = vmatpush1.bf16.msra.mxu0 %v4729
        %4905 = vmatprep.subr.bf16.mxu0 %v4736
        %4906 = vmatpush1.bf16.msra.mxu0 %v4735
        %4907 = vmatprep.subr.bf16.mxu0 %v4742
        %4908 = vmatpush1.bf16.msra.mxu0 %v4741
        %4909 = vmatprep.subr.bf16.mxu0 %v4748
        %4910 = vmatpush1.bf16.msra.mxu0 %v4747
        %4911 = vmatprep.subr.bf16.mxu0 %v4754
        %4912 = vmatpush1.bf16.msra.mxu0 %v4753
        %4913 = vmatprep.subr.bf16.mxu0 %v4760
        %4914 = vmatpush1.bf16.msra.mxu0 %v4759
        %4915 = vmatprep.subr.bf16.mxu0 %v4766
        %4916 = vmatpush1.bf16.msra.mxu0 %v4765
        %4917 = vmatprep.subr.bf16.mxu0 %v4772
        %4918 = vmatpush1.bf16.msra.mxu0 %v4771
        %4919 = vmatprep.subr.bf16.mxu0 0
        %4920 = vmatpush1.bf16.msra.mxu0 0
        %4921 = vmatprep.subr.bf16.mxu0 0
        %4922 = vmatpush1.bf16.msra.mxu0 0
        %4923 = vmatprep.subr.bf16.mxu0 0
        %4924 = vmatpush1.bf16.msra.mxu0 0
        %4925 = vmatprep.subr.bf16.mxu0 0
        %4926 = vmatpush1.bf16.msra.mxu0 0
        %4927 = vmatprep.subr.bf16.mxu0 0
        %4928 = vmatpush1.bf16.msra.mxu0 0
        %4929 = vmatprep.subr.bf16.mxu0 0
        %4930 = vmatpush1.bf16.msra.mxu0 0
        %4931 = vmatprep.subr.bf16.mxu0 0
        %4932 = vmatpush1.bf16.msra.mxu0 0
        %4933 = vmatprep.subr.bf16.mxu0 0
        %4934 = vmatpush1.bf16.msra.mxu0 0
        %4935 = vmatprep.mubr.bf16.mxu0 0
        %4936 = vmatmul.mubr.bf16.gmra.mrb[0].mxu0 %v4532
        %v4937 = vpop.f32.mrb[0].mxu0
        %v4938 = vadd.f32 0.0, %v4937
        %v4939 = vpop.f32.mrb[0].mxu0
        %v4940 = vadd.f32 0.0, %v4939
        %v4941 = vpop.f32.mrb[0].mxu0
        %v4942 = vpop.f32.mrb[0].mxu0
        %4943 = vdwg.mxu0
        %v4944 = vpack.c.bf16 %v4856, %v4856
        %v4945 = vpack.c.bf16 %v4858, %v4858
        %v4946 = vld [vmem:[%s69] sm:$0xf]
        %v4947 = vpack.c.bf16 %v4897, %v4897
        %v4948 = vpack.c.bf16 %v4899, %v4899
        %s4949 = scalar_lea.vmem %s69, 4
        %v4950 = vld [vmem:[%s4949] sm:$0xf]
        %v4952 = vsel %vm1716, %v4950, 0
        %v4955 = vsel %vm1720, %v4947, 0
        %v4958 = vsel %vm1720, %v4948, 0
        %4960 = vmatprep.subr.bf16.mxu0 %v4958
        %4961 = vmatpush1.bf16.msra.mxu0 %v4955
        %4962 = vmatprep.subr.bf16.mxu0 0
        %4963 = vmatpush1.bf16.msra.mxu0 0
        %4964 = vmatprep.subr.bf16.mxu0 0
        %4965 = vmatpush1.bf16.msra.mxu0 0
        %4966 = vmatprep.subr.bf16.mxu0 0
        %4967 = vmatpush1.bf16.msra.mxu0 0
        %4968 = vmatprep.subr.bf16.mxu0 0
        %4969 = vmatpush1.bf16.msra.mxu0 0
        %4970 = vmatprep.subr.bf16.mxu0 0
        %4971 = vmatpush1.bf16.msra.mxu0 0
        %4972 = vmatprep.subr.bf16.mxu0 0
        %4973 = vmatpush1.bf16.msra.mxu0 0
        %4974 = vmatprep.subr.bf16.mxu0 0
        %4975 = vmatpush1.bf16.msra.mxu0 0
        %4976 = vmatprep.subr.bf16.mxu0 0
        %4977 = vmatpush1.bf16.msra.mxu0 0
        %4978 = vmatprep.subr.bf16.mxu0 0
        %4979 = vmatpush1.bf16.msra.mxu0 0
        %4980 = vmatprep.subr.bf16.mxu0 0
        %4981 = vmatpush1.bf16.msra.mxu0 0
        %4982 = vmatprep.subr.bf16.mxu0 0
        %4983 = vmatpush1.bf16.msra.mxu0 0
        %4984 = vmatprep.subr.bf16.mxu0 0
        %4985 = vmatpush1.bf16.msra.mxu0 0
        %4986 = vmatprep.subr.bf16.mxu0 0
        %4987 = vmatpush1.bf16.msra.mxu0 0
        %4988 = vmatprep.subr.bf16.mxu0 0
        %4989 = vmatpush1.bf16.msra.mxu0 0
        %4990 = vmatprep.subr.bf16.mxu0 0
        %4991 = vmatpush1.bf16.msra.mxu0 0
        %4992 = vmatprep.mubr.bf16.mxu0 0
        %4993 = vmatmul.mubr.bf16.gmra.mrb[0].mxu0 %v4952
        %v4994 = vpop.f32.mrb[0].mxu0
        %v4995 = vadd.f32 0.0, %v4994
        %v4996 = vpop.f32.mrb[0].mxu0
        %v4997 = vadd.f32 0.0, %v4996
        %v4998 = vpop.f32.mrb[0].mxu0
        %v4999 = vpop.f32.mrb[0].mxu0
        %5000 = vdwg.mxu0
        %v5002 = vsel %vm1716, %v4946, 0
        %v5005 = vsel %vm1720, %v4944, 0
        %v5008 = vsel %vm1720, %v4945, 0
        %5010 = vmatprep.subr.bf16.mxu0 %v5008
        %5011 = vmatpush1.bf16.msra.mxu0 %v5005
        %5012 = vmatprep.subr.bf16.mxu0 0
        %5013 = vmatpush1.bf16.msra.mxu0 0
        %5014 = vmatprep.subr.bf16.mxu0 0
        %5015 = vmatpush1.bf16.msra.mxu0 0
        %5016 = vmatprep.subr.bf16.mxu0 0
        %5017 = vmatpush1.bf16.msra.mxu0 0
        %5018 = vmatprep.subr.bf16.mxu0 0
        %5019 = vmatpush1.bf16.msra.mxu0 0
        %5020 = vmatprep.subr.bf16.mxu0 0
        %5021 = vmatpush1.bf16.msra.mxu0 0
        %5022 = vmatprep.subr.bf16.mxu0 0
        %5023 = vmatpush1.bf16.msra.mxu0 0
        %5024 = vmatprep.subr.bf16.mxu0 0
        %5025 = vmatpush1.bf16.msra.mxu0 0
        %5026 = vmatprep.subr.bf16.mxu0 0
        %5027 = vmatpush1.bf16.msra.mxu0 0
        %5028 = vmatprep.subr.bf16.mxu0 0
        %5029 = vmatpush1.bf16.msra.mxu0 0
        %5030 = vmatprep.subr.bf16.mxu0 0
        %5031 = vmatpush1.bf16.msra.mxu0 0
        %5032 = vmatprep.subr.bf16.mxu0 0
        %5033 = vmatpush1.bf16.msra.mxu0 0
        %5034 = vmatprep.subr.bf16.mxu0 0
        %5035 = vmatpush1.bf16.msra.mxu0 0
        %5036 = vmatprep.subr.bf16.mxu0 0
        %5037 = vmatpush1.bf16.msra.mxu0 0
        %5038 = vmatprep.subr.bf16.mxu0 0
        %5039 = vmatpush1.bf16.msra.mxu0 0
        %5040 = vmatprep.subr.bf16.mxu0 0
        %5041 = vmatpush1.bf16.msra.mxu0 0
        %5042 = vmatprep.mubr.bf16.mxu0 0
        %5043 = vmatmul.mubr.bf16.gmra.mrb[0].mxu0 %v5002
        %v5044 = vpop.f32.mrb[0].mxu0
        %v5045 = vadd.f32 %v4995, %v5044
        %v5046 = vpop.f32.mrb[0].mxu0
        %v5047 = vadd.f32 %v4997, %v5046
        %v5048 = vpop.f32.mrb[0].mxu0
        %v5049 = vpop.f32.mrb[0].mxu0
        %5050 = vdwg.mxu0
        %v5051 = vpack.c.bf16 %v4938, %v4938
        %v5052 = vpack.c.bf16 %v4940, %v4940
        %s5053 = scalar_lea.vmem %s69, 8
        %v5054 = vld [vmem:[%s5053] sm:$0xf]
        %v5056 = vsel %vm1716, %v5054, 0
        %v5059 = vsel %vm1720, %v5051, 0
        %v5062 = vsel %vm1720, %v5052, 0
        %5064 = vmatprep.subr.bf16.mxu0 %v5062
        %5065 = vmatpush1.bf16.msra.mxu0 %v5059
        %5066 = vmatprep.subr.bf16.mxu0 0
        %5067 = vmatpush1.bf16.msra.mxu0 0
        %5068 = vmatprep.subr.bf16.mxu0 0
        %5069 = vmatpush1.bf16.msra.mxu0 0
        %5070 = vmatprep.subr.bf16.mxu0 0
        %5071 = vmatpush1.bf16.msra.mxu0 0
        %5072 = vmatprep.subr.bf16.mxu0 0
        %5073 = vmatpush1.bf16.msra.mxu0 0
        %5074 = vmatprep.subr.bf16.mxu0 0
        %5075 = vmatpush1.bf16.msra.mxu0 0
        %5076 = vmatprep.subr.bf16.mxu0 0
        %5077 = vmatpush1.bf16.msra.mxu0 0
        %5078 = vmatprep.subr.bf16.mxu0 0
        %5079 = vmatpush1.bf16.msra.mxu0 0
        %5080 = vmatprep.subr.bf16.mxu0 0
        %5081 = vmatpush1.bf16.msra.mxu0 0
        %5082 = vmatprep.subr.bf16.mxu0 0
        %5083 = vmatpush1.bf16.msra.mxu0 0
        %5084 = vmatprep.subr.bf16.mxu0 0
        %5085 = vmatpush1.bf16.msra.mxu0 0
        %5086 = vmatprep.subr.bf16.mxu0 0
        %5087 = vmatpush1.bf16.msra.mxu0 0
        %5088 = vmatprep.subr.bf16.mxu0 0
        %5089 = vmatpush1.bf16.msra.mxu0 0
        %5090 = vmatprep.subr.bf16.mxu0 0
        %5091 = vmatpush1.bf16.msra.mxu0 0
        %5092 = vmatprep.subr.bf16.mxu0 0
        %5093 = vmatpush1.bf16.msra.mxu0 0
        %5094 = vmatprep.subr.bf16.mxu0 0
        %5095 = vmatpush1.bf16.msra.mxu0 0
        %5096 = vmatprep.mubr.bf16.mxu0 0
        %5097 = vmatmul.mubr.bf16.gmra.mrb[0].mxu0 %v5056
        %v5098 = vpop.f32.mrb[0].mxu0
        %v5099 = vadd.f32 0.0, %v5098
        %v5100 = vpop.f32.mrb[0].mxu0
        %v5101 = vadd.f32 0.0, %v5100
        %v5102 = vpop.f32.mrb[0].mxu0
        %v5103 = vpop.f32.mrb[0].mxu0
        %5104 = vdwg.mxu0
        %v5105 = vadd.f32 %v5045, %v5099
        %v5106 = vadd.f32 %v5047, %v5101
        %5107 = vmatprep.subr.bf16.mxu0 %v4726
        %5108 = vmatpush1.bf16.msra.mxu0 %v4725
        %5109 = vmatprep.subr.bf16.mxu0 %v4732
        %5110 = vmatpush1.bf16.msra.mxu0 %v4731
        %5111 = vmatprep.subr.bf16.mxu0 %v4738
        %5112 = vmatpush1.bf16.msra.mxu0 %v4737
        %5113 = vmatprep.subr.bf16.mxu0 %v4744
        %5114 = vmatpush1.bf16.msra.mxu0 %v4743
        %5115 = vmatprep.subr.bf16.mxu0 %v4750
        %5116 = vmatpush1.bf16.msra.mxu0 %v4749
        %5117 = vmatprep.subr.bf16.mxu0 %v4756
        %5118 = vmatpush1.bf16.msra.mxu0 %v4755
        %5119 = vmatprep.subr.bf16.mxu0 %v4762
        %5120 = vmatpush1.bf16.msra.mxu0 %v4761
        %5121 = vmatprep.subr.bf16.mxu0 %v4768
        %5122 = vmatpush1.bf16.msra.mxu0 %v4767
        %5123 = vmatprep.subr.bf16.mxu0 0
        %5124 = vmatpush1.bf16.msra.mxu0 0
        %5125 = vmatprep.subr.bf16.mxu0 0
        %5126 = vmatpush1.bf16.msra.mxu0 0
        %5127 = vmatprep.subr.bf16.mxu0 0
        %5128 = vmatpush1.bf16.msra.mxu0 0
        %5129 = vmatprep.subr.bf16.mxu0 0
        %5130 = vmatpush1.bf16.msra.mxu0 0
        %5131 = vmatprep.subr.bf16.mxu0 0
        %5132 = vmatpush1.bf16.msra.mxu0 0
        %5133 = vmatprep.subr.bf16.mxu0 0
        %5134 = vmatpush1.bf16.msra.mxu0 0
        %5135 = vmatprep.subr.bf16.mxu0 0
        %5136 = vmatpush1.bf16.msra.mxu0 0
        %5137 = vmatprep.subr.bf16.mxu0 0
        %5138 = vmatpush1.bf16.msra.mxu0 0
        %5139 = vmatprep.mubr.bf16.mxu0 0
        %5140 = vmatmul.mubr.bf16.gmra.mrb[0].mxu0 %v1868
        %v5141 = vpop.f32.mrb[0].mxu0
        %v5142 = vadd.f32 0.0, %v5141
        %v5143 = vpop.f32.mrb[0].mxu0
        %v5144 = vadd.f32 0.0, %v5143
        %v5145 = vpop.f32.mrb[0].mxu0
        %v5146 = vpop.f32.mrb[0].mxu0
        %5147 = vdwg.mxu0
        %5148 = vmatprep.subr.bf16.mxu0 %v4728
        %5149 = vmatpush1.bf16.msra.mxu0 %v4727
        %5150 = vmatprep.subr.bf16.mxu0 %v4734
        %5151 = vmatpush1.bf16.msra.mxu0 %v4733
        %5152 = vmatprep.subr.bf16.mxu0 %v4740
        %5153 = vmatpush1.bf16.msra.mxu0 %v4739
        %5154 = vmatprep.subr.bf16.mxu0 %v4746
        %5155 = vmatpush1.bf16.msra.mxu0 %v4745
        %5156 = vmatprep.subr.bf16.mxu0 %v4752
        %5157 = vmatpush1.bf16.msra.mxu0 %v4751
        %5158 = vmatprep.subr.bf16.mxu0 %v4758
        %5159 = vmatpush1.bf16.msra.mxu0 %v4757
        %5160 = vmatprep.subr.bf16.mxu0 %v4764
        %5161 = vmatpush1.bf16.msra.mxu0 %v4763
        %5162 = vmatprep.subr.bf16.mxu0 %v4770
        %5163 = vmatpush1.bf16.msra.mxu0 %v4769
        %5164 = vmatprep.subr.bf16.mxu0 0
        %5165 = vmatpush1.bf16.msra.mxu0 0
        %5166 = vmatprep.subr.bf16.mxu0 0
        %5167 = vmatpush1.bf16.msra.mxu0 0
        %5168 = vmatprep.subr.bf16.mxu0 0
        %5169 = vmatpush1.bf16.msra.mxu0 0
        %5170 = vmatprep.subr.bf16.mxu0 0
        %5171 = vmatpush1.bf16.msra.mxu0 0
        %5172 = vmatprep.subr.bf16.mxu0 0
        %5173 = vmatpush1.bf16.msra.mxu0 0
        %5174 = vmatprep.subr.bf16.mxu0 0
        %5175 = vmatpush1.bf16.msra.mxu0 0
        %5176 = vmatprep.subr.bf16.mxu0 0
        %5177 = vmatpush1.bf16.msra.mxu0 0
        %5178 = vmatprep.subr.bf16.mxu0 0
        %5179 = vmatpush1.bf16.msra.mxu0 0
        %5180 = vmatprep.mubr.bf16.mxu0 0
        %5181 = vmatmul.mubr.bf16.gmra.mrb[0].mxu0 %v1868
        %v5182 = vpop.f32.mrb[0].mxu0
        %v5183 = vadd.f32 0.0, %v5182
        %v5184 = vpop.f32.mrb[0].mxu0
        %v5185 = vadd.f32 0.0, %v5184
        %v5186 = vpop.f32.mrb[0].mxu0
        %v5187 = vpop.f32.mrb[0].mxu0
        %5188 = vdwg.mxu0
        %5189 = vmatprep.subr.bf16.mxu0 %v4730
        %5190 = vmatpush1.bf16.msra.mxu0 %v4729
        %5191 = vmatprep.subr.bf16.mxu0 %v4736
        %5192 = vmatpush1.bf16.msra.mxu0 %v4735
        %5193 = vmatprep.subr.bf16.mxu0 %v4742
        %5194 = vmatpush1.bf16.msra.mxu0 %v4741
        %5195 = vmatprep.subr.bf16.mxu0 %v4748
        %5196 = vmatpush1.bf16.msra.mxu0 %v4747
        %5197 = vmatprep.subr.bf16.mxu0 %v4754
        %5198 = vmatpush1.bf16.msra.mxu0 %v4753
        %5199 = vmatprep.subr.bf16.mxu0 %v4760
        %5200 = vmatpush1.bf16.msra.mxu0 %v4759
        %5201 = vmatprep.subr.bf16.mxu0 %v4766
        %5202 = vmatpush1.bf16.msra.mxu0 %v4765
        %5203 = vmatprep.subr.bf16.mxu0 %v4772
        %5204 = vmatpush1.bf16.msra.mxu0 %v4771
        %5205 = vmatprep.subr.bf16.mxu0 0
        %5206 = vmatpush1.bf16.msra.mxu0 0
        %5207 = vmatprep.subr.bf16.mxu0 0
        %5208 = vmatpush1.bf16.msra.mxu0 0
        %5209 = vmatprep.subr.bf16.mxu0 0
        %5210 = vmatpush1.bf16.msra.mxu0 0
        %5211 = vmatprep.subr.bf16.mxu0 0
        %5212 = vmatpush1.bf16.msra.mxu0 0
        %5213 = vmatprep.subr.bf16.mxu0 0
        %5214 = vmatpush1.bf16.msra.mxu0 0
        %5215 = vmatprep.subr.bf16.mxu0 0
        %5216 = vmatpush1.bf16.msra.mxu0 0
        %5217 = vmatprep.subr.bf16.mxu0 0
        %5218 = vmatpush1.bf16.msra.mxu0 0
        %5219 = vmatprep.subr.bf16.mxu0 0
        %5220 = vmatpush1.bf16.msra.mxu0 0
        %5221 = vmatprep.mubr.bf16.mxu0 0
        %5222 = vmatmul.mubr.bf16.gmra.mrb[0].mxu0 %v1868
        %v5223 = vpop.f32.mrb[0].mxu0
        %v5224 = vadd.f32 0.0, %v5223
        %v5225 = vpop.f32.mrb[0].mxu0
        %v5226 = vadd.f32 0.0, %v5225
        %v5227 = vpop.f32.mrb[0].mxu0
        %v5228 = vpop.f32.mrb[0].mxu0
        %5229 = vdwg.mxu0
        %v5230 = vpack.c.bf16 %v5142, %v5142
        %v5231 = vpack.c.bf16 %v5144, %v5144
        %v5232 = vld [vmem:[%s71] sm:$0xf]
        %v5233 = vpack.c.bf16 %v5183, %v5183
        %v5234 = vpack.c.bf16 %v5185, %v5185
        %s5235 = scalar_lea.vmem %s71, 4
        %v5236 = vld [vmem:[%s5235] sm:$0xf]
        %v5238 = vsel %vm1716, %v5236, 0
        %v5241 = vsel %vm1720, %v5233, 0
        %v5244 = vsel %vm1720, %v5234, 0
        %5246 = vmatprep.subr.bf16.mxu0 %v5244
        %5247 = vmatpush1.bf16.msra.mxu0 %v5241
        %5248 = vmatprep.subr.bf16.mxu0 0
        %5249 = vmatpush1.bf16.msra.mxu0 0
        %5250 = vmatprep.subr.bf16.mxu0 0
        %5251 = vmatpush1.bf16.msra.mxu0 0
        %5252 = vmatprep.subr.bf16.mxu0 0
        %5253 = vmatpush1.bf16.msra.mxu0 0
        %5254 = vmatprep.subr.bf16.mxu0 0
        %5255 = vmatpush1.bf16.msra.mxu0 0
        %5256 = vmatprep.subr.bf16.mxu0 0
        %5257 = vmatpush1.bf16.msra.mxu0 0
        %5258 = vmatprep.subr.bf16.mxu0 0
        %5259 = vmatpush1.bf16.msra.mxu0 0
        %5260 = vmatprep.subr.bf16.mxu0 0
        %5261 = vmatpush1.bf16.msra.mxu0 0
        %5262 = vmatprep.subr.bf16.mxu0 0
        %5263 = vmatpush1.bf16.msra.mxu0 0
        %5264 = vmatprep.subr.bf16.mxu0 0
        %5265 = vmatpush1.bf16.msra.mxu0 0
        %5266 = vmatprep.subr.bf16.mxu0 0
        %5267 = vmatpush1.bf16.msra.mxu0 0
        %5268 = vmatprep.subr.bf16.mxu0 0
        %5269 = vmatpush1.bf16.msra.mxu0 0
        %5270 = vmatprep.subr.bf16.mxu0 0
        %5271 = vmatpush1.bf16.msra.mxu0 0
        %5272 = vmatprep.subr.bf16.mxu0 0
        %5273 = vmatpush1.bf16.msra.mxu0 0
        %5274 = vmatprep.subr.bf16.mxu0 0
        %5275 = vmatpush1.bf16.msra.mxu0 0
        %5276 = vmatprep.subr.bf16.mxu0 0
        %5277 = vmatpush1.bf16.msra.mxu0 0
        %5278 = vmatprep.mubr.bf16.mxu0 0
        %5279 = vmatmul.mubr.bf16.gmra.mrb[0].mxu0 %v5238
        %v5280 = vpop.f32.mrb[0].mxu0
        %v5281 = vadd.f32 0.0, %v5280
        %v5282 = vpop.f32.mrb[0].mxu0
        %v5283 = vadd.f32 0.0, %v5282
        %v5284 = vpop.f32.mrb[0].mxu0
        %v5285 = vpop.f32.mrb[0].mxu0
        %5286 = vdwg.mxu0
        %v5288 = vsel %vm1716, %v5232, 0
        %v5291 = vsel %vm1720, %v5230, 0
        %v5294 = vsel %vm1720, %v5231, 0
        %5296 = vmatprep.subr.bf16.mxu0 %v5294
        %5297 = vmatpush1.bf16.msra.mxu0 %v5291
        %5298 = vmatprep.subr.bf16.mxu0 0
        %5299 = vmatpush1.bf16.msra.mxu0 0
        %5300 = vmatprep.subr.bf16.mxu0 0
        %5301 = vmatpush1.bf16.msra.mxu0 0
        %5302 = vmatprep.subr.bf16.mxu0 0
        %5303 = vmatpush1.bf16.msra.mxu0 0
        %5304 = vmatprep.subr.bf16.mxu0 0
        %5305 = vmatpush1.bf16.msra.mxu0 0
        %5306 = vmatprep.subr.bf16.mxu0 0
        %5307 = vmatpush1.bf16.msra.mxu0 0
        %5308 = vmatprep.subr.bf16.mxu0 0
        %5309 = vmatpush1.bf16.msra.mxu0 0
        %5310 = vmatprep.subr.bf16.mxu0 0
        %5311 = vmatpush1.bf16.msra.mxu0 0
        %5312 = vmatprep.subr.bf16.mxu0 0
        %5313 = vmatpush1.bf16.msra.mxu0 0
        %5314 = vmatprep.subr.bf16.mxu0 0
        %5315 = vmatpush1.bf16.msra.mxu0 0
        %5316 = vmatprep.subr.bf16.mxu0 0
        %5317 = vmatpush1.bf16.msra.mxu0 0
        %5318 = vmatprep.subr.bf16.mxu0 0
        %5319 = vmatpush1.bf16.msra.mxu0 0
        %5320 = vmatprep.subr.bf16.mxu0 0
        %5321 = vmatpush1.bf16.msra.mxu0 0
        %5322 = vmatprep.subr.bf16.mxu0 0
        %5323 = vmatpush1.bf16.msra.mxu0 0
        %5324 = vmatprep.subr.bf16.mxu0 0
        %5325 = vmatpush1.bf16.msra.mxu0 0
        %5326 = vmatprep.subr.bf16.mxu0 0
        %5327 = vmatpush1.bf16.msra.mxu0 0
        %5328 = vmatprep.mubr.bf16.mxu0 0
        %5329 = vmatmul.mubr.bf16.gmra.mrb[0].mxu0 %v5288
        %v5330 = vpop.f32.mrb[0].mxu0
        %v5331 = vadd.f32 %v5281, %v5330
        %v5332 = vpop.f32.mrb[0].mxu0
        %v5333 = vadd.f32 %v5283, %v5332
        %v5334 = vpop.f32.mrb[0].mxu0
        %v5335 = vpop.f32.mrb[0].mxu0
        %5336 = vdwg.mxu0
        %v5337 = vpack.c.bf16 %v5224, %v5224
        %v5338 = vpack.c.bf16 %v5226, %v5226
        %s5339 = scalar_lea.vmem %s71, 8
        %v5340 = vld [vmem:[%s5339] sm:$0xf]
        %v5342 = vsel %vm1716, %v5340, 0
        %v5345 = vsel %vm1720, %v5337, 0
        %v5348 = vsel %vm1720, %v5338, 0
        %5350 = vmatprep.subr.bf16.mxu0 %v5348
        %5351 = vmatpush1.bf16.msra.mxu0 %v5345
        %5352 = vmatprep.subr.bf16.mxu0 0
        %5353 = vmatpush1.bf16.msra.mxu0 0
        %5354 = vmatprep.subr.bf16.mxu0 0
        %5355 = vmatpush1.bf16.msra.mxu0 0
        %5356 = vmatprep.subr.bf16.mxu0 0
        %5357 = vmatpush1.bf16.msra.mxu0 0
        %5358 = vmatprep.subr.bf16.mxu0 0
        %5359 = vmatpush1.bf16.msra.mxu0 0
        %5360 = vmatprep.subr.bf16.mxu0 0
        %5361 = vmatpush1.bf16.msra.mxu0 0
        %5362 = vmatprep.subr.bf16.mxu0 0
        %5363 = vmatpush1.bf16.msra.mxu0 0
        %5364 = vmatprep.subr.bf16.mxu0 0
        %5365 = vmatpush1.bf16.msra.mxu0 0
        %5366 = vmatprep.subr.bf16.mxu0 0
        %5367 = vmatpush1.bf16.msra.mxu0 0
        %5368 = vmatprep.subr.bf16.mxu0 0
        %5369 = vmatpush1.bf16.msra.mxu0 0
        %5370 = vmatprep.subr.bf16.mxu0 0
        %5371 = vmatpush1.bf16.msra.mxu0 0
        %5372 = vmatprep.subr.bf16.mxu0 0
        %5373 = vmatpush1.bf16.msra.mxu0 0
        %5374 = vmatprep.subr.bf16.mxu0 0
        %5375 = vmatpush1.bf16.msra.mxu0 0
        %5376 = vmatprep.subr.bf16.mxu0 0
        %5377 = vmatpush1.bf16.msra.mxu0 0
        %5378 = vmatprep.subr.bf16.mxu0 0
        %5379 = vmatpush1.bf16.msra.mxu0 0
        %5380 = vmatprep.subr.bf16.mxu0 0
        %5381 = vmatpush1.bf16.msra.mxu0 0
        %5382 = vmatprep.mubr.bf16.mxu0 0
        %5383 = vmatmul.mubr.bf16.gmra.mrb[0].mxu0 %v5342
        %v5384 = vpop.f32.mrb[0].mxu0
        %v5385 = vadd.f32 0.0, %v5384
        %v5386 = vpop.f32.mrb[0].mxu0
        %v5387 = vadd.f32 0.0, %v5386
        %v5388 = vpop.f32.mrb[0].mxu0
        %v5389 = vpop.f32.mrb[0].mxu0
        %5390 = vdwg.mxu0
        %v5391 = vadd.f32 %v5331, %v5385
        %v5392 = vadd.f32 %v5333, %v5387
        %v5393 = vadd.f32 %v5105, %v5391
        %v5394 = vadd.f32 %v5106, %v5392
        %v5395 = vld [vmem:[%s73] sm:$0xff]
        %5397 = vset.pattern.permute.xlu0 0
        %5398 = vperm.xlu0 %5397, %v5395
        %v5399 = vpop.permute.xlu0 %5398
        %v5401 = vadd.f32 %v5393, %v5399
        %v5402 = vadd.f32 %v5394, %v5399
        %v5403 = vmax.f32 %v5401, 0.0
        %v5404 = vmax.f32 %v5402, 0.0
        %v5405 = vld [vmem:[%s75] sm:$0x1]
        %v5406 = vpack.c.bf16 %v5403, %v5403
        %v5407 = vpack.c.bf16 %v5404, %v5404
        %v5408 = vld [vmem:[%s77] sm:$0x1]
        %v5410 = vsel %vm1716, %v5408, 0
        %v5413 = vsel %vm1720, %v1308, 0
        %v5416 = vsel %vm1720, %v1309, 0
        %5418 = vmatprep.subr.bf16.mxu0 %v5416
        %5419 = vmatpush1.bf16.msra.mxu0 %v5413
        %5420 = vmatprep.subr.bf16.mxu0 0
        %5421 = vmatpush1.bf16.msra.mxu0 0
        %5422 = vmatprep.subr.bf16.mxu0 0
        %5423 = vmatpush1.bf16.msra.mxu0 0
        %5424 = vmatprep.subr.bf16.mxu0 0
        %5425 = vmatpush1.bf16.msra.mxu0 0
        %5426 = vmatprep.subr.bf16.mxu0 0
        %5427 = vmatpush1.bf16.msra.mxu0 0
        %5428 = vmatprep.subr.bf16.mxu0 0
        %5429 = vmatpush1.bf16.msra.mxu0 0
        %5430 = vmatprep.subr.bf16.mxu0 0
        %5431 = vmatpush1.bf16.msra.mxu0 0
        %5432 = vmatprep.subr.bf16.mxu0 0
        %5433 = vmatpush1.bf16.msra.mxu0 0
        %5434 = vmatprep.subr.bf16.mxu0 0
        %5435 = vmatpush1.bf16.msra.mxu0 0
        %5436 = vmatprep.subr.bf16.mxu0 0
        %5437 = vmatpush1.bf16.msra.mxu0 0
        %5438 = vmatprep.subr.bf16.mxu0 0
        %5439 = vmatpush1.bf16.msra.mxu0 0
        %5440 = vmatprep.subr.bf16.mxu0 0
        %5441 = vmatpush1.bf16.msra.mxu0 0
        %5442 = vmatprep.subr.bf16.mxu0 0
        %5443 = vmatpush1.bf16.msra.mxu0 0
        %5444 = vmatprep.subr.bf16.mxu0 0
        %5445 = vmatpush1.bf16.msra.mxu0 0
        %5446 = vmatprep.subr.bf16.mxu0 0
        %5447 = vmatpush1.bf16.msra.mxu0 0
        %5448 = vmatprep.subr.bf16.mxu0 0
        %5449 = vmatpush1.bf16.msra.mxu0 0
        %5450 = vmatprep.mubr.bf16.mxu0 0
        %5451 = vmatmul.mubr.bf16.gmra.mrb[0].mxu0 %v5410
        %v5452 = vpop.f32.mrb[0].mxu0
        %v5453 = vadd.f32 0.0, %v5452
        %v5454 = vpop.f32.mrb[0].mxu0
        %v5455 = vadd.f32 0.0, %v5454
        %v5456 = vpop.f32.mrb[0].mxu0
        %v5457 = vpop.f32.mrb[0].mxu0
        %5458 = vdwg.mxu0
        %v5460 = vsel %vm1716, %v5405, 0
        %v5463 = vsel %vm1720, %v5406, 0
        %v5466 = vsel %vm1720, %v5407, 0
        %5468 = vmatprep.subr.bf16.mxu0 %v5466
        %5469 = vmatpush1.bf16.msra.mxu0 %v5463
        %5470 = vmatprep.subr.bf16.mxu0 0
        %5471 = vmatpush1.bf16.msra.mxu0 0
        %5472 = vmatprep.subr.bf16.mxu0 0
        %5473 = vmatpush1.bf16.msra.mxu0 0
        %5474 = vmatprep.subr.bf16.mxu0 0
        %5475 = vmatpush1.bf16.msra.mxu0 0
        %5476 = vmatprep.subr.bf16.mxu0 0
        %5477 = vmatpush1.bf16.msra.mxu0 0
        %5478 = vmatprep.subr.bf16.mxu0 0
        %5479 = vmatpush1.bf16.msra.mxu0 0
        %5480 = vmatprep.subr.bf16.mxu0 0
        %5481 = vmatpush1.bf16.msra.mxu0 0
        %5482 = vmatprep.subr.bf16.mxu0 0
        %5483 = vmatpush1.bf16.msra.mxu0 0
        %5484 = vmatprep.subr.bf16.mxu0 0
        %5485 = vmatpush1.bf16.msra.mxu0 0
        %5486 = vmatprep.subr.bf16.mxu0 0
        %5487 = vmatpush1.bf16.msra.mxu0 0
        %5488 = vmatprep.subr.bf16.mxu0 0
        %5489 = vmatpush1.bf16.msra.mxu0 0
        %5490 = vmatprep.subr.bf16.mxu0 0
        %5491 = vmatpush1.bf16.msra.mxu0 0
        %5492 = vmatprep.subr.bf16.mxu0 0
        %5493 = vmatpush1.bf16.msra.mxu0 0
        %5494 = vmatprep.subr.bf16.mxu0 0
        %5495 = vmatpush1.bf16.msra.mxu0 0
        %5496 = vmatprep.subr.bf16.mxu0 0
        %5497 = vmatpush1.bf16.msra.mxu0 0
        %5498 = vmatprep.subr.bf16.mxu0 0
        %5499 = vmatpush1.bf16.msra.mxu0 0
        %5500 = vmatprep.mubr.bf16.mxu0 0
        %5501 = vmatmul.mubr.bf16.gmra.mrb[0].mxu0 %v5460
        %v5502 = vpop.f32.mrb[0].mxu0
        %v5503 = vadd.f32 %v5453, %v5502
        %v5504 = vpop.f32.mrb[0].mxu0
        %v5505 = vadd.f32 %v5455, %v5504
        %v5506 = vpop.f32.mrb[0].mxu0
        %v5507 = vpop.f32.mrb[0].mxu0
        %5508 = vdwg.mxu0
        %v5509 = vld [vmem:[#allocation3] sm:$0x1]
        %5511 = vset.pattern.permute.xlu0 0
        %5512 = vperm.xlu0 %5511, %v5509
        %v5513 = vpop.permute.xlu0 %5512
        %v5515 = vlaneseq
        %v5516 = vshrl.u32 %v5515, 7
        %v5517 = vsub.s32 0, %v5516
        %v5518 = vrot.slane %v5513, %v5517
        %v5519 = vadd.f32 %v5503, %v5518
        %v5520 = vadd.f32 %v5505, %v5518
        %v5521 = vtanh.pop %v5519
        %v5522 = vtanh.pop %v5520
        %v5525 = vcombine.low %v5521, %v5522
        %v5527 = vunpack.c.l.s4 1966171168
        %v5528 = vunpack.c.0.s8 %v5527
        %v5529 = vlaneseq
        %v5530 = vshrl.u32 %v5529, 7
        %v5531 = vsub.s32 %v5528, %v5530
        %v5532 = vrot.slane %v5525, %v5531
        %v5534 = vunpack.c.l.s4 1966171168
        %v5535 = vunpack.c.0.s8 %v5534
        %v5536 = vlaneseq
        %v5537 = vshrl.u32 %v5536, 7
        %v5538 = vsub.s32 %v5535, %v5537
        %v5539 = vrot.slane %v5532, %v5538
        %v5541 = vlaneseq
        %vm5542 = vcmp.ge.s32.totalorder %v5541, 0
        %vm5543 = vcmp.lt.s32.totalorder %v5541, 256
        %vm5544 = vmand %vm5542, %vm5543
        %5545 = vst.msk [vmem:[%s1260] sm:$0x3] %vm5544, %v5539
        %vm5546 = vcmask 516096
        %5547 = vst.msk [vmem:[#allocation2] sm:$0x1] %vm5546, %v5521
        %5548 = vrot.lane.b32.xlu0 %v5521, 112
        %v5549 = vpop.permute.xlu0 %5548
        %5551 = vst.msk [vmem:[#allocation2 + $0x1] sm:$0x1] %vm5546, %v5549
        %5552 = vrot.lane.b32.xlu0 %v5521, 96
        %v5553 = vpop.permute.xlu0 %5552
        %5555 = vst.msk [vmem:[#allocation2 + $0x2] sm:$0x1] %vm5546, %v5553
        %5556 = vrot.lane.b32.xlu0 %v5521, 80
        %v5557 = vpop.permute.xlu0 %5556
        %5559 = vst.msk [vmem:[#allocation2 + $0x3] sm:$0x1] %vm5546, %v5557
        %5560 = vrot.lane.b32.xlu0 %v5521, 64
        %v5561 = vpop.permute.xlu0 %5560
        %5563 = vst.msk [vmem:[#allocation2 + $0x4] sm:$0x1] %vm5546, %v5561
        %5564 = vrot.lane.b32.xlu0 %v5521, 48
        %v5565 = vpop.permute.xlu0 %5564
        %5566 = vrot.lane.b32.xlu0 %v5522, 48
        %v5567 = vpop.permute.xlu0 %5566
        %vm5568 = vcmask 392192
        %v5569 = vsel %vm5568, %v5565, %v5567
        %5571 = vst.msk [vmem:[#allocation2 + $0x5] sm:$0x1] %vm5546, %v5569
        %5572 = vrot.lane.b32.xlu0 %v5521, 32
        %v5573 = vpop.permute.xlu0 %5572
        %5574 = vrot.lane.b32.xlu0 %v5522, 32
        %v5575 = vpop.permute.xlu0 %5574
        %v5576 = vsel %vm2445, %v5573, %v5575
        %5578 = vst.msk [vmem:[#allocation2 + $0x6] sm:$0x1] %vm5546, %v5576
        %5579 = vrot.lane.b32.xlu0 %v5521, 16
        %v5580 = vpop.permute.xlu0 %5579
        %5581 = vrot.lane.b32.xlu0 %v5522, 16
        %v5582 = vpop.permute.xlu0 %5581
        %v5583 = vsel %vm2505, %v5580, %v5582
        %5585 = vst.msk [vmem:[#allocation2 + $0x7] sm:$0x1] %vm5546, %v5583
        %5586 = vst.msk [vmem:[#allocation2 + $0x8] sm:$0x1] %vm5546, %v5522
        %5587 = vrot.lane.b32.xlu0 %v5522, 112
        %v5588 = vpop.permute.xlu0 %5587
        %5590 = vst.msk [vmem:[#allocation2 + $0x9] sm:$0x1] %vm5546, %v5588
        %5591 = vrot.lane.b32.xlu0 %v5522, 96
        %v5592 = vpop.permute.xlu0 %5591
        %5594 = vst.msk [vmem:[#allocation2 + $0xa] sm:$0x1] %vm5546, %v5592
        %5595 = vrot.lane.b32.xlu0 %v5522, 80
        %v5596 = vpop.permute.xlu0 %5595
        %5598 = vst.msk [vmem:[#allocation2 + $0xb] sm:$0x1] %vm5546, %v5596
        %5599 = vrot.lane.b32.xlu0 %v5522, 64
        %v5600 = vpop.permute.xlu0 %5599
        %5602 = vst.msk [vmem:[#allocation2 + $0xc] sm:$0x1] %vm5546, %v5600
        %v5603 = vld [vmem:[#allocation2] sm:$0xff]
        %v5604 = vld [vmem:[#allocation2 + $0x8] sm:$0x1f]
        %v5605 = vpack.c.bf16 %v5604, %v5603
        %v5606 = vld [vmem:[%s81] sm:$0xf]
        %v5607 = vld [vmem:[%s81 + $0x4] sm:$0xf]
        %v5608 = vld [vmem:[%s81 + $0x8] sm:$0xf]
        %v5609 = vld [vmem:[%s81 + $0xc] sm:$0xf]
        %v5610 = vld [vmem:[%s81 + $0x10] sm:$0xf]
        %v5611 = vld [vmem:[%s81 + $0x14] sm:$0xf]
        %v5612 = vld [vmem:[%s81 + $0x18] sm:$0xf]
        %v5613 = vld [vmem:[%s81 + $0x1c] sm:$0xf]
        %v5622 = vunpack.c.l.b16 %v5606
        %v5623 = vunpack.c.l.b16 %v5607
        %v5624 = vunpack.c.l.b16 %v5608
        %v5625 = vunpack.c.l.b16 %v5609
        %v5626 = vunpack.c.l.b16 %v5610
        %v5627 = vunpack.c.l.b16 %v5611
        %v5628 = vunpack.c.l.b16 %v5612
        %v5629 = vunpack.c.l.b16 %v5613
        %v5630 = vpack.c.b16 %v5623, %v5622
        %v5631 = vpack.c.b16 %v5625, %v5624
        %v5632 = vpack.c.b16 %v5627, %v5626
        %v5633 = vpack.c.b16 %v5629, %v5628
        %v5639 = vsel %vm2196, %v5605, 0
        %5641 = vmatprep.subr.bf16.mxu0 0
        %5642 = vmatpush1.bf16.msra.mxu0 %v5630
        %5643 = vmatprep.subr.bf16.mxu0 0
        %5644 = vmatpush1.bf16.msra.mxu0 %v5631
        %5645 = vmatprep.subr.bf16.mxu0 0
        %5646 = vmatpush1.bf16.msra.mxu0 %v5632
        %5647 = vmatprep.subr.bf16.mxu0 0
        %5648 = vmatpush1.bf16.msra.mxu0 %v5633
        %5649 = vmatprep.subr.bf16.mxu0 0
        %5650 = vmatpush1.bf16.msra.mxu0 0
        %5651 = vmatprep.subr.bf16.mxu0 0
        %5652 = vmatpush1.bf16.msra.mxu0 0
        %5653 = vmatprep.subr.bf16.mxu0 0
        %5654 = vmatpush1.bf16.msra.mxu0 0
        %5655 = vmatprep.subr.bf16.mxu0 0
        %5656 = vmatpush1.bf16.msra.mxu0 0
        %5657 = vmatprep.subr.bf16.mxu0 0
        %5658 = vmatpush1.bf16.msra.mxu0 0
        %5659 = vmatprep.subr.bf16.mxu0 0
        %5660 = vmatpush1.bf16.msra.mxu0 0
        %5661 = vmatprep.subr.bf16.mxu0 0
        %5662 = vmatpush1.bf16.msra.mxu0 0
        %5663 = vmatprep.subr.bf16.mxu0 0
        %5664 = vmatpush1.bf16.msra.mxu0 0
        %5665 = vmatprep.subr.bf16.mxu0 0
        %5666 = vmatpush1.bf16.msra.mxu0 0
        %5667 = vmatprep.subr.bf16.mxu0 0
        %5668 = vmatpush1.bf16.msra.mxu0 0
        %5669 = vmatprep.subr.bf16.mxu0 0
        %5670 = vmatpush1.bf16.msra.mxu0 0
        %5671 = vmatprep.subr.bf16.mxu0 0
        %5672 = vmatpush1.bf16.msra.mxu0 0
        %5673 = vmatprep.mubr.bf16.mxu0 0
        %5674 = vmatmul.mubr.bf16.gmra.mrb[0].mxu0 %v5639
        %v5675 = vpop.f32.mrb[0].mxu0
        %v5676 = vadd.f32 0.0, %v5675
        %v5677 = vpop.f32.mrb[0].mxu0
        %v5678 = vpop.f32.mrb[0].mxu0
        %v5679 = vadd.f32 0.0, %v5678
        %v5680 = vpop.f32.mrb[0].mxu0
        %5681 = vdwg.mxu0
        %v5682 = vmul.f32 %v5676, %v5676
        %v5683 = vmul.f32 %v5679, %v5679
        %5686 = vrot.lane.b32.xlu0 %v5682, 95
        %v5687 = vpop.permute.xlu0 %5686
        %5688 = vrot.lane.b32.xlu0 %v5683, 95
        %v5689 = vpop.permute.xlu0 %5688
        %v5692 = vadd.f32 %v5682, %v5687
        %v5693 = vadd.f32 %v5683, %v5689
        %v5694 = vadd.f32 %v5692, 1e-12
        %v5695 = vadd.f32 %v5693, 1e-12
        %v5696 = vrsqrt.pop %v5694
        %v5697 = vmul.f32 %v5694, %v5696
        %vm5698 = vcmp.eq.f32.partialorder %v5694, inf
        %v5699 = vsel %vm5698, %v5694, %v5697
        %vm5700 = vcmp.eq.f32.partialorder %v5694, 0.0
        %v5701 = vand.u32 %v5694, 2147483648
        %v5702 = vsel %vm5700, %v5701, %v5699
        %v5703 = vrsqrt.pop %v5695
        %v5704 = vmul.f32 %v5695, %v5703
        %vm5705 = vcmp.eq.f32.partialorder %v5695, inf
        %v5706 = vsel %vm5705, %v5695, %v5704
        %vm5707 = vcmp.eq.f32.partialorder %v5695, 0.0
        %v5708 = vand.u32 %v5695, 2147483648
        %v5709 = vsel %vm5707, %v5708, %v5706
        %vm5710 = vcmask 269312
        %5711 = vst.msk [vmem:[%s1276] sm:$0xff] %vm5710, %v5702
        %vm5712 = vcmask 266240
        %5713 = vst.msk [vmem:[%s1276 + $0x8] sm:$0x1f] %vm5712, %v5709
        %s5714 = sand.u32 %s976, 1
        %s5715 = scalar_lea.sflag [#allocation5], %s5714
        %s5716 = sand.u32 %s976, 1
        %s5717 = smul.addr %s5716, 2
        %s5718 = scalar_lea.vmem [#allocation4], %s5717
        %p5719 = scmp.lt.s32.totalorder %s102, 1
        %s5720 = scalar_select %p5719, %s102, 1
        %s5721 = smul.addr %s5720, 2
        %s5722 = smul.addr %s5721, 8
        %s5723 = scalar_lea.vmem %s85, %s5722
        // Predicated region
        $region185: #{cnns_forward.1} parent=183 // pred_check
          %p5724 = pneg %p986
        $region186: #{cnns_forward.1} parent=183 // pred_check_branch
          %5726 = sbr.rel (%p5724) target = $region188
        $region187: #{cnns_forward.1} parent=183 // pred_region
          %s5728 = ssub.s32 32, 32
          %5729 = vsyncadd %s5715, %s5728
          %s5730 = smul.addr %s102, 2
          %s5731 = smul.addr %s5730, 16
          %s5732 = scalar_lea.hbm %s83, %s5731
          %s5734 = sshll.u32 %s5718, 4
          %s5735 = int_to_ptr.vmem [resolvable:$true] %s5734
          %5737 = dma.vmem_to_hbm [thread:$0]  %s5735, 32, %s5732, %s5715
        $region188: #{cnns_forward.1} parent=183 // pred_fallthru
          _
        // Predicated region
        $region189: #{cnns_forward.1} parent=183 // pred_check
          %p5738 = pneg %p1012
        $region190: #{cnns_forward.1} parent=183 // pred_check_branch
          %5740 = sbr.rel (%p5738) target = $region192
        $region191: #{cnns_forward.1} parent=183 // pred_region
          _
        $region192: #{cnns_forward.1} parent=183 // pred_fallthru
          _
      $region184: #{cnns_forward.1} parent=5 // pred_fallthru
        _
      %p5741 = scmp.le.s32.totalorder 2, %s97
      // Predicated region
      $region193: #{cnns_forward.1} parent=5 // pred_check
        %p5742 = pneg %p5741
      $region194: #{cnns_forward.1} parent=5 // pred_check_branch
        %5744 = sbr.rel (%p5742) target = $region196
      $region195: #{cnns_forward.1} parent=5 // pred_region
        %s5745 = ssub.s32 %s97, 2
        // Predicated region
        $region197: #{cnns_forward.1} parent=195 // pred_check
          %p5746 = pneg %p992
        $region198: #{cnns_forward.1} parent=195 // pred_check_branch
          %5748 = sbr.rel (%p5746) target = $region200
        $region199: #{cnns_forward.1} parent=195 // pred_region
          %s5749 = sand.u32 %s977, 1
          %s5750 = scalar_lea.sflag [#allocation5], %s5749
          %s5751 = sand.u32 %s977, 1
          %s5752 = smul.addr %s5751, 2
          %s5753 = scalar_lea.vmem [#allocation4], %s5752
          %5754 = dma.done %s5750, 32
        $region200: #{cnns_forward.1} parent=195 // pred_fallthru
          _
        // Predicated region
        $region201: #{cnns_forward.1} parent=195 // pred_check
          %p5755 = pneg %p1018
        $region202: #{cnns_forward.1} parent=195 // pred_check_branch
          %5757 = sbr.rel (%p5755) target = $region204
        $region203: #{cnns_forward.1} parent=195 // pred_region
          %p5758 = scmp.lt.s32.totalorder %s103, 1
          %s5759 = scalar_select %p5758, %s103, 1
          %s5760 = smul.addr %s5759, 2
          %s5761 = smul.addr %s5760, 8
          %s5762 = scalar_lea.vmem %s85, %s5761
        $region204: #{cnns_forward.1} parent=195 // pred_fallthru
          _
      $region196: #{cnns_forward.1} parent=5 // pred_fallthru
        _
    $region6: #{cnns_forward.1} parent=1 // loop_footer
      %s101 = sadd.s32 1, %s97
    $region7: #{cnns_forward.1} parent=1 // loop_footer_branch
      %96 = sbr.rel target = $region3
    $region8: #{cnns_forward.1} parent=1 // loop_exit
      _
    %5763 = vsyncpa [#allocation5], 1
    %s5764 = scalar_lea.sflag [#allocation5], 1
    %5765 = vsyncpa %s5764, 1

</llo_original>
